<compile_context>
chip_gen: v7x
topology: tpu7x:2x2x1
jax: 0.10.0
libtpu: 0.0.40
codegen_flags: <defaults>
</compile_context>

<pallas_src>
import functools

import jax
import jax.numpy as jnp
from jax import lax
from jax.experimental import pallas as pl
from jax.experimental.pallas import tpu as pltpu

EPS = 1e-5

# Native MXU path: bf16 operands, f32 accumulation. Set both to jnp.float32 for
# tight (1e-5-level) parity against the f32 reference.
MXU_DTYPE = jnp.bfloat16   # matmul operand dtype (windows + weights)
ACT_DTYPE = jnp.bfloat16   # inter-pass activation storage dtype (y1 / y2 in HBM)


# ----------------------------- Pallas kernels ------------------------------

def _conv_bn_stats_kernel(x_ref, w_ref, sin_ref, tin_ref, y_ref, stats_ref,
                          xpad_ref, xrow_ref, acc_ref, *,
                          H, W, Cin, Cout, fuse_input_bn_relu):
    """One image per grid step: (optional fused BN+ReLU of the input) ->
    3x3/pad1 conv as 3 fused-tap MXU matmuls (K = 3*Cin) over a zero-padded VMEM
    tile -> unnormalized conv output + per-image (sum, sum_sq) BN partials.

    x_ref:     (H, W, Cin)         input image block (NHWC), f32 or bf16
    w_ref:     (3, 3*Cin, Cout)    fused-tap conv weights (per-ky), MXU_DTYPE
    sin_ref:   (1, Cin)            per-channel scale for the fused input BN (conv2)
    tin_ref:   (1, Cin)            per-channel shift for the fused input BN (conv2)
    y_ref:     (H*W, Cout)         unnormalized conv output (ACT_DTYPE)
    stats_ref: (2, Cout)           row0 = sum over H*W, row1 = sum of squares (f32)
    xpad_ref:  (H+2, W+2, Cin) f32 VMEM scratch: zero-padded activation
    xrow_ref:  (H, W, 3*Cin)       VMEM scratch: kx-fused matmul operand (MXU_DTYPE)
    acc_ref:   (H*W, Cout) f32     VMEM accumulator
    """
    x = x_ref[...].astype(jnp.float32)
    if fuse_input_bn_relu:
        # Fold the previous layer's BN(train)+ReLU into this kernel's input read (f32 VPU).
        x = jnp.maximum(x * sin_ref[...] + tin_ref[...], 0.0)

    # Zero only the 1-element border (O(H+W) stores); the interior is overwritten.
    xpad_ref[0:1, :, :] = jnp.zeros((1, W + 2, Cin), jnp.float32)
    xpad_ref[H + 1:H + 2, :, :] = jnp.zeros((1, W + 2, Cin), jnp.float32)
    xpad_ref[:, 0:1, :] = jnp.zeros((H + 2, 1, Cin), jnp.float32)
    xpad_ref[:, W + 1:W + 2, :] = jnp.zeros((H + 2, 1, Cin), jnp.float32)
    xpad_ref[1:H + 1, 1:W + 1, :] = x

    # 3x3 conv as 3 matmuls with K = 3*Cin: per ky, pack the 3 kx-shifted windows
    # along the channel (lane) dim once, then one (H*W, 3*Cin) x (3*Cin, Cout) dot.
    # The bf16 cast happens here, at the matmul operand build.
    for ky in range(3):
        for kx in range(3):
            xrow_ref[:, :, kx * Cin:(kx + 1) * Cin] = (
                xpad_ref[ky:ky + H, kx:kx + W, :].astype(MXU_DTYPE))
        win = xrow_ref[...].reshape(H * W, 3 * Cin)
        part = jnp.dot(win, w_ref[ky], preferred_element_type=jnp.float32)
        if ky == 0:
            acc_ref[...] = part            # explicit VMEM accumulator (no vreg spill)
        else:
            acc_ref[...] += part

    acc = acc_ref[...]
    y_ref[...] = acc.astype(y_ref.dtype)
    # Single-pass BN partials (f32) for the cross-tile reduction.
    stats_ref[0:1, :] = jnp.sum(acc, axis=0, keepdims=True)
    stats_ref[1:2, :] = jnp.sum(acc * acc, axis=0, keepdims=True)


def _bn_relu_avgpool_kernel(x_ref, s_ref, t_ref, o_ref, *, C):
    """Fused BN(train)+ReLU+2x2 average pool over R row-pairs of one image.

    x_ref: (2*R, Wh, 2*C)  2R consecutive rows; the W column-pair folded into lanes
    s_ref: (1, C) f32 BN scale      t_ref: (1, C) f32 BN shift
    o_ref: (R, Wh, C) f32 pooled output rows
    """
    rows, Wh, _ = x_ref.shape
    R = rows // 2
    x = x_ref[...].astype(jnp.float32).reshape(R, 2, Wh, 2 * C)  # leading-dim split: free
    s = s_ref[...]
    t = t_ref[...]
    a = jnp.maximum(x[:, 0, :, :C] * s + t, 0.0)   # even rows, even cols
    b = jnp.maximum(x[:, 0, :, C:] * s + t, 0.0)   # even rows, odd cols
    c = jnp.maximum(x[:, 1, :, :C] * s + t, 0.0)   # odd rows,  even cols
    d = jnp.maximum(x[:, 1, :, C:] * s + t, 0.0)   # odd rows,  odd cols
    o_ref[...] = (a + b + c + d) * 0.25


# ------------------------------ JAX wrappers --------------------------------

def _vmem_capacity_bytes():
    try:
        return int(pltpu.get_tpu_info().vmem_capacity_bytes)
    except Exception:
        return 64 * 1024 * 1024   # conservative fallback: v7x per-TC VMEM


def _vmem_limit_bytes(estimate):
    hi = min((_vmem_capacity_bytes() * 3) // 4, 96 * 1024 * 1024)
    lo = min(16 * 1024 * 1024, hi)
    return int(min(max(4 * estimate, lo), hi))


def _const_block_spec(block_shape, index_map):
    """Single-buffered BlockSpec for grid-invariant inputs (weights, BN scale/shift)."""
    try:
        return pl.BlockSpec(block_shape, index_map, pipeline_mode=pl.Buffered(1))
    except Exception:  # older jax without pipeline_mode: fall back to default buffering
        return pl.BlockSpec(block_shape, index_map)


def _conv_bn_stats_pass(x_nhwc, w_oihw, scale_in, shift_in, fuse_input):
    """3x3/stride1/pad1 conv (no bias). Returns (y_unnormalized (N,H*W,Cout) in
    ACT_DTYPE, per-image BN partials (N,2,Cout) in f32)."""
    N, H, W, Cin = x_nhwc.shape
    Cout = w_oihw.shape[0]
    # (Cout, Cin, ky, kx) -> (ky, kx, Cin, Cout) -> (ky, 3*Cin, Cout): per-ky fused-tap
    # weight matrices, matching the kx-major channel packing of the window operand.
    w_taps = jnp.transpose(w_oihw, (2, 3, 1, 0)).reshape(3, 3 * Cin, Cout)
    w_taps = w_taps.astype(MXU_DTYPE)

    if not fuse_input:
        scale_in = jnp.ones((1, Cin), jnp.float32)
        shift_in = jnp.zeros((1, Cin), jnp.float32)

    kernel = functools.partial(_conv_bn_stats_kernel, H=H, W=W, Cin=Cin,
                               Cout=Cout, fuse_input_bn_relu=fuse_input)

    xb = jnp.dtype(x_nhwc.dtype).itemsize
    yb = jnp.dtype(ACT_DTYPE).itemsize
    mb = jnp.dtype(MXU_DTYPE).itemsize
    est = (2 * H * W * Cin * xb                      # double-buffered input blocks
           + 9 * Cin * Cout * mb                     # resident (single-buffered) weights
           + 2 * (H * W * Cout * yb + 2 * Cout * 4)  # double-buffered outputs
           + (H + 2) * (W + 2) * Cin * 4             # padded activation scratch (f32)
           + H * W * 3 * Cin * mb                    # fused-tap window scratch
           + H * W * Cout * 4                        # f32 accumulator
           + 4 * Cin * 4)                            # scale / shift

    y, stats = pl.pallas_call(
        kernel,
        out_shape=(
            jax.ShapeDtypeStruct((N, H * W, Cout), ACT_DTYPE),
            jax.ShapeDtypeStruct((N, 2, Cout), jnp.float32),
        ),
        grid_spec=pltpu.PrefetchScalarGridSpec(
            num_scalar_prefetch=0,
            grid=(N,),
            in_specs=[
                pl.BlockSpec((None, H, W, Cin), lambda n: (n, 0, 0, 0)),
                _const_block_spec((3, 3 * Cin, Cout), lambda n: (0, 0, 0)),
                _const_block_spec((1, Cin), lambda n: (0, 0)),
                _const_block_spec((1, Cin), lambda n: (0, 0)),
            ],
            out_specs=[
                pl.BlockSpec((None, H * W, Cout), lambda n: (n, 0, 0)),
                pl.BlockSpec((None, 2, Cout), lambda n: (n, 0, 0)),
            ],
            scratch_shapes=[
                pltpu.VMEM((H + 2, W + 2, Cin), jnp.float32),   # zero-padded activation
                pltpu.VMEM((H, W, 3 * Cin), MXU_DTYPE),         # fused kx-window operand
                pltpu.VMEM((H * W, Cout), jnp.float32),         # f32 conv accumulator
            ],
        ),
        compiler_params=pltpu.CompilerParams(
            dimension_semantics=("parallel",),
            vmem_limit_bytes=_vmem_limit_bytes(est),
        ),
    )(x_nhwc, w_taps, scale_in, shift_in)
    return y, stats


def _bn_scale_shift(stats, count, gamma, beta):
    """Reduce per-image (sum, sum_sq) partials -> per-channel (scale, shift)."""
    total = jnp.sum(stats, axis=0)                          # (2, C)
    mean = total[0] / count
    var = jnp.maximum(total[1] / count - mean * mean, 0.0)  # biased variance
    scale = gamma * lax.rsqrt(var + EPS)
    shift = beta - mean * scale
    return (scale.reshape(1, -1).astype(jnp.float32),
            shift.reshape(1, -1).astype(jnp.float32))


def _pick_row_pairs(Hh, Wh, C, in_bytes, target_bytes=2 * 1024 * 1024):
    """Row-pairs per pool grid step: ~target_bytes per input block, dividing Hh."""
    per_pair = 2 * Wh * 2 * C * in_bytes
    R = int(max(1, min(Hh, target_bytes // max(per_pair, 1))))
    while Hh % R:
        R -= 1
    return R


def _bn_relu_avgpool(y_flat, N, H, W, C, scale, shift):
    """Fused BN+ReLU+2x2 avg pool. y_flat: (N, H*W, C) -> (N, H/2, W/2, C) f32."""
    Hh, Wh = H // 2, W // 2
    # Free metadata reshape: fold the W column-pair into the lane dim.
    x = y_flat.reshape(N, H, Wh, 2 * C)
    in_bytes = jnp.dtype(y_flat.dtype).itemsize
    R = _pick_row_pairs(Hh, Wh, C, in_bytes)

    est = (2 * (2 * R) * Wh * 2 * C * in_bytes   # double-buffered input blocks
           + 2 * R * Wh * C * 4                  # double-buffered output blocks
           + 8 * C * 4)                          # scale / shift

    out = pl.pallas_call(
        functools.partial(_bn_relu_avgpool_kernel, C=C),
        out_shape=jax.ShapeDtypeStruct((N, Hh, Wh, C), jnp.float32),
        grid_spec=pltpu.PrefetchScalarGridSpec(
            num_scalar_prefetch=0,
            grid=(N, Hh // R),
            in_specs=[
                pl.BlockSpec((None, 2 * R, Wh, 2 * C), lambda n, j: (n, j, 0, 0)),
                _const_block_spec((1, C), lambda n, j: (0, 0)),
                _const_block_spec((1, C), lambda n, j: (0, 0)),
            ],
            out_specs=pl.BlockSpec((None, R, Wh, C), lambda n, j: (n, j, 0, 0)),
        ),
        compiler_params=pltpu.CompilerParams(
            dimension_semantics=("parallel", "parallel"),
            vmem_limit_bytes=_vmem_limit_bytes(est),
        ),
    )(x, scale, shift)
    return out


def conv_block_forward(x_nchw, params, pool_size=(2, 2), pool_type='avg'):
    """Equivalent of ConvBlock.forward(input, pool_size=(2,2), pool_type='avg')."""
    assert pool_size == (2, 2)
    if pool_type != 'avg':
        # TODO(synk): 'max' and 'avg+max' pool branches not implemented (default path is 'avg').
        raise Exception('Incorrect argument!')

    N, _, H, W = x_nchw.shape
    x = jnp.transpose(x_nchw, (0, 2, 3, 1))                       # NCHW -> NHWC
    C1 = params['w1'].shape[0]
    C2 = params['w2'].shape[0]
    count = N * H * W

    # Pass A: conv1 + BN1 batch-stat partials (unnormalized output stays in HBM, bf16).
    y1, st1 = _conv_bn_stats_pass(x, params['w1'], None, None, fuse_input=False)
    scale1, shift1 = _bn_scale_shift(st1, count, params['g1'], params['b1'])

    # Pass B: BN1+ReLU fused into conv2's input read; conv2 + BN2 partials.
    y2, st2 = _conv_bn_stats_pass(y1.reshape(N, H, W, C1), params['w2'],
                                  scale1, shift1, fuse_input=True)
    scale2, shift2 = _bn_scale_shift(st2, count, params['g2'], params['b2'])

    # Pass C: BN2+ReLU+2x2 average pool fused in one kernel.
    out_nhwc = _bn_relu_avgpool(y2, N, H, W, C2, scale2, shift2)
    return jnp.transpose(out_nhwc, (0, 3, 1, 2))                  # NHWC -> NCHW


# ------------------------- deterministic parameters -------------------------

def init_params(key, in_channels, out_channels):
    k1, k2 = jax.random.split(key)

    def xavier_uniform(k, cout, cin):
        fan_in, fan_out = cin * 9, cout * 9
        bound = (6.0 / (fan_in + fan_out)) ** 0.5
        return jax.random.uniform(k, (cout, cin, 3, 3), jnp.float32, -bound, bound)

    return dict(
        w1=xavier_uniform(k1, out_channels, in_channels),
        w2=xavier_uniform(k2, out_channels, out_channels),
        g1=jnp.ones((out_channels,), jnp.float32),
        b1=jnp.zeros((out_channels,), jnp.float32),
        g2=jnp.ones((out_channels,), jnp.float32),
        b2=jnp.zeros((out_channels,), jnp.float32),
    )


# ------------------------------ plain-JAX ref --------------------------------

def reference_forward(x_nchw, params):
    def conv(x, w):
        return lax.conv_general_dilated(
            x, w, window_strides=(1, 1), padding=((1, 1), (1, 1)),
            dimension_numbers=('NCHW', 'OIHW', 'NCHW'))

    def bn_relu(x, g, b):
        mean = jnp.mean(x, axis=(0, 2, 3), keepdims=True)
        var = jnp.mean(jnp.square(x - mean), axis=(0, 2, 3), keepdims=True)
        xh = (x - mean) * lax.rsqrt(var + EPS)
        return jnp.maximum(xh * g.reshape(1, -1, 1, 1) + b.reshape(1, -1, 1, 1), 0.0)

    x = bn_relu(conv(x_nchw, params['w1']), params['g1'], params['b1'])
    x = bn_relu(conv(x, params['w2']), params['g2'], params['b2'])
    N, C, H, W = x.shape
    return x.reshape(N, C, H // 2, 2, W // 2, 2).mean(axis=(3, 5))


# ---------------------------------- main -------------------------------------

if __name__ == "__main__":
    key = jax.random.PRNGKey(0)
    kx_, kp = jax.random.split(key)

    N, Cin, Cout, H, W = 2, 4, 8, 16, 16
    x = jax.random.normal(kx_, (N, Cin, H, W), dtype=jnp.float32)
    params = init_params(kp, Cin, Cout)

    fwd = jax.jit(conv_block_forward)
    out = jax.block_until_ready(fwd(x, params))

    assert out.shape == (N, Cout, H // 2, W // 2), out.shape
    ref = reference_forward(x, params)
    max_err = float(jnp.max(jnp.abs(out - ref)))
    # bf16 MXU operands + bf16 inter-pass activations vs the f32 reference: standard
    # bf16 comparison tolerance. With MXU_DTYPE=ACT_DTYPE=f32 this matches to ~1e-5.
    low_precision = (MXU_DTYPE == jnp.bfloat16) or (ACT_DTYPE == jnp.bfloat16)
    tol = 5e-2 if low_precision else 1e-3
    assert jnp.allclose(out, ref, atol=tol, rtol=tol), f"max abs err {max_err}"

    print("KERNEL_OK")
</pallas_src>

<mosaic_0001>
module attributes {stable_mosaic.version = 11 : i64} {
  func.func @_conv_bn_stats_kernel(%arg0: i32, %arg1: memref<1x16x16x4xf32, #tpu.memory_space<vmem>>, %arg2: memref<3x12x8xbf16, #tpu.memory_space<vmem>>, %arg3: memref<1x4xf32, #tpu.memory_space<vmem>>, %arg4: memref<1x4xf32, #tpu.memory_space<vmem>>, %arg5: memref<1x256x8xbf16, #tpu.memory_space<vmem>>, %arg6: memref<1x2x8xf32, #tpu.memory_space<vmem>>, %arg7: memref<18x18x4xf32, #tpu.memory_space<vmem>>, %arg8: memref<16x16x12xbf16, #tpu.memory_space<vmem>>, %arg9: memref<256x8xf32, #tpu.memory_space<vmem>>) attributes {dimension_semantics = [#tpu.dimension_semantics<parallel>], iteration_bounds = array<i64: 2>, scalar_prefetch = 0 : i64, scratch_operands = 3 : i64, tpu.core_type = #tpu.core_type<tc>, window_params = [{transform_indices = @transform_0, window_bounds = array<i64: 1, 16, 16, 4>}, {pipeline_mode = #tpu.pipeline_mode<synchronous>, transform_indices = @transform_1, window_bounds = array<i64: 3, 12, 8>}, {pipeline_mode = #tpu.pipeline_mode<synchronous>, transform_indices = @transform_2, window_bounds = array<i64: 1, 4>}, {pipeline_mode = #tpu.pipeline_mode<synchronous>, transform_indices = @transform_3, window_bounds = array<i64: 1, 4>}, {transform_indices = @transform_4, window_bounds = array<i64: 1, 256, 8>}, {transform_indices = @transform_5, window_bounds = array<i64: 1, 2, 8>}]} {
    %c0 = arith.constant 0 : index
    %c0_0 = arith.constant 0 : index
    %c0_1 = arith.constant 0 : index
    %c0_2 = arith.constant 0 : index
    %0 = vector.load %arg1[%c0, %c0_0, %c0_1, %c0_2] : memref<1x16x16x4xf32, #tpu.memory_space<vmem>>, vector<1x16x16x4xf32>
    %1 = vector.shape_cast %0 : vector<1x16x16x4xf32> to vector<16x16x4xf32>
    %cst = arith.constant 0.000000e+00 : f32
    %2 = vector.broadcast %cst : f32 to vector<1x18x4xf32>
    %c0_3 = arith.constant 0 : index
    %c0_4 = arith.constant 0 : index
    %c0_5 = arith.constant 0 : index
    %3 = vector.load %arg7[%c0_3, %c0_4, %c0_5] : memref<18x18x4xf32, #tpu.memory_space<vmem>>, vector<1x18x4xf32>
    tpu.vector_store %arg7[%c0_3, %c0_4, %c0_5], %2 {strides = array<i32>} : memref<18x18x4xf32, #tpu.memory_space<vmem>>, vector<1x18x4xf32>,
    %cst_6 = arith.constant 0.000000e+00 : f32
    %4 = vector.broadcast %cst_6 : f32 to vector<1x18x4xf32>
    %c17 = arith.constant 17 : index
    %c0_7 = arith.constant 0 : index
    %c0_8 = arith.constant 0 : index
    %5 = vector.load %arg7[%c17, %c0_7, %c0_8] : memref<18x18x4xf32, #tpu.memory_space<vmem>>, vector<1x18x4xf32>
    tpu.vector_store %arg7[%c17, %c0_7, %c0_8], %4 {strides = array<i32>} : memref<18x18x4xf32, #tpu.memory_space<vmem>>, vector<1x18x4xf32>,
    %cst_9 = arith.constant 0.000000e+00 : f32
    %6 = vector.broadcast %cst_9 : f32 to vector<18x1x4xf32>
    %c0_10 = arith.constant 0 : index
    %c0_11 = arith.constant 0 : index
    %c0_12 = arith.constant 0 : index
    %7 = vector.load %arg7[%c0_10, %c0_11, %c0_12] : memref<18x18x4xf32, #tpu.memory_space<vmem>>, vector<18x1x4xf32>
    tpu.vector_store %arg7[%c0_10, %c0_11, %c0_12], %6 {strides = array<i32>} : memref<18x18x4xf32, #tpu.memory_space<vmem>>, vector<18x1x4xf32>,
    %cst_13 = arith.constant 0.000000e+00 : f32
    %8 = vector.broadcast %cst_13 : f32 to vector<18x1x4xf32>
    %c0_14 = arith.constant 0 : index
    %c17_15 = arith.constant 17 : index
    %c0_16 = arith.constant 0 : index
    %9 = vector.load %arg7[%c0_14, %c17_15, %c0_16] : memref<18x18x4xf32, #tpu.memory_space<vmem>>, vector<18x1x4xf32>
    tpu.vector_store %arg7[%c0_14, %c17_15, %c0_16], %8 {strides = array<i32>} : memref<18x18x4xf32, #tpu.memory_space<vmem>>, vector<18x1x4xf32>,
    %c1 = arith.constant 1 : index
    %c1_17 = arith.constant 1 : index
    %c0_18 = arith.constant 0 : index
    %10 = vector.load %arg7[%c1, %c1_17, %c0_18] : memref<18x18x4xf32, #tpu.memory_space<vmem>>, vector<16x16x4xf32>
    tpu.vector_store %arg7[%c1, %c1_17, %c0_18], %1 {strides = array<i32>} : memref<18x18x4xf32, #tpu.memory_space<vmem>>, vector<16x16x4xf32>,
    %c0_19 = arith.constant 0 : index
    %c0_20 = arith.constant 0 : index
    %c0_21 = arith.constant 0 : index
    %11 = vector.load %arg7[%c0_19, %c0_20, %c0_21] : memref<18x18x4xf32, #tpu.memory_space<vmem>>, vector<16x16x4xf32>
    %12 = arith.truncf %11 : vector<16x16x4xf32> to vector<16x16x4xbf16>
    %c0_22 = arith.constant 0 : index
    %c0_23 = arith.constant 0 : index
    %c0_24 = arith.constant 0 : index
    %13 = vector.load %arg8[%c0_22, %c0_23, %c0_24] : memref<16x16x12xbf16, #tpu.memory_space<vmem>>, vector<16x16x4xbf16>
    tpu.vector_store %arg8[%c0_22, %c0_23, %c0_24], %12 {strides = array<i32>} : memref<16x16x12xbf16, #tpu.memory_space<vmem>>, vector<16x16x4xbf16>,
    %c0_25 = arith.constant 0 : index
    %c1_26 = arith.constant 1 : index
    %c0_27 = arith.constant 0 : index
    %14 = vector.load %arg7[%c0_25, %c1_26, %c0_27] : memref<18x18x4xf32, #tpu.memory_space<vmem>>, vector<16x16x4xf32>
    %15 = arith.truncf %14 : vector<16x16x4xf32> to vector<16x16x4xbf16>
    %c0_28 = arith.constant 0 : index
    %c0_29 = arith.constant 0 : index
    %c4 = arith.constant 4 : index
    %16 = vector.load %arg8[%c0_28, %c0_29, %c4] : memref<16x16x12xbf16, #tpu.memory_space<vmem>>, vector<16x16x4xbf16>
    tpu.vector_store %arg8[%c0_28, %c0_29, %c4], %15 {strides = array<i32>} : memref<16x16x12xbf16, #tpu.memory_space<vmem>>, vector<16x16x4xbf16>,
    %c0_30 = arith.constant 0 : index
    %c2 = arith.constant 2 : index
    %c0_31 = arith.constant 0 : index
    %17 = vector.load %arg7[%c0_30, %c2, %c0_31] : memref<18x18x4xf32, #tpu.memory_space<vmem>>, vector<16x16x4xf32>
    %18 = arith.truncf %17 : vector<16x16x4xf32> to vector<16x16x4xbf16>
    %c0_32 = arith.constant 0 : index
    %c0_33 = arith.constant 0 : index
    %c8 = arith.constant 8 : index
    %19 = vector.load %arg8[%c0_32, %c0_33, %c8] : memref<16x16x12xbf16, #tpu.memory_space<vmem>>, vector<16x16x4xbf16>
    tpu.vector_store %arg8[%c0_32, %c0_33, %c8], %18 {strides = array<i32>} : memref<16x16x12xbf16, #tpu.memory_space<vmem>>, vector<16x16x4xbf16>,
    %c0_34 = arith.constant 0 : index
    %c0_35 = arith.constant 0 : index
    %c0_36 = arith.constant 0 : index
    %20 = vector.load %arg8[%c0_34, %c0_35, %c0_36] : memref<16x16x12xbf16, #tpu.memory_space<vmem>>, vector<16x16x12xbf16>
    %21 = vector.shape_cast %20 : vector<16x16x12xbf16> to vector<256x12xbf16>
    %c0_37 = arith.constant 0 : index
    %c0_38 = arith.constant 0 : index
    %c0_39 = arith.constant 0 : index
    %22 = vector.load %arg2[%c0_37, %c0_38, %c0_39] : memref<3x12x8xbf16, #tpu.memory_space<vmem>>, vector<1x12x8xbf16>
    %23 = vector.shape_cast %22 : vector<1x12x8xbf16> to vector<12x8xbf16>
    %cst_40 = arith.constant dense<0.000000e+00> : vector<256x8xf32>
    %24 = tpu.matmul %21, %23, %cst_40 {dimension_numbers = #tpu.dot_dimension_numbers<[1], [0], [0], [1], [0, 0, 1, 1], [], []>} : vector<256x12xbf16>, vector<12x8xbf16>, vector<256x8xf32> -> vector<256x8xf32>
    %c0_41 = arith.constant 0 : index
    %c0_42 = arith.constant 0 : index
    %25 = vector.load %arg9[%c0_41, %c0_42] : memref<256x8xf32, #tpu.memory_space<vmem>>, vector<256x8xf32>
    tpu.vector_store %arg9[%c0_41, %c0_42], %24 {strides = array<i32>} : memref<256x8xf32, #tpu.memory_space<vmem>>, vector<256x8xf32>,
    %c1_43 = arith.constant 1 : index
    %c0_44 = arith.constant 0 : index
    %c0_45 = arith.constant 0 : index
    %26 = vector.load %arg7[%c1_43, %c0_44, %c0_45] : memref<18x18x4xf32, #tpu.memory_space<vmem>>, vector<16x16x4xf32>
    %27 = arith.truncf %26 : vector<16x16x4xf32> to vector<16x16x4xbf16>
    %c0_46 = arith.constant 0 : index
    %c0_47 = arith.constant 0 : index
    %c0_48 = arith.constant 0 : index
    %28 = vector.load %arg8[%c0_46, %c0_47, %c0_48] : memref<16x16x12xbf16, #tpu.memory_space<vmem>>, vector<16x16x4xbf16>
    tpu.vector_store %arg8[%c0_46, %c0_47, %c0_48], %27 {strides = array<i32>} : memref<16x16x12xbf16, #tpu.memory_space<vmem>>, vector<16x16x4xbf16>,
    %c1_49 = arith.constant 1 : index
    %c1_50 = arith.constant 1 : index
    %c0_51 = arith.constant 0 : index
    %29 = vector.load %arg7[%c1_49, %c1_50, %c0_51] : memref<18x18x4xf32, #tpu.memory_space<vmem>>, vector<16x16x4xf32>
    %30 = arith.truncf %29 : vector<16x16x4xf32> to vector<16x16x4xbf16>
    %c0_52 = arith.constant 0 : index
    %c0_53 = arith.constant 0 : index
    %c4_54 = arith.constant 4 : index
    %31 = vector.load %arg8[%c0_52, %c0_53, %c4_54] : memref<16x16x12xbf16, #tpu.memory_space<vmem>>, vector<16x16x4xbf16>
    tpu.vector_store %arg8[%c0_52, %c0_53, %c4_54], %30 {strides = array<i32>} : memref<16x16x12xbf16, #tpu.memory_space<vmem>>, vector<16x16x4xbf16>,
    %c1_55 = arith.constant 1 : index
    %c2_56 = arith.constant 2 : index
    %c0_57 = arith.constant 0 : index
    %32 = vector.load %arg7[%c1_55, %c2_56, %c0_57] : memref<18x18x4xf32, #tpu.memory_space<vmem>>, vector<16x16x4xf32>
    %33 = arith.truncf %32 : vector<16x16x4xf32> to vector<16x16x4xbf16>
    %c0_58 = arith.constant 0 : index
    %c0_59 = arith.constant 0 : index
    %c8_60 = arith.constant 8 : index
    %34 = vector.load %arg8[%c0_58, %c0_59, %c8_60] : memref<16x16x12xbf16, #tpu.memory_space<vmem>>, vector<16x16x4xbf16>
    tpu.vector_store %arg8[%c0_58, %c0_59, %c8_60], %33 {strides = array<i32>} : memref<16x16x12xbf16, #tpu.memory_space<vmem>>, vector<16x16x4xbf16>,
    %c0_61 = arith.constant 0 : index
    %c0_62 = arith.constant 0 : index
    %c0_63 = arith.constant 0 : index
    %35 = vector.load %arg8[%c0_61, %c0_62, %c0_63] : memref<16x16x12xbf16, #tpu.memory_space<vmem>>, vector<16x16x12xbf16>
    %36 = vector.shape_cast %35 : vector<16x16x12xbf16> to vector<256x12xbf16>
    %c1_64 = arith.constant 1 : index
    %c0_65 = arith.constant 0 : index
    %c0_66 = arith.constant 0 : index
    %37 = vector.load %arg2[%c1_64, %c0_65, %c0_66] : memref<3x12x8xbf16, #tpu.memory_space<vmem>>, vector<1x12x8xbf16>
    %38 = vector.shape_cast %37 : vector<1x12x8xbf16> to vector<12x8xbf16>
    %cst_67 = arith.constant dense<0.000000e+00> : vector<256x8xf32>
    %39 = tpu.matmul %36, %38, %cst_67 {dimension_numbers = #tpu.dot_dimension_numbers<[1], [0], [0], [1], [0, 0, 1, 1], [], []>} : vector<256x12xbf16>, vector<12x8xbf16>, vector<256x8xf32> -> vector<256x8xf32>
    %c0_68 = arith.constant 0 : index
    %c0_69 = arith.constant 0 : index
    %40 = vector.load %arg9[%c0_68, %c0_69] : memref<256x8xf32, #tpu.memory_space<vmem>>, vector<256x8xf32>
    %41 = arith.addf %40, %39 : vector<256x8xf32>
    %c0_70 = arith.constant 0 : index
    %c0_71 = arith.constant 0 : index
    %42 = vector.load %arg9[%c0_70, %c0_71] : memref<256x8xf32, #tpu.memory_space<vmem>>, vector<256x8xf32>
    tpu.vector_store %arg9[%c0_70, %c0_71], %41 {strides = array<i32>} : memref<256x8xf32, #tpu.memory_space<vmem>>, vector<256x8xf32>,
    %c2_72 = arith.constant 2 : index
    %c0_73 = arith.constant 0 : index
    %c0_74 = arith.constant 0 : index
    %43 = vector.load %arg7[%c2_72, %c0_73, %c0_74] : memref<18x18x4xf32, #tpu.memory_space<vmem>>, vector<16x16x4xf32>
    %44 = arith.truncf %43 : vector<16x16x4xf32> to vector<16x16x4xbf16>
    %c0_75 = arith.constant 0 : index
    %c0_76 = arith.constant 0 : index
    %c0_77 = arith.constant 0 : index
    %45 = vector.load %arg8[%c0_75, %c0_76, %c0_77] : memref<16x16x12xbf16, #tpu.memory_space<vmem>>, vector<16x16x4xbf16>
    tpu.vector_store %arg8[%c0_75, %c0_76, %c0_77], %44 {strides = array<i32>} : memref<16x16x12xbf16, #tpu.memory_space<vmem>>, vector<16x16x4xbf16>,
    %c2_78 = arith.constant 2 : index
    %c1_79 = arith.constant 1 : index
    %c0_80 = arith.constant 0 : index
    %46 = vector.load %arg7[%c2_78, %c1_79, %c0_80] : memref<18x18x4xf32, #tpu.memory_space<vmem>>, vector<16x16x4xf32>
    %47 = arith.truncf %46 : vector<16x16x4xf32> to vector<16x16x4xbf16>
    %c0_81 = arith.constant 0 : index
    %c0_82 = arith.constant 0 : index
    %c4_83 = arith.constant 4 : index
    %48 = vector.load %arg8[%c0_81, %c0_82, %c4_83] : memref<16x16x12xbf16, #tpu.memory_space<vmem>>, vector<16x16x4xbf16>
    tpu.vector_store %arg8[%c0_81, %c0_82, %c4_83], %47 {strides = array<i32>} : memref<16x16x12xbf16, #tpu.memory_space<vmem>>, vector<16x16x4xbf16>,
    %c2_84 = arith.constant 2 : index
    %c2_85 = arith.constant 2 : index
    %c0_86 = arith.constant 0 : index
    %49 = vector.load %arg7[%c2_84, %c2_85, %c0_86] : memref<18x18x4xf32, #tpu.memory_space<vmem>>, vector<16x16x4xf32>
    %50 = arith.truncf %49 : vector<16x16x4xf32> to vector<16x16x4xbf16>
    %c0_87 = arith.constant 0 : index
    %c0_88 = arith.constant 0 : index
    %c8_89 = arith.constant 8 : index
    %51 = vector.load %arg8[%c0_87, %c0_88, %c8_89] : memref<16x16x12xbf16, #tpu.memory_space<vmem>>, vector<16x16x4xbf16>
    tpu.vector_store %arg8[%c0_87, %c0_88, %c8_89], %50 {strides = array<i32>} : memref<16x16x12xbf16, #tpu.memory_space<vmem>>, vector<16x16x4xbf16>,
    %c0_90 = arith.constant 0 : index
    %c0_91 = arith.constant 0 : index
    %c0_92 = arith.constant 0 : index
    %52 = vector.load %arg8[%c0_90, %c0_91, %c0_92] : memref<16x16x12xbf16, #tpu.memory_space<vmem>>, vector<16x16x12xbf16>
    %53 = vector.shape_cast %52 : vector<16x16x12xbf16> to vector<256x12xbf16>
    %c2_93 = arith.constant 2 : index
    %c0_94 = arith.constant 0 : index
    %c0_95 = arith.constant 0 : index
    %54 = vector.load %arg2[%c2_93, %c0_94, %c0_95] : memref<3x12x8xbf16, #tpu.memory_space<vmem>>, vector<1x12x8xbf16>
    %55 = vector.shape_cast %54 : vector<1x12x8xbf16> to vector<12x8xbf16>
    %cst_96 = arith.constant dense<0.000000e+00> : vector<256x8xf32>
    %56 = tpu.matmul %53, %55, %cst_96 {dimension_numbers = #tpu.dot_dimension_numbers<[1], [0], [0], [1], [0, 0, 1, 1], [], []>} : vector<256x12xbf16>, vector<12x8xbf16>, vector<256x8xf32> -> vector<256x8xf32>
    %c0_97 = arith.constant 0 : index
    %c0_98 = arith.constant 0 : index
    %57 = vector.load %arg9[%c0_97, %c0_98] : memref<256x8xf32, #tpu.memory_space<vmem>>, vector<256x8xf32>
    %58 = arith.addf %57, %56 : vector<256x8xf32>
    %c0_99 = arith.constant 0 : index
    %c0_100 = arith.constant 0 : index
    %59 = vector.load %arg9[%c0_99, %c0_100] : memref<256x8xf32, #tpu.memory_space<vmem>>, vector<256x8xf32>
    tpu.vector_store %arg9[%c0_99, %c0_100], %58 {strides = array<i32>} : memref<256x8xf32, #tpu.memory_space<vmem>>, vector<256x8xf32>,
    %c0_101 = arith.constant 0 : index
    %c0_102 = arith.constant 0 : index
    %60 = vector.load %arg9[%c0_101, %c0_102] : memref<256x8xf32, #tpu.memory_space<vmem>>, vector<256x8xf32>
    %61 = arith.truncf %60 : vector<256x8xf32> to vector<256x8xbf16>
    %c0_103 = arith.constant 0 : index
    %c0_104 = arith.constant 0 : index
    %c0_105 = arith.constant 0 : index
    %62 = vector.load %arg5[%c0_103, %c0_104, %c0_105] : memref<1x256x8xbf16, #tpu.memory_space<vmem>>, vector<1x256x8xbf16>
    %63 = vector.shape_cast %62 : vector<1x256x8xbf16> to vector<256x8xbf16>
    %64 = vector.shape_cast %61 : vector<256x8xbf16> to vector<1x256x8xbf16>
    tpu.vector_store %arg5[%c0_103, %c0_104, %c0_105], %64 {strides = array<i32>} : memref<1x256x8xbf16, #tpu.memory_space<vmem>>, vector<1x256x8xbf16>,
    %cst_106 = arith.constant dense<0.000000e+00> : vector<8xf32>
    %65 = vector.multi_reduction <add>, %60, %cst_106 [0] : vector<256x8xf32> to vector<8xf32>
    %66 = vector.shape_cast %65 : vector<8xf32> to vector<1x8xf32>
    %c0_107 = arith.constant 0 : index
    %c0_108 = arith.constant 0 : index
    %c0_109 = arith.constant 0 : index
    %67 = vector.load %arg6[%c0_107, %c0_108, %c0_109] : memref<1x2x8xf32, #tpu.memory_space<vmem>>, vector<1x1x8xf32>
    %68 = vector.shape_cast %67 : vector<1x1x8xf32> to vector<1x8xf32>
    %69 = vector.shape_cast %66 : vector<1x8xf32> to vector<1x1x8xf32>
    tpu.vector_store %arg6[%c0_107, %c0_108, %c0_109], %69 {strides = array<i32>} : memref<1x2x8xf32, #tpu.memory_space<vmem>>, vector<1x1x8xf32>,
    %70 = arith.mulf %60, %60 : vector<256x8xf32>
    %cst_110 = arith.constant dense<0.000000e+00> : vector<8xf32>
    %71 = vector.multi_reduction <add>, %70, %cst_110 [0] : vector<256x8xf32> to vector<8xf32>
    %72 = vector.shape_cast %71 : vector<8xf32> to vector<1x8xf32>
    %c0_111 = arith.constant 0 : index
    %c1_112 = arith.constant 1 : index
    %c0_113 = arith.constant 0 : index
    %73 = vector.load %arg6[%c0_111, %c1_112, %c0_113] : memref<1x2x8xf32, #tpu.memory_space<vmem>>, vector<1x1x8xf32>
    %74 = vector.shape_cast %73 : vector<1x1x8xf32> to vector<1x8xf32>
    %75 = vector.shape_cast %72 : vector<1x8xf32> to vector<1x1x8xf32>
    tpu.vector_store %arg6[%c0_111, %c1_112, %c0_113], %75 {strides = array<i32>} : memref<1x2x8xf32, #tpu.memory_space<vmem>>, vector<1x1x8xf32>,
    return
  }
  func.func @transform_0(%arg0: i32) -> (i32, i32, i32, i32) {
    %c0_i32 = arith.constant 0 : i32
    %c0_i32_0 = arith.constant 0 : i32
    %c0_i32_1 = arith.constant 0 : i32
    %c0_i32_2 = arith.constant 0 : i32
    return %arg0, %c0_i32, %c0_i32_0, %c0_i32_1 : i32, i32, i32, i32
  }
  func.func @transform_1(%arg0: i32) -> (i32, i32, i32) {
    %c0_i32 = arith.constant 0 : i32
    %c0_i32_0 = arith.constant 0 : i32
    %c0_i32_1 = arith.constant 0 : i32
    %c0_i32_2 = arith.constant 0 : i32
    return %c0_i32, %c0_i32_0, %c0_i32_1 : i32, i32, i32
  }
  func.func @transform_2(%arg0: i32) -> (i32, i32) {
    %c0_i32 = arith.constant 0 : i32
    %c0_i32_0 = arith.constant 0 : i32
    %c0_i32_1 = arith.constant 0 : i32
    return %c0_i32, %c0_i32_0 : i32, i32
  }
  func.func @transform_3(%arg0: i32) -> (i32, i32) {
    %c0_i32 = arith.constant 0 : i32
    %c0_i32_0 = arith.constant 0 : i32
    %c0_i32_1 = arith.constant 0 : i32
    return %c0_i32, %c0_i32_0 : i32, i32
  }
  func.func @transform_4(%arg0: i32) -> (i32, i32, i32) {
    %c0_i32 = arith.constant 0 : i32
    %c0_i32_0 = arith.constant 0 : i32
    %c0_i32_1 = arith.constant 0 : i32
    return %arg0, %c0_i32, %c0_i32_0 : i32, i32, i32
  }
  func.func @transform_5(%arg0: i32) -> (i32, i32, i32) {
    %c0_i32 = arith.constant 0 : i32
    %c0_i32_0 = arith.constant 0 : i32
    %c0_i32_1 = arith.constant 0 : i32
    return %arg0, %c0_i32, %c0_i32_0 : i32, i32, i32
  }
}

module attributes {stable_mosaic.version = 11 : i64} {
  func.func @_bn_relu_avgpool_kernel(%arg0: i32, %arg1: i32, %arg2: memref<1x16x8x16xbf16, #tpu.memory_space<vmem>>, %arg3: memref<1x8xf32, #tpu.memory_space<vmem>>, %arg4: memref<1x8xf32, #tpu.memory_space<vmem>>, %arg5: memref<1x8x8x8xf32, #tpu.memory_space<vmem>>) attributes {dimension_semantics = [#tpu.dimension_semantics<parallel>, #tpu.dimension_semantics<parallel>], iteration_bounds = array<i64: 2, 1>, scalar_prefetch = 0 : i64, scratch_operands = 0 : i64, tpu.core_type = #tpu.core_type<tc>, window_params = [{transform_indices = @transform_0, window_bounds = array<i64: 1, 16, 8, 16>}, {pipeline_mode = #tpu.pipeline_mode<synchronous>, transform_indices = @transform_1, window_bounds = array<i64: 1, 8>}, {pipeline_mode = #tpu.pipeline_mode<synchronous>, transform_indices = @transform_2, window_bounds = array<i64: 1, 8>}, {transform_indices = @transform_3, window_bounds = array<i64: 1, 8, 8, 8>}]} {
    %c0 = arith.constant 0 : index
    %c0_0 = arith.constant 0 : index
    %c0_1 = arith.constant 0 : index
    %c0_2 = arith.constant 0 : index
    %0 = vector.load %arg2[%c0, %c0_0, %c0_1, %c0_2] : memref<1x16x8x16xbf16, #tpu.memory_space<vmem>>, vector<1x16x8x16xbf16>
    %1 = vector.shape_cast %0 : vector<1x16x8x16xbf16> to vector<16x8x16xbf16>
    %2 = arith.extf %1 : vector<16x8x16xbf16> to vector<16x8x16xf32>
    %3 = vector.shape_cast %2 : vector<16x8x16xf32> to vector<8x2x8x16xf32>
    %c0_3 = arith.constant 0 : index
    %c0_4 = arith.constant 0 : index
    %4 = vector.load %arg3[%c0_3, %c0_4] : memref<1x8xf32, #tpu.memory_space<vmem>>, vector<1x8xf32>
    %c0_5 = arith.constant 0 : index
    %c0_6 = arith.constant 0 : index
    %5 = vector.load %arg4[%c0_5, %c0_6] : memref<1x8xf32, #tpu.memory_space<vmem>>, vector<1x8xf32>
    %6 = vector.extract_strided_slice %3 {offsets = [0, 0, 0, 0], sizes = [8, 1, 8, 8], strides = [1, 1, 1, 1]} : vector<8x2x8x16xf32> to vector<8x1x8x8xf32>
    %7 = vector.shape_cast %6 : vector<8x1x8x8xf32> to vector<8x8x8xf32>
    %8 = vector.shape_cast %4 : vector<1x8xf32> to vector<1x1x8xf32>
    %9 = vector.broadcast %8 : vector<1x1x8xf32> to vector<8x8x8xf32>
    %10 = arith.mulf %7, %9 : vector<8x8x8xf32>
    %11 = vector.shape_cast %5 : vector<1x8xf32> to vector<1x1x8xf32>
    %12 = vector.broadcast %11 : vector<1x1x8xf32> to vector<8x8x8xf32>
    %13 = arith.addf %10, %12 : vector<8x8x8xf32>
    %cst = arith.constant 0.000000e+00 : f32
    %14 = vector.broadcast %cst : f32 to vector<8x8x8xf32>
    %15 = arith.maximumf %13, %14 : vector<8x8x8xf32>
    %16 = vector.extract_strided_slice %3 {offsets = [0, 0, 0, 8], sizes = [8, 1, 8, 8], strides = [1, 1, 1, 1]} : vector<8x2x8x16xf32> to vector<8x1x8x8xf32>
    %17 = vector.shape_cast %16 : vector<8x1x8x8xf32> to vector<8x8x8xf32>
    %18 = vector.shape_cast %4 : vector<1x8xf32> to vector<1x1x8xf32>
    %19 = vector.broadcast %18 : vector<1x1x8xf32> to vector<8x8x8xf32>
    %20 = arith.mulf %17, %19 : vector<8x8x8xf32>
    %21 = vector.shape_cast %5 : vector<1x8xf32> to vector<1x1x8xf32>
    %22 = vector.broadcast %21 : vector<1x1x8xf32> to vector<8x8x8xf32>
    %23 = arith.addf %20, %22 : vector<8x8x8xf32>
    %cst_7 = arith.constant 0.000000e+00 : f32
    %24 = vector.broadcast %cst_7 : f32 to vector<8x8x8xf32>
    %25 = arith.maximumf %23, %24 : vector<8x8x8xf32>
    %26 = vector.extract_strided_slice %3 {offsets = [0, 1, 0, 0], sizes = [8, 1, 8, 8], strides = [1, 1, 1, 1]} : vector<8x2x8x16xf32> to vector<8x1x8x8xf32>
    %27 = vector.shape_cast %26 : vector<8x1x8x8xf32> to vector<8x8x8xf32>
    %28 = vector.shape_cast %4 : vector<1x8xf32> to vector<1x1x8xf32>
    %29 = vector.broadcast %28 : vector<1x1x8xf32> to vector<8x8x8xf32>
    %30 = arith.mulf %27, %29 : vector<8x8x8xf32>
    %31 = vector.shape_cast %5 : vector<1x8xf32> to vector<1x1x8xf32>
    %32 = vector.broadcast %31 : vector<1x1x8xf32> to vector<8x8x8xf32>
    %33 = arith.addf %30, %32 : vector<8x8x8xf32>
    %cst_8 = arith.constant 0.000000e+00 : f32
    %34 = vector.broadcast %cst_8 : f32 to vector<8x8x8xf32>
    %35 = arith.maximumf %33, %34 : vector<8x8x8xf32>
    %36 = vector.extract_strided_slice %3 {offsets = [0, 1, 0, 8], sizes = [8, 1, 8, 8], strides = [1, 1, 1, 1]} : vector<8x2x8x16xf32> to vector<8x1x8x8xf32>
    %37 = vector.shape_cast %36 : vector<8x1x8x8xf32> to vector<8x8x8xf32>
    %38 = vector.shape_cast %4 : vector<1x8xf32> to vector<1x1x8xf32>
    %39 = vector.broadcast %38 : vector<1x1x8xf32> to vector<8x8x8xf32>
    %40 = arith.mulf %37, %39 : vector<8x8x8xf32>
    %41 = vector.shape_cast %5 : vector<1x8xf32> to vector<1x1x8xf32>
    %42 = vector.broadcast %41 : vector<1x1x8xf32> to vector<8x8x8xf32>
    %43 = arith.addf %40, %42 : vector<8x8x8xf32>
    %cst_9 = arith.constant 0.000000e+00 : f32
    %44 = vector.broadcast %cst_9 : f32 to vector<8x8x8xf32>
    %45 = arith.maximumf %43, %44 : vector<8x8x8xf32>
    %46 = arith.addf %15, %25 : vector<8x8x8xf32>
    %47 = arith.addf %46, %35 : vector<8x8x8xf32>
    %48 = arith.addf %47, %45 : vector<8x8x8xf32>
    %cst_10 = arith.constant 2.500000e-01 : f32
    %49 = vector.broadcast %cst_10 : f32 to vector<8x8x8xf32>
    %50 = arith.mulf %48, %49 : vector<8x8x8xf32>
    %c0_11 = arith.constant 0 : index
    %c0_12 = arith.constant 0 : index
    %c0_13 = arith.constant 0 : index
    %c0_14 = arith.constant 0 : index
    %51 = vector.load %arg5[%c0_11, %c0_12, %c0_13, %c0_14] : memref<1x8x8x8xf32, #tpu.memory_space<vmem>>, vector<1x8x8x8xf32>
    %52 = vector.shape_cast %51 : vector<1x8x8x8xf32> to vector<8x8x8xf32>
    %53 = vector.shape_cast %50 : vector<8x8x8xf32> to vector<1x8x8x8xf32>
    tpu.vector_store %arg5[%c0_11, %c0_12, %c0_13, %c0_14], %53 {strides = array<i32>} : memref<1x8x8x8xf32, #tpu.memory_space<vmem>>, vector<1x8x8x8xf32>,
    return
  }
  func.func @transform_0(%arg0: i32, %arg1: i32) -> (i32, i32, i32, i32) {
    %c0_i32 = arith.constant 0 : i32
    %c0_i32_0 = arith.constant 0 : i32
    %c0_i32_1 = arith.constant 0 : i32
    return %arg0, %arg1, %c0_i32, %c0_i32_0 : i32, i32, i32, i32
  }
  func.func @transform_1(%arg0: i32, %arg1: i32) -> (i32, i32) {
    %c0_i32 = arith.constant 0 : i32
    %c0_i32_0 = arith.constant 0 : i32
    %c0_i32_1 = arith.constant 0 : i32
    return %c0_i32, %c0_i32_0 : i32, i32
  }
  func.func @transform_2(%arg0: i32, %arg1: i32) -> (i32, i32) {
    %c0_i32 = arith.constant 0 : i32
    %c0_i32_0 = arith.constant 0 : i32
    %c0_i32_1 = arith.constant 0 : i32
    return %c0_i32, %c0_i32_0 : i32, i32
  }
  func.func @transform_3(%arg0: i32, %arg1: i32) -> (i32, i32, i32, i32) {
    %c0_i32 = arith.constant 0 : i32
    %c0_i32_0 = arith.constant 0 : i32
    %c0_i32_1 = arith.constant 0 : i32
    return %arg0, %arg1, %c0_i32, %c0_i32_0 : i32, i32, i32, i32
  }
}

module attributes {stable_mosaic.version = 11 : i64} {
  func.func @_conv_bn_stats_kernel(%arg0: i32, %arg1: memref<1x16x16x8xbf16, #tpu.memory_space<vmem>>, %arg2: memref<3x24x8xbf16, #tpu.memory_space<vmem>>, %arg3: memref<1x8xf32, #tpu.memory_space<vmem>>, %arg4: memref<1x8xf32, #tpu.memory_space<vmem>>, %arg5: memref<1x256x8xbf16, #tpu.memory_space<vmem>>, %arg6: memref<1x2x8xf32, #tpu.memory_space<vmem>>, %arg7: memref<18x18x8xf32, #tpu.memory_space<vmem>>, %arg8: memref<16x16x24xbf16, #tpu.memory_space<vmem>>, %arg9: memref<256x8xf32, #tpu.memory_space<vmem>>) attributes {dimension_semantics = [#tpu.dimension_semantics<parallel>], iteration_bounds = array<i64: 2>, scalar_prefetch = 0 : i64, scratch_operands = 3 : i64, tpu.core_type = #tpu.core_type<tc>, window_params = [{transform_indices = @transform_0, window_bounds = array<i64: 1, 16, 16, 8>}, {pipeline_mode = #tpu.pipeline_mode<synchronous>, transform_indices = @transform_1, window_bounds = array<i64: 3, 24, 8>}, {pipeline_mode = #tpu.pipeline_mode<synchronous>, transform_indices = @transform_2, window_bounds = array<i64: 1, 8>}, {pipeline_mode = #tpu.pipeline_mode<synchronous>, transform_indices = @transform_3, window_bounds = array<i64: 1, 8>}, {transform_indices = @transform_4, window_bounds = array<i64: 1, 256, 8>}, {transform_indices = @transform_5, window_bounds = array<i64: 1, 2, 8>}]} {
    %c0 = arith.constant 0 : index
    %c0_0 = arith.constant 0 : index
    %c0_1 = arith.constant 0 : index
    %c0_2 = arith.constant 0 : index
    %0 = vector.load %arg1[%c0, %c0_0, %c0_1, %c0_2] : memref<1x16x16x8xbf16, #tpu.memory_space<vmem>>, vector<1x16x16x8xbf16>
    %1 = vector.shape_cast %0 : vector<1x16x16x8xbf16> to vector<16x16x8xbf16>
    %2 = arith.extf %1 : vector<16x16x8xbf16> to vector<16x16x8xf32>
    %c0_3 = arith.constant 0 : index
    %c0_4 = arith.constant 0 : index
    %3 = vector.load %arg3[%c0_3, %c0_4] : memref<1x8xf32, #tpu.memory_space<vmem>>, vector<1x8xf32>
    %4 = vector.shape_cast %3 : vector<1x8xf32> to vector<1x1x8xf32>
    %5 = vector.broadcast %4 : vector<1x1x8xf32> to vector<16x16x8xf32>
    %6 = arith.mulf %2, %5 : vector<16x16x8xf32>
    %c0_5 = arith.constant 0 : index
    %c0_6 = arith.constant 0 : index
    %7 = vector.load %arg4[%c0_5, %c0_6] : memref<1x8xf32, #tpu.memory_space<vmem>>, vector<1x8xf32>
    %8 = vector.shape_cast %7 : vector<1x8xf32> to vector<1x1x8xf32>
    %9 = vector.broadcast %8 : vector<1x1x8xf32> to vector<16x16x8xf32>
    %10 = arith.addf %6, %9 : vector<16x16x8xf32>
    %cst = arith.constant 0.000000e+00 : f32
    %11 = vector.broadcast %cst : f32 to vector<16x16x8xf32>
    %12 = arith.maximumf %10, %11 : vector<16x16x8xf32>
    %cst_7 = arith.constant 0.000000e+00 : f32
    %13 = vector.broadcast %cst_7 : f32 to vector<1x18x8xf32>
    %c0_8 = arith.constant 0 : index
    %c0_9 = arith.constant 0 : index
    %c0_10 = arith.constant 0 : index
    %14 = vector.load %arg7[%c0_8, %c0_9, %c0_10] : memref<18x18x8xf32, #tpu.memory_space<vmem>>, vector<1x18x8xf32>
    tpu.vector_store %arg7[%c0_8, %c0_9, %c0_10], %13 {strides = array<i32>} : memref<18x18x8xf32, #tpu.memory_space<vmem>>, vector<1x18x8xf32>,
    %cst_11 = arith.constant 0.000000e+00 : f32
    %15 = vector.broadcast %cst_11 : f32 to vector<1x18x8xf32>
    %c17 = arith.constant 17 : index
    %c0_12 = arith.constant 0 : index
    %c0_13 = arith.constant 0 : index
    %16 = vector.load %arg7[%c17, %c0_12, %c0_13] : memref<18x18x8xf32, #tpu.memory_space<vmem>>, vector<1x18x8xf32>
    tpu.vector_store %arg7[%c17, %c0_12, %c0_13], %15 {strides = array<i32>} : memref<18x18x8xf32, #tpu.memory_space<vmem>>, vector<1x18x8xf32>,
    %cst_14 = arith.constant 0.000000e+00 : f32
    %17 = vector.broadcast %cst_14 : f32 to vector<18x1x8xf32>
    %c0_15 = arith.constant 0 : index
    %c0_16 = arith.constant 0 : index
    %c0_17 = arith.constant 0 : index
    %18 = vector.load %arg7[%c0_15, %c0_16, %c0_17] : memref<18x18x8xf32, #tpu.memory_space<vmem>>, vector<18x1x8xf32>
    tpu.vector_store %arg7[%c0_15, %c0_16, %c0_17], %17 {strides = array<i32>} : memref<18x18x8xf32, #tpu.memory_space<vmem>>, vector<18x1x8xf32>,
    %cst_18 = arith.constant 0.000000e+00 : f32
    %19 = vector.broadcast %cst_18 : f32 to vector<18x1x8xf32>
    %c0_19 = arith.constant 0 : index
    %c17_20 = arith.constant 17 : index
    %c0_21 = arith.constant 0 : index
    %20 = vector.load %arg7[%c0_19, %c17_20, %c0_21] : memref<18x18x8xf32, #tpu.memory_space<vmem>>, vector<18x1x8xf32>
    tpu.vector_store %arg7[%c0_19, %c17_20, %c0_21], %19 {strides = array<i32>} : memref<18x18x8xf32, #tpu.memory_space<vmem>>, vector<18x1x8xf32>,
    %c1 = arith.constant 1 : index
    %c1_22 = arith.constant 1 : index
    %c0_23 = arith.constant 0 : index
    %21 = vector.load %arg7[%c1, %c1_22, %c0_23] : memref<18x18x8xf32, #tpu.memory_space<vmem>>, vector<16x16x8xf32>
    tpu.vector_store %arg7[%c1, %c1_22, %c0_23], %12 {strides = array<i32>} : memref<18x18x8xf32, #tpu.memory_space<vmem>>, vector<16x16x8xf32>,
    %c0_24 = arith.constant 0 : index
    %c0_25 = arith.constant 0 : index
    %c0_26 = arith.constant 0 : index
    %22 = vector.load %arg7[%c0_24, %c0_25, %c0_26] : memref<18x18x8xf32, #tpu.memory_space<vmem>>, vector<16x16x8xf32>
    %23 = arith.truncf %22 : vector<16x16x8xf32> to vector<16x16x8xbf16>
    %c0_27 = arith.constant 0 : index
    %c0_28 = arith.constant 0 : index
    %c0_29 = arith.constant 0 : index
    %24 = vector.load %arg8[%c0_27, %c0_28, %c0_29] : memref<16x16x24xbf16, #tpu.memory_space<vmem>>, vector<16x16x8xbf16>
    tpu.vector_store %arg8[%c0_27, %c0_28, %c0_29], %23 {strides = array<i32>} : memref<16x16x24xbf16, #tpu.memory_space<vmem>>, vector<16x16x8xbf16>,
    %c0_30 = arith.constant 0 : index
    %c1_31 = arith.constant 1 : index
    %c0_32 = arith.constant 0 : index
    %25 = vector.load %arg7[%c0_30, %c1_31, %c0_32] : memref<18x18x8xf32, #tpu.memory_space<vmem>>, vector<16x16x8xf32>
    %26 = arith.truncf %25 : vector<16x16x8xf32> to vector<16x16x8xbf16>
    %c0_33 = arith.constant 0 : index
    %c0_34 = arith.constant 0 : index
    %c8 = arith.constant 8 : index
    %27 = vector.load %arg8[%c0_33, %c0_34, %c8] : memref<16x16x24xbf16, #tpu.memory_space<vmem>>, vector<16x16x8xbf16>
    tpu.vector_store %arg8[%c0_33, %c0_34, %c8], %26 {strides = array<i32>} : memref<16x16x24xbf16, #tpu.memory_space<vmem>>, vector<16x16x8xbf16>,
    %c0_35 = arith.constant 0 : index
    %c2 = arith.constant 2 : index
    %c0_36 = arith.constant 0 : index
    %28 = vector.load %arg7[%c0_35, %c2, %c0_36] : memref<18x18x8xf32, #tpu.memory_space<vmem>>, vector<16x16x8xf32>
    %29 = arith.truncf %28 : vector<16x16x8xf32> to vector<16x16x8xbf16>
    %c0_37 = arith.constant 0 : index
    %c0_38 = arith.constant 0 : index
    %c16 = arith.constant 16 : index
    %30 = vector.load %arg8[%c0_37, %c0_38, %c16] : memref<16x16x24xbf16, #tpu.memory_space<vmem>>, vector<16x16x8xbf16>
    tpu.vector_store %arg8[%c0_37, %c0_38, %c16], %29 {strides = array<i32>} : memref<16x16x24xbf16, #tpu.memory_space<vmem>>, vector<16x16x8xbf16>,
    %c0_39 = arith.constant 0 : index
    %c0_40 = arith.constant 0 : index
    %c0_41 = arith.constant 0 : index
    %31 = vector.load %arg8[%c0_39, %c0_40, %c0_41] : memref<16x16x24xbf16, #tpu.memory_space<vmem>>, vector<16x16x24xbf16>
    %32 = vector.shape_cast %31 : vector<16x16x24xbf16> to vector<256x24xbf16>
    %c0_42 = arith.constant 0 : index
    %c0_43 = arith.constant 0 : index
    %c0_44 = arith.constant 0 : index
    %33 = vector.load %arg2[%c0_42, %c0_43, %c0_44] : memref<3x24x8xbf16, #tpu.memory_space<vmem>>, vector<1x24x8xbf16>
    %34 = vector.shape_cast %33 : vector<1x24x8xbf16> to vector<24x8xbf16>
    %cst_45 = arith.constant dense<0.000000e+00> : vector<256x8xf32>
    %35 = tpu.matmul %32, %34, %cst_45 {dimension_numbers = #tpu.dot_dimension_numbers<[1], [0], [0], [1], [0, 0, 1, 1], [], []>} : vector<256x24xbf16>, vector<24x8xbf16>, vector<256x8xf32> -> vector<256x8xf32>
    %c0_46 = arith.constant 0 : index
    %c0_47 = arith.constant 0 : index
    %36 = vector.load %arg9[%c0_46, %c0_47] : memref<256x8xf32, #tpu.memory_space<vmem>>, vector<256x8xf32>
    tpu.vector_store %arg9[%c0_46, %c0_47], %35 {strides = array<i32>} : memref<256x8xf32, #tpu.memory_space<vmem>>, vector<256x8xf32>,
    %c1_48 = arith.constant 1 : index
    %c0_49 = arith.constant 0 : index
    %c0_50 = arith.constant 0 : index
    %37 = vector.load %arg7[%c1_48, %c0_49, %c0_50] : memref<18x18x8xf32, #tpu.memory_space<vmem>>, vector<16x16x8xf32>
    %38 = arith.truncf %37 : vector<16x16x8xf32> to vector<16x16x8xbf16>
    %c0_51 = arith.constant 0 : index
    %c0_52 = arith.constant 0 : index
    %c0_53 = arith.constant 0 : index
    %39 = vector.load %arg8[%c0_51, %c0_52, %c0_53] : memref<16x16x24xbf16, #tpu.memory_space<vmem>>, vector<16x16x8xbf16>
    tpu.vector_store %arg8[%c0_51, %c0_52, %c0_53], %38 {strides = array<i32>} : memref<16x16x24xbf16, #tpu.memory_space<vmem>>, vector<16x16x8xbf16>,
    %c1_54 = arith.constant 1 : index
    %c1_55 = arith.constant 1 : index
    %c0_56 = arith.constant 0 : index
    %40 = vector.load %arg7[%c1_54, %c1_55, %c0_56] : memref<18x18x8xf32, #tpu.memory_space<vmem>>, vector<16x16x8xf32>
    %41 = arith.truncf %40 : vector<16x16x8xf32> to vector<16x16x8xbf16>
    %c0_57 = arith.constant 0 : index
    %c0_58 = arith.constant 0 : index
    %c8_59 = arith.constant 8 : index
    %42 = vector.load %arg8[%c0_57, %c0_58, %c8_59] : memref<16x16x24xbf16, #tpu.memory_space<vmem>>, vector<16x16x8xbf16>
    tpu.vector_store %arg8[%c0_57, %c0_58, %c8_59], %41 {strides = array<i32>} : memref<16x16x24xbf16, #tpu.memory_space<vmem>>, vector<16x16x8xbf16>,
    %c1_60 = arith.constant 1 : index
    %c2_61 = arith.constant 2 : index
    %c0_62 = arith.constant 0 : index
    %43 = vector.load %arg7[%c1_60, %c2_61, %c0_62] : memref<18x18x8xf32, #tpu.memory_space<vmem>>, vector<16x16x8xf32>
    %44 = arith.truncf %43 : vector<16x16x8xf32> to vector<16x16x8xbf16>
    %c0_63 = arith.constant 0 : index
    %c0_64 = arith.constant 0 : index
    %c16_65 = arith.constant 16 : index
    %45 = vector.load %arg8[%c0_63, %c0_64, %c16_65] : memref<16x16x24xbf16, #tpu.memory_space<vmem>>, vector<16x16x8xbf16>
    tpu.vector_store %arg8[%c0_63, %c0_64, %c16_65], %44 {strides = array<i32>} : memref<16x16x24xbf16, #tpu.memory_space<vmem>>, vector<16x16x8xbf16>,
    %c0_66 = arith.constant 0 : index
    %c0_67 = arith.constant 0 : index
    %c0_68 = arith.constant 0 : index
    %46 = vector.load %arg8[%c0_66, %c0_67, %c0_68] : memref<16x16x24xbf16, #tpu.memory_space<vmem>>, vector<16x16x24xbf16>
    %47 = vector.shape_cast %46 : vector<16x16x24xbf16> to vector<256x24xbf16>
    %c1_69 = arith.constant 1 : index
    %c0_70 = arith.constant 0 : index
    %c0_71 = arith.constant 0 : index
    %48 = vector.load %arg2[%c1_69, %c0_70, %c0_71] : memref<3x24x8xbf16, #tpu.memory_space<vmem>>, vector<1x24x8xbf16>
    %49 = vector.shape_cast %48 : vector<1x24x8xbf16> to vector<24x8xbf16>
    %cst_72 = arith.constant dense<0.000000e+00> : vector<256x8xf32>
    %50 = tpu.matmul %47, %49, %cst_72 {dimension_numbers = #tpu.dot_dimension_numbers<[1], [0], [0], [1], [0, 0, 1, 1], [], []>} : vector<256x24xbf16>, vector<24x8xbf16>, vector<256x8xf32> -> vector<256x8xf32>
    %c0_73 = arith.constant 0 : index
    %c0_74 = arith.constant 0 : index
    %51 = vector.load %arg9[%c0_73, %c0_74] : memref<256x8xf32, #tpu.memory_space<vmem>>, vector<256x8xf32>
    %52 = arith.addf %51, %50 : vector<256x8xf32>
    %c0_75 = arith.constant 0 : index
    %c0_76 = arith.constant 0 : index
    %53 = vector.load %arg9[%c0_75, %c0_76] : memref<256x8xf32, #tpu.memory_space<vmem>>, vector<256x8xf32>
    tpu.vector_store %arg9[%c0_75, %c0_76], %52 {strides = array<i32>} : memref<256x8xf32, #tpu.memory_space<vmem>>, vector<256x8xf32>,
    %c2_77 = arith.constant 2 : index
    %c0_78 = arith.constant 0 : index
    %c0_79 = arith.constant 0 : index
    %54 = vector.load %arg7[%c2_77, %c0_78, %c0_79] : memref<18x18x8xf32, #tpu.memory_space<vmem>>, vector<16x16x8xf32>
    %55 = arith.truncf %54 : vector<16x16x8xf32> to vector<16x16x8xbf16>
    %c0_80 = arith.constant 0 : index
    %c0_81 = arith.constant 0 : index
    %c0_82 = arith.constant 0 : index
    %56 = vector.load %arg8[%c0_80, %c0_81, %c0_82] : memref<16x16x24xbf16, #tpu.memory_space<vmem>>, vector<16x16x8xbf16>
    tpu.vector_store %arg8[%c0_80, %c0_81, %c0_82], %55 {strides = array<i32>} : memref<16x16x24xbf16, #tpu.memory_space<vmem>>, vector<16x16x8xbf16>,
    %c2_83 = arith.constant 2 : index
    %c1_84 = arith.constant 1 : index
    %c0_85 = arith.constant 0 : index
    %57 = vector.load %arg7[%c2_83, %c1_84, %c0_85] : memref<18x18x8xf32, #tpu.memory_space<vmem>>, vector<16x16x8xf32>
    %58 = arith.truncf %57 : vector<16x16x8xf32> to vector<16x16x8xbf16>
    %c0_86 = arith.constant 0 : index
    %c0_87 = arith.constant 0 : index
    %c8_88 = arith.constant 8 : index
    %59 = vector.load %arg8[%c0_86, %c0_87, %c8_88] : memref<16x16x24xbf16, #tpu.memory_space<vmem>>, vector<16x16x8xbf16>
    tpu.vector_store %arg8[%c0_86, %c0_87, %c8_88], %58 {strides = array<i32>} : memref<16x16x24xbf16, #tpu.memory_space<vmem>>, vector<16x16x8xbf16>,
    %c2_89 = arith.constant 2 : index
    %c2_90 = arith.constant 2 : index
    %c0_91 = arith.constant 0 : index
    %60 = vector.load %arg7[%c2_89, %c2_90, %c0_91] : memref<18x18x8xf32, #tpu.memory_space<vmem>>, vector<16x16x8xf32>
    %61 = arith.truncf %60 : vector<16x16x8xf32> to vector<16x16x8xbf16>
    %c0_92 = arith.constant 0 : index
    %c0_93 = arith.constant 0 : index
    %c16_94 = arith.constant 16 : index
    %62 = vector.load %arg8[%c0_92, %c0_93, %c16_94] : memref<16x16x24xbf16, #tpu.memory_space<vmem>>, vector<16x16x8xbf16>
    tpu.vector_store %arg8[%c0_92, %c0_93, %c16_94], %61 {strides = array<i32>} : memref<16x16x24xbf16, #tpu.memory_space<vmem>>, vector<16x16x8xbf16>,
    %c0_95 = arith.constant 0 : index
    %c0_96 = arith.constant 0 : index
    %c0_97 = arith.constant 0 : index
    %63 = vector.load %arg8[%c0_95, %c0_96, %c0_97] : memref<16x16x24xbf16, #tpu.memory_space<vmem>>, vector<16x16x24xbf16>
    %64 = vector.shape_cast %63 : vector<16x16x24xbf16> to vector<256x24xbf16>
    %c2_98 = arith.constant 2 : index
    %c0_99 = arith.constant 0 : index
    %c0_100 = arith.constant 0 : index
    %65 = vector.load %arg2[%c2_98, %c0_99, %c0_100] : memref<3x24x8xbf16, #tpu.memory_space<vmem>>, vector<1x24x8xbf16>
    %66 = vector.shape_cast %65 : vector<1x24x8xbf16> to vector<24x8xbf16>
    %cst_101 = arith.constant dense<0.000000e+00> : vector<256x8xf32>
    %67 = tpu.matmul %64, %66, %cst_101 {dimension_numbers = #tpu.dot_dimension_numbers<[1], [0], [0], [1], [0, 0, 1, 1], [], []>} : vector<256x24xbf16>, vector<24x8xbf16>, vector<256x8xf32> -> vector<256x8xf32>
    %c0_102 = arith.constant 0 : index
    %c0_103 = arith.constant 0 : index
    %68 = vector.load %arg9[%c0_102, %c0_103] : memref<256x8xf32, #tpu.memory_space<vmem>>, vector<256x8xf32>
    %69 = arith.addf %68, %67 : vector<256x8xf32>
    %c0_104 = arith.constant 0 : index
    %c0_105 = arith.constant 0 : index
    %70 = vector.load %arg9[%c0_104, %c0_105] : memref<256x8xf32, #tpu.memory_space<vmem>>, vector<256x8xf32>
    tpu.vector_store %arg9[%c0_104, %c0_105], %69 {strides = array<i32>} : memref<256x8xf32, #tpu.memory_space<vmem>>, vector<256x8xf32>,
    %c0_106 = arith.constant 0 : index
    %c0_107 = arith.constant 0 : index
    %71 = vector.load %arg9[%c0_106, %c0_107] : memref<256x8xf32, #tpu.memory_space<vmem>>, vector<256x8xf32>
    %72 = arith.truncf %71 : vector<256x8xf32> to vector<256x8xbf16>
    %c0_108 = arith.constant 0 : index
    %c0_109 = arith.constant 0 : index
    %c0_110 = arith.constant 0 : index
    %73 = vector.load %arg5[%c0_108, %c0_109, %c0_110] : memref<1x256x8xbf16, #tpu.memory_space<vmem>>, vector<1x256x8xbf16>
    %74 = vector.shape_cast %73 : vector<1x256x8xbf16> to vector<256x8xbf16>
    %75 = vector.shape_cast %72 : vector<256x8xbf16> to vector<1x256x8xbf16>
    tpu.vector_store %arg5[%c0_108, %c0_109, %c0_110], %75 {strides = array<i32>} : memref<1x256x8xbf16, #tpu.memory_space<vmem>>, vector<1x256x8xbf16>,
    %cst_111 = arith.constant dense<0.000000e+00> : vector<8xf32>
    %76 = vector.multi_reduction <add>, %71, %cst_111 [0] : vector<256x8xf32> to vector<8xf32>
    %77 = vector.shape_cast %76 : vector<8xf32> to vector<1x8xf32>
    %c0_112 = arith.constant 0 : index
    %c0_113 = arith.constant 0 : index
    %c0_114 = arith.constant 0 : index
    %78 = vector.load %arg6[%c0_112, %c0_113, %c0_114] : memref<1x2x8xf32, #tpu.memory_space<vmem>>, vector<1x1x8xf32>
    %79 = vector.shape_cast %78 : vector<1x1x8xf32> to vector<1x8xf32>
    %80 = vector.shape_cast %77 : vector<1x8xf32> to vector<1x1x8xf32>
    tpu.vector_store %arg6[%c0_112, %c0_113, %c0_114], %80 {strides = array<i32>} : memref<1x2x8xf32, #tpu.memory_space<vmem>>, vector<1x1x8xf32>,
    %81 = arith.mulf %71, %71 : vector<256x8xf32>
    %cst_115 = arith.constant dense<0.000000e+00> : vector<8xf32>
    %82 = vector.multi_reduction <add>, %81, %cst_115 [0] : vector<256x8xf32> to vector<8xf32>
    %83 = vector.shape_cast %82 : vector<8xf32> to vector<1x8xf32>
    %c0_116 = arith.constant 0 : index
    %c1_117 = arith.constant 1 : index
    %c0_118 = arith.constant 0 : index
    %84 = vector.load %arg6[%c0_116, %c1_117, %c0_118] : memref<1x2x8xf32, #tpu.memory_space<vmem>>, vector<1x1x8xf32>
    %85 = vector.shape_cast %84 : vector<1x1x8xf32> to vector<1x8xf32>
    %86 = vector.shape_cast %83 : vector<1x8xf32> to vector<1x1x8xf32>
    tpu.vector_store %arg6[%c0_116, %c1_117, %c0_118], %86 {strides = array<i32>} : memref<1x2x8xf32, #tpu.memory_space<vmem>>, vector<1x1x8xf32>,
    return
  }
  func.func @transform_0(%arg0: i32) -> (i32, i32, i32, i32) {
    %c0_i32 = arith.constant 0 : i32
    %c0_i32_0 = arith.constant 0 : i32
    %c0_i32_1 = arith.constant 0 : i32
    %c0_i32_2 = arith.constant 0 : i32
    return %arg0, %c0_i32, %c0_i32_0, %c0_i32_1 : i32, i32, i32, i32
  }
  func.func @transform_1(%arg0: i32) -> (i32, i32, i32) {
    %c0_i32 = arith.constant 0 : i32
    %c0_i32_0 = arith.constant 0 : i32
    %c0_i32_1 = arith.constant 0 : i32
    %c0_i32_2 = arith.constant 0 : i32
    return %c0_i32, %c0_i32_0, %c0_i32_1 : i32, i32, i32
  }
  func.func @transform_2(%arg0: i32) -> (i32, i32) {
    %c0_i32 = arith.constant 0 : i32
    %c0_i32_0 = arith.constant 0 : i32
    %c0_i32_1 = arith.constant 0 : i32
    return %c0_i32, %c0_i32_0 : i32, i32
  }
  func.func @transform_3(%arg0: i32) -> (i32, i32) {
    %c0_i32 = arith.constant 0 : i32
    %c0_i32_0 = arith.constant 0 : i32
    %c0_i32_1 = arith.constant 0 : i32
    return %c0_i32, %c0_i32_0 : i32, i32
  }
  func.func @transform_4(%arg0: i32) -> (i32, i32, i32) {
    %c0_i32 = arith.constant 0 : i32
    %c0_i32_0 = arith.constant 0 : i32
    %c0_i32_1 = arith.constant 0 : i32
    return %arg0, %c0_i32, %c0_i32_0 : i32, i32, i32
  }
  func.func @transform_5(%arg0: i32) -> (i32, i32, i32) {
    %c0_i32 = arith.constant 0 : i32
    %c0_i32_0 = arith.constant 0 : i32
    %c0_i32_1 = arith.constant 0 : i32
    return %arg0, %c0_i32, %c0_i32_0 : i32, i32, i32
  }
}

</mosaic_0001>

<llo_original>
// kernel: conv_block_forward.5
$region0: #{conv_block_forward.5}
  #allocation0 [shape = 'u32[]', space=smem, size = 0x4, offset = 0x4, fixed_abs, tag = 'smem constant byte address 0x4 - core index']
  #allocation1 [shape = 'u32[144,128]{1,0:T(1,128)}', space=vmem, size = 0x12000, scoped, tag = 'internal scratch']
  %s0 = inlined_call_operand.vmem [shape: bf16[2,16,8,16], index: 0, kind: input, shape index: {}]
  %s1 = inlined_call_operand.vmem [shape: f32[1,8], index: 1, kind: input, shape index: {}]
  %s2 = inlined_call_operand.vmem [shape: f32[1,8], index: 2, kind: input, shape index: {}]
  %s3 = inlined_call_operand.vmem [shape: f32[2,8,8,8], index: 3, kind: output, shape index: {}]
  %s4 = sld [smem:[#allocation0]]
  $region45: #{conv_block_forward.5} parent=0
    _
  %s6 = ssub.s32 1, %s4
  %s7 = scalar_select 0, %s6, %s4
  loop: start=0, step=1, limit=4
  $region2: #{conv_block_forward.5} parent=0 // loop_pre_header
    _
  $region3: #{conv_block_forward.5} parent=0 // loop_header
    %s9 = sphi 0, %s13
    %p10 = scmp.ge.s32.totalorder %s9, 4
    %s16 = sphi 0, %s28
    %s17 = sphi 0, %s24
    %s18 = sphi 0, %s16
    %s19 = sphi 0, %s17
    %s20 = sphi 0, %s18
    %s21 = sphi 0, %s19
    %s33 = sphi 0, %s35
    %s36 = sphi 0, %s33
    %s37 = sphi 0, %s36
    %s53 = sphi 0, %s37
    %s57 = sphi 0, %s57
    %s59 = sphi 0, %s57
    %s60 = sphi 0, %s59
    %s74 = sphi 0, %s60
    %s78 = sphi 0, %s78
    %s80 = sphi 0, %s78
    %s81 = sphi 0, %s80
    %s95 = sphi 0, %s81
    %s103 = sphi 0, %s105
    %s106 = sphi 0, %s103
    %s107 = sphi 0, %s106
    %s123 = sphi 0, %s107
  $region4: #{conv_block_forward.5} parent=0 // loop_header_branch
    %12 = sbr.rel (%p10) target = $region8
  $region5: #{conv_block_forward.5} parent=0 // loop_body
    %s14 = ssub.s32 %s9, 1
    %s15 = ssub.s32 %s9, 2
    %s22 = sadd.s32 1, %s17
    %p23 = scmp.ge.s32.totalorder %s22, 1
    %s24 = scalar_select %p23, 0, %s22
    %s25 = sadd.s32 1, %s16
    %s26 = scalar_select %p23, %s25, %s16
    %p27 = scmp.ge.s32.totalorder %s26, 2
    %s28 = scalar_select %p27, 0, %s26
    %s29 = ssub.s32 %s16, %s28
    %s30 = ssub.s32 %s17, %s24
    %s31 = sor.u32 %s29, %s30
    %p32 = scmp.eq.s32.totalorder %s31, 0
    %s34 = sadd.s32 %s33, 1
    %s35 = scalar_select %p32, %s33, %s34
    %p38 = pneg %p32
    %p39 = scmp.eq.s32.totalorder %s9, 1
    %p40 = por %p38, %p39
    %p41 = scmp.ne.s32.totalorder %s33, %s36
    %p42 = scmp.eq.s32.totalorder %s9, 0
    %p43 = por %p41, %p42
    %p44 = scmp.ne.s32.totalorder %s33, %s36
    %p45 = scmp.eq.s32.totalorder %s14, 1
    %p46 = por %p44, %p45
    %p47 = scmp.ne.s32.totalorder %s36, %s37
    %p48 = scmp.eq.s32.totalorder %s14, 0
    %p49 = por %p47, %p48
    %p50 = scmp.ne.s32.totalorder %s36, %s37
    %p51 = scmp.eq.s32.totalorder %s15, 1
    %p52 = por %p50, %p51
    %p54 = scmp.ne.s32.totalorder %s37, %s53
    %p55 = scmp.eq.s32.totalorder %s15, 0
    %p56 = por %p54, %p55
    %s58 = sadd.s32 %s57, 1
    %p61 = scmp.eq.s32.totalorder %s9, 1
    %p62 = scmp.ne.s32.totalorder %s57, %s59
    %p63 = scmp.eq.s32.totalorder %s9, 0
    %p64 = por %p62, %p63
    %p65 = scmp.ne.s32.totalorder %s57, %s59
    %p66 = scmp.eq.s32.totalorder %s14, 1
    %p67 = por %p65, %p66
    %p68 = scmp.ne.s32.totalorder %s59, %s60
    %p69 = scmp.eq.s32.totalorder %s14, 0
    %p70 = por %p68, %p69
    %p71 = scmp.ne.s32.totalorder %s59, %s60
    %p72 = scmp.eq.s32.totalorder %s15, 1
    %p73 = por %p71, %p72
    %p75 = scmp.ne.s32.totalorder %s60, %s74
    %p76 = scmp.eq.s32.totalorder %s15, 0
    %p77 = por %p75, %p76
    %s79 = sadd.s32 %s78, 1
    %p82 = scmp.eq.s32.totalorder %s9, 1
    %p83 = scmp.ne.s32.totalorder %s78, %s80
    %p84 = scmp.eq.s32.totalorder %s9, 0
    %p85 = por %p83, %p84
    %p86 = scmp.ne.s32.totalorder %s78, %s80
    %p87 = scmp.eq.s32.totalorder %s14, 1
    %p88 = por %p86, %p87
    %p89 = scmp.ne.s32.totalorder %s80, %s81
    %p90 = scmp.eq.s32.totalorder %s14, 0
    %p91 = por %p89, %p90
    %p92 = scmp.ne.s32.totalorder %s80, %s81
    %p93 = scmp.eq.s32.totalorder %s15, 1
    %p94 = por %p92, %p93
    %p96 = scmp.ne.s32.totalorder %s81, %s95
    %p97 = scmp.eq.s32.totalorder %s15, 0
    %p98 = por %p96, %p97
    %s99 = ssub.s32 %s16, %s28
    %s100 = ssub.s32 %s17, %s24
    %s101 = sor.u32 %s99, %s100
    %p102 = scmp.eq.s32.totalorder %s101, 0
    %s104 = sadd.s32 %s103, 1
    %s105 = scalar_select %p102, %s103, %s104
    %p108 = pneg %p102
    %p109 = scmp.eq.s32.totalorder %s9, 1
    %p110 = por %p108, %p109
    %p111 = scmp.ne.s32.totalorder %s103, %s106
    %p112 = scmp.eq.s32.totalorder %s9, 0
    %p113 = por %p111, %p112
    %p114 = scmp.ne.s32.totalorder %s103, %s106
    %p115 = scmp.eq.s32.totalorder %s14, 1
    %p116 = por %p114, %p115
    %p117 = scmp.ne.s32.totalorder %s106, %s107
    %p118 = scmp.eq.s32.totalorder %s14, 0
    %p119 = por %p117, %p118
    %p120 = scmp.ne.s32.totalorder %s106, %s107
    %p121 = scmp.eq.s32.totalorder %s15, 1
    %p122 = por %p120, %p121
    %p124 = scmp.ne.s32.totalorder %s107, %s123
    %p125 = scmp.eq.s32.totalorder %s15, 0
    %p126 = por %p124, %p125
    %p127 = scmp.le.s32.totalorder 1, %s9
    %p128 = scmp.lt.s32.totalorder %s9, 3
    %p129 = pnand %p127, %p128
    %p130 = pneg %p129
    // Predicated region
    $region9: #{conv_block_forward.5} parent=5 // pred_check
      _
    $region10: #{conv_block_forward.5} parent=5 // pred_check_branch
      %132 = sbr.rel (%p129) target = $region12
    $region11: #{conv_block_forward.5} parent=5 // pred_region
      %s133 = ssub.s32 %s9, 1
      // Predicated region
      $region13: #{conv_block_forward.5} parent=11 // pred_check
        %p134 = pneg %p70
      $region14: #{conv_block_forward.5} parent=11 // pred_check_branch
        %136 = sbr.rel (%p134) target = $region16
      $region15: #{conv_block_forward.5} parent=11 // pred_region
        _
      $region16: #{conv_block_forward.5} parent=11 // pred_fallthru
        _
      // Predicated region
      $region17: #{conv_block_forward.5} parent=11 // pred_check
        %p137 = pneg %p91
      $region18: #{conv_block_forward.5} parent=11 // pred_check_branch
        %139 = sbr.rel (%p137) target = $region20
      $region19: #{conv_block_forward.5} parent=11 // pred_region
        _
      $region20: #{conv_block_forward.5} parent=11 // pred_fallthru
        _
    $region12: #{conv_block_forward.5} parent=5 // pred_fallthru
      _
    %p140 = scmp.lt.s32.totalorder %s9, 2
    // Predicated region
    $region21: #{conv_block_forward.5} parent=5 // pred_check
      %p141 = pneg %p140
    $region22: #{conv_block_forward.5} parent=5 // pred_check_branch
      %143 = sbr.rel (%p141) target = $region24
    $region23: #{conv_block_forward.5} parent=5 // pred_region
      // Predicated region
      $region25: #{conv_block_forward.5} parent=23 // pred_check
        %p144 = pneg %p43
      $region26: #{conv_block_forward.5} parent=23 // pred_check_branch
        %146 = sbr.rel (%p144) target = $region28
      $region27: #{conv_block_forward.5} parent=23 // pred_region
        %s147 = smul.u32 16, %s17
        %p148 = scmp.lt.s32.totalorder %s16, 1
        %s149 = scalar_select %p148, %s16, 1
        %p150 = scmp.lt.s32.totalorder %s147, 15
        %s151 = scalar_select %p150, %s147, 15
        %s152 = smul.addr %s149, 16
        %s153 = sadd.s32 %s151, %s152
        %s154 = smul.addr %s153, 4
        %s155 = scalar_lea.vmem %s0, %s154
        %s156 = smul.u32 16, %s17
      $region28: #{conv_block_forward.5} parent=23 // pred_fallthru
        _
    $region24: #{conv_block_forward.5} parent=5 // pred_fallthru
      _
    %p157 = scmp.le.s32.totalorder 1, %s9
    %p158 = scmp.lt.s32.totalorder %s9, 3
    %p159 = pnand %p157, %p158
    %p160 = pneg %p159
    // Predicated region
    $region29: #{conv_block_forward.5} parent=5 // pred_check
      _
    $region30: #{conv_block_forward.5} parent=5 // pred_check_branch
      %162 = sbr.rel (%p159) target = $region32
    $region31: #{conv_block_forward.5} parent=5 // pred_region
      %s163 = ssub.s32 %s9, 1
      %s164 = smul.u32 16, %s19
      %p165 = scmp.lt.s32.totalorder %s18, 1
      %s166 = scalar_select %p165, %s18, 1
      %p167 = scmp.lt.s32.totalorder %s164, 15
      %s168 = scalar_select %p167, %s164, 15
      %s169 = smul.addr %s166, 16
      %s170 = sadd.s32 %s168, %s169
      %s171 = smul.addr %s170, 4
      %s172 = scalar_lea.vmem %s0, %s171
      %p173 = pneg %p49
      %p174 = pneg %p46
      %p175 = pneg %p70
      %p176 = pneg %p67
      %p177 = pneg %p91
      %p178 = pneg %p88
      %p179 = pneg %p119
      %p180 = pneg %p116
      %s181 = smul.u32 8, %s19
      %p182 = scmp.lt.s32.totalorder %s18, 1
      %s183 = scalar_select %p182, %s18, 1
      %p184 = scmp.lt.s32.totalorder %s181, 7
      %s185 = scalar_select %p184, %s181, 7
      %s186 = smul.addr %s183, 8
      %s187 = sadd.s32 %s185, %s186
      %s188 = smul.addr %s187, 8
      %s189 = scalar_lea.vmem %s3, %s188
      %s190 = smul.u32 16, %s19
      %p191 = scmp.lt.s32.totalorder %s18, 1
      %s192 = scalar_select %p191, %s18, 1
      %p193 = scmp.lt.s32.totalorder %s190, 15
      %s194 = scalar_select %p193, %s190, 15
      %s195 = smul.addr %s192, 16
      %s196 = sadd.s32 %s194, %s195
      %s197 = smul.addr %s196, 4
      %s198 = scalar_lea.vmem %s0, %s197
      %s199 = smul.u32 16, %s19
      %s200 = smul.u32 8, %s19
      %p201 = scmp.lt.s32.totalorder %s18, 1
      %s202 = scalar_select %p201, %s18, 1
      %p203 = scmp.lt.s32.totalorder %s200, 7
      %s204 = scalar_select %p203, %s200, 7
      %s205 = smul.addr %s202, 8
      %s206 = sadd.s32 %s204, %s205
      %s207 = smul.addr %s206, 8
      %s208 = scalar_lea.vmem %s3, %s207
      %s209 = smul.u32 8, %s19
      %v210 = vld [vmem:[%s198] sm:$0xf]
      %v211 = vld [vmem:[%s198 + $0x4] sm:$0xf]
      %v212 = vld [vmem:[%s198 + $0x8] sm:$0xf]
      %v213 = vld [vmem:[%s198 + $0xc] sm:$0xf]
      %v214 = vld [vmem:[%s198 + $0x10] sm:$0xf]
      %v215 = vld [vmem:[%s198 + $0x14] sm:$0xf]
      %v216 = vld [vmem:[%s198 + $0x18] sm:$0xf]
      %v217 = vld [vmem:[%s198 + $0x1c] sm:$0xf]
      %v218 = vld [vmem:[%s198 + $0x20] sm:$0xf]
      %v219 = vld [vmem:[%s198 + $0x24] sm:$0xf]
      %v220 = vld [vmem:[%s198 + $0x28] sm:$0xf]
      %v221 = vld [vmem:[%s198 + $0x2c] sm:$0xf]
      %v222 = vld [vmem:[%s198 + $0x30] sm:$0xf]
      %v223 = vld [vmem:[%s198 + $0x34] sm:$0xf]
      %v224 = vld [vmem:[%s198 + $0x38] sm:$0xf]
      %v225 = vld [vmem:[%s198 + $0x3c] sm:$0xf]
      %v226 = vunpack.c.l.bf16 %v210
      %v227 = vunpack.c.l.bf16 %v211
      %v228 = vunpack.c.l.bf16 %v212
      %v229 = vunpack.c.l.bf16 %v213
      %v230 = vunpack.c.l.bf16 %v214
      %v231 = vunpack.c.l.bf16 %v215
      %v232 = vunpack.c.l.bf16 %v216
      %v233 = vunpack.c.l.bf16 %v217
      %v234 = vunpack.c.l.bf16 %v218
      %v235 = vunpack.c.l.bf16 %v219
      %v236 = vunpack.c.l.bf16 %v220
      %v237 = vunpack.c.l.bf16 %v221
      %v238 = vunpack.c.l.bf16 %v222
      %v239 = vunpack.c.l.bf16 %v223
      %v240 = vunpack.c.l.bf16 %v224
      %v241 = vunpack.c.l.bf16 %v225
      %v242 = vld [vmem:[%s1] sm:$0x1]
      %v243 = vld [vmem:[%s2] sm:$0x1]
      %v245 = vlaneseq
      %v246 = vshrl.u32 %v245, 7
      %v247 = vsub.s32 0, %v246
      %v248 = vrot.slane %v242, %v247
      %v250 = vmul.f32 %v226, %v248
      %v251 = vmul.f32 %v228, %v248
      %v252 = vmul.f32 %v230, %v248
      %v253 = vmul.f32 %v232, %v248
      %v254 = vmul.f32 %v234, %v248
      %v255 = vmul.f32 %v236, %v248
      %v256 = vmul.f32 %v238, %v248
      %v257 = vmul.f32 %v240, %v248
      %v259 = vlaneseq
      %v260 = vshrl.u32 %v259, 7
      %v261 = vsub.s32 0, %v260
      %v262 = vrot.slane %v243, %v261
      %v264 = vadd.f32 %v250, %v262
      %v265 = vadd.f32 %v251, %v262
      %v266 = vadd.f32 %v252, %v262
      %v267 = vadd.f32 %v253, %v262
      %v268 = vadd.f32 %v254, %v262
      %v269 = vadd.f32 %v255, %v262
      %v270 = vadd.f32 %v256, %v262
      %v271 = vadd.f32 %v257, %v262
      %v272 = vmax.f32 %v264, 0.0
      %v273 = vmax.f32 %v265, 0.0
      %v274 = vmax.f32 %v266, 0.0
      %v275 = vmax.f32 %v267, 0.0
      %v276 = vmax.f32 %v268, 0.0
      %v277 = vmax.f32 %v269, 0.0
      %v278 = vmax.f32 %v270, 0.0
      %v279 = vmax.f32 %v271, 0.0
      %280 = vrot.lane.b32.xlu0 %v248, 8
      %v281 = vpop.permute.xlu0 %280
      %v283 = vmul.f32 %v226, %v281
      %v284 = vmul.f32 %v228, %v281
      %v285 = vmul.f32 %v230, %v281
      %v286 = vmul.f32 %v232, %v281
      %v287 = vmul.f32 %v234, %v281
      %v288 = vmul.f32 %v236, %v281
      %v289 = vmul.f32 %v238, %v281
      %v290 = vmul.f32 %v240, %v281
      %291 = vrot.lane.b32.xlu0 %v262, 8
      %v292 = vpop.permute.xlu0 %291
      %v294 = vadd.f32 %v283, %v292
      %v295 = vadd.f32 %v284, %v292
      %v296 = vadd.f32 %v285, %v292
      %v297 = vadd.f32 %v286, %v292
      %v298 = vadd.f32 %v287, %v292
      %v299 = vadd.f32 %v288, %v292
      %v300 = vadd.f32 %v289, %v292
      %v301 = vadd.f32 %v290, %v292
      %v302 = vmax.f32 %v294, 0.0
      %v303 = vmax.f32 %v295, 0.0
      %v304 = vmax.f32 %v296, 0.0
      %v305 = vmax.f32 %v297, 0.0
      %v306 = vmax.f32 %v298, 0.0
      %v307 = vmax.f32 %v299, 0.0
      %v308 = vmax.f32 %v300, 0.0
      %v309 = vmax.f32 %v301, 0.0
      %v310 = vmul.f32 %v227, %v248
      %v311 = vmul.f32 %v229, %v248
      %v312 = vmul.f32 %v231, %v248
      %v313 = vmul.f32 %v233, %v248
      %v314 = vmul.f32 %v235, %v248
      %v315 = vmul.f32 %v237, %v248
      %v316 = vmul.f32 %v239, %v248
      %v317 = vmul.f32 %v241, %v248
      %v318 = vadd.f32 %v310, %v262
      %v319 = vadd.f32 %v311, %v262
      %v320 = vadd.f32 %v312, %v262
      %v321 = vadd.f32 %v313, %v262
      %v322 = vadd.f32 %v314, %v262
      %v323 = vadd.f32 %v315, %v262
      %v324 = vadd.f32 %v316, %v262
      %v325 = vadd.f32 %v317, %v262
      %v326 = vmax.f32 %v318, 0.0
      %v327 = vmax.f32 %v319, 0.0
      %v328 = vmax.f32 %v320, 0.0
      %v329 = vmax.f32 %v321, 0.0
      %v330 = vmax.f32 %v322, 0.0
      %v331 = vmax.f32 %v323, 0.0
      %v332 = vmax.f32 %v324, 0.0
      %v333 = vmax.f32 %v325, 0.0
      %v334 = vmul.f32 %v227, %v281
      %v335 = vmul.f32 %v229, %v281
      %v336 = vmul.f32 %v231, %v281
      %v337 = vmul.f32 %v233, %v281
      %v338 = vmul.f32 %v235, %v281
      %v339 = vmul.f32 %v237, %v281
      %v340 = vmul.f32 %v239, %v281
      %v341 = vmul.f32 %v241, %v281
      %v342 = vadd.f32 %v334, %v292
      %v343 = vadd.f32 %v335, %v292
      %v344 = vadd.f32 %v336, %v292
      %v345 = vadd.f32 %v337, %v292
      %v346 = vadd.f32 %v338, %v292
      %v347 = vadd.f32 %v339, %v292
      %v348 = vadd.f32 %v340, %v292
      %v349 = vadd.f32 %v341, %v292
      %v350 = vmax.f32 %v342, 0.0
      %v351 = vmax.f32 %v343, 0.0
      %v352 = vmax.f32 %v344, 0.0
      %v353 = vmax.f32 %v345, 0.0
      %v354 = vmax.f32 %v346, 0.0
      %v355 = vmax.f32 %v347, 0.0
      %v356 = vmax.f32 %v348, 0.0
      %v357 = vmax.f32 %v349, 0.0
      %366 = vrot.lane.b32.xlu0 %v302, 120
      %v367 = vpop.permute.xlu0 %366
      %368 = vrot.lane.b32.xlu0 %v303, 120
      %v369 = vpop.permute.xlu0 %368
      %370 = vrot.lane.b32.xlu0 %v304, 120
      %v371 = vpop.permute.xlu0 %370
      %372 = vrot.lane.b32.xlu0 %v305, 120
      %v373 = vpop.permute.xlu0 %372
      %374 = vrot.lane.b32.xlu0 %v306, 120
      %v375 = vpop.permute.xlu0 %374
      %376 = vrot.lane.b32.xlu0 %v307, 120
      %v377 = vpop.permute.xlu0 %376
      %378 = vrot.lane.b32.xlu0 %v308, 120
      %v379 = vpop.permute.xlu0 %378
      %380 = vrot.lane.b32.xlu0 %v309, 120
      %v381 = vpop.permute.xlu0 %380
      %v390 = vadd.f32 %v272, %v367
      %v391 = vadd.f32 %v273, %v369
      %v392 = vadd.f32 %v274, %v371
      %v393 = vadd.f32 %v275, %v373
      %v394 = vadd.f32 %v276, %v375
      %v395 = vadd.f32 %v277, %v377
      %v396 = vadd.f32 %v278, %v379
      %v397 = vadd.f32 %v279, %v381
      %v398 = vadd.f32 %v390, %v326
      %v399 = vadd.f32 %v391, %v327
      %v400 = vadd.f32 %v392, %v328
      %v401 = vadd.f32 %v393, %v329
      %v402 = vadd.f32 %v394, %v330
      %v403 = vadd.f32 %v395, %v331
      %v404 = vadd.f32 %v396, %v332
      %v405 = vadd.f32 %v397, %v333
      %414 = vrot.lane.b32.xlu0 %v350, 120
      %v415 = vpop.permute.xlu0 %414
      %416 = vrot.lane.b32.xlu0 %v351, 120
      %v417 = vpop.permute.xlu0 %416
      %418 = vrot.lane.b32.xlu0 %v352, 120
      %v419 = vpop.permute.xlu0 %418
      %420 = vrot.lane.b32.xlu0 %v353, 120
      %v421 = vpop.permute.xlu0 %420
      %422 = vrot.lane.b32.xlu0 %v354, 120
      %v423 = vpop.permute.xlu0 %422
      %424 = vrot.lane.b32.xlu0 %v355, 120
      %v425 = vpop.permute.xlu0 %424
      %426 = vrot.lane.b32.xlu0 %v356, 120
      %v427 = vpop.permute.xlu0 %426
      %428 = vrot.lane.b32.xlu0 %v357, 120
      %v429 = vpop.permute.xlu0 %428
      %v438 = vadd.f32 %v398, %v415
      %v439 = vadd.f32 %v399, %v417
      %v440 = vadd.f32 %v400, %v419
      %v441 = vadd.f32 %v401, %v421
      %v442 = vadd.f32 %v402, %v423
      %v443 = vadd.f32 %v403, %v425
      %v444 = vadd.f32 %v404, %v427
      %v445 = vadd.f32 %v405, %v429
      %v446 = vmul.f32 %v438, 0.25
      %v447 = vmul.f32 %v439, 0.25
      %v448 = vmul.f32 %v440, 0.25
      %v449 = vmul.f32 %v441, 0.25
      %v450 = vmul.f32 %v442, 0.25
      %v451 = vmul.f32 %v443, 0.25
      %v452 = vmul.f32 %v444, 0.25
      %v453 = vmul.f32 %v445, 0.25
      %vm454 = vcmask 64512
      %455 = vst.msk [vmem:[%s208] sm:$0xff] %vm454, %v446
      %456 = vst.msk [vmem:[%s208 + $0x8] sm:$0xff] %vm454, %v447
      %457 = vst.msk [vmem:[%s208 + $0x10] sm:$0xff] %vm454, %v448
      %458 = vst.msk [vmem:[%s208 + $0x18] sm:$0xff] %vm454, %v449
      %459 = vst.msk [vmem:[%s208 + $0x20] sm:$0xff] %vm454, %v450
      %460 = vst.msk [vmem:[%s208 + $0x28] sm:$0xff] %vm454, %v451
      %461 = vst.msk [vmem:[%s208 + $0x30] sm:$0xff] %vm454, %v452
      %462 = vst.msk [vmem:[%s208 + $0x38] sm:$0xff] %vm454, %v453
      %s463 = smul.u32 8, %s19
      %p464 = scmp.lt.s32.totalorder %s18, 1
      %s465 = scalar_select %p464, %s18, 1
      %p466 = scmp.lt.s32.totalorder %s463, 7
      %s467 = scalar_select %p466, %s463, 7
      %s468 = smul.addr %s465, 8
      %s469 = sadd.s32 %s467, %s468
      %s470 = smul.addr %s469, 8
      %s471 = scalar_lea.vmem %s3, %s470
      // Predicated region
      $region33: #{conv_block_forward.5} parent=31 // pred_check
        %p472 = pneg %p116
      $region34: #{conv_block_forward.5} parent=31 // pred_check_branch
        %474 = sbr.rel (%p472) target = $region36
      $region35: #{conv_block_forward.5} parent=31 // pred_region
        %s475 = smul.u32 8, %s19
      $region36: #{conv_block_forward.5} parent=31 // pred_fallthru
        _
    $region32: #{conv_block_forward.5} parent=5 // pred_fallthru
      _
    %p476 = scmp.le.s32.totalorder 2, %s9
    // Predicated region
    $region37: #{conv_block_forward.5} parent=5 // pred_check
      %p477 = pneg %p476
    $region38: #{conv_block_forward.5} parent=5 // pred_check_branch
      %479 = sbr.rel (%p477) target = $region40
    $region39: #{conv_block_forward.5} parent=5 // pred_region
      %s480 = ssub.s32 %s9, 2
      // Predicated region
      $region41: #{conv_block_forward.5} parent=39 // pred_check
        %p481 = pneg %p122
      $region42: #{conv_block_forward.5} parent=39 // pred_check_branch
        %483 = sbr.rel (%p481) target = $region44
      $region43: #{conv_block_forward.5} parent=39 // pred_region
        %s484 = smul.u32 8, %s21
        %p485 = scmp.lt.s32.totalorder %s20, 1
        %s486 = scalar_select %p485, %s20, 1
        %p487 = scmp.lt.s32.totalorder %s484, 7
        %s488 = scalar_select %p487, %s484, 7
        %s489 = smul.addr %s486, 8
        %s490 = sadd.s32 %s488, %s489
        %s491 = smul.addr %s490, 8
        %s492 = scalar_lea.vmem %s3, %s491
      $region44: #{conv_block_forward.5} parent=39 // pred_fallthru
        _
    $region40: #{conv_block_forward.5} parent=5 // pred_fallthru
      _
  $region6: #{conv_block_forward.5} parent=0 // loop_footer
    %s13 = sadd.s32 1, %s9
  $region7: #{conv_block_forward.5} parent=0 // loop_footer_branch
    %8 = sbr.rel target = $region3
  $region8: #{conv_block_forward.5} parent=0 // loop_exit
    _

// kernel: conv_block_forward.3
$region0: #{conv_block_forward.3}
  #allocation0 [shape = 'u32[]', space=smem, size = 0x4, offset = 0x4, fixed_abs, tag = 'smem constant byte address 0x4 - core index']
  #allocation1 [shape = 'u32[144,128]{1,0:T(1,128)}', space=vmem, size = 0x12000, scoped, tag = 'internal scratch']
  #allocation2 [shape = 'f32[18,18,4]{2,1,0:T(8,128)}', space=vmem, size = 0x36000, scoped, tag = 'scratch operand']
  #allocation3 [shape = 'bf16[16,16,12]{2,1,0:T(16,128)(2,1)}', space=vmem, size = 0x10000, scoped, tag = 'scratch operand']
  #allocation4 [shape = 'f32[256,8]{1,0:T(8,128)}', space=vmem, size = 0x20000, scoped, tag = 'scratch operand']
  %s0 = inlined_call_operand.vmem [shape: f32[2,16,16,4], index: 0, kind: input, shape index: {}]
  %s1 = inlined_call_operand.vmem [shape: bf16[3,12,8], index: 1, kind: input, shape index: {}]
  %s2 = inlined_call_operand.vmem [shape: f32[1,4], index: 2, kind: input, shape index: {}]
  %s3 = inlined_call_operand.vmem [shape: f32[1,4], index: 3, kind: input, shape index: {}]
  %s4 = inlined_call_operand.vmem [shape: bf16[2,256,8], index: 4, kind: output, shape index: {0}]
  %s5 = inlined_call_operand.vmem [shape: f32[2,2,8], index: 5, kind: output, shape index: {1}]
  %6 = xla_tuple %s4, %s5
  %s7 = sld [smem:[#allocation0]]
  $region57: #{conv_block_forward.3} parent=0
    _
  %s9 = ssub.s32 1, %s7
  %s10 = scalar_select 0, %s9, %s7
  loop: start=0, step=1, limit=4
  $region2: #{conv_block_forward.3} parent=0 // loop_pre_header
    _
  $region3: #{conv_block_forward.3} parent=0 // loop_header
    %s12 = sphi 0, %s16
    %p13 = scmp.ge.s32.totalorder %s12, 4
    %s22 = sphi 0, %s24
    %s25 = sphi 0, %s22
    %s26 = sphi 0, %s25
    %s42 = sphi 0, %s26
    %s46 = sphi 0, %s46
    %s48 = sphi 0, %s46
    %s49 = sphi 0, %s48
    %s63 = sphi 0, %s49
    %s67 = sphi 0, %s67
    %s69 = sphi 0, %s67
    %s70 = sphi 0, %s69
    %s84 = sphi 0, %s70
    %s88 = sphi 0, %s88
    %s90 = sphi 0, %s88
    %s91 = sphi 0, %s90
    %s105 = sphi 0, %s91
    %s111 = sphi 0, %s113
    %s114 = sphi 0, %s111
    %s115 = sphi 0, %s114
    %s131 = sphi 0, %s115
    %s137 = sphi 0, %s139
    %s140 = sphi 0, %s137
    %s141 = sphi 0, %s140
    %s157 = sphi 0, %s141
  $region4: #{conv_block_forward.3} parent=0 // loop_header_branch
    %15 = sbr.rel (%p13) target = $region8
  $region5: #{conv_block_forward.3} parent=0 // loop_body
    %s17 = ssub.s32 %s12, 1
    %s18 = ssub.s32 %s12, 2
    %s19 = sadd.s32 %s12, 1
    %s20 = ssub.s32 %s12, %s19
    %p21 = scmp.eq.s32.totalorder %s20, 0
    %s23 = sadd.s32 %s22, 1
    %s24 = scalar_select %p21, %s22, %s23
    %p27 = pneg %p21
    %p28 = scmp.eq.s32.totalorder %s12, 1
    %p29 = por %p27, %p28
    %p30 = scmp.ne.s32.totalorder %s22, %s25
    %p31 = scmp.eq.s32.totalorder %s12, 0
    %p32 = por %p30, %p31
    %p33 = scmp.ne.s32.totalorder %s22, %s25
    %p34 = scmp.eq.s32.totalorder %s17, 1
    %p35 = por %p33, %p34
    %p36 = scmp.ne.s32.totalorder %s25, %s26
    %p37 = scmp.eq.s32.totalorder %s17, 0
    %p38 = por %p36, %p37
    %p39 = scmp.ne.s32.totalorder %s25, %s26
    %p40 = scmp.eq.s32.totalorder %s18, 1
    %p41 = por %p39, %p40
    %p43 = scmp.ne.s32.totalorder %s26, %s42
    %p44 = scmp.eq.s32.totalorder %s18, 0
    %p45 = por %p43, %p44
    %s47 = sadd.s32 %s46, 1
    %p50 = scmp.eq.s32.totalorder %s12, 1
    %p51 = scmp.ne.s32.totalorder %s46, %s48
    %p52 = scmp.eq.s32.totalorder %s12, 0
    %p53 = por %p51, %p52
    %p54 = scmp.ne.s32.totalorder %s46, %s48
    %p55 = scmp.eq.s32.totalorder %s17, 1
    %p56 = por %p54, %p55
    %p57 = scmp.ne.s32.totalorder %s48, %s49
    %p58 = scmp.eq.s32.totalorder %s17, 0
    %p59 = por %p57, %p58
    %p60 = scmp.ne.s32.totalorder %s48, %s49
    %p61 = scmp.eq.s32.totalorder %s18, 1
    %p62 = por %p60, %p61
    %p64 = scmp.ne.s32.totalorder %s49, %s63
    %p65 = scmp.eq.s32.totalorder %s18, 0
    %p66 = por %p64, %p65
    %s68 = sadd.s32 %s67, 1
    %p71 = scmp.eq.s32.totalorder %s12, 1
    %p72 = scmp.ne.s32.totalorder %s67, %s69
    %p73 = scmp.eq.s32.totalorder %s12, 0
    %p74 = por %p72, %p73
    %p75 = scmp.ne.s32.totalorder %s67, %s69
    %p76 = scmp.eq.s32.totalorder %s17, 1
    %p77 = por %p75, %p76
    %p78 = scmp.ne.s32.totalorder %s69, %s70
    %p79 = scmp.eq.s32.totalorder %s17, 0
    %p80 = por %p78, %p79
    %p81 = scmp.ne.s32.totalorder %s69, %s70
    %p82 = scmp.eq.s32.totalorder %s18, 1
    %p83 = por %p81, %p82
    %p85 = scmp.ne.s32.totalorder %s70, %s84
    %p86 = scmp.eq.s32.totalorder %s18, 0
    %p87 = por %p85, %p86
    %s89 = sadd.s32 %s88, 1
    %p92 = scmp.eq.s32.totalorder %s12, 1
    %p93 = scmp.ne.s32.totalorder %s88, %s90
    %p94 = scmp.eq.s32.totalorder %s12, 0
    %p95 = por %p93, %p94
    %p96 = scmp.ne.s32.totalorder %s88, %s90
    %p97 = scmp.eq.s32.totalorder %s17, 1
    %p98 = por %p96, %p97
    %p99 = scmp.ne.s32.totalorder %s90, %s91
    %p100 = scmp.eq.s32.totalorder %s17, 0
    %p101 = por %p99, %p100
    %p102 = scmp.ne.s32.totalorder %s90, %s91
    %p103 = scmp.eq.s32.totalorder %s18, 1
    %p104 = por %p102, %p103
    %p106 = scmp.ne.s32.totalorder %s91, %s105
    %p107 = scmp.eq.s32.totalorder %s18, 0
    %p108 = por %p106, %p107
    %s109 = ssub.s32 %s12, %s19
    %p110 = scmp.eq.s32.totalorder %s109, 0
    %s112 = sadd.s32 %s111, 1
    %s113 = scalar_select %p110, %s111, %s112
    %p116 = pneg %p110
    %p117 = scmp.eq.s32.totalorder %s12, 1
    %p118 = por %p116, %p117
    %p119 = scmp.ne.s32.totalorder %s111, %s114
    %p120 = scmp.eq.s32.totalorder %s12, 0
    %p121 = por %p119, %p120
    %p122 = scmp.ne.s32.totalorder %s111, %s114
    %p123 = scmp.eq.s32.totalorder %s17, 1
    %p124 = por %p122, %p123
    %p125 = scmp.ne.s32.totalorder %s114, %s115
    %p126 = scmp.eq.s32.totalorder %s17, 0
    %p127 = por %p125, %p126
    %p128 = scmp.ne.s32.totalorder %s114, %s115
    %p129 = scmp.eq.s32.totalorder %s18, 1
    %p130 = por %p128, %p129
    %p132 = scmp.ne.s32.totalorder %s115, %s131
    %p133 = scmp.eq.s32.totalorder %s18, 0
    %p134 = por %p132, %p133
    %s135 = ssub.s32 %s12, %s19
    %p136 = scmp.eq.s32.totalorder %s135, 0
    %s138 = sadd.s32 %s137, 1
    %s139 = scalar_select %p136, %s137, %s138
    %p142 = pneg %p136
    %p143 = scmp.eq.s32.totalorder %s12, 1
    %p144 = por %p142, %p143
    %p145 = scmp.ne.s32.totalorder %s137, %s140
    %p146 = scmp.eq.s32.totalorder %s12, 0
    %p147 = por %p145, %p146
    %p148 = scmp.ne.s32.totalorder %s137, %s140
    %p149 = scmp.eq.s32.totalorder %s17, 1
    %p150 = por %p148, %p149
    %p151 = scmp.ne.s32.totalorder %s140, %s141
    %p152 = scmp.eq.s32.totalorder %s17, 0
    %p153 = por %p151, %p152
    %p154 = scmp.ne.s32.totalorder %s140, %s141
    %p155 = scmp.eq.s32.totalorder %s18, 1
    %p156 = por %p154, %p155
    %p158 = scmp.ne.s32.totalorder %s141, %s157
    %p159 = scmp.eq.s32.totalorder %s18, 0
    %p160 = por %p158, %p159
    %p161 = scmp.le.s32.totalorder 1, %s12
    %p162 = scmp.lt.s32.totalorder %s12, 3
    %p163 = pnand %p161, %p162
    %p164 = pneg %p163
    // Predicated region
    $region9: #{conv_block_forward.3} parent=5 // pred_check
      _
    $region10: #{conv_block_forward.3} parent=5 // pred_check_branch
      %166 = sbr.rel (%p163) target = $region12
    $region11: #{conv_block_forward.3} parent=5 // pred_region
      %s167 = ssub.s32 %s12, 1
      // Predicated region
      $region13: #{conv_block_forward.3} parent=11 // pred_check
        %p168 = pneg %p59
      $region14: #{conv_block_forward.3} parent=11 // pred_check_branch
        %170 = sbr.rel (%p168) target = $region16
      $region15: #{conv_block_forward.3} parent=11 // pred_region
        _
      $region16: #{conv_block_forward.3} parent=11 // pred_fallthru
        _
      // Predicated region
      $region17: #{conv_block_forward.3} parent=11 // pred_check
        %p171 = pneg %p80
      $region18: #{conv_block_forward.3} parent=11 // pred_check_branch
        %173 = sbr.rel (%p171) target = $region20
      $region19: #{conv_block_forward.3} parent=11 // pred_region
        _
      $region20: #{conv_block_forward.3} parent=11 // pred_fallthru
        _
      // Predicated region
      $region21: #{conv_block_forward.3} parent=11 // pred_check
        %p174 = pneg %p101
      $region22: #{conv_block_forward.3} parent=11 // pred_check_branch
        %176 = sbr.rel (%p174) target = $region24
      $region23: #{conv_block_forward.3} parent=11 // pred_region
        _
      $region24: #{conv_block_forward.3} parent=11 // pred_fallthru
        _
    $region12: #{conv_block_forward.3} parent=5 // pred_fallthru
      _
    %p177 = scmp.lt.s32.totalorder %s12, 2
    // Predicated region
    $region25: #{conv_block_forward.3} parent=5 // pred_check
      %p178 = pneg %p177
    $region26: #{conv_block_forward.3} parent=5 // pred_check_branch
      %180 = sbr.rel (%p178) target = $region28
    $region27: #{conv_block_forward.3} parent=5 // pred_region
      // Predicated region
      $region29: #{conv_block_forward.3} parent=27 // pred_check
        %p181 = pneg %p32
      $region30: #{conv_block_forward.3} parent=27 // pred_check_branch
        %183 = sbr.rel (%p181) target = $region32
      $region31: #{conv_block_forward.3} parent=27 // pred_region
        %p184 = scmp.lt.s32.totalorder %s12, 1
        %s185 = scalar_select %p184, %s12, 1
        %s186 = smul.addr %s185, 32
        %s187 = smul.addr %s186, 8
        %s188 = scalar_lea.vmem %s0, %s187
      $region32: #{conv_block_forward.3} parent=27 // pred_fallthru
        _
    $region28: #{conv_block_forward.3} parent=5 // pred_fallthru
      _
    %p189 = scmp.le.s32.totalorder 1, %s12
    %p190 = scmp.lt.s32.totalorder %s12, 3
    %p191 = pnand %p189, %p190
    %p192 = pneg %p191
    // Predicated region
    $region33: #{conv_block_forward.3} parent=5 // pred_check
      _
    $region34: #{conv_block_forward.3} parent=5 // pred_check_branch
      %194 = sbr.rel (%p191) target = $region36
    $region35: #{conv_block_forward.3} parent=5 // pred_region
      %s195 = ssub.s32 %s12, 1
      %p196 = scmp.lt.s32.totalorder %s17, 1
      %s197 = scalar_select %p196, %s17, 1
      %s198 = smul.addr %s197, 32
      %s199 = smul.addr %s198, 8
      %s200 = scalar_lea.vmem %s0, %s199
      %p201 = pneg %p38
      %p202 = pneg %p35
      %p203 = pneg %p59
      %p204 = pneg %p56
      %p205 = pneg %p80
      %p206 = pneg %p77
      %p207 = pneg %p101
      %p208 = pneg %p98
      %p209 = pneg %p127
      %p210 = pneg %p124
      %p211 = scmp.lt.s32.totalorder %s17, 1
      %s212 = scalar_select %p211, %s17, 1
      %s213 = smul.addr %s212, 32
      %s214 = smul.addr %s213, 4
      %s215 = scalar_lea.vmem %s4, %s214
      %p216 = pneg %p153
      %p217 = pneg %p150
      %p218 = scmp.lt.s32.totalorder %s17, 1
      %s219 = scalar_select %p218, %s17, 1
      %s220 = smul.addr %s219, 2
      %s221 = scalar_lea.vmem %s5, %s220
      %p222 = scmp.lt.s32.totalorder %s17, 1
      %s223 = scalar_select %p222, %s17, 1
      %s224 = smul.addr %s223, 32
      %s225 = smul.addr %s224, 8
      %s226 = scalar_lea.vmem %s0, %s225
      %p227 = scmp.lt.s32.totalorder %s17, 1
      %s228 = scalar_select %p227, %s17, 1
      %s229 = smul.addr %s228, 32
      %s230 = smul.addr %s229, 4
      %s231 = scalar_lea.vmem %s4, %s230
      %p232 = scmp.lt.s32.totalorder %s17, 1
      %s233 = scalar_select %p232, %s17, 1
      %s234 = smul.addr %s233, 2
      %s235 = scalar_lea.vmem %s5, %s234
      %v237 = vld [vmem:[%s226] sm:$0xff]
      %v238 = vld [vmem:[%s226 + $0x8] sm:$0xff]
      %v239 = vld [vmem:[%s226 + $0x10] sm:$0xff]
      %v240 = vld [vmem:[%s226 + $0x18] sm:$0xff]
      %v241 = vld [vmem:[%s226 + $0x20] sm:$0xff]
      %v242 = vld [vmem:[%s226 + $0x28] sm:$0xff]
      %v243 = vld [vmem:[%s226 + $0x30] sm:$0xff]
      %v244 = vld [vmem:[%s226 + $0x38] sm:$0xff]
      %v245 = vld [vmem:[%s226 + $0x40] sm:$0xff]
      %v246 = vld [vmem:[%s226 + $0x48] sm:$0xff]
      %v247 = vld [vmem:[%s226 + $0x50] sm:$0xff]
      %v248 = vld [vmem:[%s226 + $0x58] sm:$0xff]
      %v249 = vld [vmem:[%s226 + $0x60] sm:$0xff]
      %v250 = vld [vmem:[%s226 + $0x68] sm:$0xff]
      %v251 = vld [vmem:[%s226 + $0x70] sm:$0xff]
      %v252 = vld [vmem:[%s226 + $0x78] sm:$0xff]
      %v253 = vld [vmem:[%s226 + $0x80] sm:$0xff]
      %v254 = vld [vmem:[%s226 + $0x88] sm:$0xff]
      %v255 = vld [vmem:[%s226 + $0x90] sm:$0xff]
      %v256 = vld [vmem:[%s226 + $0x98] sm:$0xff]
      %v257 = vld [vmem:[%s226 + $0xa0] sm:$0xff]
      %v258 = vld [vmem:[%s226 + $0xa8] sm:$0xff]
      %v259 = vld [vmem:[%s226 + $0xb0] sm:$0xff]
      %v260 = vld [vmem:[%s226 + $0xb8] sm:$0xff]
      %v261 = vld [vmem:[%s226 + $0xc0] sm:$0xff]
      %v262 = vld [vmem:[%s226 + $0xc8] sm:$0xff]
      %v263 = vld [vmem:[%s226 + $0xd0] sm:$0xff]
      %v264 = vld [vmem:[%s226 + $0xd8] sm:$0xff]
      %v265 = vld [vmem:[%s226 + $0xe0] sm:$0xff]
      %v266 = vld [vmem:[%s226 + $0xe8] sm:$0xff]
      %v267 = vld [vmem:[%s226 + $0xf0] sm:$0xff]
      %v268 = vld [vmem:[%s226 + $0xf8] sm:$0xff]
      %vm269 = vcmask 31744
      %270 = vst.msk [vmem:[#allocation2] sm:$0xff] %vm269, 0.0
      %271 = vst.msk [vmem:[#allocation2 + $0x8] sm:$0xff] %vm269, 0.0
      %vm272 = vcmask 25600
      %273 = vst.msk [vmem:[#allocation2 + $0x10] sm:$0x3] %vm272, 0.0
      %s274 = scalar_lea.vmem [#allocation2], 408
      %275 = vst.msk [vmem:[%s274] sm:$0xff] %vm269, 0.0
      %276 = vst.msk [vmem:[%s274 + $0x8] sm:$0xff] %vm269, 0.0
      %277 = vst.msk [vmem:[%s274 + $0x10] sm:$0x3] %vm272, 0.0
      %vm278 = vcmask 24576
      %279 = vst.msk [vmem:[#allocation2] sm:$0x1] %vm278, 0.0
      %280 = vst.msk [vmem:[#allocation2 + $0x18] sm:$0x1] %vm278, 0.0
      %281 = vst.msk [vmem:[#allocation2 + $0x30] sm:$0x1] %vm278, 0.0
      %282 = vst.msk [vmem:[#allocation2 + $0x48] sm:$0x1] %vm278, 0.0
      %283 = vst.msk [vmem:[#allocation2 + $0x60] sm:$0x1] %vm278, 0.0
      %284 = vst.msk [vmem:[#allocation2 + $0x78] sm:$0x1] %vm278, 0.0
      %285 = vst.msk [vmem:[#allocation2 + $0x90] sm:$0x1] %vm278, 0.0
      %286 = vst.msk [vmem:[#allocation2 + $0xa8] sm:$0x1] %vm278, 0.0
      %287 = vst.msk [vmem:[#allocation2 + $0xc0] sm:$0x1] %vm278, 0.0
      %288 = vst.msk [vmem:[#allocation2 + $0xd8] sm:$0x1] %vm278, 0.0
      %289 = vst.msk [vmem:[#allocation2 + $0xf0] sm:$0x1] %vm278, 0.0
      %290 = vst.msk [vmem:[#allocation2 + $0x108] sm:$0x1] %vm278, 0.0
      %291 = vst.msk [vmem:[#allocation2 + $0x120] sm:$0x1] %vm278, 0.0
      %292 = vst.msk [vmem:[#allocation2 + $0x138] sm:$0x1] %vm278, 0.0
      %293 = vst.msk [vmem:[#allocation2 + $0x150] sm:$0x1] %vm278, 0.0
      %294 = vst.msk [vmem:[#allocation2 + $0x168] sm:$0x1] %vm278, 0.0
      %295 = vst.msk [vmem:[#allocation2 + $0x180] sm:$0x1] %vm278, 0.0
      %296 = vst.msk [vmem:[#allocation2 + $0x198] sm:$0x1] %vm278, 0.0
      %297 = vst.msk [vmem:[#allocation2 + $0x11] sm:$0x1] %vm278, 0.0
      %298 = vst.msk [vmem:[#allocation2 + $0x29] sm:$0x1] %vm278, 0.0
      %299 = vst.msk [vmem:[#allocation2 + $0x41] sm:$0x1] %vm278, 0.0
      %300 = vst.msk [vmem:[#allocation2 + $0x59] sm:$0x1] %vm278, 0.0
      %301 = vst.msk [vmem:[#allocation2 + $0x71] sm:$0x1] %vm278, 0.0
      %302 = vst.msk [vmem:[#allocation2 + $0x89] sm:$0x1] %vm278, 0.0
      %303 = vst.msk [vmem:[#allocation2 + $0xa1] sm:$0x1] %vm278, 0.0
      %304 = vst.msk [vmem:[#allocation2 + $0xb9] sm:$0x1] %vm278, 0.0
      %305 = vst.msk [vmem:[#allocation2 + $0xd1] sm:$0x1] %vm278, 0.0
      %306 = vst.msk [vmem:[#allocation2 + $0xe9] sm:$0x1] %vm278, 0.0
      %307 = vst.msk [vmem:[#allocation2 + $0x101] sm:$0x1] %vm278, 0.0
      %308 = vst.msk [vmem:[#allocation2 + $0x119] sm:$0x1] %vm278, 0.0
      %309 = vst.msk [vmem:[#allocation2 + $0x131] sm:$0x1] %vm278, 0.0
      %310 = vst.msk [vmem:[#allocation2 + $0x149] sm:$0x1] %vm278, 0.0
      %311 = vst.msk [vmem:[#allocation2 + $0x161] sm:$0x1] %vm278, 0.0
      %312 = vst.msk [vmem:[#allocation2 + $0x179] sm:$0x1] %vm278, 0.0
      %313 = vst.msk [vmem:[#allocation2 + $0x191] sm:$0x1] %vm278, 0.0
      %314 = vst.msk [vmem:[#allocation2 + $0x1a9] sm:$0x1] %vm278, 0.0
      %s315 = scalar_lea.vmem [#allocation2], 24
      %316 = vst.msk [vmem:[%s315 + $0x1] sm:$0xff] %vm269, %v237
      %317 = vst.msk [vmem:[%s315 + $0x9] sm:$0xff] %vm269, %v238
      %318 = vst.msk [vmem:[%s315 + $0x19] sm:$0xff] %vm269, %v239
      %319 = vst.msk [vmem:[%s315 + $0x21] sm:$0xff] %vm269, %v240
      %320 = vst.msk [vmem:[%s315 + $0x31] sm:$0xff] %vm269, %v241
      %321 = vst.msk [vmem:[%s315 + $0x39] sm:$0xff] %vm269, %v242
      %322 = vst.msk [vmem:[%s315 + $0x49] sm:$0xff] %vm269, %v243
      %323 = vst.msk [vmem:[%s315 + $0x51] sm:$0xff] %vm269, %v244
      %324 = vst.msk [vmem:[%s315 + $0x61] sm:$0xff] %vm269, %v245
      %325 = vst.msk [vmem:[%s315 + $0x69] sm:$0xff] %vm269, %v246
      %326 = vst.msk [vmem:[%s315 + $0x79] sm:$0xff] %vm269, %v247
      %327 = vst.msk [vmem:[%s315 + $0x81] sm:$0xff] %vm269, %v248
      %328 = vst.msk [vmem:[%s315 + $0x91] sm:$0xff] %vm269, %v249
      %329 = vst.msk [vmem:[%s315 + $0x99] sm:$0xff] %vm269, %v250
      %330 = vst.msk [vmem:[%s315 + $0xa9] sm:$0xff] %vm269, %v251
      %331 = vst.msk [vmem:[%s315 + $0xb1] sm:$0xff] %vm269, %v252
      %332 = vst.msk [vmem:[%s315 + $0xc1] sm:$0xff] %vm269, %v253
      %333 = vst.msk [vmem:[%s315 + $0xc9] sm:$0xff] %vm269, %v254
      %334 = vst.msk [vmem:[%s315 + $0xd9] sm:$0xff] %vm269, %v255
      %335 = vst.msk [vmem:[%s315 + $0xe1] sm:$0xff] %vm269, %v256
      %336 = vst.msk [vmem:[%s315 + $0xf1] sm:$0xff] %vm269, %v257
      %337 = vst.msk [vmem:[%s315 + $0xf9] sm:$0xff] %vm269, %v258
      %338 = vst.msk [vmem:[%s315 + $0x109] sm:$0xff] %vm269, %v259
      %339 = vst.msk [vmem:[%s315 + $0x111] sm:$0xff] %vm269, %v260
      %340 = vst.msk [vmem:[%s315 + $0x121] sm:$0xff] %vm269, %v261
      %341 = vst.msk [vmem:[%s315 + $0x129] sm:$0xff] %vm269, %v262
      %342 = vst.msk [vmem:[%s315 + $0x139] sm:$0xff] %vm269, %v263
      %343 = vst.msk [vmem:[%s315 + $0x141] sm:$0xff] %vm269, %v264
      %344 = vst.msk [vmem:[%s315 + $0x151] sm:$0xff] %vm269, %v265
      %345 = vst.msk [vmem:[%s315 + $0x159] sm:$0xff] %vm269, %v266
      %346 = vst.msk [vmem:[%s315 + $0x169] sm:$0xff] %vm269, %v267
      %347 = vst.msk [vmem:[%s315 + $0x171] sm:$0xff] %vm269, %v268
      %v348 = vld [vmem:[#allocation2] sm:$0xff]
      %v349 = vld [vmem:[#allocation2 + $0x8] sm:$0xff]
      %v350 = vld [vmem:[#allocation2 + $0x18] sm:$0xff]
      %v351 = vld [vmem:[#allocation2 + $0x20] sm:$0xff]
      %v352 = vld [vmem:[#allocation2 + $0x30] sm:$0xff]
      %v353 = vld [vmem:[#allocation2 + $0x38] sm:$0xff]
      %v354 = vld [vmem:[#allocation2 + $0x48] sm:$0xff]
      %v355 = vld [vmem:[#allocation2 + $0x50] sm:$0xff]
      %v356 = vld [vmem:[#allocation2 + $0x60] sm:$0xff]
      %v357 = vld [vmem:[#allocation2 + $0x68] sm:$0xff]
      %v358 = vld [vmem:[#allocation2 + $0x78] sm:$0xff]
      %v359 = vld [vmem:[#allocation2 + $0x80] sm:$0xff]
      %v360 = vld [vmem:[#allocation2 + $0x90] sm:$0xff]
      %v361 = vld [vmem:[#allocation2 + $0x98] sm:$0xff]
      %v362 = vld [vmem:[#allocation2 + $0xa8] sm:$0xff]
      %v363 = vld [vmem:[#allocation2 + $0xb0] sm:$0xff]
      %v364 = vld [vmem:[#allocation2 + $0xc0] sm:$0xff]
      %v365 = vld [vmem:[#allocation2 + $0xc8] sm:$0xff]
      %v366 = vld [vmem:[#allocation2 + $0xd8] sm:$0xff]
      %v367 = vld [vmem:[#allocation2 + $0xe0] sm:$0xff]
      %v368 = vld [vmem:[#allocation2 + $0xf0] sm:$0xff]
      %v369 = vld [vmem:[#allocation2 + $0xf8] sm:$0xff]
      %v370 = vld [vmem:[#allocation2 + $0x108] sm:$0xff]
      %v371 = vld [vmem:[#allocation2 + $0x110] sm:$0xff]
      %v372 = vld [vmem:[#allocation2 + $0x120] sm:$0xff]
      %v373 = vld [vmem:[#allocation2 + $0x128] sm:$0xff]
      %v374 = vld [vmem:[#allocation2 + $0x138] sm:$0xff]
      %v375 = vld [vmem:[#allocation2 + $0x140] sm:$0xff]
      %v376 = vld [vmem:[#allocation2 + $0x150] sm:$0xff]
      %v377 = vld [vmem:[#allocation2 + $0x158] sm:$0xff]
      %v378 = vld [vmem:[#allocation2 + $0x168] sm:$0xff]
      %v379 = vld [vmem:[#allocation2 + $0x170] sm:$0xff]
      %v380 = vpack.c.bf16 %v349, %v348
      %v381 = vpack.c.bf16 %v351, %v350
      %v382 = vpack.c.bf16 %v353, %v352
      %v383 = vpack.c.bf16 %v355, %v354
      %v384 = vpack.c.bf16 %v357, %v356
      %v385 = vpack.c.bf16 %v359, %v358
      %v386 = vpack.c.bf16 %v361, %v360
      %v387 = vpack.c.bf16 %v363, %v362
      %v388 = vpack.c.bf16 %v365, %v364
      %v389 = vpack.c.bf16 %v367, %v366
      %v390 = vpack.c.bf16 %v369, %v368
      %v391 = vpack.c.bf16 %v371, %v370
      %v392 = vpack.c.bf16 %v373, %v372
      %v393 = vpack.c.bf16 %v375, %v374
      %v394 = vpack.c.bf16 %v377, %v376
      %v395 = vpack.c.bf16 %v379, %v378
      %396 = vst.msk [vmem:[#allocation3] sm:$0xff] %vm269, %v380
      %397 = vst.msk [vmem:[#allocation3 + $0x8] sm:$0xff] %vm269, %v381
      %398 = vst.msk [vmem:[#allocation3 + $0x10] sm:$0xff] %vm269, %v382
      %399 = vst.msk [vmem:[#allocation3 + $0x18] sm:$0xff] %vm269, %v383
      %400 = vst.msk [vmem:[#allocation3 + $0x20] sm:$0xff] %vm269, %v384
      %401 = vst.msk [vmem:[#allocation3 + $0x28] sm:$0xff] %vm269, %v385
      %402 = vst.msk [vmem:[#allocation3 + $0x30] sm:$0xff] %vm269, %v386
      %403 = vst.msk [vmem:[#allocation3 + $0x38] sm:$0xff] %vm269, %v387
      %404 = vst.msk [vmem:[#allocation3 + $0x40] sm:$0xff] %vm269, %v388
      %405 = vst.msk [vmem:[#allocation3 + $0x48] sm:$0xff] %vm269, %v389
      %406 = vst.msk [vmem:[#allocation3 + $0x50] sm:$0xff] %vm269, %v390
      %407 = vst.msk [vmem:[#allocation3 + $0x58] sm:$0xff] %vm269, %v391
      %408 = vst.msk [vmem:[#allocation3 + $0x60] sm:$0xff] %vm269, %v392
      %409 = vst.msk [vmem:[#allocation3 + $0x68] sm:$0xff] %vm269, %v393
      %410 = vst.msk [vmem:[#allocation3 + $0x70] sm:$0xff] %vm269, %v394
      %411 = vst.msk [vmem:[#allocation3 + $0x78] sm:$0xff] %vm269, %v395
      %v412 = vld [vmem:[#allocation2 + $0x1] sm:$0xff]
      %v413 = vld [vmem:[#allocation2 + $0x9] sm:$0xff]
      %v414 = vld [vmem:[#allocation2 + $0x19] sm:$0xff]
      %v415 = vld [vmem:[#allocation2 + $0x21] sm:$0xff]
      %v416 = vld [vmem:[#allocation2 + $0x31] sm:$0xff]
      %v417 = vld [vmem:[#allocation2 + $0x39] sm:$0xff]
      %v418 = vld [vmem:[#allocation2 + $0x49] sm:$0xff]
      %v419 = vld [vmem:[#allocation2 + $0x51] sm:$0xff]
      %v420 = vld [vmem:[#allocation2 + $0x61] sm:$0xff]
      %v421 = vld [vmem:[#allocation2 + $0x69] sm:$0xff]
      %v422 = vld [vmem:[#allocation2 + $0x79] sm:$0xff]
      %v423 = vld [vmem:[#allocation2 + $0x81] sm:$0xff]
      %v424 = vld [vmem:[#allocation2 + $0x91] sm:$0xff]
      %v425 = vld [vmem:[#allocation2 + $0x99] sm:$0xff]
      %v426 = vld [vmem:[#allocation2 + $0xa9] sm:$0xff]
      %v427 = vld [vmem:[#allocation2 + $0xb1] sm:$0xff]
      %v428 = vld [vmem:[#allocation2 + $0xc1] sm:$0xff]
      %v429 = vld [vmem:[#allocation2 + $0xc9] sm:$0xff]
      %v430 = vld [vmem:[#allocation2 + $0xd9] sm:$0xff]
      %v431 = vld [vmem:[#allocation2 + $0xe1] sm:$0xff]
      %v432 = vld [vmem:[#allocation2 + $0xf1] sm:$0xff]
      %v433 = vld [vmem:[#allocation2 + $0xf9] sm:$0xff]
      %v434 = vld [vmem:[#allocation2 + $0x109] sm:$0xff]
      %v435 = vld [vmem:[#allocation2 + $0x111] sm:$0xff]
      %v436 = vld [vmem:[#allocation2 + $0x121] sm:$0xff]
      %v437 = vld [vmem:[#allocation2 + $0x129] sm:$0xff]
      %v438 = vld [vmem:[#allocation2 + $0x139] sm:$0xff]
      %v439 = vld [vmem:[#allocation2 + $0x141] sm:$0xff]
      %v440 = vld [vmem:[#allocation2 + $0x151] sm:$0xff]
      %v441 = vld [vmem:[#allocation2 + $0x159] sm:$0xff]
      %v442 = vld [vmem:[#allocation2 + $0x169] sm:$0xff]
      %v443 = vld [vmem:[#allocation2 + $0x171] sm:$0xff]
      %v444 = vpack.c.bf16 %v413, %v412
      %v445 = vpack.c.bf16 %v415, %v414
      %v446 = vpack.c.bf16 %v417, %v416
      %v447 = vpack.c.bf16 %v419, %v418
      %v448 = vpack.c.bf16 %v421, %v420
      %v449 = vpack.c.bf16 %v423, %v422
      %v450 = vpack.c.bf16 %v425, %v424
      %v451 = vpack.c.bf16 %v427, %v426
      %v452 = vpack.c.bf16 %v429, %v428
      %v453 = vpack.c.bf16 %v431, %v430
      %v454 = vpack.c.bf16 %v433, %v432
      %v455 = vpack.c.bf16 %v435, %v434
      %v456 = vpack.c.bf16 %v437, %v436
      %v457 = vpack.c.bf16 %v439, %v438
      %v458 = vpack.c.bf16 %v441, %v440
      %v459 = vpack.c.bf16 %v443, %v442
      %476 = vrot.lane.b32.xlu0 %v444, 4
      %v477 = vpop.permute.xlu0 %476
      %478 = vrot.lane.b32.xlu0 %v445, 4
      %v479 = vpop.permute.xlu0 %478
      %480 = vrot.lane.b32.xlu0 %v446, 4
      %v481 = vpop.permute.xlu0 %480
      %482 = vrot.lane.b32.xlu0 %v447, 4
      %v483 = vpop.permute.xlu0 %482
      %484 = vrot.lane.b32.xlu0 %v448, 4
      %v485 = vpop.permute.xlu0 %484
      %486 = vrot.lane.b32.xlu0 %v449, 4
      %v487 = vpop.permute.xlu0 %486
      %488 = vrot.lane.b32.xlu0 %v450, 4
      %v489 = vpop.permute.xlu0 %488
      %490 = vrot.lane.b32.xlu0 %v451, 4
      %v491 = vpop.permute.xlu0 %490
      %492 = vrot.lane.b32.xlu0 %v452, 4
      %v493 = vpop.permute.xlu0 %492
      %494 = vrot.lane.b32.xlu0 %v453, 4
      %v495 = vpop.permute.xlu0 %494
      %496 = vrot.lane.b32.xlu0 %v454, 4
      %v497 = vpop.permute.xlu0 %496
      %498 = vrot.lane.b32.xlu0 %v455, 4
      %v499 = vpop.permute.xlu0 %498
      %500 = vrot.lane.b32.xlu0 %v456, 4
      %v501 = vpop.permute.xlu0 %500
      %502 = vrot.lane.b32.xlu0 %v457, 4
      %v503 = vpop.permute.xlu0 %502
      %504 = vrot.lane.b32.xlu0 %v458, 4
      %v505 = vpop.permute.xlu0 %504
      %506 = vrot.lane.b32.xlu0 %v459, 4
      %v507 = vpop.permute.xlu0 %506
      %vm524 = vcmask 64544
      %525 = vst.msk [vmem:[#allocation3] sm:$0xff] %vm524, %v477
      %526 = vst.msk [vmem:[#allocation3 + $0x8] sm:$0xff] %vm524, %v479
      %527 = vst.msk [vmem:[#allocation3 + $0x10] sm:$0xff] %vm524, %v481
      %528 = vst.msk [vmem:[#allocation3 + $0x18] sm:$0xff] %vm524, %v483
      %529 = vst.msk [vmem:[#allocation3 + $0x20] sm:$0xff] %vm524, %v485
      %530 = vst.msk [vmem:[#allocation3 + $0x28] sm:$0xff] %vm524, %v487
      %531 = vst.msk [vmem:[#allocation3 + $0x30] sm:$0xff] %vm524, %v489
      %532 = vst.msk [vmem:[#allocation3 + $0x38] sm:$0xff] %vm524, %v491
      %533 = vst.msk [vmem:[#allocation3 + $0x40] sm:$0xff] %vm524, %v493
      %534 = vst.msk [vmem:[#allocation3 + $0x48] sm:$0xff] %vm524, %v495
      %535 = vst.msk [vmem:[#allocation3 + $0x50] sm:$0xff] %vm524, %v497
      %536 = vst.msk [vmem:[#allocation3 + $0x58] sm:$0xff] %vm524, %v499
      %537 = vst.msk [vmem:[#allocation3 + $0x60] sm:$0xff] %vm524, %v501
      %538 = vst.msk [vmem:[#allocation3 + $0x68] sm:$0xff] %vm524, %v503
      %539 = vst.msk [vmem:[#allocation3 + $0x70] sm:$0xff] %vm524, %v505
      %540 = vst.msk [vmem:[#allocation3 + $0x78] sm:$0xff] %vm524, %v507
      %v541 = vld [vmem:[#allocation2 + $0x2] sm:$0xff]
      %v542 = vld [vmem:[#allocation2 + $0xa] sm:$0xff]
      %v543 = vld [vmem:[#allocation2 + $0x1a] sm:$0xff]
      %v544 = vld [vmem:[#allocation2 + $0x22] sm:$0xff]
      %v545 = vld [vmem:[#allocation2 + $0x32] sm:$0xff]
      %v546 = vld [vmem:[#allocation2 + $0x3a] sm:$0xff]
      %v547 = vld [vmem:[#allocation2 + $0x4a] sm:$0xff]
      %v548 = vld [vmem:[#allocation2 + $0x52] sm:$0xff]
      %v549 = vld [vmem:[#allocation2 + $0x62] sm:$0xff]
      %v550 = vld [vmem:[#allocation2 + $0x6a] sm:$0xff]
      %v551 = vld [vmem:[#allocation2 + $0x7a] sm:$0xff]
      %v552 = vld [vmem:[#allocation2 + $0x82] sm:$0xff]
      %v553 = vld [vmem:[#allocation2 + $0x92] sm:$0xff]
      %v554 = vld [vmem:[#allocation2 + $0x9a] sm:$0xff]
      %v555 = vld [vmem:[#allocation2 + $0xaa] sm:$0xff]
      %v556 = vld [vmem:[#allocation2 + $0xb2] sm:$0xff]
      %v557 = vld [vmem:[#allocation2 + $0xc2] sm:$0xff]
      %v558 = vld [vmem:[#allocation2 + $0xca] sm:$0xff]
      %v559 = vld [vmem:[#allocation2 + $0xda] sm:$0xff]
      %v560 = vld [vmem:[#allocation2 + $0xe2] sm:$0xff]
      %v561 = vld [vmem:[#allocation2 + $0xf2] sm:$0xff]
      %v562 = vld [vmem:[#allocation2 + $0xfa] sm:$0xff]
      %v563 = vld [vmem:[#allocation2 + $0x10a] sm:$0xff]
      %v564 = vld [vmem:[#allocation2 + $0x112] sm:$0xff]
      %v565 = vld [vmem:[#allocation2 + $0x122] sm:$0xff]
      %v566 = vld [vmem:[#allocation2 + $0x12a] sm:$0xff]
      %v567 = vld [vmem:[#allocation2 + $0x13a] sm:$0xff]
      %v568 = vld [vmem:[#allocation2 + $0x142] sm:$0xff]
      %v569 = vld [vmem:[#allocation2 + $0x152] sm:$0xff]
      %v570 = vld [vmem:[#allocation2 + $0x15a] sm:$0xff]
      %v571 = vld [vmem:[#allocation2 + $0x16a] sm:$0xff]
      %v572 = vld [vmem:[#allocation2 + $0x172] sm:$0xff]
      %v573 = vpack.c.bf16 %v542, %v541
      %v574 = vpack.c.bf16 %v544, %v543
      %v575 = vpack.c.bf16 %v546, %v545
      %v576 = vpack.c.bf16 %v548, %v547
      %v577 = vpack.c.bf16 %v550, %v549
      %v578 = vpack.c.bf16 %v552, %v551
      %v579 = vpack.c.bf16 %v554, %v553
      %v580 = vpack.c.bf16 %v556, %v555
      %v581 = vpack.c.bf16 %v558, %v557
      %v582 = vpack.c.bf16 %v560, %v559
      %v583 = vpack.c.bf16 %v562, %v561
      %v584 = vpack.c.bf16 %v564, %v563
      %v585 = vpack.c.bf16 %v566, %v565
      %v586 = vpack.c.bf16 %v568, %v567
      %v587 = vpack.c.bf16 %v570, %v569
      %v588 = vpack.c.bf16 %v572, %v571
      %605 = vrot.lane.b32.xlu0 %v573, 8
      %v606 = vpop.permute.xlu0 %605
      %607 = vrot.lane.b32.xlu0 %v574, 8
      %v608 = vpop.permute.xlu0 %607
      %609 = vrot.lane.b32.xlu0 %v575, 8
      %v610 = vpop.permute.xlu0 %609
      %611 = vrot.lane.b32.xlu0 %v576, 8
      %v612 = vpop.permute.xlu0 %611
      %613 = vrot.lane.b32.xlu0 %v577, 8
      %v614 = vpop.permute.xlu0 %613
      %615 = vrot.lane.b32.xlu0 %v578, 8
      %v616 = vpop.permute.xlu0 %615
      %617 = vrot.lane.b32.xlu0 %v579, 8
      %v618 = vpop.permute.xlu0 %617
      %619 = vrot.lane.b32.xlu0 %v580, 8
      %v620 = vpop.permute.xlu0 %619
      %621 = vrot.lane.b32.xlu0 %v581, 8
      %v622 = vpop.permute.xlu0 %621
      %623 = vrot.lane.b32.xlu0 %v582, 8
      %v624 = vpop.permute.xlu0 %623
      %625 = vrot.lane.b32.xlu0 %v583, 8
      %v626 = vpop.permute.xlu0 %625
      %627 = vrot.lane.b32.xlu0 %v584, 8
      %v628 = vpop.permute.xlu0 %627
      %629 = vrot.lane.b32.xlu0 %v585, 8
      %v630 = vpop.permute.xlu0 %629
      %631 = vrot.lane.b32.xlu0 %v586, 8
      %v632 = vpop.permute.xlu0 %631
      %633 = vrot.lane.b32.xlu0 %v587, 8
      %v634 = vpop.permute.xlu0 %633
      %635 = vrot.lane.b32.xlu0 %v588, 8
      %v636 = vpop.permute.xlu0 %635
      %vm653 = vcmask 97344
      %654 = vst.msk [vmem:[#allocation3] sm:$0xff] %vm653, %v606
      %655 = vst.msk [vmem:[#allocation3 + $0x8] sm:$0xff] %vm653, %v608
      %656 = vst.msk [vmem:[#allocation3 + $0x10] sm:$0xff] %vm653, %v610
      %657 = vst.msk [vmem:[#allocation3 + $0x18] sm:$0xff] %vm653, %v612
      %658 = vst.msk [vmem:[#allocation3 + $0x20] sm:$0xff] %vm653, %v614
      %659 = vst.msk [vmem:[#allocation3 + $0x28] sm:$0xff] %vm653, %v616
      %660 = vst.msk [vmem:[#allocation3 + $0x30] sm:$0xff] %vm653, %v618
      %661 = vst.msk [vmem:[#allocation3 + $0x38] sm:$0xff] %vm653, %v620
      %662 = vst.msk [vmem:[#allocation3 + $0x40] sm:$0xff] %vm653, %v622
      %663 = vst.msk [vmem:[#allocation3 + $0x48] sm:$0xff] %vm653, %v624
      %664 = vst.msk [vmem:[#allocation3 + $0x50] sm:$0xff] %vm653, %v626
      %665 = vst.msk [vmem:[#allocation3 + $0x58] sm:$0xff] %vm653, %v628
      %666 = vst.msk [vmem:[#allocation3 + $0x60] sm:$0xff] %vm653, %v630
      %667 = vst.msk [vmem:[#allocation3 + $0x68] sm:$0xff] %vm653, %v632
      %668 = vst.msk [vmem:[#allocation3 + $0x70] sm:$0xff] %vm653, %v634
      %669 = vst.msk [vmem:[#allocation3 + $0x78] sm:$0xff] %vm653, %v636
      %v670 = vld [vmem:[#allocation3] sm:$0xff]
      %v671 = vld [vmem:[#allocation3 + $0x8] sm:$0xff]
      %v672 = vld [vmem:[#allocation3 + $0x10] sm:$0xff]
      %v673 = vld [vmem:[#allocation3 + $0x18] sm:$0xff]
      %v674 = vld [vmem:[#allocation3 + $0x20] sm:$0xff]
      %v675 = vld [vmem:[#allocation3 + $0x28] sm:$0xff]
      %v676 = vld [vmem:[#allocation3 + $0x30] sm:$0xff]
      %v677 = vld [vmem:[#allocation3 + $0x38] sm:$0xff]
      %v678 = vld [vmem:[#allocation3 + $0x40] sm:$0xff]
      %v679 = vld [vmem:[#allocation3 + $0x48] sm:$0xff]
      %v680 = vld [vmem:[#allocation3 + $0x50] sm:$0xff]
      %v681 = vld [vmem:[#allocation3 + $0x58] sm:$0xff]
      %v682 = vld [vmem:[#allocation3 + $0x60] sm:$0xff]
      %v683 = vld [vmem:[#allocation3 + $0x68] sm:$0xff]
      %v684 = vld [vmem:[#allocation3 + $0x70] sm:$0xff]
      %v685 = vld [vmem:[#allocation3 + $0x78] sm:$0xff]
      %v686 = vld [vmem:[%s1] sm:$0xf]
      %v687 = vld [vmem:[%s1 + $0x4] sm:$0x3]
      %v690 = vunpack.c.l.b16 %v686
      %v691 = vunpack.c.l.b16 %v687
      %v692 = vpack.c.b16 %v691, %v690
      %vm693 = vcmask 97280
      %v695 = vsel %vm693, %v670, 0
      %v698 = vsel %vm693, %v671, 0
      %v701 = vsel %vm693, %v672, 0
      %v704 = vsel %vm693, %v673, 0
      %v707 = vsel %vm693, %v674, 0
      %v710 = vsel %vm693, %v675, 0
      %v713 = vsel %vm693, %v676, 0
      %v716 = vsel %vm693, %v677, 0
      %v719 = vsel %vm693, %v678, 0
      %v722 = vsel %vm693, %v679, 0
      %v725 = vsel %vm693, %v680, 0
      %v728 = vsel %vm693, %v681, 0
      %v731 = vsel %vm693, %v682, 0
      %v734 = vsel %vm693, %v683, 0
      %v737 = vsel %vm693, %v684, 0
      %v740 = vsel %vm693, %v685, 0
      %vm742 = vcmask 1045504
      %v744 = vsel %vm742, %v692, 0
      %746 = vmatprep.subr.bf16.mxu0 0
      %747 = vmatpush1.bf16.msra.mxu0 %v744
      %748 = vmatprep.subr.bf16.mxu0 0
      %749 = vmatpush1.bf16.msra.mxu0 0
      %750 = vmatprep.subr.bf16.mxu0 0
      %751 = vmatpush1.bf16.msra.mxu0 0
      %752 = vmatprep.subr.bf16.mxu0 0
      %753 = vmatpush1.bf16.msra.mxu0 0
      %754 = vmatprep.subr.bf16.mxu0 0
      %755 = vmatpush1.bf16.msra.mxu0 0
      %756 = vmatprep.subr.bf16.mxu0 0
      %757 = vmatpush1.bf16.msra.mxu0 0
      %758 = vmatprep.subr.bf16.mxu0 0
      %759 = vmatpush1.bf16.msra.mxu0 0
      %760 = vmatprep.subr.bf16.mxu0 0
      %761 = vmatpush1.bf16.msra.mxu0 0
      %762 = vmatprep.subr.bf16.mxu0 0
      %763 = vmatpush1.bf16.msra.mxu0 0
      %764 = vmatprep.subr.bf16.mxu0 0
      %765 = vmatpush1.bf16.msra.mxu0 0
      %766 = vmatprep.subr.bf16.mxu0 0
      %767 = vmatpush1.bf16.msra.mxu0 0
      %768 = vmatprep.subr.bf16.mxu0 0
      %769 = vmatpush1.bf16.msra.mxu0 0
      %770 = vmatprep.subr.bf16.mxu0 0
      %771 = vmatpush1.bf16.msra.mxu0 0
      %772 = vmatprep.subr.bf16.mxu0 0
      %773 = vmatpush1.bf16.msra.mxu0 0
      %774 = vmatprep.subr.bf16.mxu0 0
      %775 = vmatpush1.bf16.msra.mxu0 0
      %776 = vmatprep.subr.bf16.mxu0 0
      %777 = vmatpush1.bf16.msra.mxu0 0
      %778 = vmatprep.mubr.bf16.mxu0 0
      %779 = vmatmul.mubr.bf16.gmra.mrb[0].mxu0 %v695
      %v780 = vpop.f32.mrb[0].mxu0
      %v781 = vadd.f32 0.0, %v780
      %v782 = vpop.f32.mrb[0].mxu0
      %v783 = vpop.f32.mrb[0].mxu0
      %v784 = vadd.f32 0.0, %v783
      %v785 = vpop.f32.mrb[0].mxu0
      %786 = vmatprep.mubr.bf16.mxu0 0
      %787 = vmatmul.mubr.bf16.gmra.mrb[0].mxu0 %v698
      %v788 = vpop.f32.mrb[0].mxu0
      %v789 = vadd.f32 0.0, %v788
      %v790 = vpop.f32.mrb[0].mxu0
      %v791 = vpop.f32.mrb[0].mxu0
      %v792 = vadd.f32 0.0, %v791
      %v793 = vpop.f32.mrb[0].mxu0
      %794 = vmatprep.mubr.bf16.mxu0 0
      %795 = vmatmul.mubr.bf16.gmra.mrb[0].mxu0 %v701
      %v796 = vpop.f32.mrb[0].mxu0
      %v797 = vadd.f32 0.0, %v796
      %v798 = vpop.f32.mrb[0].mxu0
      %v799 = vpop.f32.mrb[0].mxu0
      %v800 = vadd.f32 0.0, %v799
      %v801 = vpop.f32.mrb[0].mxu0
      %802 = vmatprep.mubr.bf16.mxu0 0
      %803 = vmatmul.mubr.bf16.gmra.mrb[0].mxu0 %v704
      %v804 = vpop.f32.mrb[0].mxu0
      %v805 = vadd.f32 0.0, %v804
      %v806 = vpop.f32.mrb[0].mxu0
      %v807 = vpop.f32.mrb[0].mxu0
      %v808 = vadd.f32 0.0, %v807
      %v809 = vpop.f32.mrb[0].mxu0
      %810 = vmatprep.mubr.bf16.mxu0 0
      %811 = vmatmul.mubr.bf16.gmra.mrb[0].mxu0 %v707
      %v812 = vpop.f32.mrb[0].mxu0
      %v813 = vadd.f32 0.0, %v812
      %v814 = vpop.f32.mrb[0].mxu0
      %v815 = vpop.f32.mrb[0].mxu0
      %v816 = vadd.f32 0.0, %v815
      %v817 = vpop.f32.mrb[0].mxu0
      %818 = vmatprep.mubr.bf16.mxu0 0
      %819 = vmatmul.mubr.bf16.gmra.mrb[0].mxu0 %v710
      %v820 = vpop.f32.mrb[0].mxu0
      %v821 = vadd.f32 0.0, %v820
      %v822 = vpop.f32.mrb[0].mxu0
      %v823 = vpop.f32.mrb[0].mxu0
      %v824 = vadd.f32 0.0, %v823
      %v825 = vpop.f32.mrb[0].mxu0
      %826 = vmatprep.mubr.bf16.mxu0 0
      %827 = vmatmul.mubr.bf16.gmra.mrb[0].mxu0 %v713
      %v828 = vpop.f32.mrb[0].mxu0
      %v829 = vadd.f32 0.0, %v828
      %v830 = vpop.f32.mrb[0].mxu0
      %v831 = vpop.f32.mrb[0].mxu0
      %v832 = vadd.f32 0.0, %v831
      %v833 = vpop.f32.mrb[0].mxu0
      %834 = vmatprep.mubr.bf16.mxu0 0
      %835 = vmatmul.mubr.bf16.gmra.mrb[0].mxu0 %v716
      %v836 = vpop.f32.mrb[0].mxu0
      %v837 = vadd.f32 0.0, %v836
      %v838 = vpop.f32.mrb[0].mxu0
      %v839 = vpop.f32.mrb[0].mxu0
      %v840 = vadd.f32 0.0, %v839
      %v841 = vpop.f32.mrb[0].mxu0
      %842 = vmatprep.mubr.bf16.mxu0 0
      %843 = vmatmul.mubr.bf16.gmra.mrb[0].mxu0 %v719
      %v844 = vpop.f32.mrb[0].mxu0
      %v845 = vadd.f32 0.0, %v844
      %v846 = vpop.f32.mrb[0].mxu0
      %v847 = vpop.f32.mrb[0].mxu0
      %v848 = vadd.f32 0.0, %v847
      %v849 = vpop.f32.mrb[0].mxu0
      %850 = vmatprep.mubr.bf16.mxu0 0
      %851 = vmatmul.mubr.bf16.gmra.mrb[0].mxu0 %v722
      %v852 = vpop.f32.mrb[0].mxu0
      %v853 = vadd.f32 0.0, %v852
      %v854 = vpop.f32.mrb[0].mxu0
      %v855 = vpop.f32.mrb[0].mxu0
      %v856 = vadd.f32 0.0, %v855
      %v857 = vpop.f32.mrb[0].mxu0
      %858 = vmatprep.mubr.bf16.mxu0 0
      %859 = vmatmul.mubr.bf16.gmra.mrb[0].mxu0 %v725
      %v860 = vpop.f32.mrb[0].mxu0
      %v861 = vadd.f32 0.0, %v860
      %v862 = vpop.f32.mrb[0].mxu0
      %v863 = vpop.f32.mrb[0].mxu0
      %v864 = vadd.f32 0.0, %v863
      %v865 = vpop.f32.mrb[0].mxu0
      %866 = vmatprep.mubr.bf16.mxu0 0
      %867 = vmatmul.mubr.bf16.gmra.mrb[0].mxu0 %v728
      %v868 = vpop.f32.mrb[0].mxu0
      %v869 = vadd.f32 0.0, %v868
      %v870 = vpop.f32.mrb[0].mxu0
      %v871 = vpop.f32.mrb[0].mxu0
      %v872 = vadd.f32 0.0, %v871
      %v873 = vpop.f32.mrb[0].mxu0
      %874 = vmatprep.mubr.bf16.mxu0 0
      %875 = vmatmul.mubr.bf16.gmra.mrb[0].mxu0 %v731
      %v876 = vpop.f32.mrb[0].mxu0
      %v877 = vadd.f32 0.0, %v876
      %v878 = vpop.f32.mrb[0].mxu0
      %v879 = vpop.f32.mrb[0].mxu0
      %v880 = vadd.f32 0.0, %v879
      %v881 = vpop.f32.mrb[0].mxu0
      %882 = vmatprep.mubr.bf16.mxu0 0
      %883 = vmatmul.mubr.bf16.gmra.mrb[0].mxu0 %v734
      %v884 = vpop.f32.mrb[0].mxu0
      %v885 = vadd.f32 0.0, %v884
      %v886 = vpop.f32.mrb[0].mxu0
      %v887 = vpop.f32.mrb[0].mxu0
      %v888 = vadd.f32 0.0, %v887
      %v889 = vpop.f32.mrb[0].mxu0
      %890 = vmatprep.mubr.bf16.mxu0 0
      %891 = vmatmul.mubr.bf16.gmra.mrb[0].mxu0 %v737
      %v892 = vpop.f32.mrb[0].mxu0
      %v893 = vadd.f32 0.0, %v892
      %v894 = vpop.f32.mrb[0].mxu0
      %v895 = vpop.f32.mrb[0].mxu0
      %v896 = vadd.f32 0.0, %v895
      %v897 = vpop.f32.mrb[0].mxu0
      %898 = vmatprep.mubr.bf16.mxu0 0
      %899 = vmatmul.mubr.bf16.gmra.mrb[0].mxu0 %v740
      %v900 = vpop.f32.mrb[0].mxu0
      %v901 = vadd.f32 0.0, %v900
      %v902 = vpop.f32.mrb[0].mxu0
      %v903 = vpop.f32.mrb[0].mxu0
      %v904 = vadd.f32 0.0, %v903
      %v905 = vpop.f32.mrb[0].mxu0
      %906 = vdwg.mxu0
      %vm907 = vcmask 64512
      %908 = vst.msk [vmem:[#allocation4] sm:$0xff] %vm907, %v781
      %909 = vst.msk [vmem:[#allocation4 + $0x8] sm:$0xff] %vm907, %v784
      %910 = vst.msk [vmem:[#allocation4 + $0x10] sm:$0xff] %vm907, %v789
      %911 = vst.msk [vmem:[#allocation4 + $0x18] sm:$0xff] %vm907, %v792
      %912 = vst.msk [vmem:[#allocation4 + $0x20] sm:$0xff] %vm907, %v797
      %913 = vst.msk [vmem:[#allocation4 + $0x28] sm:$0xff] %vm907, %v800
      %914 = vst.msk [vmem:[#allocation4 + $0x30] sm:$0xff] %vm907, %v805
      %915 = vst.msk [vmem:[#allocation4 + $0x38] sm:$0xff] %vm907, %v808
      %916 = vst.msk [vmem:[#allocation4 + $0x40] sm:$0xff] %vm907, %v813
      %917 = vst.msk [vmem:[#allocation4 + $0x48] sm:$0xff] %vm907, %v816
      %918 = vst.msk [vmem:[#allocation4 + $0x50] sm:$0xff] %vm907, %v821
      %919 = vst.msk [vmem:[#allocation4 + $0x58] sm:$0xff] %vm907, %v824
      %920 = vst.msk [vmem:[#allocation4 + $0x60] sm:$0xff] %vm907, %v829
      %921 = vst.msk [vmem:[#allocation4 + $0x68] sm:$0xff] %vm907, %v832
      %922 = vst.msk [vmem:[#allocation4 + $0x70] sm:$0xff] %vm907, %v837
      %923 = vst.msk [vmem:[#allocation4 + $0x78] sm:$0xff] %vm907, %v840
      %924 = vst.msk [vmem:[#allocation4 + $0x80] sm:$0xff] %vm907, %v845
      %925 = vst.msk [vmem:[#allocation4 + $0x88] sm:$0xff] %vm907, %v848
      %926 = vst.msk [vmem:[#allocation4 + $0x90] sm:$0xff] %vm907, %v853
      %927 = vst.msk [vmem:[#allocation4 + $0x98] sm:$0xff] %vm907, %v856
      %928 = vst.msk [vmem:[#allocation4 + $0xa0] sm:$0xff] %vm907, %v861
      %929 = vst.msk [vmem:[#allocation4 + $0xa8] sm:$0xff] %vm907, %v864
      %930 = vst.msk [vmem:[#allocation4 + $0xb0] sm:$0xff] %vm907, %v869
      %931 = vst.msk [vmem:[#allocation4 + $0xb8] sm:$0xff] %vm907, %v872
      %932 = vst.msk [vmem:[#allocation4 + $0xc0] sm:$0xff] %vm907, %v877
      %933 = vst.msk [vmem:[#allocation4 + $0xc8] sm:$0xff] %vm907, %v880
      %934 = vst.msk [vmem:[#allocation4 + $0xd0] sm:$0xff] %vm907, %v885
      %935 = vst.msk [vmem:[#allocation4 + $0xd8] sm:$0xff] %vm907, %v888
      %936 = vst.msk [vmem:[#allocation4 + $0xe0] sm:$0xff] %vm907, %v893
      %937 = vst.msk [vmem:[#allocation4 + $0xe8] sm:$0xff] %vm907, %v896
      %938 = vst.msk [vmem:[#allocation4 + $0xf0] sm:$0xff] %vm907, %v901
      %939 = vst.msk [vmem:[#allocation4 + $0xf8] sm:$0xff] %vm907, %v904
      %v940 = vld [vmem:[%s315] sm:$0xff]
      %v941 = vld [vmem:[%s315 + $0x8] sm:$0xff]
      %v942 = vld [vmem:[%s315 + $0x18] sm:$0xff]
      %v943 = vld [vmem:[%s315 + $0x20] sm:$0xff]
      %v944 = vld [vmem:[%s315 + $0x30] sm:$0xff]
      %v945 = vld [vmem:[%s315 + $0x38] sm:$0xff]
      %v946 = vld [vmem:[%s315 + $0x48] sm:$0xff]
      %v947 = vld [vmem:[%s315 + $0x50] sm:$0xff]
      %v948 = vld [vmem:[%s315 + $0x60] sm:$0xff]
      %v949 = vld [vmem:[%s315 + $0x68] sm:$0xff]
      %v950 = vld [vmem:[%s315 + $0x78] sm:$0xff]
      %v951 = vld [vmem:[%s315 + $0x80] sm:$0xff]
      %v952 = vld [vmem:[%s315 + $0x90] sm:$0xff]
      %v953 = vld [vmem:[%s315 + $0x98] sm:$0xff]
      %v954 = vld [vmem:[%s315 + $0xa8] sm:$0xff]
      %v955 = vld [vmem:[%s315 + $0xb0] sm:$0xff]
      %v956 = vld [vmem:[%s315 + $0xc0] sm:$0xff]
      %v957 = vld [vmem:[%s315 + $0xc8] sm:$0xff]
      %v958 = vld [vmem:[%s315 + $0xd8] sm:$0xff]
      %v959 = vld [vmem:[%s315 + $0xe0] sm:$0xff]
      %v960 = vld [vmem:[%s315 + $0xf0] sm:$0xff]
      %v961 = vld [vmem:[%s315 + $0xf8] sm:$0xff]
      %v962 = vld [vmem:[%s315 + $0x108] sm:$0xff]
      %v963 = vld [vmem:[%s315 + $0x110] sm:$0xff]
      %v964 = vld [vmem:[%s315 + $0x120] sm:$0xff]
      %v965 = vld [vmem:[%s315 + $0x128] sm:$0xff]
      %v966 = vld [vmem:[%s315 + $0x138] sm:$0xff]
      %v967 = vld [vmem:[%s315 + $0x140] sm:$0xff]
      %v968 = vld [vmem:[%s315 + $0x150] sm:$0xff]
      %v969 = vld [vmem:[%s315 + $0x158] sm:$0xff]
      %v970 = vld [vmem:[%s315 + $0x168] sm:$0xff]
      %v971 = vld [vmem:[%s315 + $0x170] sm:$0xff]
      %v972 = vpack.c.bf16 %v941, %v940
      %v973 = vpack.c.bf16 %v943, %v942
      %v974 = vpack.c.bf16 %v945, %v944
      %v975 = vpack.c.bf16 %v947, %v946
      %v976 = vpack.c.bf16 %v949, %v948
      %v977 = vpack.c.bf16 %v951, %v950
      %v978 = vpack.c.bf16 %v953, %v952
      %v979 = vpack.c.bf16 %v955, %v954
      %v980 = vpack.c.bf16 %v957, %v956
      %v981 = vpack.c.bf16 %v959, %v958
      %v982 = vpack.c.bf16 %v961, %v960
      %v983 = vpack.c.bf16 %v963, %v962
      %v984 = vpack.c.bf16 %v965, %v964
      %v985 = vpack.c.bf16 %v967, %v966
      %v986 = vpack.c.bf16 %v969, %v968
      %v987 = vpack.c.bf16 %v971, %v970
      %988 = vst.msk [vmem:[#allocation3] sm:$0xff] %vm269, %v972
      %989 = vst.msk [vmem:[#allocation3 + $0x8] sm:$0xff] %vm269, %v973
      %990 = vst.msk [vmem:[#allocation3 + $0x10] sm:$0xff] %vm269, %v974
      %991 = vst.msk [vmem:[#allocation3 + $0x18] sm:$0xff] %vm269, %v975
      %992 = vst.msk [vmem:[#allocation3 + $0x20] sm:$0xff] %vm269, %v976
      %993 = vst.msk [vmem:[#allocation3 + $0x28] sm:$0xff] %vm269, %v977
      %994 = vst.msk [vmem:[#allocation3 + $0x30] sm:$0xff] %vm269, %v978
      %995 = vst.msk [vmem:[#allocation3 + $0x38] sm:$0xff] %vm269, %v979
      %996 = vst.msk [vmem:[#allocation3 + $0x40] sm:$0xff] %vm269, %v980
      %997 = vst.msk [vmem:[#allocation3 + $0x48] sm:$0xff] %vm269, %v981
      %998 = vst.msk [vmem:[#allocation3 + $0x50] sm:$0xff] %vm269, %v982
      %999 = vst.msk [vmem:[#allocation3 + $0x58] sm:$0xff] %vm269, %v983
      %1000 = vst.msk [vmem:[#allocation3 + $0x60] sm:$0xff] %vm269, %v984
      %1001 = vst.msk [vmem:[#allocation3 + $0x68] sm:$0xff] %vm269, %v985
      %1002 = vst.msk [vmem:[#allocation3 + $0x70] sm:$0xff] %vm269, %v986
      %1003 = vst.msk [vmem:[#allocation3 + $0x78] sm:$0xff] %vm269, %v987
      %v1004 = vld [vmem:[%s315 + $0x1] sm:$0xff]
      %v1005 = vld [vmem:[%s315 + $0x9] sm:$0xff]
      %v1006 = vld [vmem:[%s315 + $0x19] sm:$0xff]
      %v1007 = vld [vmem:[%s315 + $0x21] sm:$0xff]
      %v1008 = vld [vmem:[%s315 + $0x31] sm:$0xff]
      %v1009 = vld [vmem:[%s315 + $0x39] sm:$0xff]
      %v1010 = vld [vmem:[%s315 + $0x49] sm:$0xff]
      %v1011 = vld [vmem:[%s315 + $0x51] sm:$0xff]
      %v1012 = vld [vmem:[%s315 + $0x61] sm:$0xff]
      %v1013 = vld [vmem:[%s315 + $0x69] sm:$0xff]
      %v1014 = vld [vmem:[%s315 + $0x79] sm:$0xff]
      %v1015 = vld [vmem:[%s315 + $0x81] sm:$0xff]
      %v1016 = vld [vmem:[%s315 + $0x91] sm:$0xff]
      %v1017 = vld [vmem:[%s315 + $0x99] sm:$0xff]
      %v1018 = vld [vmem:[%s315 + $0xa9] sm:$0xff]
      %v1019 = vld [vmem:[%s315 + $0xb1] sm:$0xff]
      %v1020 = vld [vmem:[%s315 + $0xc1] sm:$0xff]
      %v1021 = vld [vmem:[%s315 + $0xc9] sm:$0xff]
      %v1022 = vld [vmem:[%s315 + $0xd9] sm:$0xff]
      %v1023 = vld [vmem:[%s315 + $0xe1] sm:$0xff]
      %v1024 = vld [vmem:[%s315 + $0xf1] sm:$0xff]
      %v1025 = vld [vmem:[%s315 + $0xf9] sm:$0xff]
      %v1026 = vld [vmem:[%s315 + $0x109] sm:$0xff]
      %v1027 = vld [vmem:[%s315 + $0x111] sm:$0xff]
      %v1028 = vld [vmem:[%s315 + $0x121] sm:$0xff]
      %v1029 = vld [vmem:[%s315 + $0x129] sm:$0xff]
      %v1030 = vld [vmem:[%s315 + $0x139] sm:$0xff]
      %v1031 = vld [vmem:[%s315 + $0x141] sm:$0xff]
      %v1032 = vld [vmem:[%s315 + $0x151] sm:$0xff]
      %v1033 = vld [vmem:[%s315 + $0x159] sm:$0xff]
      %v1034 = vld [vmem:[%s315 + $0x169] sm:$0xff]
      %v1035 = vld [vmem:[%s315 + $0x171] sm:$0xff]
      %v1036 = vpack.c.bf16 %v1005, %v1004
      %v1037 = vpack.c.bf16 %v1007, %v1006
      %v1038 = vpack.c.bf16 %v1009, %v1008
      %v1039 = vpack.c.bf16 %v1011, %v1010
      %v1040 = vpack.c.bf16 %v1013, %v1012
      %v1041 = vpack.c.bf16 %v1015, %v1014
      %v1042 = vpack.c.bf16 %v1017, %v1016
      %v1043 = vpack.c.bf16 %v1019, %v1018
      %v1044 = vpack.c.bf16 %v1021, %v1020
      %v1045 = vpack.c.bf16 %v1023, %v1022
      %v1046 = vpack.c.bf16 %v1025, %v1024
      %v1047 = vpack.c.bf16 %v1027, %v1026
      %v1048 = vpack.c.bf16 %v1029, %v1028
      %v1049 = vpack.c.bf16 %v1031, %v1030
      %v1050 = vpack.c.bf16 %v1033, %v1032
      %v1051 = vpack.c.bf16 %v1035, %v1034
      %1068 = vrot.lane.b32.xlu0 %v1036, 4
      %v1069 = vpop.permute.xlu0 %1068
      %1070 = vrot.lane.b32.xlu0 %v1037, 4
      %v1071 = vpop.permute.xlu0 %1070
      %1072 = vrot.lane.b32.xlu0 %v1038, 4
      %v1073 = vpop.permute.xlu0 %1072
      %1074 = vrot.lane.b32.xlu0 %v1039, 4
      %v1075 = vpop.permute.xlu0 %1074
      %1076 = vrot.lane.b32.xlu0 %v1040, 4
      %v1077 = vpop.permute.xlu0 %1076
      %1078 = vrot.lane.b32.xlu0 %v1041, 4
      %v1079 = vpop.permute.xlu0 %1078
      %1080 = vrot.lane.b32.xlu0 %v1042, 4
      %v1081 = vpop.permute.xlu0 %1080
      %1082 = vrot.lane.b32.xlu0 %v1043, 4
      %v1083 = vpop.permute.xlu0 %1082
      %1084 = vrot.lane.b32.xlu0 %v1044, 4
      %v1085 = vpop.permute.xlu0 %1084
      %1086 = vrot.lane.b32.xlu0 %v1045, 4
      %v1087 = vpop.permute.xlu0 %1086
      %1088 = vrot.lane.b32.xlu0 %v1046, 4
      %v1089 = vpop.permute.xlu0 %1088
      %1090 = vrot.lane.b32.xlu0 %v1047, 4
      %v1091 = vpop.permute.xlu0 %1090
      %1092 = vrot.lane.b32.xlu0 %v1048, 4
      %v1093 = vpop.permute.xlu0 %1092
      %1094 = vrot.lane.b32.xlu0 %v1049, 4
      %v1095 = vpop.permute.xlu0 %1094
      %1096 = vrot.lane.b32.xlu0 %v1050, 4
      %v1097 = vpop.permute.xlu0 %1096
      %1098 = vrot.lane.b32.xlu0 %v1051, 4
      %v1099 = vpop.permute.xlu0 %1098
      %1116 = vst.msk [vmem:[#allocation3] sm:$0xff] %vm524, %v1069
      %1117 = vst.msk [vmem:[#allocation3 + $0x8] sm:$0xff] %vm524, %v1071
      %1118 = vst.msk [vmem:[#allocation3 + $0x10] sm:$0xff] %vm524, %v1073
      %1119 = vst.msk [vmem:[#allocation3 + $0x18] sm:$0xff] %vm524, %v1075
      %1120 = vst.msk [vmem:[#allocation3 + $0x20] sm:$0xff] %vm524, %v1077
      %1121 = vst.msk [vmem:[#allocation3 + $0x28] sm:$0xff] %vm524, %v1079
      %1122 = vst.msk [vmem:[#allocation3 + $0x30] sm:$0xff] %vm524, %v1081
      %1123 = vst.msk [vmem:[#allocation3 + $0x38] sm:$0xff] %vm524, %v1083
      %1124 = vst.msk [vmem:[#allocation3 + $0x40] sm:$0xff] %vm524, %v1085
      %1125 = vst.msk [vmem:[#allocation3 + $0x48] sm:$0xff] %vm524, %v1087
      %1126 = vst.msk [vmem:[#allocation3 + $0x50] sm:$0xff] %vm524, %v1089
      %1127 = vst.msk [vmem:[#allocation3 + $0x58] sm:$0xff] %vm524, %v1091
      %1128 = vst.msk [vmem:[#allocation3 + $0x60] sm:$0xff] %vm524, %v1093
      %1129 = vst.msk [vmem:[#allocation3 + $0x68] sm:$0xff] %vm524, %v1095
      %1130 = vst.msk [vmem:[#allocation3 + $0x70] sm:$0xff] %vm524, %v1097
      %1131 = vst.msk [vmem:[#allocation3 + $0x78] sm:$0xff] %vm524, %v1099
      %v1132 = vld [vmem:[%s315 + $0x2] sm:$0xff]
      %v1133 = vld [vmem:[%s315 + $0xa] sm:$0xff]
      %v1134 = vld [vmem:[%s315 + $0x1a] sm:$0xff]
      %v1135 = vld [vmem:[%s315 + $0x22] sm:$0xff]
      %v1136 = vld [vmem:[%s315 + $0x32] sm:$0xff]
      %v1137 = vld [vmem:[%s315 + $0x3a] sm:$0xff]
      %v1138 = vld [vmem:[%s315 + $0x4a] sm:$0xff]
      %v1139 = vld [vmem:[%s315 + $0x52] sm:$0xff]
      %v1140 = vld [vmem:[%s315 + $0x62] sm:$0xff]
      %v1141 = vld [vmem:[%s315 + $0x6a] sm:$0xff]
      %v1142 = vld [vmem:[%s315 + $0x7a] sm:$0xff]
      %v1143 = vld [vmem:[%s315 + $0x82] sm:$0xff]
      %v1144 = vld [vmem:[%s315 + $0x92] sm:$0xff]
      %v1145 = vld [vmem:[%s315 + $0x9a] sm:$0xff]
      %v1146 = vld [vmem:[%s315 + $0xaa] sm:$0xff]
      %v1147 = vld [vmem:[%s315 + $0xb2] sm:$0xff]
      %v1148 = vld [vmem:[%s315 + $0xc2] sm:$0xff]
      %v1149 = vld [vmem:[%s315 + $0xca] sm:$0xff]
      %v1150 = vld [vmem:[%s315 + $0xda] sm:$0xff]
      %v1151 = vld [vmem:[%s315 + $0xe2] sm:$0xff]
      %v1152 = vld [vmem:[%s315 + $0xf2] sm:$0xff]
      %v1153 = vld [vmem:[%s315 + $0xfa] sm:$0xff]
      %v1154 = vld [vmem:[%s315 + $0x10a] sm:$0xff]
      %v1155 = vld [vmem:[%s315 + $0x112] sm:$0xff]
      %v1156 = vld [vmem:[%s315 + $0x122] sm:$0xff]
      %v1157 = vld [vmem:[%s315 + $0x12a] sm:$0xff]
      %v1158 = vld [vmem:[%s315 + $0x13a] sm:$0xff]
      %v1159 = vld [vmem:[%s315 + $0x142] sm:$0xff]
      %v1160 = vld [vmem:[%s315 + $0x152] sm:$0xff]
      %v1161 = vld [vmem:[%s315 + $0x15a] sm:$0xff]
      %v1162 = vld [vmem:[%s315 + $0x16a] sm:$0xff]
      %v1163 = vld [vmem:[%s315 + $0x172] sm:$0xff]
      %v1164 = vpack.c.bf16 %v1133, %v1132
      %v1165 = vpack.c.bf16 %v1135, %v1134
      %v1166 = vpack.c.bf16 %v1137, %v1136
      %v1167 = vpack.c.bf16 %v1139, %v1138
      %v1168 = vpack.c.bf16 %v1141, %v1140
      %v1169 = vpack.c.bf16 %v1143, %v1142
      %v1170 = vpack.c.bf16 %v1145, %v1144
      %v1171 = vpack.c.bf16 %v1147, %v1146
      %v1172 = vpack.c.bf16 %v1149, %v1148
      %v1173 = vpack.c.bf16 %v1151, %v1150
      %v1174 = vpack.c.bf16 %v1153, %v1152
      %v1175 = vpack.c.bf16 %v1155, %v1154
      %v1176 = vpack.c.bf16 %v1157, %v1156
      %v1177 = vpack.c.bf16 %v1159, %v1158
      %v1178 = vpack.c.bf16 %v1161, %v1160
      %v1179 = vpack.c.bf16 %v1163, %v1162
      %1196 = vrot.lane.b32.xlu0 %v1164, 8
      %v1197 = vpop.permute.xlu0 %1196
      %1198 = vrot.lane.b32.xlu0 %v1165, 8
      %v1199 = vpop.permute.xlu0 %1198
      %1200 = vrot.lane.b32.xlu0 %v1166, 8
      %v1201 = vpop.permute.xlu0 %1200
      %1202 = vrot.lane.b32.xlu0 %v1167, 8
      %v1203 = vpop.permute.xlu0 %1202
      %1204 = vrot.lane.b32.xlu0 %v1168, 8
      %v1205 = vpop.permute.xlu0 %1204
      %1206 = vrot.lane.b32.xlu0 %v1169, 8
      %v1207 = vpop.permute.xlu0 %1206
      %1208 = vrot.lane.b32.xlu0 %v1170, 8
      %v1209 = vpop.permute.xlu0 %1208
      %1210 = vrot.lane.b32.xlu0 %v1171, 8
      %v1211 = vpop.permute.xlu0 %1210
      %1212 = vrot.lane.b32.xlu0 %v1172, 8
      %v1213 = vpop.permute.xlu0 %1212
      %1214 = vrot.lane.b32.xlu0 %v1173, 8
      %v1215 = vpop.permute.xlu0 %1214
      %1216 = vrot.lane.b32.xlu0 %v1174, 8
      %v1217 = vpop.permute.xlu0 %1216
      %1218 = vrot.lane.b32.xlu0 %v1175, 8
      %v1219 = vpop.permute.xlu0 %1218
      %1220 = vrot.lane.b32.xlu0 %v1176, 8
      %v1221 = vpop.permute.xlu0 %1220
      %1222 = vrot.lane.b32.xlu0 %v1177, 8
      %v1223 = vpop.permute.xlu0 %1222
      %1224 = vrot.lane.b32.xlu0 %v1178, 8
      %v1225 = vpop.permute.xlu0 %1224
      %1226 = vrot.lane.b32.xlu0 %v1179, 8
      %v1227 = vpop.permute.xlu0 %1226
      %1244 = vst.msk [vmem:[#allocation3] sm:$0xff] %vm653, %v1197
      %1245 = vst.msk [vmem:[#allocation3 + $0x8] sm:$0xff] %vm653, %v1199
      %1246 = vst.msk [vmem:[#allocation3 + $0x10] sm:$0xff] %vm653, %v1201
      %1247 = vst.msk [vmem:[#allocation3 + $0x18] sm:$0xff] %vm653, %v1203
      %1248 = vst.msk [vmem:[#allocation3 + $0x20] sm:$0xff] %vm653, %v1205
      %1249 = vst.msk [vmem:[#allocation3 + $0x28] sm:$0xff] %vm653, %v1207
      %1250 = vst.msk [vmem:[#allocation3 + $0x30] sm:$0xff] %vm653, %v1209
      %1251 = vst.msk [vmem:[#allocation3 + $0x38] sm:$0xff] %vm653, %v1211
      %1252 = vst.msk [vmem:[#allocation3 + $0x40] sm:$0xff] %vm653, %v1213
      %1253 = vst.msk [vmem:[#allocation3 + $0x48] sm:$0xff] %vm653, %v1215
      %1254 = vst.msk [vmem:[#allocation3 + $0x50] sm:$0xff] %vm653, %v1217
      %1255 = vst.msk [vmem:[#allocation3 + $0x58] sm:$0xff] %vm653, %v1219
      %1256 = vst.msk [vmem:[#allocation3 + $0x60] sm:$0xff] %vm653, %v1221
      %1257 = vst.msk [vmem:[#allocation3 + $0x68] sm:$0xff] %vm653, %v1223
      %1258 = vst.msk [vmem:[#allocation3 + $0x70] sm:$0xff] %vm653, %v1225
      %1259 = vst.msk [vmem:[#allocation3 + $0x78] sm:$0xff] %vm653, %v1227
      %v1260 = vld [vmem:[#allocation3] sm:$0xff]
      %v1261 = vld [vmem:[#allocation3 + $0x8] sm:$0xff]
      %v1262 = vld [vmem:[#allocation3 + $0x10] sm:$0xff]
      %v1263 = vld [vmem:[#allocation3 + $0x18] sm:$0xff]
      %v1264 = vld [vmem:[#allocation3 + $0x20] sm:$0xff]
      %v1265 = vld [vmem:[#allocation3 + $0x28] sm:$0xff]
      %v1266 = vld [vmem:[#allocation3 + $0x30] sm:$0xff]
      %v1267 = vld [vmem:[#allocation3 + $0x38] sm:$0xff]
      %v1268 = vld [vmem:[#allocation3 + $0x40] sm:$0xff]
      %v1269 = vld [vmem:[#allocation3 + $0x48] sm:$0xff]
      %v1270 = vld [vmem:[#allocation3 + $0x50] sm:$0xff]
      %v1271 = vld [vmem:[#allocation3 + $0x58] sm:$0xff]
      %v1272 = vld [vmem:[#allocation3 + $0x60] sm:$0xff]
      %v1273 = vld [vmem:[#allocation3 + $0x68] sm:$0xff]
      %v1274 = vld [vmem:[#allocation3 + $0x70] sm:$0xff]
      %v1275 = vld [vmem:[#allocation3 + $0x78] sm:$0xff]
      %s1276 = scalar_lea.vmem %s1, 8
      %v1277 = vld [vmem:[%s1276] sm:$0xf]
      %v1278 = vld [vmem:[%s1276 + $0x4] sm:$0x3]
      %v1281 = vunpack.c.l.b16 %v1277
      %v1282 = vunpack.c.l.b16 %v1278
      %v1283 = vpack.c.b16 %v1282, %v1281
      %v1285 = vsel %vm693, %v1260, 0
      %v1288 = vsel %vm693, %v1261, 0
      %v1291 = vsel %vm693, %v1262, 0
      %v1294 = vsel %vm693, %v1263, 0
      %v1297 = vsel %vm693, %v1264, 0
      %v1300 = vsel %vm693, %v1265, 0
      %v1303 = vsel %vm693, %v1266, 0
      %v1306 = vsel %vm693, %v1267, 0
      %v1309 = vsel %vm693, %v1268, 0
      %v1312 = vsel %vm693, %v1269, 0
      %v1315 = vsel %vm693, %v1270, 0
      %v1318 = vsel %vm693, %v1271, 0
      %v1321 = vsel %vm693, %v1272, 0
      %v1324 = vsel %vm693, %v1273, 0
      %v1327 = vsel %vm693, %v1274, 0
      %v1330 = vsel %vm693, %v1275, 0
      %v1333 = vsel %vm742, %v1283, 0
      %1335 = vmatprep.subr.bf16.mxu0 0
      %1336 = vmatpush1.bf16.msra.mxu0 %v1333
      %1337 = vmatprep.subr.bf16.mxu0 0
      %1338 = vmatpush1.bf16.msra.mxu0 0
      %1339 = vmatprep.subr.bf16.mxu0 0
      %1340 = vmatpush1.bf16.msra.mxu0 0
      %1341 = vmatprep.subr.bf16.mxu0 0
      %1342 = vmatpush1.bf16.msra.mxu0 0
      %1343 = vmatprep.subr.bf16.mxu0 0
      %1344 = vmatpush1.bf16.msra.mxu0 0
      %1345 = vmatprep.subr.bf16.mxu0 0
      %1346 = vmatpush1.bf16.msra.mxu0 0
      %1347 = vmatprep.subr.bf16.mxu0 0
      %1348 = vmatpush1.bf16.msra.mxu0 0
      %1349 = vmatprep.subr.bf16.mxu0 0
      %1350 = vmatpush1.bf16.msra.mxu0 0
      %1351 = vmatprep.subr.bf16.mxu0 0
      %1352 = vmatpush1.bf16.msra.mxu0 0
      %1353 = vmatprep.subr.bf16.mxu0 0
      %1354 = vmatpush1.bf16.msra.mxu0 0
      %1355 = vmatprep.subr.bf16.mxu0 0
      %1356 = vmatpush1.bf16.msra.mxu0 0
      %1357 = vmatprep.subr.bf16.mxu0 0
      %1358 = vmatpush1.bf16.msra.mxu0 0
      %1359 = vmatprep.subr.bf16.mxu0 0
      %1360 = vmatpush1.bf16.msra.mxu0 0
      %1361 = vmatprep.subr.bf16.mxu0 0
      %1362 = vmatpush1.bf16.msra.mxu0 0
      %1363 = vmatprep.subr.bf16.mxu0 0
      %1364 = vmatpush1.bf16.msra.mxu0 0
      %1365 = vmatprep.subr.bf16.mxu0 0
      %1366 = vmatpush1.bf16.msra.mxu0 0
      %1367 = vmatprep.mubr.bf16.mxu0 0
      %1368 = vmatmul.mubr.bf16.gmra.mrb[0].mxu0 %v1285
      %v1369 = vpop.f32.mrb[0].mxu0
      %v1370 = vadd.f32 0.0, %v1369
      %v1371 = vpop.f32.mrb[0].mxu0
      %v1372 = vpop.f32.mrb[0].mxu0
      %v1373 = vadd.f32 0.0, %v1372
      %v1374 = vpop.f32.mrb[0].mxu0
      %1375 = vmatprep.mubr.bf16.mxu0 0
      %1376 = vmatmul.mubr.bf16.gmra.mrb[0].mxu0 %v1288
      %v1377 = vpop.f32.mrb[0].mxu0
      %v1378 = vadd.f32 0.0, %v1377
      %v1379 = vpop.f32.mrb[0].mxu0
      %v1380 = vpop.f32.mrb[0].mxu0
      %v1381 = vadd.f32 0.0, %v1380
      %v1382 = vpop.f32.mrb[0].mxu0
      %1383 = vmatprep.mubr.bf16.mxu0 0
      %1384 = vmatmul.mubr.bf16.gmra.mrb[0].mxu0 %v1291
      %v1385 = vpop.f32.mrb[0].mxu0
      %v1386 = vadd.f32 0.0, %v1385
      %v1387 = vpop.f32.mrb[0].mxu0
      %v1388 = vpop.f32.mrb[0].mxu0
      %v1389 = vadd.f32 0.0, %v1388
      %v1390 = vpop.f32.mrb[0].mxu0
      %1391 = vmatprep.mubr.bf16.mxu0 0
      %1392 = vmatmul.mubr.bf16.gmra.mrb[0].mxu0 %v1294
      %v1393 = vpop.f32.mrb[0].mxu0
      %v1394 = vadd.f32 0.0, %v1393
      %v1395 = vpop.f32.mrb[0].mxu0
      %v1396 = vpop.f32.mrb[0].mxu0
      %v1397 = vadd.f32 0.0, %v1396
      %v1398 = vpop.f32.mrb[0].mxu0
      %1399 = vmatprep.mubr.bf16.mxu0 0
      %1400 = vmatmul.mubr.bf16.gmra.mrb[0].mxu0 %v1297
      %v1401 = vpop.f32.mrb[0].mxu0
      %v1402 = vadd.f32 0.0, %v1401
      %v1403 = vpop.f32.mrb[0].mxu0
      %v1404 = vpop.f32.mrb[0].mxu0
      %v1405 = vadd.f32 0.0, %v1404
      %v1406 = vpop.f32.mrb[0].mxu0
      %1407 = vmatprep.mubr.bf16.mxu0 0
      %1408 = vmatmul.mubr.bf16.gmra.mrb[0].mxu0 %v1300
      %v1409 = vpop.f32.mrb[0].mxu0
      %v1410 = vadd.f32 0.0, %v1409
      %v1411 = vpop.f32.mrb[0].mxu0
      %v1412 = vpop.f32.mrb[0].mxu0
      %v1413 = vadd.f32 0.0, %v1412
      %v1414 = vpop.f32.mrb[0].mxu0
      %1415 = vmatprep.mubr.bf16.mxu0 0
      %1416 = vmatmul.mubr.bf16.gmra.mrb[0].mxu0 %v1303
      %v1417 = vpop.f32.mrb[0].mxu0
      %v1418 = vadd.f32 0.0, %v1417
      %v1419 = vpop.f32.mrb[0].mxu0
      %v1420 = vpop.f32.mrb[0].mxu0
      %v1421 = vadd.f32 0.0, %v1420
      %v1422 = vpop.f32.mrb[0].mxu0
      %1423 = vmatprep.mubr.bf16.mxu0 0
      %1424 = vmatmul.mubr.bf16.gmra.mrb[0].mxu0 %v1306
      %v1425 = vpop.f32.mrb[0].mxu0
      %v1426 = vadd.f32 0.0, %v1425
      %v1427 = vpop.f32.mrb[0].mxu0
      %v1428 = vpop.f32.mrb[0].mxu0
      %v1429 = vadd.f32 0.0, %v1428
      %v1430 = vpop.f32.mrb[0].mxu0
      %1431 = vmatprep.mubr.bf16.mxu0 0
      %1432 = vmatmul.mubr.bf16.gmra.mrb[0].mxu0 %v1309
      %v1433 = vpop.f32.mrb[0].mxu0
      %v1434 = vadd.f32 0.0, %v1433
      %v1435 = vpop.f32.mrb[0].mxu0
      %v1436 = vpop.f32.mrb[0].mxu0
      %v1437 = vadd.f32 0.0, %v1436
      %v1438 = vpop.f32.mrb[0].mxu0
      %1439 = vmatprep.mubr.bf16.mxu0 0
      %1440 = vmatmul.mubr.bf16.gmra.mrb[0].mxu0 %v1312
      %v1441 = vpop.f32.mrb[0].mxu0
      %v1442 = vadd.f32 0.0, %v1441
      %v1443 = vpop.f32.mrb[0].mxu0
      %v1444 = vpop.f32.mrb[0].mxu0
      %v1445 = vadd.f32 0.0, %v1444
      %v1446 = vpop.f32.mrb[0].mxu0
      %1447 = vmatprep.mubr.bf16.mxu0 0
      %1448 = vmatmul.mubr.bf16.gmra.mrb[0].mxu0 %v1315
      %v1449 = vpop.f32.mrb[0].mxu0
      %v1450 = vadd.f32 0.0, %v1449
      %v1451 = vpop.f32.mrb[0].mxu0
      %v1452 = vpop.f32.mrb[0].mxu0
      %v1453 = vadd.f32 0.0, %v1452
      %v1454 = vpop.f32.mrb[0].mxu0
      %1455 = vmatprep.mubr.bf16.mxu0 0
      %1456 = vmatmul.mubr.bf16.gmra.mrb[0].mxu0 %v1318
      %v1457 = vpop.f32.mrb[0].mxu0
      %v1458 = vadd.f32 0.0, %v1457
      %v1459 = vpop.f32.mrb[0].mxu0
      %v1460 = vpop.f32.mrb[0].mxu0
      %v1461 = vadd.f32 0.0, %v1460
      %v1462 = vpop.f32.mrb[0].mxu0
      %1463 = vmatprep.mubr.bf16.mxu0 0
      %1464 = vmatmul.mubr.bf16.gmra.mrb[0].mxu0 %v1321
      %v1465 = vpop.f32.mrb[0].mxu0
      %v1466 = vadd.f32 0.0, %v1465
      %v1467 = vpop.f32.mrb[0].mxu0
      %v1468 = vpop.f32.mrb[0].mxu0
      %v1469 = vadd.f32 0.0, %v1468
      %v1470 = vpop.f32.mrb[0].mxu0
      %1471 = vmatprep.mubr.bf16.mxu0 0
      %1472 = vmatmul.mubr.bf16.gmra.mrb[0].mxu0 %v1324
      %v1473 = vpop.f32.mrb[0].mxu0
      %v1474 = vadd.f32 0.0, %v1473
      %v1475 = vpop.f32.mrb[0].mxu0
      %v1476 = vpop.f32.mrb[0].mxu0
      %v1477 = vadd.f32 0.0, %v1476
      %v1478 = vpop.f32.mrb[0].mxu0
      %1479 = vmatprep.mubr.bf16.mxu0 0
      %1480 = vmatmul.mubr.bf16.gmra.mrb[0].mxu0 %v1327
      %v1481 = vpop.f32.mrb[0].mxu0
      %v1482 = vadd.f32 0.0, %v1481
      %v1483 = vpop.f32.mrb[0].mxu0
      %v1484 = vpop.f32.mrb[0].mxu0
      %v1485 = vadd.f32 0.0, %v1484
      %v1486 = vpop.f32.mrb[0].mxu0
      %1487 = vmatprep.mubr.bf16.mxu0 0
      %1488 = vmatmul.mubr.bf16.gmra.mrb[0].mxu0 %v1330
      %v1489 = vpop.f32.mrb[0].mxu0
      %v1490 = vadd.f32 0.0, %v1489
      %v1491 = vpop.f32.mrb[0].mxu0
      %v1492 = vpop.f32.mrb[0].mxu0
      %v1493 = vadd.f32 0.0, %v1492
      %v1494 = vpop.f32.mrb[0].mxu0
      %1495 = vdwg.mxu0
      %v1496 = vld [vmem:[#allocation4] sm:$0xff]
      %v1497 = vld [vmem:[#allocation4 + $0x8] sm:$0xff]
      %v1498 = vld [vmem:[#allocation4 + $0x10] sm:$0xff]
      %v1499 = vld [vmem:[#allocation4 + $0x18] sm:$0xff]
      %v1500 = vld [vmem:[#allocation4 + $0x20] sm:$0xff]
      %v1501 = vld [vmem:[#allocation4 + $0x28] sm:$0xff]
      %v1502 = vld [vmem:[#allocation4 + $0x30] sm:$0xff]
      %v1503 = vld [vmem:[#allocation4 + $0x38] sm:$0xff]
      %v1504 = vld [vmem:[#allocation4 + $0x40] sm:$0xff]
      %v1505 = vld [vmem:[#allocation4 + $0x48] sm:$0xff]
      %v1506 = vld [vmem:[#allocation4 + $0x50] sm:$0xff]
      %v1507 = vld [vmem:[#allocation4 + $0x58] sm:$0xff]
      %v1508 = vld [vmem:[#allocation4 + $0x60] sm:$0xff]
      %v1509 = vld [vmem:[#allocation4 + $0x68] sm:$0xff]
      %v1510 = vld [vmem:[#allocation4 + $0x70] sm:$0xff]
      %v1511 = vld [vmem:[#allocation4 + $0x78] sm:$0xff]
      %v1512 = vld [vmem:[#allocation4 + $0x80] sm:$0xff]
      %v1513 = vld [vmem:[#allocation4 + $0x88] sm:$0xff]
      %v1514 = vld [vmem:[#allocation4 + $0x90] sm:$0xff]
      %v1515 = vld [vmem:[#allocation4 + $0x98] sm:$0xff]
      %v1516 = vld [vmem:[#allocation4 + $0xa0] sm:$0xff]
      %v1517 = vld [vmem:[#allocation4 + $0xa8] sm:$0xff]
      %v1518 = vld [vmem:[#allocation4 + $0xb0] sm:$0xff]
      %v1519 = vld [vmem:[#allocation4 + $0xb8] sm:$0xff]
      %v1520 = vld [vmem:[#allocation4 + $0xc0] sm:$0xff]
      %v1521 = vld [vmem:[#allocation4 + $0xc8] sm:$0xff]
      %v1522 = vld [vmem:[#allocation4 + $0xd0] sm:$0xff]
      %v1523 = vld [vmem:[#allocation4 + $0xd8] sm:$0xff]
      %v1524 = vld [vmem:[#allocation4 + $0xe0] sm:$0xff]
      %v1525 = vld [vmem:[#allocation4 + $0xe8] sm:$0xff]
      %v1526 = vld [vmem:[#allocation4 + $0xf0] sm:$0xff]
      %v1527 = vld [vmem:[#allocation4 + $0xf8] sm:$0xff]
      %v1528 = vadd.f32 %v1496, %v1370
      %v1529 = vadd.f32 %v1497, %v1373
      %v1530 = vadd.f32 %v1498, %v1378
      %v1531 = vadd.f32 %v1499, %v1381
      %v1532 = vadd.f32 %v1500, %v1386
      %v1533 = vadd.f32 %v1501, %v1389
      %v1534 = vadd.f32 %v1502, %v1394
      %v1535 = vadd.f32 %v1503, %v1397
      %v1536 = vadd.f32 %v1504, %v1402
      %v1537 = vadd.f32 %v1505, %v1405
      %v1538 = vadd.f32 %v1506, %v1410
      %v1539 = vadd.f32 %v1507, %v1413
      %v1540 = vadd.f32 %v1508, %v1418
      %v1541 = vadd.f32 %v1509, %v1421
      %v1542 = vadd.f32 %v1510, %v1426
      %v1543 = vadd.f32 %v1511, %v1429
      %v1544 = vadd.f32 %v1512, %v1434
      %v1545 = vadd.f32 %v1513, %v1437
      %v1546 = vadd.f32 %v1514, %v1442
      %v1547 = vadd.f32 %v1515, %v1445
      %v1548 = vadd.f32 %v1516, %v1450
      %v1549 = vadd.f32 %v1517, %v1453
      %v1550 = vadd.f32 %v1518, %v1458
      %v1551 = vadd.f32 %v1519, %v1461
      %v1552 = vadd.f32 %v1520, %v1466
      %v1553 = vadd.f32 %v1521, %v1469
      %v1554 = vadd.f32 %v1522, %v1474
      %v1555 = vadd.f32 %v1523, %v1477
      %v1556 = vadd.f32 %v1524, %v1482
      %v1557 = vadd.f32 %v1525, %v1485
      %v1558 = vadd.f32 %v1526, %v1490
      %v1559 = vadd.f32 %v1527, %v1493
      %1560 = vst.msk [vmem:[#allocation4] sm:$0xff] %vm907, %v1528
      %1561 = vst.msk [vmem:[#allocation4 + $0x8] sm:$0xff] %vm907, %v1529
      %1562 = vst.msk [vmem:[#allocation4 + $0x10] sm:$0xff] %vm907, %v1530
      %1563 = vst.msk [vmem:[#allocation4 + $0x18] sm:$0xff] %vm907, %v1531
      %1564 = vst.msk [vmem:[#allocation4 + $0x20] sm:$0xff] %vm907, %v1532
      %1565 = vst.msk [vmem:[#allocation4 + $0x28] sm:$0xff] %vm907, %v1533
      %1566 = vst.msk [vmem:[#allocation4 + $0x30] sm:$0xff] %vm907, %v1534
      %1567 = vst.msk [vmem:[#allocation4 + $0x38] sm:$0xff] %vm907, %v1535
      %1568 = vst.msk [vmem:[#allocation4 + $0x40] sm:$0xff] %vm907, %v1536
      %1569 = vst.msk [vmem:[#allocation4 + $0x48] sm:$0xff] %vm907, %v1537
      %1570 = vst.msk [vmem:[#allocation4 + $0x50] sm:$0xff] %vm907, %v1538
      %1571 = vst.msk [vmem:[#allocation4 + $0x58] sm:$0xff] %vm907, %v1539
      %1572 = vst.msk [vmem:[#allocation4 + $0x60] sm:$0xff] %vm907, %v1540
      %1573 = vst.msk [vmem:[#allocation4 + $0x68] sm:$0xff] %vm907, %v1541
      %1574 = vst.msk [vmem:[#allocation4 + $0x70] sm:$0xff] %vm907, %v1542
      %1575 = vst.msk [vmem:[#allocation4 + $0x78] sm:$0xff] %vm907, %v1543
      %1576 = vst.msk [vmem:[#allocation4 + $0x80] sm:$0xff] %vm907, %v1544
      %1577 = vst.msk [vmem:[#allocation4 + $0x88] sm:$0xff] %vm907, %v1545
      %1578 = vst.msk [vmem:[#allocation4 + $0x90] sm:$0xff] %vm907, %v1546
      %1579 = vst.msk [vmem:[#allocation4 + $0x98] sm:$0xff] %vm907, %v1547
      %1580 = vst.msk [vmem:[#allocation4 + $0xa0] sm:$0xff] %vm907, %v1548
      %1581 = vst.msk [vmem:[#allocation4 + $0xa8] sm:$0xff] %vm907, %v1549
      %1582 = vst.msk [vmem:[#allocation4 + $0xb0] sm:$0xff] %vm907, %v1550
      %1583 = vst.msk [vmem:[#allocation4 + $0xb8] sm:$0xff] %vm907, %v1551
      %1584 = vst.msk [vmem:[#allocation4 + $0xc0] sm:$0xff] %vm907, %v1552
      %1585 = vst.msk [vmem:[#allocation4 + $0xc8] sm:$0xff] %vm907, %v1553
      %1586 = vst.msk [vmem:[#allocation4 + $0xd0] sm:$0xff] %vm907, %v1554
      %1587 = vst.msk [vmem:[#allocation4 + $0xd8] sm:$0xff] %vm907, %v1555
      %1588 = vst.msk [vmem:[#allocation4 + $0xe0] sm:$0xff] %vm907, %v1556
      %1589 = vst.msk [vmem:[#allocation4 + $0xe8] sm:$0xff] %vm907, %v1557
      %1590 = vst.msk [vmem:[#allocation4 + $0xf0] sm:$0xff] %vm907, %v1558
      %1591 = vst.msk [vmem:[#allocation4 + $0xf8] sm:$0xff] %vm907, %v1559
      %s1592 = scalar_lea.vmem [#allocation2], 48
      %v1593 = vld [vmem:[%s1592] sm:$0xff]
      %v1594 = vld [vmem:[%s1592 + $0x8] sm:$0xff]
      %v1595 = vld [vmem:[%s1592 + $0x18] sm:$0xff]
      %v1596 = vld [vmem:[%s1592 + $0x20] sm:$0xff]
      %v1597 = vld [vmem:[%s1592 + $0x30] sm:$0xff]
      %v1598 = vld [vmem:[%s1592 + $0x38] sm:$0xff]
      %v1599 = vld [vmem:[%s1592 + $0x48] sm:$0xff]
      %v1600 = vld [vmem:[%s1592 + $0x50] sm:$0xff]
      %v1601 = vld [vmem:[%s1592 + $0x60] sm:$0xff]
      %v1602 = vld [vmem:[%s1592 + $0x68] sm:$0xff]
      %v1603 = vld [vmem:[%s1592 + $0x78] sm:$0xff]
      %v1604 = vld [vmem:[%s1592 + $0x80] sm:$0xff]
      %v1605 = vld [vmem:[%s1592 + $0x90] sm:$0xff]
      %v1606 = vld [vmem:[%s1592 + $0x98] sm:$0xff]
      %v1607 = vld [vmem:[%s1592 + $0xa8] sm:$0xff]
      %v1608 = vld [vmem:[%s1592 + $0xb0] sm:$0xff]
      %v1609 = vld [vmem:[%s1592 + $0xc0] sm:$0xff]
      %v1610 = vld [vmem:[%s1592 + $0xc8] sm:$0xff]
      %v1611 = vld [vmem:[%s1592 + $0xd8] sm:$0xff]
      %v1612 = vld [vmem:[%s1592 + $0xe0] sm:$0xff]
      %v1613 = vld [vmem:[%s1592 + $0xf0] sm:$0xff]
      %v1614 = vld [vmem:[%s1592 + $0xf8] sm:$0xff]
      %v1615 = vld [vmem:[%s1592 + $0x108] sm:$0xff]
      %v1616 = vld [vmem:[%s1592 + $0x110] sm:$0xff]
      %v1617 = vld [vmem:[%s1592 + $0x120] sm:$0xff]
      %v1618 = vld [vmem:[%s1592 + $0x128] sm:$0xff]
      %v1619 = vld [vmem:[%s1592 + $0x138] sm:$0xff]
      %v1620 = vld [vmem:[%s1592 + $0x140] sm:$0xff]
      %v1621 = vld [vmem:[%s1592 + $0x150] sm:$0xff]
      %v1622 = vld [vmem:[%s1592 + $0x158] sm:$0xff]
      %v1623 = vld [vmem:[%s1592 + $0x168] sm:$0xff]
      %v1624 = vld [vmem:[%s1592 + $0x170] sm:$0xff]
      %v1625 = vpack.c.bf16 %v1594, %v1593
      %v1626 = vpack.c.bf16 %v1596, %v1595
      %v1627 = vpack.c.bf16 %v1598, %v1597
      %v1628 = vpack.c.bf16 %v1600, %v1599
      %v1629 = vpack.c.bf16 %v1602, %v1601
      %v1630 = vpack.c.bf16 %v1604, %v1603
      %v1631 = vpack.c.bf16 %v1606, %v1605
      %v1632 = vpack.c.bf16 %v1608, %v1607
      %v1633 = vpack.c.bf16 %v1610, %v1609
      %v1634 = vpack.c.bf16 %v1612, %v1611
      %v1635 = vpack.c.bf16 %v1614, %v1613
      %v1636 = vpack.c.bf16 %v1616, %v1615
      %v1637 = vpack.c.bf16 %v1618, %v1617
      %v1638 = vpack.c.bf16 %v1620, %v1619
      %v1639 = vpack.c.bf16 %v1622, %v1621
      %v1640 = vpack.c.bf16 %v1624, %v1623
      %1641 = vst.msk [vmem:[#allocation3] sm:$0xff] %vm269, %v1625
      %1642 = vst.msk [vmem:[#allocation3 + $0x8] sm:$0xff] %vm269, %v1626
      %1643 = vst.msk [vmem:[#allocation3 + $0x10] sm:$0xff] %vm269, %v1627
      %1644 = vst.msk [vmem:[#allocation3 + $0x18] sm:$0xff] %vm269, %v1628
      %1645 = vst.msk [vmem:[#allocation3 + $0x20] sm:$0xff] %vm269, %v1629
      %1646 = vst.msk [vmem:[#allocation3 + $0x28] sm:$0xff] %vm269, %v1630
      %1647 = vst.msk [vmem:[#allocation3 + $0x30] sm:$0xff] %vm269, %v1631
      %1648 = vst.msk [vmem:[#allocation3 + $0x38] sm:$0xff] %vm269, %v1632
      %1649 = vst.msk [vmem:[#allocation3 + $0x40] sm:$0xff] %vm269, %v1633
      %1650 = vst.msk [vmem:[#allocation3 + $0x48] sm:$0xff] %vm269, %v1634
      %1651 = vst.msk [vmem:[#allocation3 + $0x50] sm:$0xff] %vm269, %v1635
      %1652 = vst.msk [vmem:[#allocation3 + $0x58] sm:$0xff] %vm269, %v1636
      %1653 = vst.msk [vmem:[#allocation3 + $0x60] sm:$0xff] %vm269, %v1637
      %1654 = vst.msk [vmem:[#allocation3 + $0x68] sm:$0xff] %vm269, %v1638
      %1655 = vst.msk [vmem:[#allocation3 + $0x70] sm:$0xff] %vm269, %v1639
      %1656 = vst.msk [vmem:[#allocation3 + $0x78] sm:$0xff] %vm269, %v1640
      %v1657 = vld [vmem:[%s1592 + $0x1] sm:$0xff]
      %v1658 = vld [vmem:[%s1592 + $0x9] sm:$0xff]
      %v1659 = vld [vmem:[%s1592 + $0x19] sm:$0xff]
      %v1660 = vld [vmem:[%s1592 + $0x21] sm:$0xff]
      %v1661 = vld [vmem:[%s1592 + $0x31] sm:$0xff]
      %v1662 = vld [vmem:[%s1592 + $0x39] sm:$0xff]
      %v1663 = vld [vmem:[%s1592 + $0x49] sm:$0xff]
      %v1664 = vld [vmem:[%s1592 + $0x51] sm:$0xff]
      %v1665 = vld [vmem:[%s1592 + $0x61] sm:$0xff]
      %v1666 = vld [vmem:[%s1592 + $0x69] sm:$0xff]
      %v1667 = vld [vmem:[%s1592 + $0x79] sm:$0xff]
      %v1668 = vld [vmem:[%s1592 + $0x81] sm:$0xff]
      %v1669 = vld [vmem:[%s1592 + $0x91] sm:$0xff]
      %v1670 = vld [vmem:[%s1592 + $0x99] sm:$0xff]
      %v1671 = vld [vmem:[%s1592 + $0xa9] sm:$0xff]
      %v1672 = vld [vmem:[%s1592 + $0xb1] sm:$0xff]
      %v1673 = vld [vmem:[%s1592 + $0xc1] sm:$0xff]
      %v1674 = vld [vmem:[%s1592 + $0xc9] sm:$0xff]
      %v1675 = vld [vmem:[%s1592 + $0xd9] sm:$0xff]
      %v1676 = vld [vmem:[%s1592 + $0xe1] sm:$0xff]
      %v1677 = vld [vmem:[%s1592 + $0xf1] sm:$0xff]
      %v1678 = vld [vmem:[%s1592 + $0xf9] sm:$0xff]
      %v1679 = vld [vmem:[%s1592 + $0x109] sm:$0xff]
      %v1680 = vld [vmem:[%s1592 + $0x111] sm:$0xff]
      %v1681 = vld [vmem:[%s1592 + $0x121] sm:$0xff]
      %v1682 = vld [vmem:[%s1592 + $0x129] sm:$0xff]
      %v1683 = vld [vmem:[%s1592 + $0x139] sm:$0xff]
      %v1684 = vld [vmem:[%s1592 + $0x141] sm:$0xff]
      %v1685 = vld [vmem:[%s1592 + $0x151] sm:$0xff]
      %v1686 = vld [vmem:[%s1592 + $0x159] sm:$0xff]
      %v1687 = vld [vmem:[%s1592 + $0x169] sm:$0xff]
      %v1688 = vld [vmem:[%s1592 + $0x171] sm:$0xff]
      %v1689 = vpack.c.bf16 %v1658, %v1657
      %v1690 = vpack.c.bf16 %v1660, %v1659
      %v1691 = vpack.c.bf16 %v1662, %v1661
      %v1692 = vpack.c.bf16 %v1664, %v1663
      %v1693 = vpack.c.bf16 %v1666, %v1665
      %v1694 = vpack.c.bf16 %v1668, %v1667
      %v1695 = vpack.c.bf16 %v1670, %v1669
      %v1696 = vpack.c.bf16 %v1672, %v1671
      %v1697 = vpack.c.bf16 %v1674, %v1673
      %v1698 = vpack.c.bf16 %v1676, %v1675
      %v1699 = vpack.c.bf16 %v1678, %v1677
      %v1700 = vpack.c.bf16 %v1680, %v1679
      %v1701 = vpack.c.bf16 %v1682, %v1681
      %v1702 = vpack.c.bf16 %v1684, %v1683
      %v1703 = vpack.c.bf16 %v1686, %v1685
      %v1704 = vpack.c.bf16 %v1688, %v1687
      %1721 = vrot.lane.b32.xlu0 %v1689, 4
      %v1722 = vpop.permute.xlu0 %1721
      %1723 = vrot.lane.b32.xlu0 %v1690, 4
      %v1724 = vpop.permute.xlu0 %1723
      %1725 = vrot.lane.b32.xlu0 %v1691, 4
      %v1726 = vpop.permute.xlu0 %1725
      %1727 = vrot.lane.b32.xlu0 %v1692, 4
      %v1728 = vpop.permute.xlu0 %1727
      %1729 = vrot.lane.b32.xlu0 %v1693, 4
      %v1730 = vpop.permute.xlu0 %1729
      %1731 = vrot.lane.b32.xlu0 %v1694, 4
      %v1732 = vpop.permute.xlu0 %1731
      %1733 = vrot.lane.b32.xlu0 %v1695, 4
      %v1734 = vpop.permute.xlu0 %1733
      %1735 = vrot.lane.b32.xlu0 %v1696, 4
      %v1736 = vpop.permute.xlu0 %1735
      %1737 = vrot.lane.b32.xlu0 %v1697, 4
      %v1738 = vpop.permute.xlu0 %1737
      %1739 = vrot.lane.b32.xlu0 %v1698, 4
      %v1740 = vpop.permute.xlu0 %1739
      %1741 = vrot.lane.b32.xlu0 %v1699, 4
      %v1742 = vpop.permute.xlu0 %1741
      %1743 = vrot.lane.b32.xlu0 %v1700, 4
      %v1744 = vpop.permute.xlu0 %1743
      %1745 = vrot.lane.b32.xlu0 %v1701, 4
      %v1746 = vpop.permute.xlu0 %1745
      %1747 = vrot.lane.b32.xlu0 %v1702, 4
      %v1748 = vpop.permute.xlu0 %1747
      %1749 = vrot.lane.b32.xlu0 %v1703, 4
      %v1750 = vpop.permute.xlu0 %1749
      %1751 = vrot.lane.b32.xlu0 %v1704, 4
      %v1752 = vpop.permute.xlu0 %1751
      %1769 = vst.msk [vmem:[#allocation3] sm:$0xff] %vm524, %v1722
      %1770 = vst.msk [vmem:[#allocation3 + $0x8] sm:$0xff] %vm524, %v1724
      %1771 = vst.msk [vmem:[#allocation3 + $0x10] sm:$0xff] %vm524, %v1726
      %1772 = vst.msk [vmem:[#allocation3 + $0x18] sm:$0xff] %vm524, %v1728
      %1773 = vst.msk [vmem:[#allocation3 + $0x20] sm:$0xff] %vm524, %v1730
      %1774 = vst.msk [vmem:[#allocation3 + $0x28] sm:$0xff] %vm524, %v1732
      %1775 = vst.msk [vmem:[#allocation3 + $0x30] sm:$0xff] %vm524, %v1734
      %1776 = vst.msk [vmem:[#allocation3 + $0x38] sm:$0xff] %vm524, %v1736
      %1777 = vst.msk [vmem:[#allocation3 + $0x40] sm:$0xff] %vm524, %v1738
      %1778 = vst.msk [vmem:[#allocation3 + $0x48] sm:$0xff] %vm524, %v1740
      %1779 = vst.msk [vmem:[#allocation3 + $0x50] sm:$0xff] %vm524, %v1742
      %1780 = vst.msk [vmem:[#allocation3 + $0x58] sm:$0xff] %vm524, %v1744
      %1781 = vst.msk [vmem:[#allocation3 + $0x60] sm:$0xff] %vm524, %v1746
      %1782 = vst.msk [vmem:[#allocation3 + $0x68] sm:$0xff] %vm524, %v1748
      %1783 = vst.msk [vmem:[#allocation3 + $0x70] sm:$0xff] %vm524, %v1750
      %1784 = vst.msk [vmem:[#allocation3 + $0x78] sm:$0xff] %vm524, %v1752
      %v1785 = vld [vmem:[%s1592 + $0x2] sm:$0xff]
      %v1786 = vld [vmem:[%s1592 + $0xa] sm:$0xff]
      %v1787 = vld [vmem:[%s1592 + $0x1a] sm:$0xff]
      %v1788 = vld [vmem:[%s1592 + $0x22] sm:$0xff]
      %v1789 = vld [vmem:[%s1592 + $0x32] sm:$0xff]
      %v1790 = vld [vmem:[%s1592 + $0x3a] sm:$0xff]
      %v1791 = vld [vmem:[%s1592 + $0x4a] sm:$0xff]
      %v1792 = vld [vmem:[%s1592 + $0x52] sm:$0xff]
      %v1793 = vld [vmem:[%s1592 + $0x62] sm:$0xff]
      %v1794 = vld [vmem:[%s1592 + $0x6a] sm:$0xff]
      %v1795 = vld [vmem:[%s1592 + $0x7a] sm:$0xff]
      %v1796 = vld [vmem:[%s1592 + $0x82] sm:$0xff]
      %v1797 = vld [vmem:[%s1592 + $0x92] sm:$0xff]
      %v1798 = vld [vmem:[%s1592 + $0x9a] sm:$0xff]
      %v1799 = vld [vmem:[%s1592 + $0xaa] sm:$0xff]
      %v1800 = vld [vmem:[%s1592 + $0xb2] sm:$0xff]
      %v1801 = vld [vmem:[%s1592 + $0xc2] sm:$0xff]
      %v1802 = vld [vmem:[%s1592 + $0xca] sm:$0xff]
      %v1803 = vld [vmem:[%s1592 + $0xda] sm:$0xff]
      %v1804 = vld [vmem:[%s1592 + $0xe2] sm:$0xff]
      %v1805 = vld [vmem:[%s1592 + $0xf2] sm:$0xff]
      %v1806 = vld [vmem:[%s1592 + $0xfa] sm:$0xff]
      %v1807 = vld [vmem:[%s1592 + $0x10a] sm:$0xff]
      %v1808 = vld [vmem:[%s1592 + $0x112] sm:$0xff]
      %v1809 = vld [vmem:[%s1592 + $0x122] sm:$0xff]
      %v1810 = vld [vmem:[%s1592 + $0x12a] sm:$0xff]
      %v1811 = vld [vmem:[%s1592 + $0x13a] sm:$0xff]
      %v1812 = vld [vmem:[%s1592 + $0x142] sm:$0xff]
      %v1813 = vld [vmem:[%s1592 + $0x152] sm:$0xff]
      %v1814 = vld [vmem:[%s1592 + $0x15a] sm:$0xff]
      %v1815 = vld [vmem:[%s1592 + $0x16a] sm:$0xff]
      %v1816 = vld [vmem:[%s1592 + $0x172] sm:$0xff]
      %v1817 = vpack.c.bf16 %v1786, %v1785
      %v1818 = vpack.c.bf16 %v1788, %v1787
      %v1819 = vpack.c.bf16 %v1790, %v1789
      %v1820 = vpack.c.bf16 %v1792, %v1791
      %v1821 = vpack.c.bf16 %v1794, %v1793
      %v1822 = vpack.c.bf16 %v1796, %v1795
      %v1823 = vpack.c.bf16 %v1798, %v1797
      %v1824 = vpack.c.bf16 %v1800, %v1799
      %v1825 = vpack.c.bf16 %v1802, %v1801
      %v1826 = vpack.c.bf16 %v1804, %v1803
      %v1827 = vpack.c.bf16 %v1806, %v1805
      %v1828 = vpack.c.bf16 %v1808, %v1807
      %v1829 = vpack.c.bf16 %v1810, %v1809
      %v1830 = vpack.c.bf16 %v1812, %v1811
      %v1831 = vpack.c.bf16 %v1814, %v1813
      %v1832 = vpack.c.bf16 %v1816, %v1815
      %1849 = vrot.lane.b32.xlu0 %v1817, 8
      %v1850 = vpop.permute.xlu0 %1849
      %1851 = vrot.lane.b32.xlu0 %v1818, 8
      %v1852 = vpop.permute.xlu0 %1851
      %1853 = vrot.lane.b32.xlu0 %v1819, 8
      %v1854 = vpop.permute.xlu0 %1853
      %1855 = vrot.lane.b32.xlu0 %v1820, 8
      %v1856 = vpop.permute.xlu0 %1855
      %1857 = vrot.lane.b32.xlu0 %v1821, 8
      %v1858 = vpop.permute.xlu0 %1857
      %1859 = vrot.lane.b32.xlu0 %v1822, 8
      %v1860 = vpop.permute.xlu0 %1859
      %1861 = vrot.lane.b32.xlu0 %v1823, 8
      %v1862 = vpop.permute.xlu0 %1861
      %1863 = vrot.lane.b32.xlu0 %v1824, 8
      %v1864 = vpop.permute.xlu0 %1863
      %1865 = vrot.lane.b32.xlu0 %v1825, 8
      %v1866 = vpop.permute.xlu0 %1865
      %1867 = vrot.lane.b32.xlu0 %v1826, 8
      %v1868 = vpop.permute.xlu0 %1867
      %1869 = vrot.lane.b32.xlu0 %v1827, 8
      %v1870 = vpop.permute.xlu0 %1869
      %1871 = vrot.lane.b32.xlu0 %v1828, 8
      %v1872 = vpop.permute.xlu0 %1871
      %1873 = vrot.lane.b32.xlu0 %v1829, 8
      %v1874 = vpop.permute.xlu0 %1873
      %1875 = vrot.lane.b32.xlu0 %v1830, 8
      %v1876 = vpop.permute.xlu0 %1875
      %1877 = vrot.lane.b32.xlu0 %v1831, 8
      %v1878 = vpop.permute.xlu0 %1877
      %1879 = vrot.lane.b32.xlu0 %v1832, 8
      %v1880 = vpop.permute.xlu0 %1879
      %1897 = vst.msk [vmem:[#allocation3] sm:$0xff] %vm653, %v1850
      %1898 = vst.msk [vmem:[#allocation3 + $0x8] sm:$0xff] %vm653, %v1852
      %1899 = vst.msk [vmem:[#allocation3 + $0x10] sm:$0xff] %vm653, %v1854
      %1900 = vst.msk [vmem:[#allocation3 + $0x18] sm:$0xff] %vm653, %v1856
      %1901 = vst.msk [vmem:[#allocation3 + $0x20] sm:$0xff] %vm653, %v1858
      %1902 = vst.msk [vmem:[#allocation3 + $0x28] sm:$0xff] %vm653, %v1860
      %1903 = vst.msk [vmem:[#allocation3 + $0x30] sm:$0xff] %vm653, %v1862
      %1904 = vst.msk [vmem:[#allocation3 + $0x38] sm:$0xff] %vm653, %v1864
      %1905 = vst.msk [vmem:[#allocation3 + $0x40] sm:$0xff] %vm653, %v1866
      %1906 = vst.msk [vmem:[#allocation3 + $0x48] sm:$0xff] %vm653, %v1868
      %1907 = vst.msk [vmem:[#allocation3 + $0x50] sm:$0xff] %vm653, %v1870
      %1908 = vst.msk [vmem:[#allocation3 + $0x58] sm:$0xff] %vm653, %v1872
      %1909 = vst.msk [vmem:[#allocation3 + $0x60] sm:$0xff] %vm653, %v1874
      %1910 = vst.msk [vmem:[#allocation3 + $0x68] sm:$0xff] %vm653, %v1876
      %1911 = vst.msk [vmem:[#allocation3 + $0x70] sm:$0xff] %vm653, %v1878
      %1912 = vst.msk [vmem:[#allocation3 + $0x78] sm:$0xff] %vm653, %v1880
      %v1913 = vld [vmem:[#allocation3] sm:$0xff]
      %v1914 = vld [vmem:[#allocation3 + $0x8] sm:$0xff]
      %v1915 = vld [vmem:[#allocation3 + $0x10] sm:$0xff]
      %v1916 = vld [vmem:[#allocation3 + $0x18] sm:$0xff]
      %v1917 = vld [vmem:[#allocation3 + $0x20] sm:$0xff]
      %v1918 = vld [vmem:[#allocation3 + $0x28] sm:$0xff]
      %v1919 = vld [vmem:[#allocation3 + $0x30] sm:$0xff]
      %v1920 = vld [vmem:[#allocation3 + $0x38] sm:$0xff]
      %v1921 = vld [vmem:[#allocation3 + $0x40] sm:$0xff]
      %v1922 = vld [vmem:[#allocation3 + $0x48] sm:$0xff]
      %v1923 = vld [vmem:[#allocation3 + $0x50] sm:$0xff]
      %v1924 = vld [vmem:[#allocation3 + $0x58] sm:$0xff]
      %v1925 = vld [vmem:[#allocation3 + $0x60] sm:$0xff]
      %v1926 = vld [vmem:[#allocation3 + $0x68] sm:$0xff]
      %v1927 = vld [vmem:[#allocation3 + $0x70] sm:$0xff]
      %v1928 = vld [vmem:[#allocation3 + $0x78] sm:$0xff]
      %s1929 = scalar_lea.vmem %s1, 16
      %v1930 = vld [vmem:[%s1929] sm:$0xf]
      %v1931 = vld [vmem:[%s1929 + $0x4] sm:$0x3]
      %v1934 = vunpack.c.l.b16 %v1930
      %v1935 = vunpack.c.l.b16 %v1931
      %v1936 = vpack.c.b16 %v1935, %v1934
      %v1938 = vsel %vm693, %v1913, 0
      %v1941 = vsel %vm693, %v1914, 0
      %v1944 = vsel %vm693, %v1915, 0
      %v1947 = vsel %vm693, %v1916, 0
      %v1950 = vsel %vm693, %v1917, 0
      %v1953 = vsel %vm693, %v1918, 0
      %v1956 = vsel %vm693, %v1919, 0
      %v1959 = vsel %vm693, %v1920, 0
      %v1962 = vsel %vm693, %v1921, 0
      %v1965 = vsel %vm693, %v1922, 0
      %v1968 = vsel %vm693, %v1923, 0
      %v1971 = vsel %vm693, %v1924, 0
      %v1974 = vsel %vm693, %v1925, 0
      %v1977 = vsel %vm693, %v1926, 0
      %v1980 = vsel %vm693, %v1927, 0
      %v1983 = vsel %vm693, %v1928, 0
      %v1986 = vsel %vm742, %v1936, 0
      %1988 = vmatprep.subr.bf16.mxu0 0
      %1989 = vmatpush1.bf16.msra.mxu0 %v1986
      %1990 = vmatprep.subr.bf16.mxu0 0
      %1991 = vmatpush1.bf16.msra.mxu0 0
      %1992 = vmatprep.subr.bf16.mxu0 0
      %1993 = vmatpush1.bf16.msra.mxu0 0
      %1994 = vmatprep.subr.bf16.mxu0 0
      %1995 = vmatpush1.bf16.msra.mxu0 0
      %1996 = vmatprep.subr.bf16.mxu0 0
      %1997 = vmatpush1.bf16.msra.mxu0 0
      %1998 = vmatprep.subr.bf16.mxu0 0
      %1999 = vmatpush1.bf16.msra.mxu0 0
      %2000 = vmatprep.subr.bf16.mxu0 0
      %2001 = vmatpush1.bf16.msra.mxu0 0
      %2002 = vmatprep.subr.bf16.mxu0 0
      %2003 = vmatpush1.bf16.msra.mxu0 0
      %2004 = vmatprep.subr.bf16.mxu0 0
      %2005 = vmatpush1.bf16.msra.mxu0 0
      %2006 = vmatprep.subr.bf16.mxu0 0
      %2007 = vmatpush1.bf16.msra.mxu0 0
      %2008 = vmatprep.subr.bf16.mxu0 0
      %2009 = vmatpush1.bf16.msra.mxu0 0
      %2010 = vmatprep.subr.bf16.mxu0 0
      %2011 = vmatpush1.bf16.msra.mxu0 0
      %2012 = vmatprep.subr.bf16.mxu0 0
      %2013 = vmatpush1.bf16.msra.mxu0 0
      %2014 = vmatprep.subr.bf16.mxu0 0
      %2015 = vmatpush1.bf16.msra.mxu0 0
      %2016 = vmatprep.subr.bf16.mxu0 0
      %2017 = vmatpush1.bf16.msra.mxu0 0
      %2018 = vmatprep.subr.bf16.mxu0 0
      %2019 = vmatpush1.bf16.msra.mxu0 0
      %2020 = vmatprep.mubr.bf16.mxu0 0
      %2021 = vmatmul.mubr.bf16.gmra.mrb[0].mxu0 %v1938
      %v2022 = vpop.f32.mrb[0].mxu0
      %v2023 = vadd.f32 0.0, %v2022
      %v2024 = vpop.f32.mrb[0].mxu0
      %v2025 = vpop.f32.mrb[0].mxu0
      %v2026 = vadd.f32 0.0, %v2025
      %v2027 = vpop.f32.mrb[0].mxu0
      %2028 = vmatprep.mubr.bf16.mxu0 0
      %2029 = vmatmul.mubr.bf16.gmra.mrb[0].mxu0 %v1941
      %v2030 = vpop.f32.mrb[0].mxu0
      %v2031 = vadd.f32 0.0, %v2030
      %v2032 = vpop.f32.mrb[0].mxu0
      %v2033 = vpop.f32.mrb[0].mxu0
      %v2034 = vadd.f32 0.0, %v2033
      %v2035 = vpop.f32.mrb[0].mxu0
      %2036 = vmatprep.mubr.bf16.mxu0 0
      %2037 = vmatmul.mubr.bf16.gmra.mrb[0].mxu0 %v1944
      %v2038 = vpop.f32.mrb[0].mxu0
      %v2039 = vadd.f32 0.0, %v2038
      %v2040 = vpop.f32.mrb[0].mxu0
      %v2041 = vpop.f32.mrb[0].mxu0
      %v2042 = vadd.f32 0.0, %v2041
      %v2043 = vpop.f32.mrb[0].mxu0
      %2044 = vmatprep.mubr.bf16.mxu0 0
      %2045 = vmatmul.mubr.bf16.gmra.mrb[0].mxu0 %v1947
      %v2046 = vpop.f32.mrb[0].mxu0
      %v2047 = vadd.f32 0.0, %v2046
      %v2048 = vpop.f32.mrb[0].mxu0
      %v2049 = vpop.f32.mrb[0].mxu0
      %v2050 = vadd.f32 0.0, %v2049
      %v2051 = vpop.f32.mrb[0].mxu0
      %2052 = vmatprep.mubr.bf16.mxu0 0
      %2053 = vmatmul.mubr.bf16.gmra.mrb[0].mxu0 %v1950
      %v2054 = vpop.f32.mrb[0].mxu0
      %v2055 = vadd.f32 0.0, %v2054
      %v2056 = vpop.f32.mrb[0].mxu0
      %v2057 = vpop.f32.mrb[0].mxu0
      %v2058 = vadd.f32 0.0, %v2057
      %v2059 = vpop.f32.mrb[0].mxu0
      %2060 = vmatprep.mubr.bf16.mxu0 0
      %2061 = vmatmul.mubr.bf16.gmra.mrb[0].mxu0 %v1953
      %v2062 = vpop.f32.mrb[0].mxu0
      %v2063 = vadd.f32 0.0, %v2062
      %v2064 = vpop.f32.mrb[0].mxu0
      %v2065 = vpop.f32.mrb[0].mxu0
      %v2066 = vadd.f32 0.0, %v2065
      %v2067 = vpop.f32.mrb[0].mxu0
      %2068 = vmatprep.mubr.bf16.mxu0 0
      %2069 = vmatmul.mubr.bf16.gmra.mrb[0].mxu0 %v1956
      %v2070 = vpop.f32.mrb[0].mxu0
      %v2071 = vadd.f32 0.0, %v2070
      %v2072 = vpop.f32.mrb[0].mxu0
      %v2073 = vpop.f32.mrb[0].mxu0
      %v2074 = vadd.f32 0.0, %v2073
      %v2075 = vpop.f32.mrb[0].mxu0
      %2076 = vmatprep.mubr.bf16.mxu0 0
      %2077 = vmatmul.mubr.bf16.gmra.mrb[0].mxu0 %v1959
      %v2078 = vpop.f32.mrb[0].mxu0
      %v2079 = vadd.f32 0.0, %v2078
      %v2080 = vpop.f32.mrb[0].mxu0
      %v2081 = vpop.f32.mrb[0].mxu0
      %v2082 = vadd.f32 0.0, %v2081
      %v2083 = vpop.f32.mrb[0].mxu0
      %2084 = vmatprep.mubr.bf16.mxu0 0
      %2085 = vmatmul.mubr.bf16.gmra.mrb[0].mxu0 %v1962
      %v2086 = vpop.f32.mrb[0].mxu0
      %v2087 = vadd.f32 0.0, %v2086
      %v2088 = vpop.f32.mrb[0].mxu0
      %v2089 = vpop.f32.mrb[0].mxu0
      %v2090 = vadd.f32 0.0, %v2089
      %v2091 = vpop.f32.mrb[0].mxu0
      %2092 = vmatprep.mubr.bf16.mxu0 0
      %2093 = vmatmul.mubr.bf16.gmra.mrb[0].mxu0 %v1965
      %v2094 = vpop.f32.mrb[0].mxu0
      %v2095 = vadd.f32 0.0, %v2094
      %v2096 = vpop.f32.mrb[0].mxu0
      %v2097 = vpop.f32.mrb[0].mxu0
      %v2098 = vadd.f32 0.0, %v2097
      %v2099 = vpop.f32.mrb[0].mxu0
      %2100 = vmatprep.mubr.bf16.mxu0 0
      %2101 = vmatmul.mubr.bf16.gmra.mrb[0].mxu0 %v1968
      %v2102 = vpop.f32.mrb[0].mxu0
      %v2103 = vadd.f32 0.0, %v2102
      %v2104 = vpop.f32.mrb[0].mxu0
      %v2105 = vpop.f32.mrb[0].mxu0
      %v2106 = vadd.f32 0.0, %v2105
      %v2107 = vpop.f32.mrb[0].mxu0
      %2108 = vmatprep.mubr.bf16.mxu0 0
      %2109 = vmatmul.mubr.bf16.gmra.mrb[0].mxu0 %v1971
      %v2110 = vpop.f32.mrb[0].mxu0
      %v2111 = vadd.f32 0.0, %v2110
      %v2112 = vpop.f32.mrb[0].mxu0
      %v2113 = vpop.f32.mrb[0].mxu0
      %v2114 = vadd.f32 0.0, %v2113
      %v2115 = vpop.f32.mrb[0].mxu0
      %2116 = vmatprep.mubr.bf16.mxu0 0
      %2117 = vmatmul.mubr.bf16.gmra.mrb[0].mxu0 %v1974
      %v2118 = vpop.f32.mrb[0].mxu0
      %v2119 = vadd.f32 0.0, %v2118
      %v2120 = vpop.f32.mrb[0].mxu0
      %v2121 = vpop.f32.mrb[0].mxu0
      %v2122 = vadd.f32 0.0, %v2121
      %v2123 = vpop.f32.mrb[0].mxu0
      %2124 = vmatprep.mubr.bf16.mxu0 0
      %2125 = vmatmul.mubr.bf16.gmra.mrb[0].mxu0 %v1977
      %v2126 = vpop.f32.mrb[0].mxu0
      %v2127 = vadd.f32 0.0, %v2126
      %v2128 = vpop.f32.mrb[0].mxu0
      %v2129 = vpop.f32.mrb[0].mxu0
      %v2130 = vadd.f32 0.0, %v2129
      %v2131 = vpop.f32.mrb[0].mxu0
      %2132 = vmatprep.mubr.bf16.mxu0 0
      %2133 = vmatmul.mubr.bf16.gmra.mrb[0].mxu0 %v1980
      %v2134 = vpop.f32.mrb[0].mxu0
      %v2135 = vadd.f32 0.0, %v2134
      %v2136 = vpop.f32.mrb[0].mxu0
      %v2137 = vpop.f32.mrb[0].mxu0
      %v2138 = vadd.f32 0.0, %v2137
      %v2139 = vpop.f32.mrb[0].mxu0
      %2140 = vmatprep.mubr.bf16.mxu0 0
      %2141 = vmatmul.mubr.bf16.gmra.mrb[0].mxu0 %v1983
      %v2142 = vpop.f32.mrb[0].mxu0
      %v2143 = vadd.f32 0.0, %v2142
      %v2144 = vpop.f32.mrb[0].mxu0
      %v2145 = vpop.f32.mrb[0].mxu0
      %v2146 = vadd.f32 0.0, %v2145
      %v2147 = vpop.f32.mrb[0].mxu0
      %2148 = vdwg.mxu0
      %v2149 = vld [vmem:[#allocation4] sm:$0xff]
      %v2150 = vld [vmem:[#allocation4 + $0x8] sm:$0xff]
      %v2151 = vld [vmem:[#allocation4 + $0x10] sm:$0xff]
      %v2152 = vld [vmem:[#allocation4 + $0x18] sm:$0xff]
      %v2153 = vld [vmem:[#allocation4 + $0x20] sm:$0xff]
      %v2154 = vld [vmem:[#allocation4 + $0x28] sm:$0xff]
      %v2155 = vld [vmem:[#allocation4 + $0x30] sm:$0xff]
      %v2156 = vld [vmem:[#allocation4 + $0x38] sm:$0xff]
      %v2157 = vld [vmem:[#allocation4 + $0x40] sm:$0xff]
      %v2158 = vld [vmem:[#allocation4 + $0x48] sm:$0xff]
      %v2159 = vld [vmem:[#allocation4 + $0x50] sm:$0xff]
      %v2160 = vld [vmem:[#allocation4 + $0x58] sm:$0xff]
      %v2161 = vld [vmem:[#allocation4 + $0x60] sm:$0xff]
      %v2162 = vld [vmem:[#allocation4 + $0x68] sm:$0xff]
      %v2163 = vld [vmem:[#allocation4 + $0x70] sm:$0xff]
      %v2164 = vld [vmem:[#allocation4 + $0x78] sm:$0xff]
      %v2165 = vld [vmem:[#allocation4 + $0x80] sm:$0xff]
      %v2166 = vld [vmem:[#allocation4 + $0x88] sm:$0xff]
      %v2167 = vld [vmem:[#allocation4 + $0x90] sm:$0xff]
      %v2168 = vld [vmem:[#allocation4 + $0x98] sm:$0xff]
      %v2169 = vld [vmem:[#allocation4 + $0xa0] sm:$0xff]
      %v2170 = vld [vmem:[#allocation4 + $0xa8] sm:$0xff]
      %v2171 = vld [vmem:[#allocation4 + $0xb0] sm:$0xff]
      %v2172 = vld [vmem:[#allocation4 + $0xb8] sm:$0xff]
      %v2173 = vld [vmem:[#allocation4 + $0xc0] sm:$0xff]
      %v2174 = vld [vmem:[#allocation4 + $0xc8] sm:$0xff]
      %v2175 = vld [vmem:[#allocation4 + $0xd0] sm:$0xff]
      %v2176 = vld [vmem:[#allocation4 + $0xd8] sm:$0xff]
      %v2177 = vld [vmem:[#allocation4 + $0xe0] sm:$0xff]
      %v2178 = vld [vmem:[#allocation4 + $0xe8] sm:$0xff]
      %v2179 = vld [vmem:[#allocation4 + $0xf0] sm:$0xff]
      %v2180 = vld [vmem:[#allocation4 + $0xf8] sm:$0xff]
      %v2181 = vadd.f32 %v2149, %v2023
      %v2182 = vadd.f32 %v2150, %v2026
      %v2183 = vadd.f32 %v2151, %v2031
      %v2184 = vadd.f32 %v2152, %v2034
      %v2185 = vadd.f32 %v2153, %v2039
      %v2186 = vadd.f32 %v2154, %v2042
      %v2187 = vadd.f32 %v2155, %v2047
      %v2188 = vadd.f32 %v2156, %v2050
      %v2189 = vadd.f32 %v2157, %v2055
      %v2190 = vadd.f32 %v2158, %v2058
      %v2191 = vadd.f32 %v2159, %v2063
      %v2192 = vadd.f32 %v2160, %v2066
      %v2193 = vadd.f32 %v2161, %v2071
      %v2194 = vadd.f32 %v2162, %v2074
      %v2195 = vadd.f32 %v2163, %v2079
      %v2196 = vadd.f32 %v2164, %v2082
      %v2197 = vadd.f32 %v2165, %v2087
      %v2198 = vadd.f32 %v2166, %v2090
      %v2199 = vadd.f32 %v2167, %v2095
      %v2200 = vadd.f32 %v2168, %v2098
      %v2201 = vadd.f32 %v2169, %v2103
      %v2202 = vadd.f32 %v2170, %v2106
      %v2203 = vadd.f32 %v2171, %v2111
      %v2204 = vadd.f32 %v2172, %v2114
      %v2205 = vadd.f32 %v2173, %v2119
      %v2206 = vadd.f32 %v2174, %v2122
      %v2207 = vadd.f32 %v2175, %v2127
      %v2208 = vadd.f32 %v2176, %v2130
      %v2209 = vadd.f32 %v2177, %v2135
      %v2210 = vadd.f32 %v2178, %v2138
      %v2211 = vadd.f32 %v2179, %v2143
      %v2212 = vadd.f32 %v2180, %v2146
      %2213 = vst.msk [vmem:[#allocation4] sm:$0xff] %vm907, %v2181
      %2214 = vst.msk [vmem:[#allocation4 + $0x8] sm:$0xff] %vm907, %v2182
      %2215 = vst.msk [vmem:[#allocation4 + $0x10] sm:$0xff] %vm907, %v2183
      %2216 = vst.msk [vmem:[#allocation4 + $0x18] sm:$0xff] %vm907, %v2184
      %2217 = vst.msk [vmem:[#allocation4 + $0x20] sm:$0xff] %vm907, %v2185
      %2218 = vst.msk [vmem:[#allocation4 + $0x28] sm:$0xff] %vm907, %v2186
      %2219 = vst.msk [vmem:[#allocation4 + $0x30] sm:$0xff] %vm907, %v2187
      %2220 = vst.msk [vmem:[#allocation4 + $0x38] sm:$0xff] %vm907, %v2188
      %2221 = vst.msk [vmem:[#allocation4 + $0x40] sm:$0xff] %vm907, %v2189
      %2222 = vst.msk [vmem:[#allocation4 + $0x48] sm:$0xff] %vm907, %v2190
      %2223 = vst.msk [vmem:[#allocation4 + $0x50] sm:$0xff] %vm907, %v2191
      %2224 = vst.msk [vmem:[#allocation4 + $0x58] sm:$0xff] %vm907, %v2192
      %2225 = vst.msk [vmem:[#allocation4 + $0x60] sm:$0xff] %vm907, %v2193
      %2226 = vst.msk [vmem:[#allocation4 + $0x68] sm:$0xff] %vm907, %v2194
      %2227 = vst.msk [vmem:[#allocation4 + $0x70] sm:$0xff] %vm907, %v2195
      %2228 = vst.msk [vmem:[#allocation4 + $0x78] sm:$0xff] %vm907, %v2196
      %2229 = vst.msk [vmem:[#allocation4 + $0x80] sm:$0xff] %vm907, %v2197
      %2230 = vst.msk [vmem:[#allocation4 + $0x88] sm:$0xff] %vm907, %v2198
      %2231 = vst.msk [vmem:[#allocation4 + $0x90] sm:$0xff] %vm907, %v2199
      %2232 = vst.msk [vmem:[#allocation4 + $0x98] sm:$0xff] %vm907, %v2200
      %2233 = vst.msk [vmem:[#allocation4 + $0xa0] sm:$0xff] %vm907, %v2201
      %2234 = vst.msk [vmem:[#allocation4 + $0xa8] sm:$0xff] %vm907, %v2202
      %2235 = vst.msk [vmem:[#allocation4 + $0xb0] sm:$0xff] %vm907, %v2203
      %2236 = vst.msk [vmem:[#allocation4 + $0xb8] sm:$0xff] %vm907, %v2204
      %2237 = vst.msk [vmem:[#allocation4 + $0xc0] sm:$0xff] %vm907, %v2205
      %2238 = vst.msk [vmem:[#allocation4 + $0xc8] sm:$0xff] %vm907, %v2206
      %2239 = vst.msk [vmem:[#allocation4 + $0xd0] sm:$0xff] %vm907, %v2207
      %2240 = vst.msk [vmem:[#allocation4 + $0xd8] sm:$0xff] %vm907, %v2208
      %2241 = vst.msk [vmem:[#allocation4 + $0xe0] sm:$0xff] %vm907, %v2209
      %2242 = vst.msk [vmem:[#allocation4 + $0xe8] sm:$0xff] %vm907, %v2210
      %2243 = vst.msk [vmem:[#allocation4 + $0xf0] sm:$0xff] %vm907, %v2211
      %2244 = vst.msk [vmem:[#allocation4 + $0xf8] sm:$0xff] %vm907, %v2212
      %v2245 = vld [vmem:[#allocation4] sm:$0xff]
      %v2246 = vld [vmem:[#allocation4 + $0x8] sm:$0xff]
      %v2247 = vld [vmem:[#allocation4 + $0x10] sm:$0xff]
      %v2248 = vld [vmem:[#allocation4 + $0x18] sm:$0xff]
      %v2249 = vld [vmem:[#allocation4 + $0x20] sm:$0xff]
      %v2250 = vld [vmem:[#allocation4 + $0x28] sm:$0xff]
      %v2251 = vld [vmem:[#allocation4 + $0x30] sm:$0xff]
      %v2252 = vld [vmem:[#allocation4 + $0x38] sm:$0xff]
      %v2253 = vld [vmem:[#allocation4 + $0x40] sm:$0xff]
      %v2254 = vld [vmem:[#allocation4 + $0x48] sm:$0xff]
      %v2255 = vld [vmem:[#allocation4 + $0x50] sm:$0xff]
      %v2256 = vld [vmem:[#allocation4 + $0x58] sm:$0xff]
      %v2257 = vld [vmem:[#allocation4 + $0x60] sm:$0xff]
      %v2258 = vld [vmem:[#allocation4 + $0x68] sm:$0xff]
      %v2259 = vld [vmem:[#allocation4 + $0x70] sm:$0xff]
      %v2260 = vld [vmem:[#allocation4 + $0x78] sm:$0xff]
      %v2261 = vld [vmem:[#allocation4 + $0x80] sm:$0xff]
      %v2262 = vld [vmem:[#allocation4 + $0x88] sm:$0xff]
      %v2263 = vld [vmem:[#allocation4 + $0x90] sm:$0xff]
      %v2264 = vld [vmem:[#allocation4 + $0x98] sm:$0xff]
      %v2265 = vld [vmem:[#allocation4 + $0xa0] sm:$0xff]
      %v2266 = vld [vmem:[#allocation4 + $0xa8] sm:$0xff]
      %v2267 = vld [vmem:[#allocation4 + $0xb0] sm:$0xff]
      %v2268 = vld [vmem:[#allocation4 + $0xb8] sm:$0xff]
      %v2269 = vld [vmem:[#allocation4 + $0xc0] sm:$0xff]
      %v2270 = vld [vmem:[#allocation4 + $0xc8] sm:$0xff]
      %v2271 = vld [vmem:[#allocation4 + $0xd0] sm:$0xff]
      %v2272 = vld [vmem:[#allocation4 + $0xd8] sm:$0xff]
      %v2273 = vld [vmem:[#allocation4 + $0xe0] sm:$0xff]
      %v2274 = vld [vmem:[#allocation4 + $0xe8] sm:$0xff]
      %v2275 = vld [vmem:[#allocation4 + $0xf0] sm:$0xff]
      %v2276 = vld [vmem:[#allocation4 + $0xf8] sm:$0xff]
      %v2277 = vpack.c.bf16 %v2246, %v2245
      %v2278 = vpack.c.bf16 %v2248, %v2247
      %v2279 = vpack.c.bf16 %v2250, %v2249
      %v2280 = vpack.c.bf16 %v2252, %v2251
      %v2281 = vpack.c.bf16 %v2254, %v2253
      %v2282 = vpack.c.bf16 %v2256, %v2255
      %v2283 = vpack.c.bf16 %v2258, %v2257
      %v2284 = vpack.c.bf16 %v2260, %v2259
      %v2285 = vpack.c.bf16 %v2262, %v2261
      %v2286 = vpack.c.bf16 %v2264, %v2263
      %v2287 = vpack.c.bf16 %v2266, %v2265
      %v2288 = vpack.c.bf16 %v2268, %v2267
      %v2289 = vpack.c.bf16 %v2270, %v2269
      %v2290 = vpack.c.bf16 %v2272, %v2271
      %v2291 = vpack.c.bf16 %v2274, %v2273
      %v2292 = vpack.c.bf16 %v2276, %v2275
      %v2309 = vunpack.c.l.b16 %v2277
      %v2310 = vunpack.c.h.b16 %v2277
      %v2311 = vunpack.c.l.b16 %v2278
      %v2312 = vunpack.c.h.b16 %v2278
      %v2313 = vunpack.c.l.b16 %v2279
      %v2314 = vunpack.c.h.b16 %v2279
      %v2315 = vunpack.c.l.b16 %v2280
      %v2316 = vunpack.c.h.b16 %v2280
      %v2317 = vunpack.c.l.b16 %v2281
      %v2318 = vunpack.c.h.b16 %v2281
      %v2319 = vunpack.c.l.b16 %v2282
      %v2320 = vunpack.c.h.b16 %v2282
      %v2321 = vunpack.c.l.b16 %v2283
      %v2322 = vunpack.c.h.b16 %v2283
      %v2323 = vunpack.c.l.b16 %v2284
      %v2324 = vunpack.c.h.b16 %v2284
      %v2325 = vunpack.c.l.b16 %v2285
      %v2326 = vunpack.c.h.b16 %v2285
      %v2327 = vunpack.c.l.b16 %v2286
      %v2328 = vunpack.c.h.b16 %v2286
      %v2329 = vunpack.c.l.b16 %v2287
      %v2330 = vunpack.c.h.b16 %v2287
      %v2331 = vunpack.c.l.b16 %v2288
      %v2332 = vunpack.c.h.b16 %v2288
      %v2333 = vunpack.c.l.b16 %v2289
      %v2334 = vunpack.c.h.b16 %v2289
      %v2335 = vunpack.c.l.b16 %v2290
      %v2336 = vunpack.c.h.b16 %v2290
      %v2337 = vunpack.c.l.b16 %v2291
      %v2338 = vunpack.c.h.b16 %v2291
      %v2339 = vunpack.c.l.b16 %v2292
      %v2340 = vunpack.c.h.b16 %v2292
      %v2341 = vpack.c.b16 %v2309, %v2309
      %v2342 = vpack.c.b16 %v2310, %v2310
      %v2343 = vpack.c.b16 %v2311, %v2311
      %v2344 = vpack.c.b16 %v2312, %v2312
      %v2345 = vpack.c.b16 %v2313, %v2313
      %v2346 = vpack.c.b16 %v2314, %v2314
      %v2347 = vpack.c.b16 %v2315, %v2315
      %v2348 = vpack.c.b16 %v2316, %v2316
      %v2349 = vpack.c.b16 %v2317, %v2317
      %v2350 = vpack.c.b16 %v2318, %v2318
      %v2351 = vpack.c.b16 %v2319, %v2319
      %v2352 = vpack.c.b16 %v2320, %v2320
      %v2353 = vpack.c.b16 %v2321, %v2321
      %v2354 = vpack.c.b16 %v2322, %v2322
      %v2355 = vpack.c.b16 %v2323, %v2323
      %v2356 = vpack.c.b16 %v2324, %v2324
      %v2357 = vpack.c.b16 %v2325, %v2325
      %v2358 = vpack.c.b16 %v2326, %v2326
      %v2359 = vpack.c.b16 %v2327, %v2327
      %v2360 = vpack.c.b16 %v2328, %v2328
      %v2361 = vpack.c.b16 %v2329, %v2329
      %v2362 = vpack.c.b16 %v2330, %v2330
      %v2363 = vpack.c.b16 %v2331, %v2331
      %v2364 = vpack.c.b16 %v2332, %v2332
      %v2365 = vpack.c.b16 %v2333, %v2333
      %v2366 = vpack.c.b16 %v2334, %v2334
      %v2367 = vpack.c.b16 %v2335, %v2335
      %v2368 = vpack.c.b16 %v2336, %v2336
      %v2369 = vpack.c.b16 %v2337, %v2337
      %v2370 = vpack.c.b16 %v2338, %v2338
      %v2371 = vpack.c.b16 %v2339, %v2339
      %v2372 = vpack.c.b16 %v2340, %v2340
      %vm2405 = vcmask 60416
      %2406 = vst.msk [vmem:[%s231] sm:$0xf] %vm2405, %v2341
      %2407 = vst.msk [vmem:[%s231 + $0x4] sm:$0xf] %vm2405, %v2342
      %2408 = vst.msk [vmem:[%s231 + $0x8] sm:$0xf] %vm2405, %v2343
      %2409 = vst.msk [vmem:[%s231 + $0xc] sm:$0xf] %vm2405, %v2344
      %2410 = vst.msk [vmem:[%s231 + $0x10] sm:$0xf] %vm2405, %v2345
      %2411 = vst.msk [vmem:[%s231 + $0x14] sm:$0xf] %vm2405, %v2346
      %2412 = vst.msk [vmem:[%s231 + $0x18] sm:$0xf] %vm2405, %v2347
      %2413 = vst.msk [vmem:[%s231 + $0x1c] sm:$0xf] %vm2405, %v2348
      %2414 = vst.msk [vmem:[%s231 + $0x20] sm:$0xf] %vm2405, %v2349
      %2415 = vst.msk [vmem:[%s231 + $0x24] sm:$0xf] %vm2405, %v2350
      %2416 = vst.msk [vmem:[%s231 + $0x28] sm:$0xf] %vm2405, %v2351
      %2417 = vst.msk [vmem:[%s231 + $0x2c] sm:$0xf] %vm2405, %v2352
      %2418 = vst.msk [vmem:[%s231 + $0x30] sm:$0xf] %vm2405, %v2353
      %2419 = vst.msk [vmem:[%s231 + $0x34] sm:$0xf] %vm2405, %v2354
      %2420 = vst.msk [vmem:[%s231 + $0x38] sm:$0xf] %vm2405, %v2355
      %2421 = vst.msk [vmem:[%s231 + $0x3c] sm:$0xf] %vm2405, %v2356
      %2422 = vst.msk [vmem:[%s231 + $0x40] sm:$0xf] %vm2405, %v2357
      %2423 = vst.msk [vmem:[%s231 + $0x44] sm:$0xf] %vm2405, %v2358
      %2424 = vst.msk [vmem:[%s231 + $0x48] sm:$0xf] %vm2405, %v2359
      %2425 = vst.msk [vmem:[%s231 + $0x4c] sm:$0xf] %vm2405, %v2360
      %2426 = vst.msk [vmem:[%s231 + $0x50] sm:$0xf] %vm2405, %v2361
      %2427 = vst.msk [vmem:[%s231 + $0x54] sm:$0xf] %vm2405, %v2362
      %2428 = vst.msk [vmem:[%s231 + $0x58] sm:$0xf] %vm2405, %v2363
      %2429 = vst.msk [vmem:[%s231 + $0x5c] sm:$0xf] %vm2405, %v2364
      %2430 = vst.msk [vmem:[%s231 + $0x60] sm:$0xf] %vm2405, %v2365
      %2431 = vst.msk [vmem:[%s231 + $0x64] sm:$0xf] %vm2405, %v2366
      %2432 = vst.msk [vmem:[%s231 + $0x68] sm:$0xf] %vm2405, %v2367
      %2433 = vst.msk [vmem:[%s231 + $0x6c] sm:$0xf] %vm2405, %v2368
      %2434 = vst.msk [vmem:[%s231 + $0x70] sm:$0xf] %vm2405, %v2369
      %2435 = vst.msk [vmem:[%s231 + $0x74] sm:$0xf] %vm2405, %v2370
      %2436 = vst.msk [vmem:[%s231 + $0x78] sm:$0xf] %vm2405, %v2371
      %2437 = vst.msk [vmem:[%s231 + $0x7c] sm:$0xf] %vm2405, %v2372
      %v2438 = vsel %vm907, %v2245, 0.0
      %v2439 = vsel %vm907, %v2246, 0.0
      %v2440 = vadd.f32 %v2438, %v2439
      %v2441 = vsel %vm907, %v2247, 0.0
      %v2442 = vadd.f32 %v2440, %v2441
      %v2443 = vsel %vm907, %v2248, 0.0
      %v2444 = vadd.f32 %v2442, %v2443
      %v2445 = vsel %vm907, %v2249, 0.0
      %v2446 = vadd.f32 %v2444, %v2445
      %v2447 = vsel %vm907, %v2250, 0.0
      %v2448 = vadd.f32 %v2446, %v2447
      %v2449 = vsel %vm907, %v2251, 0.0
      %v2450 = vadd.f32 %v2448, %v2449
      %v2451 = vsel %vm907, %v2252, 0.0
      %v2452 = vadd.f32 %v2450, %v2451
      %v2453 = vsel %vm907, %v2253, 0.0
      %v2454 = vadd.f32 %v2452, %v2453
      %v2455 = vsel %vm907, %v2254, 0.0
      %v2456 = vadd.f32 %v2454, %v2455
      %v2457 = vsel %vm907, %v2255, 0.0
      %v2458 = vadd.f32 %v2456, %v2457
      %v2459 = vsel %vm907, %v2256, 0.0
      %v2460 = vadd.f32 %v2458, %v2459
      %v2461 = vsel %vm907, %v2257, 0.0
      %v2462 = vadd.f32 %v2460, %v2461
      %v2463 = vsel %vm907, %v2258, 0.0
      %v2464 = vadd.f32 %v2462, %v2463
      %v2465 = vsel %vm907, %v2259, 0.0
      %v2466 = vadd.f32 %v2464, %v2465
      %v2467 = vsel %vm907, %v2260, 0.0
      %v2468 = vadd.f32 %v2466, %v2467
      %v2469 = vsel %vm907, %v2261, 0.0
      %v2470 = vadd.f32 %v2468, %v2469
      %v2471 = vsel %vm907, %v2262, 0.0
      %v2472 = vadd.f32 %v2470, %v2471
      %v2473 = vsel %vm907, %v2263, 0.0
      %v2474 = vadd.f32 %v2472, %v2473
      %v2475 = vsel %vm907, %v2264, 0.0
      %v2476 = vadd.f32 %v2474, %v2475
      %v2477 = vsel %vm907, %v2265, 0.0
      %v2478 = vadd.f32 %v2476, %v2477
      %v2479 = vsel %vm907, %v2266, 0.0
      %v2480 = vadd.f32 %v2478, %v2479
      %v2481 = vsel %vm907, %v2267, 0.0
      %v2482 = vadd.f32 %v2480, %v2481
      %v2483 = vsel %vm907, %v2268, 0.0
      %v2484 = vadd.f32 %v2482, %v2483
      %v2485 = vsel %vm907, %v2269, 0.0
      %v2486 = vadd.f32 %v2484, %v2485
      %v2487 = vsel %vm907, %v2270, 0.0
      %v2488 = vadd.f32 %v2486, %v2487
      %v2489 = vsel %vm907, %v2271, 0.0
      %v2490 = vadd.f32 %v2488, %v2489
      %v2491 = vsel %vm907, %v2272, 0.0
      %v2492 = vadd.f32 %v2490, %v2491
      %v2493 = vsel %vm907, %v2273, 0.0
      %v2494 = vadd.f32 %v2492, %v2493
      %v2495 = vsel %vm907, %v2274, 0.0
      %v2496 = vadd.f32 %v2494, %v2495
      %v2497 = vsel %vm907, %v2275, 0.0
      %v2498 = vadd.f32 %v2496, %v2497
      %v2499 = vsel %vm907, %v2276, 0.0
      %v2500 = vadd.f32 %v2498, %v2499
      %v2501 = vrot.slane %v2500, 4
      %v2502 = vadd.f32 %v2500, %v2501
      %v2503 = vrot.slane %v2502, 2
      %v2504 = vadd.f32 %v2502, %v2503
      %v2505 = vrot.slane %v2504, 1
      %v2506 = vadd.f32 %v2504, %v2505
      %vm2507 = vcmask 57344
      %2508 = vst.msk [vmem:[%s235] sm:$0x1] %vm2507, %v2506
      %v2509 = vmul.f32 %v2245, %v2245
      %v2510 = vmul.f32 %v2246, %v2246
      %v2511 = vmul.f32 %v2247, %v2247
      %v2512 = vmul.f32 %v2248, %v2248
      %v2513 = vmul.f32 %v2249, %v2249
      %v2514 = vmul.f32 %v2250, %v2250
      %v2515 = vmul.f32 %v2251, %v2251
      %v2516 = vmul.f32 %v2252, %v2252
      %v2517 = vmul.f32 %v2253, %v2253
      %v2518 = vmul.f32 %v2254, %v2254
      %v2519 = vmul.f32 %v2255, %v2255
      %v2520 = vmul.f32 %v2256, %v2256
      %v2521 = vmul.f32 %v2257, %v2257
      %v2522 = vmul.f32 %v2258, %v2258
      %v2523 = vmul.f32 %v2259, %v2259
      %v2524 = vmul.f32 %v2260, %v2260
      %v2525 = vmul.f32 %v2261, %v2261
      %v2526 = vmul.f32 %v2262, %v2262
      %v2527 = vmul.f32 %v2263, %v2263
      %v2528 = vmul.f32 %v2264, %v2264
      %v2529 = vmul.f32 %v2265, %v2265
      %v2530 = vmul.f32 %v2266, %v2266
      %v2531 = vmul.f32 %v2267, %v2267
      %v2532 = vmul.f32 %v2268, %v2268
      %v2533 = vmul.f32 %v2269, %v2269
      %v2534 = vmul.f32 %v2270, %v2270
      %v2535 = vmul.f32 %v2271, %v2271
      %v2536 = vmul.f32 %v2272, %v2272
      %v2537 = vmul.f32 %v2273, %v2273
      %v2538 = vmul.f32 %v2274, %v2274
      %v2539 = vmul.f32 %v2275, %v2275
      %v2540 = vmul.f32 %v2276, %v2276
      %v2541 = vsel %vm907, %v2509, 0.0
      %v2542 = vsel %vm907, %v2510, 0.0
      %v2543 = vadd.f32 %v2541, %v2542
      %v2544 = vsel %vm907, %v2511, 0.0
      %v2545 = vadd.f32 %v2543, %v2544
      %v2546 = vsel %vm907, %v2512, 0.0
      %v2547 = vadd.f32 %v2545, %v2546
      %v2548 = vsel %vm907, %v2513, 0.0
      %v2549 = vadd.f32 %v2547, %v2548
      %v2550 = vsel %vm907, %v2514, 0.0
      %v2551 = vadd.f32 %v2549, %v2550
      %v2552 = vsel %vm907, %v2515, 0.0
      %v2553 = vadd.f32 %v2551, %v2552
      %v2554 = vsel %vm907, %v2516, 0.0
      %v2555 = vadd.f32 %v2553, %v2554
      %v2556 = vsel %vm907, %v2517, 0.0
      %v2557 = vadd.f32 %v2555, %v2556
      %v2558 = vsel %vm907, %v2518, 0.0
      %v2559 = vadd.f32 %v2557, %v2558
      %v2560 = vsel %vm907, %v2519, 0.0
      %v2561 = vadd.f32 %v2559, %v2560
      %v2562 = vsel %vm907, %v2520, 0.0
      %v2563 = vadd.f32 %v2561, %v2562
      %v2564 = vsel %vm907, %v2521, 0.0
      %v2565 = vadd.f32 %v2563, %v2564
      %v2566 = vsel %vm907, %v2522, 0.0
      %v2567 = vadd.f32 %v2565, %v2566
      %v2568 = vsel %vm907, %v2523, 0.0
      %v2569 = vadd.f32 %v2567, %v2568
      %v2570 = vsel %vm907, %v2524, 0.0
      %v2571 = vadd.f32 %v2569, %v2570
      %v2572 = vsel %vm907, %v2525, 0.0
      %v2573 = vadd.f32 %v2571, %v2572
      %v2574 = vsel %vm907, %v2526, 0.0
      %v2575 = vadd.f32 %v2573, %v2574
      %v2576 = vsel %vm907, %v2527, 0.0
      %v2577 = vadd.f32 %v2575, %v2576
      %v2578 = vsel %vm907, %v2528, 0.0
      %v2579 = vadd.f32 %v2577, %v2578
      %v2580 = vsel %vm907, %v2529, 0.0
      %v2581 = vadd.f32 %v2579, %v2580
      %v2582 = vsel %vm907, %v2530, 0.0
      %v2583 = vadd.f32 %v2581, %v2582
      %v2584 = vsel %vm907, %v2531, 0.0
      %v2585 = vadd.f32 %v2583, %v2584
      %v2586 = vsel %vm907, %v2532, 0.0
      %v2587 = vadd.f32 %v2585, %v2586
      %v2588 = vsel %vm907, %v2533, 0.0
      %v2589 = vadd.f32 %v2587, %v2588
      %v2590 = vsel %vm907, %v2534, 0.0
      %v2591 = vadd.f32 %v2589, %v2590
      %v2592 = vsel %vm907, %v2535, 0.0
      %v2593 = vadd.f32 %v2591, %v2592
      %v2594 = vsel %vm907, %v2536, 0.0
      %v2595 = vadd.f32 %v2593, %v2594
      %v2596 = vsel %vm907, %v2537, 0.0
      %v2597 = vadd.f32 %v2595, %v2596
      %v2598 = vsel %vm907, %v2538, 0.0
      %v2599 = vadd.f32 %v2597, %v2598
      %v2600 = vsel %vm907, %v2539, 0.0
      %v2601 = vadd.f32 %v2599, %v2600
      %v2602 = vsel %vm907, %v2540, 0.0
      %v2603 = vadd.f32 %v2601, %v2602
      %v2604 = vrot.slane %v2603, 4
      %v2605 = vadd.f32 %v2603, %v2604
      %v2606 = vrot.slane %v2605, 2
      %v2607 = vadd.f32 %v2605, %v2606
      %v2608 = vrot.slane %v2607, 1
      %v2609 = vadd.f32 %v2607, %v2608
      %2610 = vst.msk [vmem:[%s235 + $0x1] sm:$0x1] %vm2507, %v2609
      %p2611 = scmp.lt.s32.totalorder %s17, 1
      %s2612 = scalar_select %p2611, %s17, 1
      %s2613 = smul.addr %s2612, 32
      %s2614 = smul.addr %s2613, 4
      %s2615 = scalar_lea.vmem %s4, %s2614
      %p2616 = scmp.lt.s32.totalorder %s17, 1
      %s2617 = scalar_select %p2616, %s17, 1
      %s2618 = smul.addr %s2617, 2
      %s2619 = scalar_lea.vmem %s5, %s2618
      // Predicated region
      $region37: #{conv_block_forward.3} parent=35 // pred_check
        %p2620 = pneg %p124
      $region38: #{conv_block_forward.3} parent=35 // pred_check_branch
        %2622 = sbr.rel (%p2620) target = $region40
      $region39: #{conv_block_forward.3} parent=35 // pred_region
        _
      $region40: #{conv_block_forward.3} parent=35 // pred_fallthru
        _
      // Predicated region
      $region41: #{conv_block_forward.3} parent=35 // pred_check
        %p2623 = pneg %p150
      $region42: #{conv_block_forward.3} parent=35 // pred_check_branch
        %2625 = sbr.rel (%p2623) target = $region44
      $region43: #{conv_block_forward.3} parent=35 // pred_region
        _
      $region44: #{conv_block_forward.3} parent=35 // pred_fallthru
        _
    $region36: #{conv_block_forward.3} parent=5 // pred_fallthru
      _
    %p2626 = scmp.le.s32.totalorder 2, %s12
    // Predicated region
    $region45: #{conv_block_forward.3} parent=5 // pred_check
      %p2627 = pneg %p2626
    $region46: #{conv_block_forward.3} parent=5 // pred_check_branch
      %2629 = sbr.rel (%p2627) target = $region48
    $region47: #{conv_block_forward.3} parent=5 // pred_region
      %s2630 = ssub.s32 %s12, 2
      // Predicated region
      $region49: #{conv_block_forward.3} parent=47 // pred_check
        %p2631 = pneg %p130
      $region50: #{conv_block_forward.3} parent=47 // pred_check_branch
        %2633 = sbr.rel (%p2631) target = $region52
      $region51: #{conv_block_forward.3} parent=47 // pred_region
        %p2634 = scmp.lt.s32.totalorder %s18, 1
        %s2635 = scalar_select %p2634, %s18, 1
        %s2636 = smul.addr %s2635, 32
        %s2637 = smul.addr %s2636, 4
        %s2638 = scalar_lea.vmem %s4, %s2637
      $region52: #{conv_block_forward.3} parent=47 // pred_fallthru
        _
      // Predicated region
      $region53: #{conv_block_forward.3} parent=47 // pred_check
        %p2639 = pneg %p156
      $region54: #{conv_block_forward.3} parent=47 // pred_check_branch
        %2641 = sbr.rel (%p2639) target = $region56
      $region55: #{conv_block_forward.3} parent=47 // pred_region
        %p2642 = scmp.lt.s32.totalorder %s18, 1
        %s2643 = scalar_select %p2642, %s18, 1
        %s2644 = smul.addr %s2643, 2
        %s2645 = scalar_lea.vmem %s5, %s2644
      $region56: #{conv_block_forward.3} parent=47 // pred_fallthru
        _
    $region48: #{conv_block_forward.3} parent=5 // pred_fallthru
      _
  $region6: #{conv_block_forward.3} parent=0 // loop_footer
    %s16 = sadd.s32 1, %s12
  $region7: #{conv_block_forward.3} parent=0 // loop_footer_branch
    %11 = sbr.rel target = $region3
  $region8: #{conv_block_forward.3} parent=0 // loop_exit
    _

// kernel: conv_block_forward.4
$region0: #{conv_block_forward.4}
  #allocation0 [shape = 'u32[]', space=smem, size = 0x4, offset = 0x4, fixed_abs, tag = 'smem constant byte address 0x4 - core index']
  #allocation1 [shape = 'u32[144,128]{1,0:T(1,128)}', space=vmem, size = 0x12000, scoped, tag = 'internal scratch']
  #allocation2 [shape = 'f32[18,18,8]{2,1,0:T(8,128)}', space=vmem, size = 0x36000, scoped, tag = 'scratch operand']
  #allocation3 [shape = 'bf16[16,16,24]{2,1,0:T(16,128)(2,1)}', space=vmem, size = 0x10000, scoped, tag = 'scratch operand']
  #allocation4 [shape = 'f32[256,8]{1,0:T(8,128)}', space=vmem, size = 0x20000, scoped, tag = 'scratch operand']
  %s0 = inlined_call_operand.vmem [shape: bf16[2,16,16,8], index: 0, kind: input, shape index: {}]
  %s1 = inlined_call_operand.vmem [shape: bf16[3,24,8], index: 1, kind: input, shape index: {}]
  %s2 = inlined_call_operand.vmem [shape: f32[1,8], index: 2, kind: input, shape index: {}]
  %s3 = inlined_call_operand.vmem [shape: f32[1,8], index: 3, kind: input, shape index: {}]
  %s4 = inlined_call_operand.vmem [shape: bf16[2,256,8], index: 4, kind: output, shape index: {0}]
  %s5 = inlined_call_operand.vmem [shape: f32[2,2,8], index: 5, kind: output, shape index: {1}]
  %6 = xla_tuple %s4, %s5
  %s7 = sld [smem:[#allocation0]]
  $region57: #{conv_block_forward.4} parent=0
    _
  %s9 = ssub.s32 1, %s7
  %s10 = scalar_select 0, %s9, %s7
  loop: start=0, step=1, limit=4
  $region2: #{conv_block_forward.4} parent=0 // loop_pre_header
    _
  $region3: #{conv_block_forward.4} parent=0 // loop_header
    %s12 = sphi 0, %s16
    %p13 = scmp.ge.s32.totalorder %s12, 4
    %s22 = sphi 0, %s24
    %s25 = sphi 0, %s22
    %s26 = sphi 0, %s25
    %s42 = sphi 0, %s26
    %s46 = sphi 0, %s46
    %s48 = sphi 0, %s46
    %s49 = sphi 0, %s48
    %s63 = sphi 0, %s49
    %s67 = sphi 0, %s67
    %s69 = sphi 0, %s67
    %s70 = sphi 0, %s69
    %s84 = sphi 0, %s70
    %s88 = sphi 0, %s88
    %s90 = sphi 0, %s88
    %s91 = sphi 0, %s90
    %s105 = sphi 0, %s91
    %s111 = sphi 0, %s113
    %s114 = sphi 0, %s111
    %s115 = sphi 0, %s114
    %s131 = sphi 0, %s115
    %s137 = sphi 0, %s139
    %s140 = sphi 0, %s137
    %s141 = sphi 0, %s140
    %s157 = sphi 0, %s141
  $region4: #{conv_block_forward.4} parent=0 // loop_header_branch
    %15 = sbr.rel (%p13) target = $region8
  $region5: #{conv_block_forward.4} parent=0 // loop_body
    %s17 = ssub.s32 %s12, 1
    %s18 = ssub.s32 %s12, 2
    %s19 = sadd.s32 %s12, 1
    %s20 = ssub.s32 %s12, %s19
    %p21 = scmp.eq.s32.totalorder %s20, 0
    %s23 = sadd.s32 %s22, 1
    %s24 = scalar_select %p21, %s22, %s23
    %p27 = pneg %p21
    %p28 = scmp.eq.s32.totalorder %s12, 1
    %p29 = por %p27, %p28
    %p30 = scmp.ne.s32.totalorder %s22, %s25
    %p31 = scmp.eq.s32.totalorder %s12, 0
    %p32 = por %p30, %p31
    %p33 = scmp.ne.s32.totalorder %s22, %s25
    %p34 = scmp.eq.s32.totalorder %s17, 1
    %p35 = por %p33, %p34
    %p36 = scmp.ne.s32.totalorder %s25, %s26
    %p37 = scmp.eq.s32.totalorder %s17, 0
    %p38 = por %p36, %p37
    %p39 = scmp.ne.s32.totalorder %s25, %s26
    %p40 = scmp.eq.s32.totalorder %s18, 1
    %p41 = por %p39, %p40
    %p43 = scmp.ne.s32.totalorder %s26, %s42
    %p44 = scmp.eq.s32.totalorder %s18, 0
    %p45 = por %p43, %p44
    %s47 = sadd.s32 %s46, 1
    %p50 = scmp.eq.s32.totalorder %s12, 1
    %p51 = scmp.ne.s32.totalorder %s46, %s48
    %p52 = scmp.eq.s32.totalorder %s12, 0
    %p53 = por %p51, %p52
    %p54 = scmp.ne.s32.totalorder %s46, %s48
    %p55 = scmp.eq.s32.totalorder %s17, 1
    %p56 = por %p54, %p55
    %p57 = scmp.ne.s32.totalorder %s48, %s49
    %p58 = scmp.eq.s32.totalorder %s17, 0
    %p59 = por %p57, %p58
    %p60 = scmp.ne.s32.totalorder %s48, %s49
    %p61 = scmp.eq.s32.totalorder %s18, 1
    %p62 = por %p60, %p61
    %p64 = scmp.ne.s32.totalorder %s49, %s63
    %p65 = scmp.eq.s32.totalorder %s18, 0
    %p66 = por %p64, %p65
    %s68 = sadd.s32 %s67, 1
    %p71 = scmp.eq.s32.totalorder %s12, 1
    %p72 = scmp.ne.s32.totalorder %s67, %s69
    %p73 = scmp.eq.s32.totalorder %s12, 0
    %p74 = por %p72, %p73
    %p75 = scmp.ne.s32.totalorder %s67, %s69
    %p76 = scmp.eq.s32.totalorder %s17, 1
    %p77 = por %p75, %p76
    %p78 = scmp.ne.s32.totalorder %s69, %s70
    %p79 = scmp.eq.s32.totalorder %s17, 0
    %p80 = por %p78, %p79
    %p81 = scmp.ne.s32.totalorder %s69, %s70
    %p82 = scmp.eq.s32.totalorder %s18, 1
    %p83 = por %p81, %p82
    %p85 = scmp.ne.s32.totalorder %s70, %s84
    %p86 = scmp.eq.s32.totalorder %s18, 0
    %p87 = por %p85, %p86
    %s89 = sadd.s32 %s88, 1
    %p92 = scmp.eq.s32.totalorder %s12, 1
    %p93 = scmp.ne.s32.totalorder %s88, %s90
    %p94 = scmp.eq.s32.totalorder %s12, 0
    %p95 = por %p93, %p94
    %p96 = scmp.ne.s32.totalorder %s88, %s90
    %p97 = scmp.eq.s32.totalorder %s17, 1
    %p98 = por %p96, %p97
    %p99 = scmp.ne.s32.totalorder %s90, %s91
    %p100 = scmp.eq.s32.totalorder %s17, 0
    %p101 = por %p99, %p100
    %p102 = scmp.ne.s32.totalorder %s90, %s91
    %p103 = scmp.eq.s32.totalorder %s18, 1
    %p104 = por %p102, %p103
    %p106 = scmp.ne.s32.totalorder %s91, %s105
    %p107 = scmp.eq.s32.totalorder %s18, 0
    %p108 = por %p106, %p107
    %s109 = ssub.s32 %s12, %s19
    %p110 = scmp.eq.s32.totalorder %s109, 0
    %s112 = sadd.s32 %s111, 1
    %s113 = scalar_select %p110, %s111, %s112
    %p116 = pneg %p110
    %p117 = scmp.eq.s32.totalorder %s12, 1
    %p118 = por %p116, %p117
    %p119 = scmp.ne.s32.totalorder %s111, %s114
    %p120 = scmp.eq.s32.totalorder %s12, 0
    %p121 = por %p119, %p120
    %p122 = scmp.ne.s32.totalorder %s111, %s114
    %p123 = scmp.eq.s32.totalorder %s17, 1
    %p124 = por %p122, %p123
    %p125 = scmp.ne.s32.totalorder %s114, %s115
    %p126 = scmp.eq.s32.totalorder %s17, 0
    %p127 = por %p125, %p126
    %p128 = scmp.ne.s32.totalorder %s114, %s115
    %p129 = scmp.eq.s32.totalorder %s18, 1
    %p130 = por %p128, %p129
    %p132 = scmp.ne.s32.totalorder %s115, %s131
    %p133 = scmp.eq.s32.totalorder %s18, 0
    %p134 = por %p132, %p133
    %s135 = ssub.s32 %s12, %s19
    %p136 = scmp.eq.s32.totalorder %s135, 0
    %s138 = sadd.s32 %s137, 1
    %s139 = scalar_select %p136, %s137, %s138
    %p142 = pneg %p136
    %p143 = scmp.eq.s32.totalorder %s12, 1
    %p144 = por %p142, %p143
    %p145 = scmp.ne.s32.totalorder %s137, %s140
    %p146 = scmp.eq.s32.totalorder %s12, 0
    %p147 = por %p145, %p146
    %p148 = scmp.ne.s32.totalorder %s137, %s140
    %p149 = scmp.eq.s32.totalorder %s17, 1
    %p150 = por %p148, %p149
    %p151 = scmp.ne.s32.totalorder %s140, %s141
    %p152 = scmp.eq.s32.totalorder %s17, 0
    %p153 = por %p151, %p152
    %p154 = scmp.ne.s32.totalorder %s140, %s141
    %p155 = scmp.eq.s32.totalorder %s18, 1
    %p156 = por %p154, %p155
    %p158 = scmp.ne.s32.totalorder %s141, %s157
    %p159 = scmp.eq.s32.totalorder %s18, 0
    %p160 = por %p158, %p159
    %p161 = scmp.le.s32.totalorder 1, %s12
    %p162 = scmp.lt.s32.totalorder %s12, 3
    %p163 = pnand %p161, %p162
    %p164 = pneg %p163
    // Predicated region
    $region9: #{conv_block_forward.4} parent=5 // pred_check
      _
    $region10: #{conv_block_forward.4} parent=5 // pred_check_branch
      %166 = sbr.rel (%p163) target = $region12
    $region11: #{conv_block_forward.4} parent=5 // pred_region
      %s167 = ssub.s32 %s12, 1
      // Predicated region
      $region13: #{conv_block_forward.4} parent=11 // pred_check
        %p168 = pneg %p59
      $region14: #{conv_block_forward.4} parent=11 // pred_check_branch
        %170 = sbr.rel (%p168) target = $region16
      $region15: #{conv_block_forward.4} parent=11 // pred_region
        _
      $region16: #{conv_block_forward.4} parent=11 // pred_fallthru
        _
      // Predicated region
      $region17: #{conv_block_forward.4} parent=11 // pred_check
        %p171 = pneg %p80
      $region18: #{conv_block_forward.4} parent=11 // pred_check_branch
        %173 = sbr.rel (%p171) target = $region20
      $region19: #{conv_block_forward.4} parent=11 // pred_region
        _
      $region20: #{conv_block_forward.4} parent=11 // pred_fallthru
        _
      // Predicated region
      $region21: #{conv_block_forward.4} parent=11 // pred_check
        %p174 = pneg %p101
      $region22: #{conv_block_forward.4} parent=11 // pred_check_branch
        %176 = sbr.rel (%p174) target = $region24
      $region23: #{conv_block_forward.4} parent=11 // pred_region
        _
      $region24: #{conv_block_forward.4} parent=11 // pred_fallthru
        _
    $region12: #{conv_block_forward.4} parent=5 // pred_fallthru
      _
    %p177 = scmp.lt.s32.totalorder %s12, 2
    // Predicated region
    $region25: #{conv_block_forward.4} parent=5 // pred_check
      %p178 = pneg %p177
    $region26: #{conv_block_forward.4} parent=5 // pred_check_branch
      %180 = sbr.rel (%p178) target = $region28
    $region27: #{conv_block_forward.4} parent=5 // pred_region
      // Predicated region
      $region29: #{conv_block_forward.4} parent=27 // pred_check
        %p181 = pneg %p32
      $region30: #{conv_block_forward.4} parent=27 // pred_check_branch
        %183 = sbr.rel (%p181) target = $region32
      $region31: #{conv_block_forward.4} parent=27 // pred_region
        %p184 = scmp.lt.s32.totalorder %s12, 1
        %s185 = scalar_select %p184, %s12, 1
        %s186 = smul.addr %s185, 32
        %s187 = smul.addr %s186, 4
        %s188 = scalar_lea.vmem %s0, %s187
      $region32: #{conv_block_forward.4} parent=27 // pred_fallthru
        _
    $region28: #{conv_block_forward.4} parent=5 // pred_fallthru
      _
    %p189 = scmp.le.s32.totalorder 1, %s12
    %p190 = scmp.lt.s32.totalorder %s12, 3
    %p191 = pnand %p189, %p190
    %p192 = pneg %p191
    // Predicated region
    $region33: #{conv_block_forward.4} parent=5 // pred_check
      _
    $region34: #{conv_block_forward.4} parent=5 // pred_check_branch
      %194 = sbr.rel (%p191) target = $region36
    $region35: #{conv_block_forward.4} parent=5 // pred_region
      %s195 = ssub.s32 %s12, 1
      %p196 = scmp.lt.s32.totalorder %s17, 1
      %s197 = scalar_select %p196, %s17, 1
      %s198 = smul.addr %s197, 32
      %s199 = smul.addr %s198, 4
      %s200 = scalar_lea.vmem %s0, %s199
      %p201 = pneg %p38
      %p202 = pneg %p35
      %p203 = pneg %p59
      %p204 = pneg %p56
      %p205 = pneg %p80
      %p206 = pneg %p77
      %p207 = pneg %p101
      %p208 = pneg %p98
      %p209 = pneg %p127
      %p210 = pneg %p124
      %p211 = scmp.lt.s32.totalorder %s17, 1
      %s212 = scalar_select %p211, %s17, 1
      %s213 = smul.addr %s212, 32
      %s214 = smul.addr %s213, 4
      %s215 = scalar_lea.vmem %s4, %s214
      %p216 = pneg %p153
      %p217 = pneg %p150
      %p218 = scmp.lt.s32.totalorder %s17, 1
      %s219 = scalar_select %p218, %s17, 1
      %s220 = smul.addr %s219, 2
      %s221 = scalar_lea.vmem %s5, %s220
      %p222 = scmp.lt.s32.totalorder %s17, 1
      %s223 = scalar_select %p222, %s17, 1
      %s224 = smul.addr %s223, 32
      %s225 = smul.addr %s224, 4
      %s226 = scalar_lea.vmem %s0, %s225
      %p227 = scmp.lt.s32.totalorder %s17, 1
      %s228 = scalar_select %p227, %s17, 1
      %s229 = smul.addr %s228, 32
      %s230 = smul.addr %s229, 4
      %s231 = scalar_lea.vmem %s4, %s230
      %p232 = scmp.lt.s32.totalorder %s17, 1
      %s233 = scalar_select %p232, %s17, 1
      %s234 = smul.addr %s233, 2
      %s235 = scalar_lea.vmem %s5, %s234
      %v237 = vld [vmem:[%s226] sm:$0xf]
      %v238 = vld [vmem:[%s226 + $0x4] sm:$0xf]
      %v239 = vld [vmem:[%s226 + $0x8] sm:$0xf]
      %v240 = vld [vmem:[%s226 + $0xc] sm:$0xf]
      %v241 = vld [vmem:[%s226 + $0x10] sm:$0xf]
      %v242 = vld [vmem:[%s226 + $0x14] sm:$0xf]
      %v243 = vld [vmem:[%s226 + $0x18] sm:$0xf]
      %v244 = vld [vmem:[%s226 + $0x1c] sm:$0xf]
      %v245 = vld [vmem:[%s226 + $0x20] sm:$0xf]
      %v246 = vld [vmem:[%s226 + $0x24] sm:$0xf]
      %v247 = vld [vmem:[%s226 + $0x28] sm:$0xf]
      %v248 = vld [vmem:[%s226 + $0x2c] sm:$0xf]
      %v249 = vld [vmem:[%s226 + $0x30] sm:$0xf]
      %v250 = vld [vmem:[%s226 + $0x34] sm:$0xf]
      %v251 = vld [vmem:[%s226 + $0x38] sm:$0xf]
      %v252 = vld [vmem:[%s226 + $0x3c] sm:$0xf]
      %v253 = vld [vmem:[%s226 + $0x40] sm:$0xf]
      %v254 = vld [vmem:[%s226 + $0x44] sm:$0xf]
      %v255 = vld [vmem:[%s226 + $0x48] sm:$0xf]
      %v256 = vld [vmem:[%s226 + $0x4c] sm:$0xf]
      %v257 = vld [vmem:[%s226 + $0x50] sm:$0xf]
      %v258 = vld [vmem:[%s226 + $0x54] sm:$0xf]
      %v259 = vld [vmem:[%s226 + $0x58] sm:$0xf]
      %v260 = vld [vmem:[%s226 + $0x5c] sm:$0xf]
      %v261 = vld [vmem:[%s226 + $0x60] sm:$0xf]
      %v262 = vld [vmem:[%s226 + $0x64] sm:$0xf]
      %v263 = vld [vmem:[%s226 + $0x68] sm:$0xf]
      %v264 = vld [vmem:[%s226 + $0x6c] sm:$0xf]
      %v265 = vld [vmem:[%s226 + $0x70] sm:$0xf]
      %v266 = vld [vmem:[%s226 + $0x74] sm:$0xf]
      %v267 = vld [vmem:[%s226 + $0x78] sm:$0xf]
      %v268 = vld [vmem:[%s226 + $0x7c] sm:$0xf]
      %v269 = vunpack.c.l.bf16 %v237
      %v270 = vunpack.c.l.bf16 %v238
      %v271 = vunpack.c.l.bf16 %v239
      %v272 = vunpack.c.l.bf16 %v240
      %v273 = vunpack.c.l.bf16 %v241
      %v274 = vunpack.c.l.bf16 %v242
      %v275 = vunpack.c.l.bf16 %v243
      %v276 = vunpack.c.l.bf16 %v244
      %v277 = vunpack.c.l.bf16 %v245
      %v278 = vunpack.c.l.bf16 %v246
      %v279 = vunpack.c.l.bf16 %v247
      %v280 = vunpack.c.l.bf16 %v248
      %v281 = vunpack.c.l.bf16 %v249
      %v282 = vunpack.c.l.bf16 %v250
      %v283 = vunpack.c.l.bf16 %v251
      %v284 = vunpack.c.l.bf16 %v252
      %v285 = vunpack.c.l.bf16 %v253
      %v286 = vunpack.c.l.bf16 %v254
      %v287 = vunpack.c.l.bf16 %v255
      %v288 = vunpack.c.l.bf16 %v256
      %v289 = vunpack.c.l.bf16 %v257
      %v290 = vunpack.c.l.bf16 %v258
      %v291 = vunpack.c.l.bf16 %v259
      %v292 = vunpack.c.l.bf16 %v260
      %v293 = vunpack.c.l.bf16 %v261
      %v294 = vunpack.c.l.bf16 %v262
      %v295 = vunpack.c.l.bf16 %v263
      %v296 = vunpack.c.l.bf16 %v264
      %v297 = vunpack.c.l.bf16 %v265
      %v298 = vunpack.c.l.bf16 %v266
      %v299 = vunpack.c.l.bf16 %v267
      %v300 = vunpack.c.l.bf16 %v268
      %v301 = vld [vmem:[%s2] sm:$0x1]
      %v303 = vlaneseq
      %v304 = vshrl.u32 %v303, 7
      %v305 = vsub.s32 0, %v304
      %v306 = vrot.slane %v301, %v305
      %v308 = vmul.f32 %v269, %v306
      %v309 = vmul.f32 %v270, %v306
      %v310 = vmul.f32 %v271, %v306
      %v311 = vmul.f32 %v272, %v306
      %v312 = vmul.f32 %v273, %v306
      %v313 = vmul.f32 %v274, %v306
      %v314 = vmul.f32 %v275, %v306
      %v315 = vmul.f32 %v276, %v306
      %v316 = vmul.f32 %v277, %v306
      %v317 = vmul.f32 %v278, %v306
      %v318 = vmul.f32 %v279, %v306
      %v319 = vmul.f32 %v280, %v306
      %v320 = vmul.f32 %v281, %v306
      %v321 = vmul.f32 %v282, %v306
      %v322 = vmul.f32 %v283, %v306
      %v323 = vmul.f32 %v284, %v306
      %v324 = vmul.f32 %v285, %v306
      %v325 = vmul.f32 %v286, %v306
      %v326 = vmul.f32 %v287, %v306
      %v327 = vmul.f32 %v288, %v306
      %v328 = vmul.f32 %v289, %v306
      %v329 = vmul.f32 %v290, %v306
      %v330 = vmul.f32 %v291, %v306
      %v331 = vmul.f32 %v292, %v306
      %v332 = vmul.f32 %v293, %v306
      %v333 = vmul.f32 %v294, %v306
      %v334 = vmul.f32 %v295, %v306
      %v335 = vmul.f32 %v296, %v306
      %v336 = vmul.f32 %v297, %v306
      %v337 = vmul.f32 %v298, %v306
      %v338 = vmul.f32 %v299, %v306
      %v339 = vmul.f32 %v300, %v306
      %v340 = vld [vmem:[%s3] sm:$0x1]
      %v342 = vlaneseq
      %v343 = vshrl.u32 %v342, 7
      %v344 = vsub.s32 0, %v343
      %v345 = vrot.slane %v340, %v344
      %v347 = vadd.f32 %v308, %v345
      %v348 = vadd.f32 %v309, %v345
      %v349 = vadd.f32 %v310, %v345
      %v350 = vadd.f32 %v311, %v345
      %v351 = vadd.f32 %v312, %v345
      %v352 = vadd.f32 %v313, %v345
      %v353 = vadd.f32 %v314, %v345
      %v354 = vadd.f32 %v315, %v345
      %v355 = vadd.f32 %v316, %v345
      %v356 = vadd.f32 %v317, %v345
      %v357 = vadd.f32 %v318, %v345
      %v358 = vadd.f32 %v319, %v345
      %v359 = vadd.f32 %v320, %v345
      %v360 = vadd.f32 %v321, %v345
      %v361 = vadd.f32 %v322, %v345
      %v362 = vadd.f32 %v323, %v345
      %v363 = vadd.f32 %v324, %v345
      %v364 = vadd.f32 %v325, %v345
      %v365 = vadd.f32 %v326, %v345
      %v366 = vadd.f32 %v327, %v345
      %v367 = vadd.f32 %v328, %v345
      %v368 = vadd.f32 %v329, %v345
      %v369 = vadd.f32 %v330, %v345
      %v370 = vadd.f32 %v331, %v345
      %v371 = vadd.f32 %v332, %v345
      %v372 = vadd.f32 %v333, %v345
      %v373 = vadd.f32 %v334, %v345
      %v374 = vadd.f32 %v335, %v345
      %v375 = vadd.f32 %v336, %v345
      %v376 = vadd.f32 %v337, %v345
      %v377 = vadd.f32 %v338, %v345
      %v378 = vadd.f32 %v339, %v345
      %v379 = vmax.f32 %v347, 0.0
      %v380 = vmax.f32 %v348, 0.0
      %v381 = vmax.f32 %v349, 0.0
      %v382 = vmax.f32 %v350, 0.0
      %v383 = vmax.f32 %v351, 0.0
      %v384 = vmax.f32 %v352, 0.0
      %v385 = vmax.f32 %v353, 0.0
      %v386 = vmax.f32 %v354, 0.0
      %v387 = vmax.f32 %v355, 0.0
      %v388 = vmax.f32 %v356, 0.0
      %v389 = vmax.f32 %v357, 0.0
      %v390 = vmax.f32 %v358, 0.0
      %v391 = vmax.f32 %v359, 0.0
      %v392 = vmax.f32 %v360, 0.0
      %v393 = vmax.f32 %v361, 0.0
      %v394 = vmax.f32 %v362, 0.0
      %v395 = vmax.f32 %v363, 0.0
      %v396 = vmax.f32 %v364, 0.0
      %v397 = vmax.f32 %v365, 0.0
      %v398 = vmax.f32 %v366, 0.0
      %v399 = vmax.f32 %v367, 0.0
      %v400 = vmax.f32 %v368, 0.0
      %v401 = vmax.f32 %v369, 0.0
      %v402 = vmax.f32 %v370, 0.0
      %v403 = vmax.f32 %v371, 0.0
      %v404 = vmax.f32 %v372, 0.0
      %v405 = vmax.f32 %v373, 0.0
      %v406 = vmax.f32 %v374, 0.0
      %v407 = vmax.f32 %v375, 0.0
      %v408 = vmax.f32 %v376, 0.0
      %v409 = vmax.f32 %v377, 0.0
      %v410 = vmax.f32 %v378, 0.0
      %vm411 = vcmask 64512
      %412 = vst.msk [vmem:[#allocation2] sm:$0xff] %vm411, 0.0
      %413 = vst.msk [vmem:[#allocation2 + $0x8] sm:$0xff] %vm411, 0.0
      %vm414 = vcmask 58368
      %415 = vst.msk [vmem:[#allocation2 + $0x10] sm:$0x3] %vm414, 0.0
      %s416 = scalar_lea.vmem [#allocation2], 408
      %417 = vst.msk [vmem:[%s416] sm:$0xff] %vm411, 0.0
      %418 = vst.msk [vmem:[%s416 + $0x8] sm:$0xff] %vm411, 0.0
      %419 = vst.msk [vmem:[%s416 + $0x10] sm:$0x3] %vm414, 0.0
      %vm420 = vcmask 57344
      %421 = vst.msk [vmem:[#allocation2] sm:$0x1] %vm420, 0.0
      %422 = vst.msk [vmem:[#allocation2 + $0x18] sm:$0x1] %vm420, 0.0
      %423 = vst.msk [vmem:[#allocation2 + $0x30] sm:$0x1] %vm420, 0.0
      %424 = vst.msk [vmem:[#allocation2 + $0x48] sm:$0x1] %vm420, 0.0
      %425 = vst.msk [vmem:[#allocation2 + $0x60] sm:$0x1] %vm420, 0.0
      %426 = vst.msk [vmem:[#allocation2 + $0x78] sm:$0x1] %vm420, 0.0
      %427 = vst.msk [vmem:[#allocation2 + $0x90] sm:$0x1] %vm420, 0.0
      %428 = vst.msk [vmem:[#allocation2 + $0xa8] sm:$0x1] %vm420, 0.0
      %429 = vst.msk [vmem:[#allocation2 + $0xc0] sm:$0x1] %vm420, 0.0
      %430 = vst.msk [vmem:[#allocation2 + $0xd8] sm:$0x1] %vm420, 0.0
      %431 = vst.msk [vmem:[#allocation2 + $0xf0] sm:$0x1] %vm420, 0.0
      %432 = vst.msk [vmem:[#allocation2 + $0x108] sm:$0x1] %vm420, 0.0
      %433 = vst.msk [vmem:[#allocation2 + $0x120] sm:$0x1] %vm420, 0.0
      %434 = vst.msk [vmem:[#allocation2 + $0x138] sm:$0x1] %vm420, 0.0
      %435 = vst.msk [vmem:[#allocation2 + $0x150] sm:$0x1] %vm420, 0.0
      %436 = vst.msk [vmem:[#allocation2 + $0x168] sm:$0x1] %vm420, 0.0
      %437 = vst.msk [vmem:[#allocation2 + $0x180] sm:$0x1] %vm420, 0.0
      %438 = vst.msk [vmem:[#allocation2 + $0x198] sm:$0x1] %vm420, 0.0
      %439 = vst.msk [vmem:[#allocation2 + $0x11] sm:$0x1] %vm420, 0.0
      %440 = vst.msk [vmem:[#allocation2 + $0x29] sm:$0x1] %vm420, 0.0
      %441 = vst.msk [vmem:[#allocation2 + $0x41] sm:$0x1] %vm420, 0.0
      %442 = vst.msk [vmem:[#allocation2 + $0x59] sm:$0x1] %vm420, 0.0
      %443 = vst.msk [vmem:[#allocation2 + $0x71] sm:$0x1] %vm420, 0.0
      %444 = vst.msk [vmem:[#allocation2 + $0x89] sm:$0x1] %vm420, 0.0
      %445 = vst.msk [vmem:[#allocation2 + $0xa1] sm:$0x1] %vm420, 0.0
      %446 = vst.msk [vmem:[#allocation2 + $0xb9] sm:$0x1] %vm420, 0.0
      %447 = vst.msk [vmem:[#allocation2 + $0xd1] sm:$0x1] %vm420, 0.0
      %448 = vst.msk [vmem:[#allocation2 + $0xe9] sm:$0x1] %vm420, 0.0
      %449 = vst.msk [vmem:[#allocation2 + $0x101] sm:$0x1] %vm420, 0.0
      %450 = vst.msk [vmem:[#allocation2 + $0x119] sm:$0x1] %vm420, 0.0
      %451 = vst.msk [vmem:[#allocation2 + $0x131] sm:$0x1] %vm420, 0.0
      %452 = vst.msk [vmem:[#allocation2 + $0x149] sm:$0x1] %vm420, 0.0
      %453 = vst.msk [vmem:[#allocation2 + $0x161] sm:$0x1] %vm420, 0.0
      %454 = vst.msk [vmem:[#allocation2 + $0x179] sm:$0x1] %vm420, 0.0
      %455 = vst.msk [vmem:[#allocation2 + $0x191] sm:$0x1] %vm420, 0.0
      %456 = vst.msk [vmem:[#allocation2 + $0x1a9] sm:$0x1] %vm420, 0.0
      %s457 = scalar_lea.vmem [#allocation2], 24
      %458 = vst.msk [vmem:[%s457 + $0x1] sm:$0xff] %vm411, %v379
      %459 = vst.msk [vmem:[%s457 + $0x9] sm:$0xff] %vm411, %v380
      %460 = vst.msk [vmem:[%s457 + $0x19] sm:$0xff] %vm411, %v381
      %461 = vst.msk [vmem:[%s457 + $0x21] sm:$0xff] %vm411, %v382
      %462 = vst.msk [vmem:[%s457 + $0x31] sm:$0xff] %vm411, %v383
      %463 = vst.msk [vmem:[%s457 + $0x39] sm:$0xff] %vm411, %v384
      %464 = vst.msk [vmem:[%s457 + $0x49] sm:$0xff] %vm411, %v385
      %465 = vst.msk [vmem:[%s457 + $0x51] sm:$0xff] %vm411, %v386
      %466 = vst.msk [vmem:[%s457 + $0x61] sm:$0xff] %vm411, %v387
      %467 = vst.msk [vmem:[%s457 + $0x69] sm:$0xff] %vm411, %v388
      %468 = vst.msk [vmem:[%s457 + $0x79] sm:$0xff] %vm411, %v389
      %469 = vst.msk [vmem:[%s457 + $0x81] sm:$0xff] %vm411, %v390
      %470 = vst.msk [vmem:[%s457 + $0x91] sm:$0xff] %vm411, %v391
      %471 = vst.msk [vmem:[%s457 + $0x99] sm:$0xff] %vm411, %v392
      %472 = vst.msk [vmem:[%s457 + $0xa9] sm:$0xff] %vm411, %v393
      %473 = vst.msk [vmem:[%s457 + $0xb1] sm:$0xff] %vm411, %v394
      %474 = vst.msk [vmem:[%s457 + $0xc1] sm:$0xff] %vm411, %v395
      %475 = vst.msk [vmem:[%s457 + $0xc9] sm:$0xff] %vm411, %v396
      %476 = vst.msk [vmem:[%s457 + $0xd9] sm:$0xff] %vm411, %v397
      %477 = vst.msk [vmem:[%s457 + $0xe1] sm:$0xff] %vm411, %v398
      %478 = vst.msk [vmem:[%s457 + $0xf1] sm:$0xff] %vm411, %v399
      %479 = vst.msk [vmem:[%s457 + $0xf9] sm:$0xff] %vm411, %v400
      %480 = vst.msk [vmem:[%s457 + $0x109] sm:$0xff] %vm411, %v401
      %481 = vst.msk [vmem:[%s457 + $0x111] sm:$0xff] %vm411, %v402
      %482 = vst.msk [vmem:[%s457 + $0x121] sm:$0xff] %vm411, %v403
      %483 = vst.msk [vmem:[%s457 + $0x129] sm:$0xff] %vm411, %v404
      %484 = vst.msk [vmem:[%s457 + $0x139] sm:$0xff] %vm411, %v405
      %485 = vst.msk [vmem:[%s457 + $0x141] sm:$0xff] %vm411, %v406
      %486 = vst.msk [vmem:[%s457 + $0x151] sm:$0xff] %vm411, %v407
      %487 = vst.msk [vmem:[%s457 + $0x159] sm:$0xff] %vm411, %v408
      %488 = vst.msk [vmem:[%s457 + $0x169] sm:$0xff] %vm411, %v409
      %489 = vst.msk [vmem:[%s457 + $0x171] sm:$0xff] %vm411, %v410
      %v490 = vld [vmem:[#allocation2] sm:$0xff]
      %v491 = vld [vmem:[#allocation2 + $0x8] sm:$0xff]
      %v492 = vld [vmem:[#allocation2 + $0x18] sm:$0xff]
      %v493 = vld [vmem:[#allocation2 + $0x20] sm:$0xff]
      %v494 = vld [vmem:[#allocation2 + $0x30] sm:$0xff]
      %v495 = vld [vmem:[#allocation2 + $0x38] sm:$0xff]
      %v496 = vld [vmem:[#allocation2 + $0x48] sm:$0xff]
      %v497 = vld [vmem:[#allocation2 + $0x50] sm:$0xff]
      %v498 = vld [vmem:[#allocation2 + $0x60] sm:$0xff]
      %v499 = vld [vmem:[#allocation2 + $0x68] sm:$0xff]
      %v500 = vld [vmem:[#allocation2 + $0x78] sm:$0xff]
      %v501 = vld [vmem:[#allocation2 + $0x80] sm:$0xff]
      %v502 = vld [vmem:[#allocation2 + $0x90] sm:$0xff]
      %v503 = vld [vmem:[#allocation2 + $0x98] sm:$0xff]
      %v504 = vld [vmem:[#allocation2 + $0xa8] sm:$0xff]
      %v505 = vld [vmem:[#allocation2 + $0xb0] sm:$0xff]
      %v506 = vld [vmem:[#allocation2 + $0xc0] sm:$0xff]
      %v507 = vld [vmem:[#allocation2 + $0xc8] sm:$0xff]
      %v508 = vld [vmem:[#allocation2 + $0xd8] sm:$0xff]
      %v509 = vld [vmem:[#allocation2 + $0xe0] sm:$0xff]
      %v510 = vld [vmem:[#allocation2 + $0xf0] sm:$0xff]
      %v511 = vld [vmem:[#allocation2 + $0xf8] sm:$0xff]
      %v512 = vld [vmem:[#allocation2 + $0x108] sm:$0xff]
      %v513 = vld [vmem:[#allocation2 + $0x110] sm:$0xff]
      %v514 = vld [vmem:[#allocation2 + $0x120] sm:$0xff]
      %v515 = vld [vmem:[#allocation2 + $0x128] sm:$0xff]
      %v516 = vld [vmem:[#allocation2 + $0x138] sm:$0xff]
      %v517 = vld [vmem:[#allocation2 + $0x140] sm:$0xff]
      %v518 = vld [vmem:[#allocation2 + $0x150] sm:$0xff]
      %v519 = vld [vmem:[#allocation2 + $0x158] sm:$0xff]
      %v520 = vld [vmem:[#allocation2 + $0x168] sm:$0xff]
      %v521 = vld [vmem:[#allocation2 + $0x170] sm:$0xff]
      %v522 = vpack.c.bf16 %v491, %v490
      %v523 = vpack.c.bf16 %v493, %v492
      %v524 = vpack.c.bf16 %v495, %v494
      %v525 = vpack.c.bf16 %v497, %v496
      %v526 = vpack.c.bf16 %v499, %v498
      %v527 = vpack.c.bf16 %v501, %v500
      %v528 = vpack.c.bf16 %v503, %v502
      %v529 = vpack.c.bf16 %v505, %v504
      %v530 = vpack.c.bf16 %v507, %v506
      %v531 = vpack.c.bf16 %v509, %v508
      %v532 = vpack.c.bf16 %v511, %v510
      %v533 = vpack.c.bf16 %v513, %v512
      %v534 = vpack.c.bf16 %v515, %v514
      %v535 = vpack.c.bf16 %v517, %v516
      %v536 = vpack.c.bf16 %v519, %v518
      %v537 = vpack.c.bf16 %v521, %v520
      %538 = vst.msk [vmem:[#allocation3] sm:$0xff] %vm411, %v522
      %539 = vst.msk [vmem:[#allocation3 + $0x8] sm:$0xff] %vm411, %v523
      %540 = vst.msk [vmem:[#allocation3 + $0x10] sm:$0xff] %vm411, %v524
      %541 = vst.msk [vmem:[#allocation3 + $0x18] sm:$0xff] %vm411, %v525
      %542 = vst.msk [vmem:[#allocation3 + $0x20] sm:$0xff] %vm411, %v526
      %543 = vst.msk [vmem:[#allocation3 + $0x28] sm:$0xff] %vm411, %v527
      %544 = vst.msk [vmem:[#allocation3 + $0x30] sm:$0xff] %vm411, %v528
      %545 = vst.msk [vmem:[#allocation3 + $0x38] sm:$0xff] %vm411, %v529
      %546 = vst.msk [vmem:[#allocation3 + $0x40] sm:$0xff] %vm411, %v530
      %547 = vst.msk [vmem:[#allocation3 + $0x48] sm:$0xff] %vm411, %v531
      %548 = vst.msk [vmem:[#allocation3 + $0x50] sm:$0xff] %vm411, %v532
      %549 = vst.msk [vmem:[#allocation3 + $0x58] sm:$0xff] %vm411, %v533
      %550 = vst.msk [vmem:[#allocation3 + $0x60] sm:$0xff] %vm411, %v534
      %551 = vst.msk [vmem:[#allocation3 + $0x68] sm:$0xff] %vm411, %v535
      %552 = vst.msk [vmem:[#allocation3 + $0x70] sm:$0xff] %vm411, %v536
      %553 = vst.msk [vmem:[#allocation3 + $0x78] sm:$0xff] %vm411, %v537
      %v554 = vld [vmem:[#allocation2 + $0x1] sm:$0xff]
      %v555 = vld [vmem:[#allocation2 + $0x9] sm:$0xff]
      %v556 = vld [vmem:[#allocation2 + $0x19] sm:$0xff]
      %v557 = vld [vmem:[#allocation2 + $0x21] sm:$0xff]
      %v558 = vld [vmem:[#allocation2 + $0x31] sm:$0xff]
      %v559 = vld [vmem:[#allocation2 + $0x39] sm:$0xff]
      %v560 = vld [vmem:[#allocation2 + $0x49] sm:$0xff]
      %v561 = vld [vmem:[#allocation2 + $0x51] sm:$0xff]
      %v562 = vld [vmem:[#allocation2 + $0x61] sm:$0xff]
      %v563 = vld [vmem:[#allocation2 + $0x69] sm:$0xff]
      %v564 = vld [vmem:[#allocation2 + $0x79] sm:$0xff]
      %v565 = vld [vmem:[#allocation2 + $0x81] sm:$0xff]
      %v566 = vld [vmem:[#allocation2 + $0x91] sm:$0xff]
      %v567 = vld [vmem:[#allocation2 + $0x99] sm:$0xff]
      %v568 = vld [vmem:[#allocation2 + $0xa9] sm:$0xff]
      %v569 = vld [vmem:[#allocation2 + $0xb1] sm:$0xff]
      %v570 = vld [vmem:[#allocation2 + $0xc1] sm:$0xff]
      %v571 = vld [vmem:[#allocation2 + $0xc9] sm:$0xff]
      %v572 = vld [vmem:[#allocation2 + $0xd9] sm:$0xff]
      %v573 = vld [vmem:[#allocation2 + $0xe1] sm:$0xff]
      %v574 = vld [vmem:[#allocation2 + $0xf1] sm:$0xff]
      %v575 = vld [vmem:[#allocation2 + $0xf9] sm:$0xff]
      %v576 = vld [vmem:[#allocation2 + $0x109] sm:$0xff]
      %v577 = vld [vmem:[#allocation2 + $0x111] sm:$0xff]
      %v578 = vld [vmem:[#allocation2 + $0x121] sm:$0xff]
      %v579 = vld [vmem:[#allocation2 + $0x129] sm:$0xff]
      %v580 = vld [vmem:[#allocation2 + $0x139] sm:$0xff]
      %v581 = vld [vmem:[#allocation2 + $0x141] sm:$0xff]
      %v582 = vld [vmem:[#allocation2 + $0x151] sm:$0xff]
      %v583 = vld [vmem:[#allocation2 + $0x159] sm:$0xff]
      %v584 = vld [vmem:[#allocation2 + $0x169] sm:$0xff]
      %v585 = vld [vmem:[#allocation2 + $0x171] sm:$0xff]
      %v586 = vpack.c.bf16 %v555, %v554
      %v587 = vpack.c.bf16 %v557, %v556
      %v588 = vpack.c.bf16 %v559, %v558
      %v589 = vpack.c.bf16 %v561, %v560
      %v590 = vpack.c.bf16 %v563, %v562
      %v591 = vpack.c.bf16 %v565, %v564
      %v592 = vpack.c.bf16 %v567, %v566
      %v593 = vpack.c.bf16 %v569, %v568
      %v594 = vpack.c.bf16 %v571, %v570
      %v595 = vpack.c.bf16 %v573, %v572
      %v596 = vpack.c.bf16 %v575, %v574
      %v597 = vpack.c.bf16 %v577, %v576
      %v598 = vpack.c.bf16 %v579, %v578
      %v599 = vpack.c.bf16 %v581, %v580
      %v600 = vpack.c.bf16 %v583, %v582
      %v601 = vpack.c.bf16 %v585, %v584
      %618 = vrot.lane.b32.xlu0 %v586, 8
      %v619 = vpop.permute.xlu0 %618
      %620 = vrot.lane.b32.xlu0 %v587, 8
      %v621 = vpop.permute.xlu0 %620
      %622 = vrot.lane.b32.xlu0 %v588, 8
      %v623 = vpop.permute.xlu0 %622
      %624 = vrot.lane.b32.xlu0 %v589, 8
      %v625 = vpop.permute.xlu0 %624
      %626 = vrot.lane.b32.xlu0 %v590, 8
      %v627 = vpop.permute.xlu0 %626
      %628 = vrot.lane.b32.xlu0 %v591, 8
      %v629 = vpop.permute.xlu0 %628
      %630 = vrot.lane.b32.xlu0 %v592, 8
      %v631 = vpop.permute.xlu0 %630
      %632 = vrot.lane.b32.xlu0 %v593, 8
      %v633 = vpop.permute.xlu0 %632
      %634 = vrot.lane.b32.xlu0 %v594, 8
      %v635 = vpop.permute.xlu0 %634
      %636 = vrot.lane.b32.xlu0 %v595, 8
      %v637 = vpop.permute.xlu0 %636
      %638 = vrot.lane.b32.xlu0 %v596, 8
      %v639 = vpop.permute.xlu0 %638
      %640 = vrot.lane.b32.xlu0 %v597, 8
      %v641 = vpop.permute.xlu0 %640
      %642 = vrot.lane.b32.xlu0 %v598, 8
      %v643 = vpop.permute.xlu0 %642
      %644 = vrot.lane.b32.xlu0 %v599, 8
      %v645 = vpop.permute.xlu0 %644
      %646 = vrot.lane.b32.xlu0 %v600, 8
      %v647 = vpop.permute.xlu0 %646
      %648 = vrot.lane.b32.xlu0 %v601, 8
      %v649 = vpop.permute.xlu0 %648
      %vm666 = vcmask 130112
      %667 = vst.msk [vmem:[#allocation3] sm:$0xff] %vm666, %v619
      %668 = vst.msk [vmem:[#allocation3 + $0x8] sm:$0xff] %vm666, %v621
      %669 = vst.msk [vmem:[#allocation3 + $0x10] sm:$0xff] %vm666, %v623
      %670 = vst.msk [vmem:[#allocation3 + $0x18] sm:$0xff] %vm666, %v625
      %671 = vst.msk [vmem:[#allocation3 + $0x20] sm:$0xff] %vm666, %v627
      %672 = vst.msk [vmem:[#allocation3 + $0x28] sm:$0xff] %vm666, %v629
      %673 = vst.msk [vmem:[#allocation3 + $0x30] sm:$0xff] %vm666, %v631
      %674 = vst.msk [vmem:[#allocation3 + $0x38] sm:$0xff] %vm666, %v633
      %675 = vst.msk [vmem:[#allocation3 + $0x40] sm:$0xff] %vm666, %v635
      %676 = vst.msk [vmem:[#allocation3 + $0x48] sm:$0xff] %vm666, %v637
      %677 = vst.msk [vmem:[#allocation3 + $0x50] sm:$0xff] %vm666, %v639
      %678 = vst.msk [vmem:[#allocation3 + $0x58] sm:$0xff] %vm666, %v641
      %679 = vst.msk [vmem:[#allocation3 + $0x60] sm:$0xff] %vm666, %v643
      %680 = vst.msk [vmem:[#allocation3 + $0x68] sm:$0xff] %vm666, %v645
      %681 = vst.msk [vmem:[#allocation3 + $0x70] sm:$0xff] %vm666, %v647
      %682 = vst.msk [vmem:[#allocation3 + $0x78] sm:$0xff] %vm666, %v649
      %v683 = vld [vmem:[#allocation2 + $0x2] sm:$0xff]
      %v684 = vld [vmem:[#allocation2 + $0xa] sm:$0xff]
      %v685 = vld [vmem:[#allocation2 + $0x1a] sm:$0xff]
      %v686 = vld [vmem:[#allocation2 + $0x22] sm:$0xff]
      %v687 = vld [vmem:[#allocation2 + $0x32] sm:$0xff]
      %v688 = vld [vmem:[#allocation2 + $0x3a] sm:$0xff]
      %v689 = vld [vmem:[#allocation2 + $0x4a] sm:$0xff]
      %v690 = vld [vmem:[#allocation2 + $0x52] sm:$0xff]
      %v691 = vld [vmem:[#allocation2 + $0x62] sm:$0xff]
      %v692 = vld [vmem:[#allocation2 + $0x6a] sm:$0xff]
      %v693 = vld [vmem:[#allocation2 + $0x7a] sm:$0xff]
      %v694 = vld [vmem:[#allocation2 + $0x82] sm:$0xff]
      %v695 = vld [vmem:[#allocation2 + $0x92] sm:$0xff]
      %v696 = vld [vmem:[#allocation2 + $0x9a] sm:$0xff]
      %v697 = vld [vmem:[#allocation2 + $0xaa] sm:$0xff]
      %v698 = vld [vmem:[#allocation2 + $0xb2] sm:$0xff]
      %v699 = vld [vmem:[#allocation2 + $0xc2] sm:$0xff]
      %v700 = vld [vmem:[#allocation2 + $0xca] sm:$0xff]
      %v701 = vld [vmem:[#allocation2 + $0xda] sm:$0xff]
      %v702 = vld [vmem:[#allocation2 + $0xe2] sm:$0xff]
      %v703 = vld [vmem:[#allocation2 + $0xf2] sm:$0xff]
      %v704 = vld [vmem:[#allocation2 + $0xfa] sm:$0xff]
      %v705 = vld [vmem:[#allocation2 + $0x10a] sm:$0xff]
      %v706 = vld [vmem:[#allocation2 + $0x112] sm:$0xff]
      %v707 = vld [vmem:[#allocation2 + $0x122] sm:$0xff]
      %v708 = vld [vmem:[#allocation2 + $0x12a] sm:$0xff]
      %v709 = vld [vmem:[#allocation2 + $0x13a] sm:$0xff]
      %v710 = vld [vmem:[#allocation2 + $0x142] sm:$0xff]
      %v711 = vld [vmem:[#allocation2 + $0x152] sm:$0xff]
      %v712 = vld [vmem:[#allocation2 + $0x15a] sm:$0xff]
      %v713 = vld [vmem:[#allocation2 + $0x16a] sm:$0xff]
      %v714 = vld [vmem:[#allocation2 + $0x172] sm:$0xff]
      %v715 = vpack.c.bf16 %v684, %v683
      %v716 = vpack.c.bf16 %v686, %v685
      %v717 = vpack.c.bf16 %v688, %v687
      %v718 = vpack.c.bf16 %v690, %v689
      %v719 = vpack.c.bf16 %v692, %v691
      %v720 = vpack.c.bf16 %v694, %v693
      %v721 = vpack.c.bf16 %v696, %v695
      %v722 = vpack.c.bf16 %v698, %v697
      %v723 = vpack.c.bf16 %v700, %v699
      %v724 = vpack.c.bf16 %v702, %v701
      %v725 = vpack.c.bf16 %v704, %v703
      %v726 = vpack.c.bf16 %v706, %v705
      %v727 = vpack.c.bf16 %v708, %v707
      %v728 = vpack.c.bf16 %v710, %v709
      %v729 = vpack.c.bf16 %v712, %v711
      %v730 = vpack.c.bf16 %v714, %v713
      %747 = vrot.lane.b32.xlu0 %v715, 16
      %v748 = vpop.permute.xlu0 %747
      %749 = vrot.lane.b32.xlu0 %v716, 16
      %v750 = vpop.permute.xlu0 %749
      %751 = vrot.lane.b32.xlu0 %v717, 16
      %v752 = vpop.permute.xlu0 %751
      %753 = vrot.lane.b32.xlu0 %v718, 16
      %v754 = vpop.permute.xlu0 %753
      %755 = vrot.lane.b32.xlu0 %v719, 16
      %v756 = vpop.permute.xlu0 %755
      %757 = vrot.lane.b32.xlu0 %v720, 16
      %v758 = vpop.permute.xlu0 %757
      %759 = vrot.lane.b32.xlu0 %v721, 16
      %v760 = vpop.permute.xlu0 %759
      %761 = vrot.lane.b32.xlu0 %v722, 16
      %v762 = vpop.permute.xlu0 %761
      %763 = vrot.lane.b32.xlu0 %v723, 16
      %v764 = vpop.permute.xlu0 %763
      %765 = vrot.lane.b32.xlu0 %v724, 16
      %v766 = vpop.permute.xlu0 %765
      %767 = vrot.lane.b32.xlu0 %v725, 16
      %v768 = vpop.permute.xlu0 %767
      %769 = vrot.lane.b32.xlu0 %v726, 16
      %v770 = vpop.permute.xlu0 %769
      %771 = vrot.lane.b32.xlu0 %v727, 16
      %v772 = vpop.permute.xlu0 %771
      %773 = vrot.lane.b32.xlu0 %v728, 16
      %v774 = vpop.permute.xlu0 %773
      %775 = vrot.lane.b32.xlu0 %v729, 16
      %v776 = vpop.permute.xlu0 %775
      %777 = vrot.lane.b32.xlu0 %v730, 16
      %v778 = vpop.permute.xlu0 %777
      %vm795 = vcmask 195712
      %796 = vst.msk [vmem:[#allocation3] sm:$0xff] %vm795, %v748
      %797 = vst.msk [vmem:[#allocation3 + $0x8] sm:$0xff] %vm795, %v750
      %798 = vst.msk [vmem:[#allocation3 + $0x10] sm:$0xff] %vm795, %v752
      %799 = vst.msk [vmem:[#allocation3 + $0x18] sm:$0xff] %vm795, %v754
      %800 = vst.msk [vmem:[#allocation3 + $0x20] sm:$0xff] %vm795, %v756
      %801 = vst.msk [vmem:[#allocation3 + $0x28] sm:$0xff] %vm795, %v758
      %802 = vst.msk [vmem:[#allocation3 + $0x30] sm:$0xff] %vm795, %v760
      %803 = vst.msk [vmem:[#allocation3 + $0x38] sm:$0xff] %vm795, %v762
      %804 = vst.msk [vmem:[#allocation3 + $0x40] sm:$0xff] %vm795, %v764
      %805 = vst.msk [vmem:[#allocation3 + $0x48] sm:$0xff] %vm795, %v766
      %806 = vst.msk [vmem:[#allocation3 + $0x50] sm:$0xff] %vm795, %v768
      %807 = vst.msk [vmem:[#allocation3 + $0x58] sm:$0xff] %vm795, %v770
      %808 = vst.msk [vmem:[#allocation3 + $0x60] sm:$0xff] %vm795, %v772
      %809 = vst.msk [vmem:[#allocation3 + $0x68] sm:$0xff] %vm795, %v774
      %810 = vst.msk [vmem:[#allocation3 + $0x70] sm:$0xff] %vm795, %v776
      %811 = vst.msk [vmem:[#allocation3 + $0x78] sm:$0xff] %vm795, %v778
      %v812 = vld [vmem:[#allocation3] sm:$0xff]
      %v813 = vld [vmem:[#allocation3 + $0x8] sm:$0xff]
      %v814 = vld [vmem:[#allocation3 + $0x10] sm:$0xff]
      %v815 = vld [vmem:[#allocation3 + $0x18] sm:$0xff]
      %v816 = vld [vmem:[#allocation3 + $0x20] sm:$0xff]
      %v817 = vld [vmem:[#allocation3 + $0x28] sm:$0xff]
      %v818 = vld [vmem:[#allocation3 + $0x30] sm:$0xff]
      %v819 = vld [vmem:[#allocation3 + $0x38] sm:$0xff]
      %v820 = vld [vmem:[#allocation3 + $0x40] sm:$0xff]
      %v821 = vld [vmem:[#allocation3 + $0x48] sm:$0xff]
      %v822 = vld [vmem:[#allocation3 + $0x50] sm:$0xff]
      %v823 = vld [vmem:[#allocation3 + $0x58] sm:$0xff]
      %v824 = vld [vmem:[#allocation3 + $0x60] sm:$0xff]
      %v825 = vld [vmem:[#allocation3 + $0x68] sm:$0xff]
      %v826 = vld [vmem:[#allocation3 + $0x70] sm:$0xff]
      %v827 = vld [vmem:[#allocation3 + $0x78] sm:$0xff]
      %v828 = vld [vmem:[%s1] sm:$0xf]
      %v829 = vld [vmem:[%s1 + $0x4] sm:$0xf]
      %v830 = vld [vmem:[%s1 + $0x8] sm:$0xf]
      %v834 = vunpack.c.l.b16 %v828
      %v835 = vunpack.c.l.b16 %v829
      %v836 = vunpack.c.l.b16 %v830
      %v837 = vpack.c.b16 %v835, %v834
      %v838 = vpack.c.b16 %v836, %v836
      %vm840 = vcmask 195584
      %v842 = vsel %vm840, %v812, 0
      %v845 = vsel %vm840, %v813, 0
      %v848 = vsel %vm840, %v814, 0
      %v851 = vsel %vm840, %v815, 0
      %v854 = vsel %vm840, %v816, 0
      %v857 = vsel %vm840, %v817, 0
      %v860 = vsel %vm840, %v818, 0
      %v863 = vsel %vm840, %v819, 0
      %v866 = vsel %vm840, %v820, 0
      %v869 = vsel %vm840, %v821, 0
      %v872 = vsel %vm840, %v822, 0
      %v875 = vsel %vm840, %v823, 0
      %v878 = vsel %vm840, %v824, 0
      %v881 = vsel %vm840, %v825, 0
      %v884 = vsel %vm840, %v826, 0
      %v887 = vsel %vm840, %v827, 0
      %vm889 = vcmask 1043456
      %v891 = vsel %vm889, %v838, 0
      %893 = vmatprep.subr.bf16.mxu0 0
      %894 = vmatpush1.bf16.msra.mxu0 %v837
      %895 = vmatprep.subr.bf16.mxu0 0
      %896 = vmatpush1.bf16.msra.mxu0 %v891
      %897 = vmatprep.subr.bf16.mxu0 0
      %898 = vmatpush1.bf16.msra.mxu0 0
      %899 = vmatprep.subr.bf16.mxu0 0
      %900 = vmatpush1.bf16.msra.mxu0 0
      %901 = vmatprep.subr.bf16.mxu0 0
      %902 = vmatpush1.bf16.msra.mxu0 0
      %903 = vmatprep.subr.bf16.mxu0 0
      %904 = vmatpush1.bf16.msra.mxu0 0
      %905 = vmatprep.subr.bf16.mxu0 0
      %906 = vmatpush1.bf16.msra.mxu0 0
      %907 = vmatprep.subr.bf16.mxu0 0
      %908 = vmatpush1.bf16.msra.mxu0 0
      %909 = vmatprep.subr.bf16.mxu0 0
      %910 = vmatpush1.bf16.msra.mxu0 0
      %911 = vmatprep.subr.bf16.mxu0 0
      %912 = vmatpush1.bf16.msra.mxu0 0
      %913 = vmatprep.subr.bf16.mxu0 0
      %914 = vmatpush1.bf16.msra.mxu0 0
      %915 = vmatprep.subr.bf16.mxu0 0
      %916 = vmatpush1.bf16.msra.mxu0 0
      %917 = vmatprep.subr.bf16.mxu0 0
      %918 = vmatpush1.bf16.msra.mxu0 0
      %919 = vmatprep.subr.bf16.mxu0 0
      %920 = vmatpush1.bf16.msra.mxu0 0
      %921 = vmatprep.subr.bf16.mxu0 0
      %922 = vmatpush1.bf16.msra.mxu0 0
      %923 = vmatprep.subr.bf16.mxu0 0
      %924 = vmatpush1.bf16.msra.mxu0 0
      %925 = vmatprep.mubr.bf16.mxu0 0
      %926 = vmatmul.mubr.bf16.gmra.mrb[0].mxu0 %v842
      %v927 = vpop.f32.mrb[0].mxu0
      %v928 = vadd.f32 0.0, %v927
      %v929 = vpop.f32.mrb[0].mxu0
      %v930 = vpop.f32.mrb[0].mxu0
      %v931 = vadd.f32 0.0, %v930
      %v932 = vpop.f32.mrb[0].mxu0
      %933 = vmatprep.mubr.bf16.mxu0 0
      %934 = vmatmul.mubr.bf16.gmra.mrb[0].mxu0 %v845
      %v935 = vpop.f32.mrb[0].mxu0
      %v936 = vadd.f32 0.0, %v935
      %v937 = vpop.f32.mrb[0].mxu0
      %v938 = vpop.f32.mrb[0].mxu0
      %v939 = vadd.f32 0.0, %v938
      %v940 = vpop.f32.mrb[0].mxu0
      %941 = vmatprep.mubr.bf16.mxu0 0
      %942 = vmatmul.mubr.bf16.gmra.mrb[0].mxu0 %v848
      %v943 = vpop.f32.mrb[0].mxu0
      %v944 = vadd.f32 0.0, %v943
      %v945 = vpop.f32.mrb[0].mxu0
      %v946 = vpop.f32.mrb[0].mxu0
      %v947 = vadd.f32 0.0, %v946
      %v948 = vpop.f32.mrb[0].mxu0
      %949 = vmatprep.mubr.bf16.mxu0 0
      %950 = vmatmul.mubr.bf16.gmra.mrb[0].mxu0 %v851
      %v951 = vpop.f32.mrb[0].mxu0
      %v952 = vadd.f32 0.0, %v951
      %v953 = vpop.f32.mrb[0].mxu0
      %v954 = vpop.f32.mrb[0].mxu0
      %v955 = vadd.f32 0.0, %v954
      %v956 = vpop.f32.mrb[0].mxu0
      %957 = vmatprep.mubr.bf16.mxu0 0
      %958 = vmatmul.mubr.bf16.gmra.mrb[0].mxu0 %v854
      %v959 = vpop.f32.mrb[0].mxu0
      %v960 = vadd.f32 0.0, %v959
      %v961 = vpop.f32.mrb[0].mxu0
      %v962 = vpop.f32.mrb[0].mxu0
      %v963 = vadd.f32 0.0, %v962
      %v964 = vpop.f32.mrb[0].mxu0
      %965 = vmatprep.mubr.bf16.mxu0 0
      %966 = vmatmul.mubr.bf16.gmra.mrb[0].mxu0 %v857
      %v967 = vpop.f32.mrb[0].mxu0
      %v968 = vadd.f32 0.0, %v967
      %v969 = vpop.f32.mrb[0].mxu0
      %v970 = vpop.f32.mrb[0].mxu0
      %v971 = vadd.f32 0.0, %v970
      %v972 = vpop.f32.mrb[0].mxu0
      %973 = vmatprep.mubr.bf16.mxu0 0
      %974 = vmatmul.mubr.bf16.gmra.mrb[0].mxu0 %v860
      %v975 = vpop.f32.mrb[0].mxu0
      %v976 = vadd.f32 0.0, %v975
      %v977 = vpop.f32.mrb[0].mxu0
      %v978 = vpop.f32.mrb[0].mxu0
      %v979 = vadd.f32 0.0, %v978
      %v980 = vpop.f32.mrb[0].mxu0
      %981 = vmatprep.mubr.bf16.mxu0 0
      %982 = vmatmul.mubr.bf16.gmra.mrb[0].mxu0 %v863
      %v983 = vpop.f32.mrb[0].mxu0
      %v984 = vadd.f32 0.0, %v983
      %v985 = vpop.f32.mrb[0].mxu0
      %v986 = vpop.f32.mrb[0].mxu0
      %v987 = vadd.f32 0.0, %v986
      %v988 = vpop.f32.mrb[0].mxu0
      %989 = vmatprep.mubr.bf16.mxu0 0
      %990 = vmatmul.mubr.bf16.gmra.mrb[0].mxu0 %v866
      %v991 = vpop.f32.mrb[0].mxu0
      %v992 = vadd.f32 0.0, %v991
      %v993 = vpop.f32.mrb[0].mxu0
      %v994 = vpop.f32.mrb[0].mxu0
      %v995 = vadd.f32 0.0, %v994
      %v996 = vpop.f32.mrb[0].mxu0
      %997 = vmatprep.mubr.bf16.mxu0 0
      %998 = vmatmul.mubr.bf16.gmra.mrb[0].mxu0 %v869
      %v999 = vpop.f32.mrb[0].mxu0
      %v1000 = vadd.f32 0.0, %v999
      %v1001 = vpop.f32.mrb[0].mxu0
      %v1002 = vpop.f32.mrb[0].mxu0
      %v1003 = vadd.f32 0.0, %v1002
      %v1004 = vpop.f32.mrb[0].mxu0
      %1005 = vmatprep.mubr.bf16.mxu0 0
      %1006 = vmatmul.mubr.bf16.gmra.mrb[0].mxu0 %v872
      %v1007 = vpop.f32.mrb[0].mxu0
      %v1008 = vadd.f32 0.0, %v1007
      %v1009 = vpop.f32.mrb[0].mxu0
      %v1010 = vpop.f32.mrb[0].mxu0
      %v1011 = vadd.f32 0.0, %v1010
      %v1012 = vpop.f32.mrb[0].mxu0
      %1013 = vmatprep.mubr.bf16.mxu0 0
      %1014 = vmatmul.mubr.bf16.gmra.mrb[0].mxu0 %v875
      %v1015 = vpop.f32.mrb[0].mxu0
      %v1016 = vadd.f32 0.0, %v1015
      %v1017 = vpop.f32.mrb[0].mxu0
      %v1018 = vpop.f32.mrb[0].mxu0
      %v1019 = vadd.f32 0.0, %v1018
      %v1020 = vpop.f32.mrb[0].mxu0
      %1021 = vmatprep.mubr.bf16.mxu0 0
      %1022 = vmatmul.mubr.bf16.gmra.mrb[0].mxu0 %v878
      %v1023 = vpop.f32.mrb[0].mxu0
      %v1024 = vadd.f32 0.0, %v1023
      %v1025 = vpop.f32.mrb[0].mxu0
      %v1026 = vpop.f32.mrb[0].mxu0
      %v1027 = vadd.f32 0.0, %v1026
      %v1028 = vpop.f32.mrb[0].mxu0
      %1029 = vmatprep.mubr.bf16.mxu0 0
      %1030 = vmatmul.mubr.bf16.gmra.mrb[0].mxu0 %v881
      %v1031 = vpop.f32.mrb[0].mxu0
      %v1032 = vadd.f32 0.0, %v1031
      %v1033 = vpop.f32.mrb[0].mxu0
      %v1034 = vpop.f32.mrb[0].mxu0
      %v1035 = vadd.f32 0.0, %v1034
      %v1036 = vpop.f32.mrb[0].mxu0
      %1037 = vmatprep.mubr.bf16.mxu0 0
      %1038 = vmatmul.mubr.bf16.gmra.mrb[0].mxu0 %v884
      %v1039 = vpop.f32.mrb[0].mxu0
      %v1040 = vadd.f32 0.0, %v1039
      %v1041 = vpop.f32.mrb[0].mxu0
      %v1042 = vpop.f32.mrb[0].mxu0
      %v1043 = vadd.f32 0.0, %v1042
      %v1044 = vpop.f32.mrb[0].mxu0
      %1045 = vmatprep.mubr.bf16.mxu0 0
      %1046 = vmatmul.mubr.bf16.gmra.mrb[0].mxu0 %v887
      %v1047 = vpop.f32.mrb[0].mxu0
      %v1048 = vadd.f32 0.0, %v1047
      %v1049 = vpop.f32.mrb[0].mxu0
      %v1050 = vpop.f32.mrb[0].mxu0
      %v1051 = vadd.f32 0.0, %v1050
      %v1052 = vpop.f32.mrb[0].mxu0
      %1053 = vdwg.mxu0
      %1054 = vst.msk [vmem:[#allocation4] sm:$0xff] %vm411, %v928
      %1055 = vst.msk [vmem:[#allocation4 + $0x8] sm:$0xff] %vm411, %v931
      %1056 = vst.msk [vmem:[#allocation4 + $0x10] sm:$0xff] %vm411, %v936
      %1057 = vst.msk [vmem:[#allocation4 + $0x18] sm:$0xff] %vm411, %v939
      %1058 = vst.msk [vmem:[#allocation4 + $0x20] sm:$0xff] %vm411, %v944
      %1059 = vst.msk [vmem:[#allocation4 + $0x28] sm:$0xff] %vm411, %v947
      %1060 = vst.msk [vmem:[#allocation4 + $0x30] sm:$0xff] %vm411, %v952
      %1061 = vst.msk [vmem:[#allocation4 + $0x38] sm:$0xff] %vm411, %v955
      %1062 = vst.msk [vmem:[#allocation4 + $0x40] sm:$0xff] %vm411, %v960
      %1063 = vst.msk [vmem:[#allocation4 + $0x48] sm:$0xff] %vm411, %v963
      %1064 = vst.msk [vmem:[#allocation4 + $0x50] sm:$0xff] %vm411, %v968
      %1065 = vst.msk [vmem:[#allocation4 + $0x58] sm:$0xff] %vm411, %v971
      %1066 = vst.msk [vmem:[#allocation4 + $0x60] sm:$0xff] %vm411, %v976
      %1067 = vst.msk [vmem:[#allocation4 + $0x68] sm:$0xff] %vm411, %v979
      %1068 = vst.msk [vmem:[#allocation4 + $0x70] sm:$0xff] %vm411, %v984
      %1069 = vst.msk [vmem:[#allocation4 + $0x78] sm:$0xff] %vm411, %v987
      %1070 = vst.msk [vmem:[#allocation4 + $0x80] sm:$0xff] %vm411, %v992
      %1071 = vst.msk [vmem:[#allocation4 + $0x88] sm:$0xff] %vm411, %v995
      %1072 = vst.msk [vmem:[#allocation4 + $0x90] sm:$0xff] %vm411, %v1000
      %1073 = vst.msk [vmem:[#allocation4 + $0x98] sm:$0xff] %vm411, %v1003
      %1074 = vst.msk [vmem:[#allocation4 + $0xa0] sm:$0xff] %vm411, %v1008
      %1075 = vst.msk [vmem:[#allocation4 + $0xa8] sm:$0xff] %vm411, %v1011
      %1076 = vst.msk [vmem:[#allocation4 + $0xb0] sm:$0xff] %vm411, %v1016
      %1077 = vst.msk [vmem:[#allocation4 + $0xb8] sm:$0xff] %vm411, %v1019
      %1078 = vst.msk [vmem:[#allocation4 + $0xc0] sm:$0xff] %vm411, %v1024
      %1079 = vst.msk [vmem:[#allocation4 + $0xc8] sm:$0xff] %vm411, %v1027
      %1080 = vst.msk [vmem:[#allocation4 + $0xd0] sm:$0xff] %vm411, %v1032
      %1081 = vst.msk [vmem:[#allocation4 + $0xd8] sm:$0xff] %vm411, %v1035
      %1082 = vst.msk [vmem:[#allocation4 + $0xe0] sm:$0xff] %vm411, %v1040
      %1083 = vst.msk [vmem:[#allocation4 + $0xe8] sm:$0xff] %vm411, %v1043
      %1084 = vst.msk [vmem:[#allocation4 + $0xf0] sm:$0xff] %vm411, %v1048
      %1085 = vst.msk [vmem:[#allocation4 + $0xf8] sm:$0xff] %vm411, %v1051
      %v1086 = vld [vmem:[%s457] sm:$0xff]
      %v1087 = vld [vmem:[%s457 + $0x8] sm:$0xff]
      %v1088 = vld [vmem:[%s457 + $0x18] sm:$0xff]
      %v1089 = vld [vmem:[%s457 + $0x20] sm:$0xff]
      %v1090 = vld [vmem:[%s457 + $0x30] sm:$0xff]
      %v1091 = vld [vmem:[%s457 + $0x38] sm:$0xff]
      %v1092 = vld [vmem:[%s457 + $0x48] sm:$0xff]
      %v1093 = vld [vmem:[%s457 + $0x50] sm:$0xff]
      %v1094 = vld [vmem:[%s457 + $0x60] sm:$0xff]
      %v1095 = vld [vmem:[%s457 + $0x68] sm:$0xff]
      %v1096 = vld [vmem:[%s457 + $0x78] sm:$0xff]
      %v1097 = vld [vmem:[%s457 + $0x80] sm:$0xff]
      %v1098 = vld [vmem:[%s457 + $0x90] sm:$0xff]
      %v1099 = vld [vmem:[%s457 + $0x98] sm:$0xff]
      %v1100 = vld [vmem:[%s457 + $0xa8] sm:$0xff]
      %v1101 = vld [vmem:[%s457 + $0xb0] sm:$0xff]
      %v1102 = vld [vmem:[%s457 + $0xc0] sm:$0xff]
      %v1103 = vld [vmem:[%s457 + $0xc8] sm:$0xff]
      %v1104 = vld [vmem:[%s457 + $0xd8] sm:$0xff]
      %v1105 = vld [vmem:[%s457 + $0xe0] sm:$0xff]
      %v1106 = vld [vmem:[%s457 + $0xf0] sm:$0xff]
      %v1107 = vld [vmem:[%s457 + $0xf8] sm:$0xff]
      %v1108 = vld [vmem:[%s457 + $0x108] sm:$0xff]
      %v1109 = vld [vmem:[%s457 + $0x110] sm:$0xff]
      %v1110 = vld [vmem:[%s457 + $0x120] sm:$0xff]
      %v1111 = vld [vmem:[%s457 + $0x128] sm:$0xff]
      %v1112 = vld [vmem:[%s457 + $0x138] sm:$0xff]
      %v1113 = vld [vmem:[%s457 + $0x140] sm:$0xff]
      %v1114 = vld [vmem:[%s457 + $0x150] sm:$0xff]
      %v1115 = vld [vmem:[%s457 + $0x158] sm:$0xff]
      %v1116 = vld [vmem:[%s457 + $0x168] sm:$0xff]
      %v1117 = vld [vmem:[%s457 + $0x170] sm:$0xff]
      %v1118 = vpack.c.bf16 %v1087, %v1086
      %v1119 = vpack.c.bf16 %v1089, %v1088
      %v1120 = vpack.c.bf16 %v1091, %v1090
      %v1121 = vpack.c.bf16 %v1093, %v1092
      %v1122 = vpack.c.bf16 %v1095, %v1094
      %v1123 = vpack.c.bf16 %v1097, %v1096
      %v1124 = vpack.c.bf16 %v1099, %v1098
      %v1125 = vpack.c.bf16 %v1101, %v1100
      %v1126 = vpack.c.bf16 %v1103, %v1102
      %v1127 = vpack.c.bf16 %v1105, %v1104
      %v1128 = vpack.c.bf16 %v1107, %v1106
      %v1129 = vpack.c.bf16 %v1109, %v1108
      %v1130 = vpack.c.bf16 %v1111, %v1110
      %v1131 = vpack.c.bf16 %v1113, %v1112
      %v1132 = vpack.c.bf16 %v1115, %v1114
      %v1133 = vpack.c.bf16 %v1117, %v1116
      %1134 = vst.msk [vmem:[#allocation3] sm:$0xff] %vm411, %v1118
      %1135 = vst.msk [vmem:[#allocation3 + $0x8] sm:$0xff] %vm411, %v1119
      %1136 = vst.msk [vmem:[#allocation3 + $0x10] sm:$0xff] %vm411, %v1120
      %1137 = vst.msk [vmem:[#allocation3 + $0x18] sm:$0xff] %vm411, %v1121
      %1138 = vst.msk [vmem:[#allocation3 + $0x20] sm:$0xff] %vm411, %v1122
      %1139 = vst.msk [vmem:[#allocation3 + $0x28] sm:$0xff] %vm411, %v1123
      %1140 = vst.msk [vmem:[#allocation3 + $0x30] sm:$0xff] %vm411, %v1124
      %1141 = vst.msk [vmem:[#allocation3 + $0x38] sm:$0xff] %vm411, %v1125
      %1142 = vst.msk [vmem:[#allocation3 + $0x40] sm:$0xff] %vm411, %v1126
      %1143 = vst.msk [vmem:[#allocation3 + $0x48] sm:$0xff] %vm411, %v1127
      %1144 = vst.msk [vmem:[#allocation3 + $0x50] sm:$0xff] %vm411, %v1128
      %1145 = vst.msk [vmem:[#allocation3 + $0x58] sm:$0xff] %vm411, %v1129
      %1146 = vst.msk [vmem:[#allocation3 + $0x60] sm:$0xff] %vm411, %v1130
      %1147 = vst.msk [vmem:[#allocation3 + $0x68] sm:$0xff] %vm411, %v1131
      %1148 = vst.msk [vmem:[#allocation3 + $0x70] sm:$0xff] %vm411, %v1132
      %1149 = vst.msk [vmem:[#allocation3 + $0x78] sm:$0xff] %vm411, %v1133
      %v1150 = vld [vmem:[%s457 + $0x1] sm:$0xff]
      %v1151 = vld [vmem:[%s457 + $0x9] sm:$0xff]
      %v1152 = vld [vmem:[%s457 + $0x19] sm:$0xff]
      %v1153 = vld [vmem:[%s457 + $0x21] sm:$0xff]
      %v1154 = vld [vmem:[%s457 + $0x31] sm:$0xff]
      %v1155 = vld [vmem:[%s457 + $0x39] sm:$0xff]
      %v1156 = vld [vmem:[%s457 + $0x49] sm:$0xff]
      %v1157 = vld [vmem:[%s457 + $0x51] sm:$0xff]
      %v1158 = vld [vmem:[%s457 + $0x61] sm:$0xff]
      %v1159 = vld [vmem:[%s457 + $0x69] sm:$0xff]
      %v1160 = vld [vmem:[%s457 + $0x79] sm:$0xff]
      %v1161 = vld [vmem:[%s457 + $0x81] sm:$0xff]
      %v1162 = vld [vmem:[%s457 + $0x91] sm:$0xff]
      %v1163 = vld [vmem:[%s457 + $0x99] sm:$0xff]
      %v1164 = vld [vmem:[%s457 + $0xa9] sm:$0xff]
      %v1165 = vld [vmem:[%s457 + $0xb1] sm:$0xff]
      %v1166 = vld [vmem:[%s457 + $0xc1] sm:$0xff]
      %v1167 = vld [vmem:[%s457 + $0xc9] sm:$0xff]
      %v1168 = vld [vmem:[%s457 + $0xd9] sm:$0xff]
      %v1169 = vld [vmem:[%s457 + $0xe1] sm:$0xff]
      %v1170 = vld [vmem:[%s457 + $0xf1] sm:$0xff]
      %v1171 = vld [vmem:[%s457 + $0xf9] sm:$0xff]
      %v1172 = vld [vmem:[%s457 + $0x109] sm:$0xff]
      %v1173 = vld [vmem:[%s457 + $0x111] sm:$0xff]
      %v1174 = vld [vmem:[%s457 + $0x121] sm:$0xff]
      %v1175 = vld [vmem:[%s457 + $0x129] sm:$0xff]
      %v1176 = vld [vmem:[%s457 + $0x139] sm:$0xff]
      %v1177 = vld [vmem:[%s457 + $0x141] sm:$0xff]
      %v1178 = vld [vmem:[%s457 + $0x151] sm:$0xff]
      %v1179 = vld [vmem:[%s457 + $0x159] sm:$0xff]
      %v1180 = vld [vmem:[%s457 + $0x169] sm:$0xff]
      %v1181 = vld [vmem:[%s457 + $0x171] sm:$0xff]
      %v1182 = vpack.c.bf16 %v1151, %v1150
      %v1183 = vpack.c.bf16 %v1153, %v1152
      %v1184 = vpack.c.bf16 %v1155, %v1154
      %v1185 = vpack.c.bf16 %v1157, %v1156
      %v1186 = vpack.c.bf16 %v1159, %v1158
      %v1187 = vpack.c.bf16 %v1161, %v1160
      %v1188 = vpack.c.bf16 %v1163, %v1162
      %v1189 = vpack.c.bf16 %v1165, %v1164
      %v1190 = vpack.c.bf16 %v1167, %v1166
      %v1191 = vpack.c.bf16 %v1169, %v1168
      %v1192 = vpack.c.bf16 %v1171, %v1170
      %v1193 = vpack.c.bf16 %v1173, %v1172
      %v1194 = vpack.c.bf16 %v1175, %v1174
      %v1195 = vpack.c.bf16 %v1177, %v1176
      %v1196 = vpack.c.bf16 %v1179, %v1178
      %v1197 = vpack.c.bf16 %v1181, %v1180
      %1214 = vrot.lane.b32.xlu0 %v1182, 8
      %v1215 = vpop.permute.xlu0 %1214
      %1216 = vrot.lane.b32.xlu0 %v1183, 8
      %v1217 = vpop.permute.xlu0 %1216
      %1218 = vrot.lane.b32.xlu0 %v1184, 8
      %v1219 = vpop.permute.xlu0 %1218
      %1220 = vrot.lane.b32.xlu0 %v1185, 8
      %v1221 = vpop.permute.xlu0 %1220
      %1222 = vrot.lane.b32.xlu0 %v1186, 8
      %v1223 = vpop.permute.xlu0 %1222
      %1224 = vrot.lane.b32.xlu0 %v1187, 8
      %v1225 = vpop.permute.xlu0 %1224
      %1226 = vrot.lane.b32.xlu0 %v1188, 8
      %v1227 = vpop.permute.xlu0 %1226
      %1228 = vrot.lane.b32.xlu0 %v1189, 8
      %v1229 = vpop.permute.xlu0 %1228
      %1230 = vrot.lane.b32.xlu0 %v1190, 8
      %v1231 = vpop.permute.xlu0 %1230
      %1232 = vrot.lane.b32.xlu0 %v1191, 8
      %v1233 = vpop.permute.xlu0 %1232
      %1234 = vrot.lane.b32.xlu0 %v1192, 8
      %v1235 = vpop.permute.xlu0 %1234
      %1236 = vrot.lane.b32.xlu0 %v1193, 8
      %v1237 = vpop.permute.xlu0 %1236
      %1238 = vrot.lane.b32.xlu0 %v1194, 8
      %v1239 = vpop.permute.xlu0 %1238
      %1240 = vrot.lane.b32.xlu0 %v1195, 8
      %v1241 = vpop.permute.xlu0 %1240
      %1242 = vrot.lane.b32.xlu0 %v1196, 8
      %v1243 = vpop.permute.xlu0 %1242
      %1244 = vrot.lane.b32.xlu0 %v1197, 8
      %v1245 = vpop.permute.xlu0 %1244
      %1262 = vst.msk [vmem:[#allocation3] sm:$0xff] %vm666, %v1215
      %1263 = vst.msk [vmem:[#allocation3 + $0x8] sm:$0xff] %vm666, %v1217
      %1264 = vst.msk [vmem:[#allocation3 + $0x10] sm:$0xff] %vm666, %v1219
      %1265 = vst.msk [vmem:[#allocation3 + $0x18] sm:$0xff] %vm666, %v1221
      %1266 = vst.msk [vmem:[#allocation3 + $0x20] sm:$0xff] %vm666, %v1223
      %1267 = vst.msk [vmem:[#allocation3 + $0x28] sm:$0xff] %vm666, %v1225
      %1268 = vst.msk [vmem:[#allocation3 + $0x30] sm:$0xff] %vm666, %v1227
      %1269 = vst.msk [vmem:[#allocation3 + $0x38] sm:$0xff] %vm666, %v1229
      %1270 = vst.msk [vmem:[#allocation3 + $0x40] sm:$0xff] %vm666, %v1231
      %1271 = vst.msk [vmem:[#allocation3 + $0x48] sm:$0xff] %vm666, %v1233
      %1272 = vst.msk [vmem:[#allocation3 + $0x50] sm:$0xff] %vm666, %v1235
      %1273 = vst.msk [vmem:[#allocation3 + $0x58] sm:$0xff] %vm666, %v1237
      %1274 = vst.msk [vmem:[#allocation3 + $0x60] sm:$0xff] %vm666, %v1239
      %1275 = vst.msk [vmem:[#allocation3 + $0x68] sm:$0xff] %vm666, %v1241
      %1276 = vst.msk [vmem:[#allocation3 + $0x70] sm:$0xff] %vm666, %v1243
      %1277 = vst.msk [vmem:[#allocation3 + $0x78] sm:$0xff] %vm666, %v1245
      %v1278 = vld [vmem:[%s457 + $0x2] sm:$0xff]
      %v1279 = vld [vmem:[%s457 + $0xa] sm:$0xff]
      %v1280 = vld [vmem:[%s457 + $0x1a] sm:$0xff]
      %v1281 = vld [vmem:[%s457 + $0x22] sm:$0xff]
      %v1282 = vld [vmem:[%s457 + $0x32] sm:$0xff]
      %v1283 = vld [vmem:[%s457 + $0x3a] sm:$0xff]
      %v1284 = vld [vmem:[%s457 + $0x4a] sm:$0xff]
      %v1285 = vld [vmem:[%s457 + $0x52] sm:$0xff]
      %v1286 = vld [vmem:[%s457 + $0x62] sm:$0xff]
      %v1287 = vld [vmem:[%s457 + $0x6a] sm:$0xff]
      %v1288 = vld [vmem:[%s457 + $0x7a] sm:$0xff]
      %v1289 = vld [vmem:[%s457 + $0x82] sm:$0xff]
      %v1290 = vld [vmem:[%s457 + $0x92] sm:$0xff]
      %v1291 = vld [vmem:[%s457 + $0x9a] sm:$0xff]
      %v1292 = vld [vmem:[%s457 + $0xaa] sm:$0xff]
      %v1293 = vld [vmem:[%s457 + $0xb2] sm:$0xff]
      %v1294 = vld [vmem:[%s457 + $0xc2] sm:$0xff]
      %v1295 = vld [vmem:[%s457 + $0xca] sm:$0xff]
      %v1296 = vld [vmem:[%s457 + $0xda] sm:$0xff]
      %v1297 = vld [vmem:[%s457 + $0xe2] sm:$0xff]
      %v1298 = vld [vmem:[%s457 + $0xf2] sm:$0xff]
      %v1299 = vld [vmem:[%s457 + $0xfa] sm:$0xff]
      %v1300 = vld [vmem:[%s457 + $0x10a] sm:$0xff]
      %v1301 = vld [vmem:[%s457 + $0x112] sm:$0xff]
      %v1302 = vld [vmem:[%s457 + $0x122] sm:$0xff]
      %v1303 = vld [vmem:[%s457 + $0x12a] sm:$0xff]
      %v1304 = vld [vmem:[%s457 + $0x13a] sm:$0xff]
      %v1305 = vld [vmem:[%s457 + $0x142] sm:$0xff]
      %v1306 = vld [vmem:[%s457 + $0x152] sm:$0xff]
      %v1307 = vld [vmem:[%s457 + $0x15a] sm:$0xff]
      %v1308 = vld [vmem:[%s457 + $0x16a] sm:$0xff]
      %v1309 = vld [vmem:[%s457 + $0x172] sm:$0xff]
      %v1310 = vpack.c.bf16 %v1279, %v1278
      %v1311 = vpack.c.bf16 %v1281, %v1280
      %v1312 = vpack.c.bf16 %v1283, %v1282
      %v1313 = vpack.c.bf16 %v1285, %v1284
      %v1314 = vpack.c.bf16 %v1287, %v1286
      %v1315 = vpack.c.bf16 %v1289, %v1288
      %v1316 = vpack.c.bf16 %v1291, %v1290
      %v1317 = vpack.c.bf16 %v1293, %v1292
      %v1318 = vpack.c.bf16 %v1295, %v1294
      %v1319 = vpack.c.bf16 %v1297, %v1296
      %v1320 = vpack.c.bf16 %v1299, %v1298
      %v1321 = vpack.c.bf16 %v1301, %v1300
      %v1322 = vpack.c.bf16 %v1303, %v1302
      %v1323 = vpack.c.bf16 %v1305, %v1304
      %v1324 = vpack.c.bf16 %v1307, %v1306
      %v1325 = vpack.c.bf16 %v1309, %v1308
      %1342 = vrot.lane.b32.xlu0 %v1310, 16
      %v1343 = vpop.permute.xlu0 %1342
      %1344 = vrot.lane.b32.xlu0 %v1311, 16
      %v1345 = vpop.permute.xlu0 %1344
      %1346 = vrot.lane.b32.xlu0 %v1312, 16
      %v1347 = vpop.permute.xlu0 %1346
      %1348 = vrot.lane.b32.xlu0 %v1313, 16
      %v1349 = vpop.permute.xlu0 %1348
      %1350 = vrot.lane.b32.xlu0 %v1314, 16
      %v1351 = vpop.permute.xlu0 %1350
      %1352 = vrot.lane.b32.xlu0 %v1315, 16
      %v1353 = vpop.permute.xlu0 %1352
      %1354 = vrot.lane.b32.xlu0 %v1316, 16
      %v1355 = vpop.permute.xlu0 %1354
      %1356 = vrot.lane.b32.xlu0 %v1317, 16
      %v1357 = vpop.permute.xlu0 %1356
      %1358 = vrot.lane.b32.xlu0 %v1318, 16
      %v1359 = vpop.permute.xlu0 %1358
      %1360 = vrot.lane.b32.xlu0 %v1319, 16
      %v1361 = vpop.permute.xlu0 %1360
      %1362 = vrot.lane.b32.xlu0 %v1320, 16
      %v1363 = vpop.permute.xlu0 %1362
      %1364 = vrot.lane.b32.xlu0 %v1321, 16
      %v1365 = vpop.permute.xlu0 %1364
      %1366 = vrot.lane.b32.xlu0 %v1322, 16
      %v1367 = vpop.permute.xlu0 %1366
      %1368 = vrot.lane.b32.xlu0 %v1323, 16
      %v1369 = vpop.permute.xlu0 %1368
      %1370 = vrot.lane.b32.xlu0 %v1324, 16
      %v1371 = vpop.permute.xlu0 %1370
      %1372 = vrot.lane.b32.xlu0 %v1325, 16
      %v1373 = vpop.permute.xlu0 %1372
      %1390 = vst.msk [vmem:[#allocation3] sm:$0xff] %vm795, %v1343
      %1391 = vst.msk [vmem:[#allocation3 + $0x8] sm:$0xff] %vm795, %v1345
      %1392 = vst.msk [vmem:[#allocation3 + $0x10] sm:$0xff] %vm795, %v1347
      %1393 = vst.msk [vmem:[#allocation3 + $0x18] sm:$0xff] %vm795, %v1349
      %1394 = vst.msk [vmem:[#allocation3 + $0x20] sm:$0xff] %vm795, %v1351
      %1395 = vst.msk [vmem:[#allocation3 + $0x28] sm:$0xff] %vm795, %v1353
      %1396 = vst.msk [vmem:[#allocation3 + $0x30] sm:$0xff] %vm795, %v1355
      %1397 = vst.msk [vmem:[#allocation3 + $0x38] sm:$0xff] %vm795, %v1357
      %1398 = vst.msk [vmem:[#allocation3 + $0x40] sm:$0xff] %vm795, %v1359
      %1399 = vst.msk [vmem:[#allocation3 + $0x48] sm:$0xff] %vm795, %v1361
      %1400 = vst.msk [vmem:[#allocation3 + $0x50] sm:$0xff] %vm795, %v1363
      %1401 = vst.msk [vmem:[#allocation3 + $0x58] sm:$0xff] %vm795, %v1365
      %1402 = vst.msk [vmem:[#allocation3 + $0x60] sm:$0xff] %vm795, %v1367
      %1403 = vst.msk [vmem:[#allocation3 + $0x68] sm:$0xff] %vm795, %v1369
      %1404 = vst.msk [vmem:[#allocation3 + $0x70] sm:$0xff] %vm795, %v1371
      %1405 = vst.msk [vmem:[#allocation3 + $0x78] sm:$0xff] %vm795, %v1373
      %v1406 = vld [vmem:[#allocation3] sm:$0xff]
      %v1407 = vld [vmem:[#allocation3 + $0x8] sm:$0xff]
      %v1408 = vld [vmem:[#allocation3 + $0x10] sm:$0xff]
      %v1409 = vld [vmem:[#allocation3 + $0x18] sm:$0xff]
      %v1410 = vld [vmem:[#allocation3 + $0x20] sm:$0xff]
      %v1411 = vld [vmem:[#allocation3 + $0x28] sm:$0xff]
      %v1412 = vld [vmem:[#allocation3 + $0x30] sm:$0xff]
      %v1413 = vld [vmem:[#allocation3 + $0x38] sm:$0xff]
      %v1414 = vld [vmem:[#allocation3 + $0x40] sm:$0xff]
      %v1415 = vld [vmem:[#allocation3 + $0x48] sm:$0xff]
      %v1416 = vld [vmem:[#allocation3 + $0x50] sm:$0xff]
      %v1417 = vld [vmem:[#allocation3 + $0x58] sm:$0xff]
      %v1418 = vld [vmem:[#allocation3 + $0x60] sm:$0xff]
      %v1419 = vld [vmem:[#allocation3 + $0x68] sm:$0xff]
      %v1420 = vld [vmem:[#allocation3 + $0x70] sm:$0xff]
      %v1421 = vld [vmem:[#allocation3 + $0x78] sm:$0xff]
      %s1422 = scalar_lea.vmem %s1, 12
      %v1423 = vld [vmem:[%s1422] sm:$0xf]
      %v1424 = vld [vmem:[%s1422 + $0x4] sm:$0xf]
      %v1425 = vld [vmem:[%s1422 + $0x8] sm:$0xf]
      %v1429 = vunpack.c.l.b16 %v1423
      %v1430 = vunpack.c.l.b16 %v1424
      %v1431 = vunpack.c.l.b16 %v1425
      %v1432 = vpack.c.b16 %v1430, %v1429
      %v1433 = vpack.c.b16 %v1431, %v1431
      %v1436 = vsel %vm840, %v1406, 0
      %v1439 = vsel %vm840, %v1407, 0
      %v1442 = vsel %vm840, %v1408, 0
      %v1445 = vsel %vm840, %v1409, 0
      %v1448 = vsel %vm840, %v1410, 0
      %v1451 = vsel %vm840, %v1411, 0
      %v1454 = vsel %vm840, %v1412, 0
      %v1457 = vsel %vm840, %v1413, 0
      %v1460 = vsel %vm840, %v1414, 0
      %v1463 = vsel %vm840, %v1415, 0
      %v1466 = vsel %vm840, %v1416, 0
      %v1469 = vsel %vm840, %v1417, 0
      %v1472 = vsel %vm840, %v1418, 0
      %v1475 = vsel %vm840, %v1419, 0
      %v1478 = vsel %vm840, %v1420, 0
      %v1481 = vsel %vm840, %v1421, 0
      %v1484 = vsel %vm889, %v1433, 0
      %1486 = vmatprep.subr.bf16.mxu0 0
      %1487 = vmatpush1.bf16.msra.mxu0 %v1432
      %1488 = vmatprep.subr.bf16.mxu0 0
      %1489 = vmatpush1.bf16.msra.mxu0 %v1484
      %1490 = vmatprep.subr.bf16.mxu0 0
      %1491 = vmatpush1.bf16.msra.mxu0 0
      %1492 = vmatprep.subr.bf16.mxu0 0
      %1493 = vmatpush1.bf16.msra.mxu0 0
      %1494 = vmatprep.subr.bf16.mxu0 0
      %1495 = vmatpush1.bf16.msra.mxu0 0
      %1496 = vmatprep.subr.bf16.mxu0 0
      %1497 = vmatpush1.bf16.msra.mxu0 0
      %1498 = vmatprep.subr.bf16.mxu0 0
      %1499 = vmatpush1.bf16.msra.mxu0 0
      %1500 = vmatprep.subr.bf16.mxu0 0
      %1501 = vmatpush1.bf16.msra.mxu0 0
      %1502 = vmatprep.subr.bf16.mxu0 0
      %1503 = vmatpush1.bf16.msra.mxu0 0
      %1504 = vmatprep.subr.bf16.mxu0 0
      %1505 = vmatpush1.bf16.msra.mxu0 0
      %1506 = vmatprep.subr.bf16.mxu0 0
      %1507 = vmatpush1.bf16.msra.mxu0 0
      %1508 = vmatprep.subr.bf16.mxu0 0
      %1509 = vmatpush1.bf16.msra.mxu0 0
      %1510 = vmatprep.subr.bf16.mxu0 0
      %1511 = vmatpush1.bf16.msra.mxu0 0
      %1512 = vmatprep.subr.bf16.mxu0 0
      %1513 = vmatpush1.bf16.msra.mxu0 0
      %1514 = vmatprep.subr.bf16.mxu0 0
      %1515 = vmatpush1.bf16.msra.mxu0 0
      %1516 = vmatprep.subr.bf16.mxu0 0
      %1517 = vmatpush1.bf16.msra.mxu0 0
      %1518 = vmatprep.mubr.bf16.mxu0 0
      %1519 = vmatmul.mubr.bf16.gmra.mrb[0].mxu0 %v1436
      %v1520 = vpop.f32.mrb[0].mxu0
      %v1521 = vadd.f32 0.0, %v1520
      %v1522 = vpop.f32.mrb[0].mxu0
      %v1523 = vpop.f32.mrb[0].mxu0
      %v1524 = vadd.f32 0.0, %v1523
      %v1525 = vpop.f32.mrb[0].mxu0
      %1526 = vmatprep.mubr.bf16.mxu0 0
      %1527 = vmatmul.mubr.bf16.gmra.mrb[0].mxu0 %v1439
      %v1528 = vpop.f32.mrb[0].mxu0
      %v1529 = vadd.f32 0.0, %v1528
      %v1530 = vpop.f32.mrb[0].mxu0
      %v1531 = vpop.f32.mrb[0].mxu0
      %v1532 = vadd.f32 0.0, %v1531
      %v1533 = vpop.f32.mrb[0].mxu0
      %1534 = vmatprep.mubr.bf16.mxu0 0
      %1535 = vmatmul.mubr.bf16.gmra.mrb[0].mxu0 %v1442
      %v1536 = vpop.f32.mrb[0].mxu0
      %v1537 = vadd.f32 0.0, %v1536
      %v1538 = vpop.f32.mrb[0].mxu0
      %v1539 = vpop.f32.mrb[0].mxu0
      %v1540 = vadd.f32 0.0, %v1539
      %v1541 = vpop.f32.mrb[0].mxu0
      %1542 = vmatprep.mubr.bf16.mxu0 0
      %1543 = vmatmul.mubr.bf16.gmra.mrb[0].mxu0 %v1445
      %v1544 = vpop.f32.mrb[0].mxu0
      %v1545 = vadd.f32 0.0, %v1544
      %v1546 = vpop.f32.mrb[0].mxu0
      %v1547 = vpop.f32.mrb[0].mxu0
      %v1548 = vadd.f32 0.0, %v1547
      %v1549 = vpop.f32.mrb[0].mxu0
      %1550 = vmatprep.mubr.bf16.mxu0 0
      %1551 = vmatmul.mubr.bf16.gmra.mrb[0].mxu0 %v1448
      %v1552 = vpop.f32.mrb[0].mxu0
      %v1553 = vadd.f32 0.0, %v1552
      %v1554 = vpop.f32.mrb[0].mxu0
      %v1555 = vpop.f32.mrb[0].mxu0
      %v1556 = vadd.f32 0.0, %v1555
      %v1557 = vpop.f32.mrb[0].mxu0
      %1558 = vmatprep.mubr.bf16.mxu0 0
      %1559 = vmatmul.mubr.bf16.gmra.mrb[0].mxu0 %v1451
      %v1560 = vpop.f32.mrb[0].mxu0
      %v1561 = vadd.f32 0.0, %v1560
      %v1562 = vpop.f32.mrb[0].mxu0
      %v1563 = vpop.f32.mrb[0].mxu0
      %v1564 = vadd.f32 0.0, %v1563
      %v1565 = vpop.f32.mrb[0].mxu0
      %1566 = vmatprep.mubr.bf16.mxu0 0
      %1567 = vmatmul.mubr.bf16.gmra.mrb[0].mxu0 %v1454
      %v1568 = vpop.f32.mrb[0].mxu0
      %v1569 = vadd.f32 0.0, %v1568
      %v1570 = vpop.f32.mrb[0].mxu0
      %v1571 = vpop.f32.mrb[0].mxu0
      %v1572 = vadd.f32 0.0, %v1571
      %v1573 = vpop.f32.mrb[0].mxu0
      %1574 = vmatprep.mubr.bf16.mxu0 0
      %1575 = vmatmul.mubr.bf16.gmra.mrb[0].mxu0 %v1457
      %v1576 = vpop.f32.mrb[0].mxu0
      %v1577 = vadd.f32 0.0, %v1576
      %v1578 = vpop.f32.mrb[0].mxu0
      %v1579 = vpop.f32.mrb[0].mxu0
      %v1580 = vadd.f32 0.0, %v1579
      %v1581 = vpop.f32.mrb[0].mxu0
      %1582 = vmatprep.mubr.bf16.mxu0 0
      %1583 = vmatmul.mubr.bf16.gmra.mrb[0].mxu0 %v1460
      %v1584 = vpop.f32.mrb[0].mxu0
      %v1585 = vadd.f32 0.0, %v1584
      %v1586 = vpop.f32.mrb[0].mxu0
      %v1587 = vpop.f32.mrb[0].mxu0
      %v1588 = vadd.f32 0.0, %v1587
      %v1589 = vpop.f32.mrb[0].mxu0
      %1590 = vmatprep.mubr.bf16.mxu0 0
      %1591 = vmatmul.mubr.bf16.gmra.mrb[0].mxu0 %v1463
      %v1592 = vpop.f32.mrb[0].mxu0
      %v1593 = vadd.f32 0.0, %v1592
      %v1594 = vpop.f32.mrb[0].mxu0
      %v1595 = vpop.f32.mrb[0].mxu0
      %v1596 = vadd.f32 0.0, %v1595
      %v1597 = vpop.f32.mrb[0].mxu0
      %1598 = vmatprep.mubr.bf16.mxu0 0
      %1599 = vmatmul.mubr.bf16.gmra.mrb[0].mxu0 %v1466
      %v1600 = vpop.f32.mrb[0].mxu0
      %v1601 = vadd.f32 0.0, %v1600
      %v1602 = vpop.f32.mrb[0].mxu0
      %v1603 = vpop.f32.mrb[0].mxu0
      %v1604 = vadd.f32 0.0, %v1603
      %v1605 = vpop.f32.mrb[0].mxu0
      %1606 = vmatprep.mubr.bf16.mxu0 0
      %1607 = vmatmul.mubr.bf16.gmra.mrb[0].mxu0 %v1469
      %v1608 = vpop.f32.mrb[0].mxu0
      %v1609 = vadd.f32 0.0, %v1608
      %v1610 = vpop.f32.mrb[0].mxu0
      %v1611 = vpop.f32.mrb[0].mxu0
      %v1612 = vadd.f32 0.0, %v1611
      %v1613 = vpop.f32.mrb[0].mxu0
      %1614 = vmatprep.mubr.bf16.mxu0 0
      %1615 = vmatmul.mubr.bf16.gmra.mrb[0].mxu0 %v1472
      %v1616 = vpop.f32.mrb[0].mxu0
      %v1617 = vadd.f32 0.0, %v1616
      %v1618 = vpop.f32.mrb[0].mxu0
      %v1619 = vpop.f32.mrb[0].mxu0
      %v1620 = vadd.f32 0.0, %v1619
      %v1621 = vpop.f32.mrb[0].mxu0
      %1622 = vmatprep.mubr.bf16.mxu0 0
      %1623 = vmatmul.mubr.bf16.gmra.mrb[0].mxu0 %v1475
      %v1624 = vpop.f32.mrb[0].mxu0
      %v1625 = vadd.f32 0.0, %v1624
      %v1626 = vpop.f32.mrb[0].mxu0
      %v1627 = vpop.f32.mrb[0].mxu0
      %v1628 = vadd.f32 0.0, %v1627
      %v1629 = vpop.f32.mrb[0].mxu0
      %1630 = vmatprep.mubr.bf16.mxu0 0
      %1631 = vmatmul.mubr.bf16.gmra.mrb[0].mxu0 %v1478
      %v1632 = vpop.f32.mrb[0].mxu0
      %v1633 = vadd.f32 0.0, %v1632
      %v1634 = vpop.f32.mrb[0].mxu0
      %v1635 = vpop.f32.mrb[0].mxu0
      %v1636 = vadd.f32 0.0, %v1635
      %v1637 = vpop.f32.mrb[0].mxu0
      %1638 = vmatprep.mubr.bf16.mxu0 0
      %1639 = vmatmul.mubr.bf16.gmra.mrb[0].mxu0 %v1481
      %v1640 = vpop.f32.mrb[0].mxu0
      %v1641 = vadd.f32 0.0, %v1640
      %v1642 = vpop.f32.mrb[0].mxu0
      %v1643 = vpop.f32.mrb[0].mxu0
      %v1644 = vadd.f32 0.0, %v1643
      %v1645 = vpop.f32.mrb[0].mxu0
      %1646 = vdwg.mxu0
      %v1647 = vld [vmem:[#allocation4] sm:$0xff]
      %v1648 = vld [vmem:[#allocation4 + $0x8] sm:$0xff]
      %v1649 = vld [vmem:[#allocation4 + $0x10] sm:$0xff]
      %v1650 = vld [vmem:[#allocation4 + $0x18] sm:$0xff]
      %v1651 = vld [vmem:[#allocation4 + $0x20] sm:$0xff]
      %v1652 = vld [vmem:[#allocation4 + $0x28] sm:$0xff]
      %v1653 = vld [vmem:[#allocation4 + $0x30] sm:$0xff]
      %v1654 = vld [vmem:[#allocation4 + $0x38] sm:$0xff]
      %v1655 = vld [vmem:[#allocation4 + $0x40] sm:$0xff]
      %v1656 = vld [vmem:[#allocation4 + $0x48] sm:$0xff]
      %v1657 = vld [vmem:[#allocation4 + $0x50] sm:$0xff]
      %v1658 = vld [vmem:[#allocation4 + $0x58] sm:$0xff]
      %v1659 = vld [vmem:[#allocation4 + $0x60] sm:$0xff]
      %v1660 = vld [vmem:[#allocation4 + $0x68] sm:$0xff]
      %v1661 = vld [vmem:[#allocation4 + $0x70] sm:$0xff]
      %v1662 = vld [vmem:[#allocation4 + $0x78] sm:$0xff]
      %v1663 = vld [vmem:[#allocation4 + $0x80] sm:$0xff]
      %v1664 = vld [vmem:[#allocation4 + $0x88] sm:$0xff]
      %v1665 = vld [vmem:[#allocation4 + $0x90] sm:$0xff]
      %v1666 = vld [vmem:[#allocation4 + $0x98] sm:$0xff]
      %v1667 = vld [vmem:[#allocation4 + $0xa0] sm:$0xff]
      %v1668 = vld [vmem:[#allocation4 + $0xa8] sm:$0xff]
      %v1669 = vld [vmem:[#allocation4 + $0xb0] sm:$0xff]
      %v1670 = vld [vmem:[#allocation4 + $0xb8] sm:$0xff]
      %v1671 = vld [vmem:[#allocation4 + $0xc0] sm:$0xff]
      %v1672 = vld [vmem:[#allocation4 + $0xc8] sm:$0xff]
      %v1673 = vld [vmem:[#allocation4 + $0xd0] sm:$0xff]
      %v1674 = vld [vmem:[#allocation4 + $0xd8] sm:$0xff]
      %v1675 = vld [vmem:[#allocation4 + $0xe0] sm:$0xff]
      %v1676 = vld [vmem:[#allocation4 + $0xe8] sm:$0xff]
      %v1677 = vld [vmem:[#allocation4 + $0xf0] sm:$0xff]
      %v1678 = vld [vmem:[#allocation4 + $0xf8] sm:$0xff]
      %v1679 = vadd.f32 %v1647, %v1521
      %v1680 = vadd.f32 %v1648, %v1524
      %v1681 = vadd.f32 %v1649, %v1529
      %v1682 = vadd.f32 %v1650, %v1532
      %v1683 = vadd.f32 %v1651, %v1537
      %v1684 = vadd.f32 %v1652, %v1540
      %v1685 = vadd.f32 %v1653, %v1545
      %v1686 = vadd.f32 %v1654, %v1548
      %v1687 = vadd.f32 %v1655, %v1553
      %v1688 = vadd.f32 %v1656, %v1556
      %v1689 = vadd.f32 %v1657, %v1561
      %v1690 = vadd.f32 %v1658, %v1564
      %v1691 = vadd.f32 %v1659, %v1569
      %v1692 = vadd.f32 %v1660, %v1572
      %v1693 = vadd.f32 %v1661, %v1577
      %v1694 = vadd.f32 %v1662, %v1580
      %v1695 = vadd.f32 %v1663, %v1585
      %v1696 = vadd.f32 %v1664, %v1588
      %v1697 = vadd.f32 %v1665, %v1593
      %v1698 = vadd.f32 %v1666, %v1596
      %v1699 = vadd.f32 %v1667, %v1601
      %v1700 = vadd.f32 %v1668, %v1604
      %v1701 = vadd.f32 %v1669, %v1609
      %v1702 = vadd.f32 %v1670, %v1612
      %v1703 = vadd.f32 %v1671, %v1617
      %v1704 = vadd.f32 %v1672, %v1620
      %v1705 = vadd.f32 %v1673, %v1625
      %v1706 = vadd.f32 %v1674, %v1628
      %v1707 = vadd.f32 %v1675, %v1633
      %v1708 = vadd.f32 %v1676, %v1636
      %v1709 = vadd.f32 %v1677, %v1641
      %v1710 = vadd.f32 %v1678, %v1644
      %1711 = vst.msk [vmem:[#allocation4] sm:$0xff] %vm411, %v1679
      %1712 = vst.msk [vmem:[#allocation4 + $0x8] sm:$0xff] %vm411, %v1680
      %1713 = vst.msk [vmem:[#allocation4 + $0x10] sm:$0xff] %vm411, %v1681
      %1714 = vst.msk [vmem:[#allocation4 + $0x18] sm:$0xff] %vm411, %v1682
      %1715 = vst.msk [vmem:[#allocation4 + $0x20] sm:$0xff] %vm411, %v1683
      %1716 = vst.msk [vmem:[#allocation4 + $0x28] sm:$0xff] %vm411, %v1684
      %1717 = vst.msk [vmem:[#allocation4 + $0x30] sm:$0xff] %vm411, %v1685
      %1718 = vst.msk [vmem:[#allocation4 + $0x38] sm:$0xff] %vm411, %v1686
      %1719 = vst.msk [vmem:[#allocation4 + $0x40] sm:$0xff] %vm411, %v1687
      %1720 = vst.msk [vmem:[#allocation4 + $0x48] sm:$0xff] %vm411, %v1688
      %1721 = vst.msk [vmem:[#allocation4 + $0x50] sm:$0xff] %vm411, %v1689
      %1722 = vst.msk [vmem:[#allocation4 + $0x58] sm:$0xff] %vm411, %v1690
      %1723 = vst.msk [vmem:[#allocation4 + $0x60] sm:$0xff] %vm411, %v1691
      %1724 = vst.msk [vmem:[#allocation4 + $0x68] sm:$0xff] %vm411, %v1692
      %1725 = vst.msk [vmem:[#allocation4 + $0x70] sm:$0xff] %vm411, %v1693
      %1726 = vst.msk [vmem:[#allocation4 + $0x78] sm:$0xff] %vm411, %v1694
      %1727 = vst.msk [vmem:[#allocation4 + $0x80] sm:$0xff] %vm411, %v1695
      %1728 = vst.msk [vmem:[#allocation4 + $0x88] sm:$0xff] %vm411, %v1696
      %1729 = vst.msk [vmem:[#allocation4 + $0x90] sm:$0xff] %vm411, %v1697
      %1730 = vst.msk [vmem:[#allocation4 + $0x98] sm:$0xff] %vm411, %v1698
      %1731 = vst.msk [vmem:[#allocation4 + $0xa0] sm:$0xff] %vm411, %v1699
      %1732 = vst.msk [vmem:[#allocation4 + $0xa8] sm:$0xff] %vm411, %v1700
      %1733 = vst.msk [vmem:[#allocation4 + $0xb0] sm:$0xff] %vm411, %v1701
      %1734 = vst.msk [vmem:[#allocation4 + $0xb8] sm:$0xff] %vm411, %v1702
      %1735 = vst.msk [vmem:[#allocation4 + $0xc0] sm:$0xff] %vm411, %v1703
      %1736 = vst.msk [vmem:[#allocation4 + $0xc8] sm:$0xff] %vm411, %v1704
      %1737 = vst.msk [vmem:[#allocation4 + $0xd0] sm:$0xff] %vm411, %v1705
      %1738 = vst.msk [vmem:[#allocation4 + $0xd8] sm:$0xff] %vm411, %v1706
      %1739 = vst.msk [vmem:[#allocation4 + $0xe0] sm:$0xff] %vm411, %v1707
      %1740 = vst.msk [vmem:[#allocation4 + $0xe8] sm:$0xff] %vm411, %v1708
      %1741 = vst.msk [vmem:[#allocation4 + $0xf0] sm:$0xff] %vm411, %v1709
      %1742 = vst.msk [vmem:[#allocation4 + $0xf8] sm:$0xff] %vm411, %v1710
      %s1743 = scalar_lea.vmem [#allocation2], 48
      %v1744 = vld [vmem:[%s1743] sm:$0xff]
      %v1745 = vld [vmem:[%s1743 + $0x8] sm:$0xff]
      %v1746 = vld [vmem:[%s1743 + $0x18] sm:$0xff]
      %v1747 = vld [vmem:[%s1743 + $0x20] sm:$0xff]
      %v1748 = vld [vmem:[%s1743 + $0x30] sm:$0xff]
      %v1749 = vld [vmem:[%s1743 + $0x38] sm:$0xff]
      %v1750 = vld [vmem:[%s1743 + $0x48] sm:$0xff]
      %v1751 = vld [vmem:[%s1743 + $0x50] sm:$0xff]
      %v1752 = vld [vmem:[%s1743 + $0x60] sm:$0xff]
      %v1753 = vld [vmem:[%s1743 + $0x68] sm:$0xff]
      %v1754 = vld [vmem:[%s1743 + $0x78] sm:$0xff]
      %v1755 = vld [vmem:[%s1743 + $0x80] sm:$0xff]
      %v1756 = vld [vmem:[%s1743 + $0x90] sm:$0xff]
      %v1757 = vld [vmem:[%s1743 + $0x98] sm:$0xff]
      %v1758 = vld [vmem:[%s1743 + $0xa8] sm:$0xff]
      %v1759 = vld [vmem:[%s1743 + $0xb0] sm:$0xff]
      %v1760 = vld [vmem:[%s1743 + $0xc0] sm:$0xff]
      %v1761 = vld [vmem:[%s1743 + $0xc8] sm:$0xff]
      %v1762 = vld [vmem:[%s1743 + $0xd8] sm:$0xff]
      %v1763 = vld [vmem:[%s1743 + $0xe0] sm:$0xff]
      %v1764 = vld [vmem:[%s1743 + $0xf0] sm:$0xff]
      %v1765 = vld [vmem:[%s1743 + $0xf8] sm:$0xff]
      %v1766 = vld [vmem:[%s1743 + $0x108] sm:$0xff]
      %v1767 = vld [vmem:[%s1743 + $0x110] sm:$0xff]
      %v1768 = vld [vmem:[%s1743 + $0x120] sm:$0xff]
      %v1769 = vld [vmem:[%s1743 + $0x128] sm:$0xff]
      %v1770 = vld [vmem:[%s1743 + $0x138] sm:$0xff]
      %v1771 = vld [vmem:[%s1743 + $0x140] sm:$0xff]
      %v1772 = vld [vmem:[%s1743 + $0x150] sm:$0xff]
      %v1773 = vld [vmem:[%s1743 + $0x158] sm:$0xff]
      %v1774 = vld [vmem:[%s1743 + $0x168] sm:$0xff]
      %v1775 = vld [vmem:[%s1743 + $0x170] sm:$0xff]
      %v1776 = vpack.c.bf16 %v1745, %v1744
      %v1777 = vpack.c.bf16 %v1747, %v1746
      %v1778 = vpack.c.bf16 %v1749, %v1748
      %v1779 = vpack.c.bf16 %v1751, %v1750
      %v1780 = vpack.c.bf16 %v1753, %v1752
      %v1781 = vpack.c.bf16 %v1755, %v1754
      %v1782 = vpack.c.bf16 %v1757, %v1756
      %v1783 = vpack.c.bf16 %v1759, %v1758
      %v1784 = vpack.c.bf16 %v1761, %v1760
      %v1785 = vpack.c.bf16 %v1763, %v1762
      %v1786 = vpack.c.bf16 %v1765, %v1764
      %v1787 = vpack.c.bf16 %v1767, %v1766
      %v1788 = vpack.c.bf16 %v1769, %v1768
      %v1789 = vpack.c.bf16 %v1771, %v1770
      %v1790 = vpack.c.bf16 %v1773, %v1772
      %v1791 = vpack.c.bf16 %v1775, %v1774
      %1792 = vst.msk [vmem:[#allocation3] sm:$0xff] %vm411, %v1776
      %1793 = vst.msk [vmem:[#allocation3 + $0x8] sm:$0xff] %vm411, %v1777
      %1794 = vst.msk [vmem:[#allocation3 + $0x10] sm:$0xff] %vm411, %v1778
      %1795 = vst.msk [vmem:[#allocation3 + $0x18] sm:$0xff] %vm411, %v1779
      %1796 = vst.msk [vmem:[#allocation3 + $0x20] sm:$0xff] %vm411, %v1780
      %1797 = vst.msk [vmem:[#allocation3 + $0x28] sm:$0xff] %vm411, %v1781
      %1798 = vst.msk [vmem:[#allocation3 + $0x30] sm:$0xff] %vm411, %v1782
      %1799 = vst.msk [vmem:[#allocation3 + $0x38] sm:$0xff] %vm411, %v1783
      %1800 = vst.msk [vmem:[#allocation3 + $0x40] sm:$0xff] %vm411, %v1784
      %1801 = vst.msk [vmem:[#allocation3 + $0x48] sm:$0xff] %vm411, %v1785
      %1802 = vst.msk [vmem:[#allocation3 + $0x50] sm:$0xff] %vm411, %v1786
      %1803 = vst.msk [vmem:[#allocation3 + $0x58] sm:$0xff] %vm411, %v1787
      %1804 = vst.msk [vmem:[#allocation3 + $0x60] sm:$0xff] %vm411, %v1788
      %1805 = vst.msk [vmem:[#allocation3 + $0x68] sm:$0xff] %vm411, %v1789
      %1806 = vst.msk [vmem:[#allocation3 + $0x70] sm:$0xff] %vm411, %v1790
      %1807 = vst.msk [vmem:[#allocation3 + $0x78] sm:$0xff] %vm411, %v1791
      %v1808 = vld [vmem:[%s1743 + $0x1] sm:$0xff]
      %v1809 = vld [vmem:[%s1743 + $0x9] sm:$0xff]
      %v1810 = vld [vmem:[%s1743 + $0x19] sm:$0xff]
      %v1811 = vld [vmem:[%s1743 + $0x21] sm:$0xff]
      %v1812 = vld [vmem:[%s1743 + $0x31] sm:$0xff]
      %v1813 = vld [vmem:[%s1743 + $0x39] sm:$0xff]
      %v1814 = vld [vmem:[%s1743 + $0x49] sm:$0xff]
      %v1815 = vld [vmem:[%s1743 + $0x51] sm:$0xff]
      %v1816 = vld [vmem:[%s1743 + $0x61] sm:$0xff]
      %v1817 = vld [vmem:[%s1743 + $0x69] sm:$0xff]
      %v1818 = vld [vmem:[%s1743 + $0x79] sm:$0xff]
      %v1819 = vld [vmem:[%s1743 + $0x81] sm:$0xff]
      %v1820 = vld [vmem:[%s1743 + $0x91] sm:$0xff]
      %v1821 = vld [vmem:[%s1743 + $0x99] sm:$0xff]
      %v1822 = vld [vmem:[%s1743 + $0xa9] sm:$0xff]
      %v1823 = vld [vmem:[%s1743 + $0xb1] sm:$0xff]
      %v1824 = vld [vmem:[%s1743 + $0xc1] sm:$0xff]
      %v1825 = vld [vmem:[%s1743 + $0xc9] sm:$0xff]
      %v1826 = vld [vmem:[%s1743 + $0xd9] sm:$0xff]
      %v1827 = vld [vmem:[%s1743 + $0xe1] sm:$0xff]
      %v1828 = vld [vmem:[%s1743 + $0xf1] sm:$0xff]
      %v1829 = vld [vmem:[%s1743 + $0xf9] sm:$0xff]
      %v1830 = vld [vmem:[%s1743 + $0x109] sm:$0xff]
      %v1831 = vld [vmem:[%s1743 + $0x111] sm:$0xff]
      %v1832 = vld [vmem:[%s1743 + $0x121] sm:$0xff]
      %v1833 = vld [vmem:[%s1743 + $0x129] sm:$0xff]
      %v1834 = vld [vmem:[%s1743 + $0x139] sm:$0xff]
      %v1835 = vld [vmem:[%s1743 + $0x141] sm:$0xff]
      %v1836 = vld [vmem:[%s1743 + $0x151] sm:$0xff]
      %v1837 = vld [vmem:[%s1743 + $0x159] sm:$0xff]
      %v1838 = vld [vmem:[%s1743 + $0x169] sm:$0xff]
      %v1839 = vld [vmem:[%s1743 + $0x171] sm:$0xff]
      %v1840 = vpack.c.bf16 %v1809, %v1808
      %v1841 = vpack.c.bf16 %v1811, %v1810
      %v1842 = vpack.c.bf16 %v1813, %v1812
      %v1843 = vpack.c.bf16 %v1815, %v1814
      %v1844 = vpack.c.bf16 %v1817, %v1816
      %v1845 = vpack.c.bf16 %v1819, %v1818
      %v1846 = vpack.c.bf16 %v1821, %v1820
      %v1847 = vpack.c.bf16 %v1823, %v1822
      %v1848 = vpack.c.bf16 %v1825, %v1824
      %v1849 = vpack.c.bf16 %v1827, %v1826
      %v1850 = vpack.c.bf16 %v1829, %v1828
      %v1851 = vpack.c.bf16 %v1831, %v1830
      %v1852 = vpack.c.bf16 %v1833, %v1832
      %v1853 = vpack.c.bf16 %v1835, %v1834
      %v1854 = vpack.c.bf16 %v1837, %v1836
      %v1855 = vpack.c.bf16 %v1839, %v1838
      %1872 = vrot.lane.b32.xlu0 %v1840, 8
      %v1873 = vpop.permute.xlu0 %1872
      %1874 = vrot.lane.b32.xlu0 %v1841, 8
      %v1875 = vpop.permute.xlu0 %1874
      %1876 = vrot.lane.b32.xlu0 %v1842, 8
      %v1877 = vpop.permute.xlu0 %1876
      %1878 = vrot.lane.b32.xlu0 %v1843, 8
      %v1879 = vpop.permute.xlu0 %1878
      %1880 = vrot.lane.b32.xlu0 %v1844, 8
      %v1881 = vpop.permute.xlu0 %1880
      %1882 = vrot.lane.b32.xlu0 %v1845, 8
      %v1883 = vpop.permute.xlu0 %1882
      %1884 = vrot.lane.b32.xlu0 %v1846, 8
      %v1885 = vpop.permute.xlu0 %1884
      %1886 = vrot.lane.b32.xlu0 %v1847, 8
      %v1887 = vpop.permute.xlu0 %1886
      %1888 = vrot.lane.b32.xlu0 %v1848, 8
      %v1889 = vpop.permute.xlu0 %1888
      %1890 = vrot.lane.b32.xlu0 %v1849, 8
      %v1891 = vpop.permute.xlu0 %1890
      %1892 = vrot.lane.b32.xlu0 %v1850, 8
      %v1893 = vpop.permute.xlu0 %1892
      %1894 = vrot.lane.b32.xlu0 %v1851, 8
      %v1895 = vpop.permute.xlu0 %1894
      %1896 = vrot.lane.b32.xlu0 %v1852, 8
      %v1897 = vpop.permute.xlu0 %1896
      %1898 = vrot.lane.b32.xlu0 %v1853, 8
      %v1899 = vpop.permute.xlu0 %1898
      %1900 = vrot.lane.b32.xlu0 %v1854, 8
      %v1901 = vpop.permute.xlu0 %1900
      %1902 = vrot.lane.b32.xlu0 %v1855, 8
      %v1903 = vpop.permute.xlu0 %1902
      %1920 = vst.msk [vmem:[#allocation3] sm:$0xff] %vm666, %v1873
      %1921 = vst.msk [vmem:[#allocation3 + $0x8] sm:$0xff] %vm666, %v1875
      %1922 = vst.msk [vmem:[#allocation3 + $0x10] sm:$0xff] %vm666, %v1877
      %1923 = vst.msk [vmem:[#allocation3 + $0x18] sm:$0xff] %vm666, %v1879
      %1924 = vst.msk [vmem:[#allocation3 + $0x20] sm:$0xff] %vm666, %v1881
      %1925 = vst.msk [vmem:[#allocation3 + $0x28] sm:$0xff] %vm666, %v1883
      %1926 = vst.msk [vmem:[#allocation3 + $0x30] sm:$0xff] %vm666, %v1885
      %1927 = vst.msk [vmem:[#allocation3 + $0x38] sm:$0xff] %vm666, %v1887
      %1928 = vst.msk [vmem:[#allocation3 + $0x40] sm:$0xff] %vm666, %v1889
      %1929 = vst.msk [vmem:[#allocation3 + $0x48] sm:$0xff] %vm666, %v1891
      %1930 = vst.msk [vmem:[#allocation3 + $0x50] sm:$0xff] %vm666, %v1893
      %1931 = vst.msk [vmem:[#allocation3 + $0x58] sm:$0xff] %vm666, %v1895
      %1932 = vst.msk [vmem:[#allocation3 + $0x60] sm:$0xff] %vm666, %v1897
      %1933 = vst.msk [vmem:[#allocation3 + $0x68] sm:$0xff] %vm666, %v1899
      %1934 = vst.msk [vmem:[#allocation3 + $0x70] sm:$0xff] %vm666, %v1901
      %1935 = vst.msk [vmem:[#allocation3 + $0x78] sm:$0xff] %vm666, %v1903
      %v1936 = vld [vmem:[%s1743 + $0x2] sm:$0xff]
      %v1937 = vld [vmem:[%s1743 + $0xa] sm:$0xff]
      %v1938 = vld [vmem:[%s1743 + $0x1a] sm:$0xff]
      %v1939 = vld [vmem:[%s1743 + $0x22] sm:$0xff]
      %v1940 = vld [vmem:[%s1743 + $0x32] sm:$0xff]
      %v1941 = vld [vmem:[%s1743 + $0x3a] sm:$0xff]
      %v1942 = vld [vmem:[%s1743 + $0x4a] sm:$0xff]
      %v1943 = vld [vmem:[%s1743 + $0x52] sm:$0xff]
      %v1944 = vld [vmem:[%s1743 + $0x62] sm:$0xff]
      %v1945 = vld [vmem:[%s1743 + $0x6a] sm:$0xff]
      %v1946 = vld [vmem:[%s1743 + $0x7a] sm:$0xff]
      %v1947 = vld [vmem:[%s1743 + $0x82] sm:$0xff]
      %v1948 = vld [vmem:[%s1743 + $0x92] sm:$0xff]
      %v1949 = vld [vmem:[%s1743 + $0x9a] sm:$0xff]
      %v1950 = vld [vmem:[%s1743 + $0xaa] sm:$0xff]
      %v1951 = vld [vmem:[%s1743 + $0xb2] sm:$0xff]
      %v1952 = vld [vmem:[%s1743 + $0xc2] sm:$0xff]
      %v1953 = vld [vmem:[%s1743 + $0xca] sm:$0xff]
      %v1954 = vld [vmem:[%s1743 + $0xda] sm:$0xff]
      %v1955 = vld [vmem:[%s1743 + $0xe2] sm:$0xff]
      %v1956 = vld [vmem:[%s1743 + $0xf2] sm:$0xff]
      %v1957 = vld [vmem:[%s1743 + $0xfa] sm:$0xff]
      %v1958 = vld [vmem:[%s1743 + $0x10a] sm:$0xff]
      %v1959 = vld [vmem:[%s1743 + $0x112] sm:$0xff]
      %v1960 = vld [vmem:[%s1743 + $0x122] sm:$0xff]
      %v1961 = vld [vmem:[%s1743 + $0x12a] sm:$0xff]
      %v1962 = vld [vmem:[%s1743 + $0x13a] sm:$0xff]
      %v1963 = vld [vmem:[%s1743 + $0x142] sm:$0xff]
      %v1964 = vld [vmem:[%s1743 + $0x152] sm:$0xff]
      %v1965 = vld [vmem:[%s1743 + $0x15a] sm:$0xff]
      %v1966 = vld [vmem:[%s1743 + $0x16a] sm:$0xff]
      %v1967 = vld [vmem:[%s1743 + $0x172] sm:$0xff]
      %v1968 = vpack.c.bf16 %v1937, %v1936
      %v1969 = vpack.c.bf16 %v1939, %v1938
      %v1970 = vpack.c.bf16 %v1941, %v1940
      %v1971 = vpack.c.bf16 %v1943, %v1942
      %v1972 = vpack.c.bf16 %v1945, %v1944
      %v1973 = vpack.c.bf16 %v1947, %v1946
      %v1974 = vpack.c.bf16 %v1949, %v1948
      %v1975 = vpack.c.bf16 %v1951, %v1950
      %v1976 = vpack.c.bf16 %v1953, %v1952
      %v1977 = vpack.c.bf16 %v1955, %v1954
      %v1978 = vpack.c.bf16 %v1957, %v1956
      %v1979 = vpack.c.bf16 %v1959, %v1958
      %v1980 = vpack.c.bf16 %v1961, %v1960
      %v1981 = vpack.c.bf16 %v1963, %v1962
      %v1982 = vpack.c.bf16 %v1965, %v1964
      %v1983 = vpack.c.bf16 %v1967, %v1966
      %2000 = vrot.lane.b32.xlu0 %v1968, 16
      %v2001 = vpop.permute.xlu0 %2000
      %2002 = vrot.lane.b32.xlu0 %v1969, 16
      %v2003 = vpop.permute.xlu0 %2002
      %2004 = vrot.lane.b32.xlu0 %v1970, 16
      %v2005 = vpop.permute.xlu0 %2004
      %2006 = vrot.lane.b32.xlu0 %v1971, 16
      %v2007 = vpop.permute.xlu0 %2006
      %2008 = vrot.lane.b32.xlu0 %v1972, 16
      %v2009 = vpop.permute.xlu0 %2008
      %2010 = vrot.lane.b32.xlu0 %v1973, 16
      %v2011 = vpop.permute.xlu0 %2010
      %2012 = vrot.lane.b32.xlu0 %v1974, 16
      %v2013 = vpop.permute.xlu0 %2012
      %2014 = vrot.lane.b32.xlu0 %v1975, 16
      %v2015 = vpop.permute.xlu0 %2014
      %2016 = vrot.lane.b32.xlu0 %v1976, 16
      %v2017 = vpop.permute.xlu0 %2016
      %2018 = vrot.lane.b32.xlu0 %v1977, 16
      %v2019 = vpop.permute.xlu0 %2018
      %2020 = vrot.lane.b32.xlu0 %v1978, 16
      %v2021 = vpop.permute.xlu0 %2020
      %2022 = vrot.lane.b32.xlu0 %v1979, 16
      %v2023 = vpop.permute.xlu0 %2022
      %2024 = vrot.lane.b32.xlu0 %v1980, 16
      %v2025 = vpop.permute.xlu0 %2024
      %2026 = vrot.lane.b32.xlu0 %v1981, 16
      %v2027 = vpop.permute.xlu0 %2026
      %2028 = vrot.lane.b32.xlu0 %v1982, 16
      %v2029 = vpop.permute.xlu0 %2028
      %2030 = vrot.lane.b32.xlu0 %v1983, 16
      %v2031 = vpop.permute.xlu0 %2030
      %2048 = vst.msk [vmem:[#allocation3] sm:$0xff] %vm795, %v2001
      %2049 = vst.msk [vmem:[#allocation3 + $0x8] sm:$0xff] %vm795, %v2003
      %2050 = vst.msk [vmem:[#allocation3 + $0x10] sm:$0xff] %vm795, %v2005
      %2051 = vst.msk [vmem:[#allocation3 + $0x18] sm:$0xff] %vm795, %v2007
      %2052 = vst.msk [vmem:[#allocation3 + $0x20] sm:$0xff] %vm795, %v2009
      %2053 = vst.msk [vmem:[#allocation3 + $0x28] sm:$0xff] %vm795, %v2011
      %2054 = vst.msk [vmem:[#allocation3 + $0x30] sm:$0xff] %vm795, %v2013
      %2055 = vst.msk [vmem:[#allocation3 + $0x38] sm:$0xff] %vm795, %v2015
      %2056 = vst.msk [vmem:[#allocation3 + $0x40] sm:$0xff] %vm795, %v2017
      %2057 = vst.msk [vmem:[#allocation3 + $0x48] sm:$0xff] %vm795, %v2019
      %2058 = vst.msk [vmem:[#allocation3 + $0x50] sm:$0xff] %vm795, %v2021
      %2059 = vst.msk [vmem:[#allocation3 + $0x58] sm:$0xff] %vm795, %v2023
      %2060 = vst.msk [vmem:[#allocation3 + $0x60] sm:$0xff] %vm795, %v2025
      %2061 = vst.msk [vmem:[#allocation3 + $0x68] sm:$0xff] %vm795, %v2027
      %2062 = vst.msk [vmem:[#allocation3 + $0x70] sm:$0xff] %vm795, %v2029
      %2063 = vst.msk [vmem:[#allocation3 + $0x78] sm:$0xff] %vm795, %v2031
      %v2064 = vld [vmem:[#allocation3] sm:$0xff]
      %v2065 = vld [vmem:[#allocation3 + $0x8] sm:$0xff]
      %v2066 = vld [vmem:[#allocation3 + $0x10] sm:$0xff]
      %v2067 = vld [vmem:[#allocation3 + $0x18] sm:$0xff]
      %v2068 = vld [vmem:[#allocation3 + $0x20] sm:$0xff]
      %v2069 = vld [vmem:[#allocation3 + $0x28] sm:$0xff]
      %v2070 = vld [vmem:[#allocation3 + $0x30] sm:$0xff]
      %v2071 = vld [vmem:[#allocation3 + $0x38] sm:$0xff]
      %v2072 = vld [vmem:[#allocation3 + $0x40] sm:$0xff]
      %v2073 = vld [vmem:[#allocation3 + $0x48] sm:$0xff]
      %v2074 = vld [vmem:[#allocation3 + $0x50] sm:$0xff]
      %v2075 = vld [vmem:[#allocation3 + $0x58] sm:$0xff]
      %v2076 = vld [vmem:[#allocation3 + $0x60] sm:$0xff]
      %v2077 = vld [vmem:[#allocation3 + $0x68] sm:$0xff]
      %v2078 = vld [vmem:[#allocation3 + $0x70] sm:$0xff]
      %v2079 = vld [vmem:[#allocation3 + $0x78] sm:$0xff]
      %s2080 = scalar_lea.vmem %s1, 24
      %v2081 = vld [vmem:[%s2080] sm:$0xf]
      %v2082 = vld [vmem:[%s2080 + $0x4] sm:$0xf]
      %v2083 = vld [vmem:[%s2080 + $0x8] sm:$0xf]
      %v2087 = vunpack.c.l.b16 %v2081
      %v2088 = vunpack.c.l.b16 %v2082
      %v2089 = vunpack.c.l.b16 %v2083
      %v2090 = vpack.c.b16 %v2088, %v2087
      %v2091 = vpack.c.b16 %v2089, %v2089
      %v2094 = vsel %vm840, %v2064, 0
      %v2097 = vsel %vm840, %v2065, 0
      %v2100 = vsel %vm840, %v2066, 0
      %v2103 = vsel %vm840, %v2067, 0
      %v2106 = vsel %vm840, %v2068, 0
      %v2109 = vsel %vm840, %v2069, 0
      %v2112 = vsel %vm840, %v2070, 0
      %v2115 = vsel %vm840, %v2071, 0
      %v2118 = vsel %vm840, %v2072, 0
      %v2121 = vsel %vm840, %v2073, 0
      %v2124 = vsel %vm840, %v2074, 0
      %v2127 = vsel %vm840, %v2075, 0
      %v2130 = vsel %vm840, %v2076, 0
      %v2133 = vsel %vm840, %v2077, 0
      %v2136 = vsel %vm840, %v2078, 0
      %v2139 = vsel %vm840, %v2079, 0
      %v2142 = vsel %vm889, %v2091, 0
      %2144 = vmatprep.subr.bf16.mxu0 0
      %2145 = vmatpush1.bf16.msra.mxu0 %v2090
      %2146 = vmatprep.subr.bf16.mxu0 0
      %2147 = vmatpush1.bf16.msra.mxu0 %v2142
      %2148 = vmatprep.subr.bf16.mxu0 0
      %2149 = vmatpush1.bf16.msra.mxu0 0
      %2150 = vmatprep.subr.bf16.mxu0 0
      %2151 = vmatpush1.bf16.msra.mxu0 0
      %2152 = vmatprep.subr.bf16.mxu0 0
      %2153 = vmatpush1.bf16.msra.mxu0 0
      %2154 = vmatprep.subr.bf16.mxu0 0
      %2155 = vmatpush1.bf16.msra.mxu0 0
      %2156 = vmatprep.subr.bf16.mxu0 0
      %2157 = vmatpush1.bf16.msra.mxu0 0
      %2158 = vmatprep.subr.bf16.mxu0 0
      %2159 = vmatpush1.bf16.msra.mxu0 0
      %2160 = vmatprep.subr.bf16.mxu0 0
      %2161 = vmatpush1.bf16.msra.mxu0 0
      %2162 = vmatprep.subr.bf16.mxu0 0
      %2163 = vmatpush1.bf16.msra.mxu0 0
      %2164 = vmatprep.subr.bf16.mxu0 0
      %2165 = vmatpush1.bf16.msra.mxu0 0
      %2166 = vmatprep.subr.bf16.mxu0 0
      %2167 = vmatpush1.bf16.msra.mxu0 0
      %2168 = vmatprep.subr.bf16.mxu0 0
      %2169 = vmatpush1.bf16.msra.mxu0 0
      %2170 = vmatprep.subr.bf16.mxu0 0
      %2171 = vmatpush1.bf16.msra.mxu0 0
      %2172 = vmatprep.subr.bf16.mxu0 0
      %2173 = vmatpush1.bf16.msra.mxu0 0
      %2174 = vmatprep.subr.bf16.mxu0 0
      %2175 = vmatpush1.bf16.msra.mxu0 0
      %2176 = vmatprep.mubr.bf16.mxu0 0
      %2177 = vmatmul.mubr.bf16.gmra.mrb[0].mxu0 %v2094
      %v2178 = vpop.f32.mrb[0].mxu0
      %v2179 = vadd.f32 0.0, %v2178
      %v2180 = vpop.f32.mrb[0].mxu0
      %v2181 = vpop.f32.mrb[0].mxu0
      %v2182 = vadd.f32 0.0, %v2181
      %v2183 = vpop.f32.mrb[0].mxu0
      %2184 = vmatprep.mubr.bf16.mxu0 0
      %2185 = vmatmul.mubr.bf16.gmra.mrb[0].mxu0 %v2097
      %v2186 = vpop.f32.mrb[0].mxu0
      %v2187 = vadd.f32 0.0, %v2186
      %v2188 = vpop.f32.mrb[0].mxu0
      %v2189 = vpop.f32.mrb[0].mxu0
      %v2190 = vadd.f32 0.0, %v2189
      %v2191 = vpop.f32.mrb[0].mxu0
      %2192 = vmatprep.mubr.bf16.mxu0 0
      %2193 = vmatmul.mubr.bf16.gmra.mrb[0].mxu0 %v2100
      %v2194 = vpop.f32.mrb[0].mxu0
      %v2195 = vadd.f32 0.0, %v2194
      %v2196 = vpop.f32.mrb[0].mxu0
      %v2197 = vpop.f32.mrb[0].mxu0
      %v2198 = vadd.f32 0.0, %v2197
      %v2199 = vpop.f32.mrb[0].mxu0
      %2200 = vmatprep.mubr.bf16.mxu0 0
      %2201 = vmatmul.mubr.bf16.gmra.mrb[0].mxu0 %v2103
      %v2202 = vpop.f32.mrb[0].mxu0
      %v2203 = vadd.f32 0.0, %v2202
      %v2204 = vpop.f32.mrb[0].mxu0
      %v2205 = vpop.f32.mrb[0].mxu0
      %v2206 = vadd.f32 0.0, %v2205
      %v2207 = vpop.f32.mrb[0].mxu0
      %2208 = vmatprep.mubr.bf16.mxu0 0
      %2209 = vmatmul.mubr.bf16.gmra.mrb[0].mxu0 %v2106
      %v2210 = vpop.f32.mrb[0].mxu0
      %v2211 = vadd.f32 0.0, %v2210
      %v2212 = vpop.f32.mrb[0].mxu0
      %v2213 = vpop.f32.mrb[0].mxu0
      %v2214 = vadd.f32 0.0, %v2213
      %v2215 = vpop.f32.mrb[0].mxu0
      %2216 = vmatprep.mubr.bf16.mxu0 0
      %2217 = vmatmul.mubr.bf16.gmra.mrb[0].mxu0 %v2109
      %v2218 = vpop.f32.mrb[0].mxu0
      %v2219 = vadd.f32 0.0, %v2218
      %v2220 = vpop.f32.mrb[0].mxu0
      %v2221 = vpop.f32.mrb[0].mxu0
      %v2222 = vadd.f32 0.0, %v2221
      %v2223 = vpop.f32.mrb[0].mxu0
      %2224 = vmatprep.mubr.bf16.mxu0 0
      %2225 = vmatmul.mubr.bf16.gmra.mrb[0].mxu0 %v2112
      %v2226 = vpop.f32.mrb[0].mxu0
      %v2227 = vadd.f32 0.0, %v2226
      %v2228 = vpop.f32.mrb[0].mxu0
      %v2229 = vpop.f32.mrb[0].mxu0
      %v2230 = vadd.f32 0.0, %v2229
      %v2231 = vpop.f32.mrb[0].mxu0
      %2232 = vmatprep.mubr.bf16.mxu0 0
      %2233 = vmatmul.mubr.bf16.gmra.mrb[0].mxu0 %v2115
      %v2234 = vpop.f32.mrb[0].mxu0
      %v2235 = vadd.f32 0.0, %v2234
      %v2236 = vpop.f32.mrb[0].mxu0
      %v2237 = vpop.f32.mrb[0].mxu0
      %v2238 = vadd.f32 0.0, %v2237
      %v2239 = vpop.f32.mrb[0].mxu0
      %2240 = vmatprep.mubr.bf16.mxu0 0
      %2241 = vmatmul.mubr.bf16.gmra.mrb[0].mxu0 %v2118
      %v2242 = vpop.f32.mrb[0].mxu0
      %v2243 = vadd.f32 0.0, %v2242
      %v2244 = vpop.f32.mrb[0].mxu0
      %v2245 = vpop.f32.mrb[0].mxu0
      %v2246 = vadd.f32 0.0, %v2245
      %v2247 = vpop.f32.mrb[0].mxu0
      %2248 = vmatprep.mubr.bf16.mxu0 0
      %2249 = vmatmul.mubr.bf16.gmra.mrb[0].mxu0 %v2121
      %v2250 = vpop.f32.mrb[0].mxu0
      %v2251 = vadd.f32 0.0, %v2250
      %v2252 = vpop.f32.mrb[0].mxu0
      %v2253 = vpop.f32.mrb[0].mxu0
      %v2254 = vadd.f32 0.0, %v2253
      %v2255 = vpop.f32.mrb[0].mxu0
      %2256 = vmatprep.mubr.bf16.mxu0 0
      %2257 = vmatmul.mubr.bf16.gmra.mrb[0].mxu0 %v2124
      %v2258 = vpop.f32.mrb[0].mxu0
      %v2259 = vadd.f32 0.0, %v2258
      %v2260 = vpop.f32.mrb[0].mxu0
      %v2261 = vpop.f32.mrb[0].mxu0
      %v2262 = vadd.f32 0.0, %v2261
      %v2263 = vpop.f32.mrb[0].mxu0
      %2264 = vmatprep.mubr.bf16.mxu0 0
      %2265 = vmatmul.mubr.bf16.gmra.mrb[0].mxu0 %v2127
      %v2266 = vpop.f32.mrb[0].mxu0
      %v2267 = vadd.f32 0.0, %v2266
      %v2268 = vpop.f32.mrb[0].mxu0
      %v2269 = vpop.f32.mrb[0].mxu0
      %v2270 = vadd.f32 0.0, %v2269
      %v2271 = vpop.f32.mrb[0].mxu0
      %2272 = vmatprep.mubr.bf16.mxu0 0
      %2273 = vmatmul.mubr.bf16.gmra.mrb[0].mxu0 %v2130
      %v2274 = vpop.f32.mrb[0].mxu0
      %v2275 = vadd.f32 0.0, %v2274
      %v2276 = vpop.f32.mrb[0].mxu0
      %v2277 = vpop.f32.mrb[0].mxu0
      %v2278 = vadd.f32 0.0, %v2277
      %v2279 = vpop.f32.mrb[0].mxu0
      %2280 = vmatprep.mubr.bf16.mxu0 0
      %2281 = vmatmul.mubr.bf16.gmra.mrb[0].mxu0 %v2133
      %v2282 = vpop.f32.mrb[0].mxu0
      %v2283 = vadd.f32 0.0, %v2282
      %v2284 = vpop.f32.mrb[0].mxu0
      %v2285 = vpop.f32.mrb[0].mxu0
      %v2286 = vadd.f32 0.0, %v2285
      %v2287 = vpop.f32.mrb[0].mxu0
      %2288 = vmatprep.mubr.bf16.mxu0 0
      %2289 = vmatmul.mubr.bf16.gmra.mrb[0].mxu0 %v2136
      %v2290 = vpop.f32.mrb[0].mxu0
      %v2291 = vadd.f32 0.0, %v2290
      %v2292 = vpop.f32.mrb[0].mxu0
      %v2293 = vpop.f32.mrb[0].mxu0
      %v2294 = vadd.f32 0.0, %v2293
      %v2295 = vpop.f32.mrb[0].mxu0
      %2296 = vmatprep.mubr.bf16.mxu0 0
      %2297 = vmatmul.mubr.bf16.gmra.mrb[0].mxu0 %v2139
      %v2298 = vpop.f32.mrb[0].mxu0
      %v2299 = vadd.f32 0.0, %v2298
      %v2300 = vpop.f32.mrb[0].mxu0
      %v2301 = vpop.f32.mrb[0].mxu0
      %v2302 = vadd.f32 0.0, %v2301
      %v2303 = vpop.f32.mrb[0].mxu0
      %2304 = vdwg.mxu0
      %v2305 = vld [vmem:[#allocation4] sm:$0xff]
      %v2306 = vld [vmem:[#allocation4 + $0x8] sm:$0xff]
      %v2307 = vld [vmem:[#allocation4 + $0x10] sm:$0xff]
      %v2308 = vld [vmem:[#allocation4 + $0x18] sm:$0xff]
      %v2309 = vld [vmem:[#allocation4 + $0x20] sm:$0xff]
      %v2310 = vld [vmem:[#allocation4 + $0x28] sm:$0xff]
      %v2311 = vld [vmem:[#allocation4 + $0x30] sm:$0xff]
      %v2312 = vld [vmem:[#allocation4 + $0x38] sm:$0xff]
      %v2313 = vld [vmem:[#allocation4 + $0x40] sm:$0xff]
      %v2314 = vld [vmem:[#allocation4 + $0x48] sm:$0xff]
      %v2315 = vld [vmem:[#allocation4 + $0x50] sm:$0xff]
      %v2316 = vld [vmem:[#allocation4 + $0x58] sm:$0xff]
      %v2317 = vld [vmem:[#allocation4 + $0x60] sm:$0xff]
      %v2318 = vld [vmem:[#allocation4 + $0x68] sm:$0xff]
      %v2319 = vld [vmem:[#allocation4 + $0x70] sm:$0xff]
      %v2320 = vld [vmem:[#allocation4 + $0x78] sm:$0xff]
      %v2321 = vld [vmem:[#allocation4 + $0x80] sm:$0xff]
      %v2322 = vld [vmem:[#allocation4 + $0x88] sm:$0xff]
      %v2323 = vld [vmem:[#allocation4 + $0x90] sm:$0xff]
      %v2324 = vld [vmem:[#allocation4 + $0x98] sm:$0xff]
      %v2325 = vld [vmem:[#allocation4 + $0xa0] sm:$0xff]
      %v2326 = vld [vmem:[#allocation4 + $0xa8] sm:$0xff]
      %v2327 = vld [vmem:[#allocation4 + $0xb0] sm:$0xff]
      %v2328 = vld [vmem:[#allocation4 + $0xb8] sm:$0xff]
      %v2329 = vld [vmem:[#allocation4 + $0xc0] sm:$0xff]
      %v2330 = vld [vmem:[#allocation4 + $0xc8] sm:$0xff]
      %v2331 = vld [vmem:[#allocation4 + $0xd0] sm:$0xff]
      %v2332 = vld [vmem:[#allocation4 + $0xd8] sm:$0xff]
      %v2333 = vld [vmem:[#allocation4 + $0xe0] sm:$0xff]
      %v2334 = vld [vmem:[#allocation4 + $0xe8] sm:$0xff]
      %v2335 = vld [vmem:[#allocation4 + $0xf0] sm:$0xff]
      %v2336 = vld [vmem:[#allocation4 + $0xf8] sm:$0xff]
      %v2337 = vadd.f32 %v2305, %v2179
      %v2338 = vadd.f32 %v2306, %v2182
      %v2339 = vadd.f32 %v2307, %v2187
      %v2340 = vadd.f32 %v2308, %v2190
      %v2341 = vadd.f32 %v2309, %v2195
      %v2342 = vadd.f32 %v2310, %v2198
      %v2343 = vadd.f32 %v2311, %v2203
      %v2344 = vadd.f32 %v2312, %v2206
      %v2345 = vadd.f32 %v2313, %v2211
      %v2346 = vadd.f32 %v2314, %v2214
      %v2347 = vadd.f32 %v2315, %v2219
      %v2348 = vadd.f32 %v2316, %v2222
      %v2349 = vadd.f32 %v2317, %v2227
      %v2350 = vadd.f32 %v2318, %v2230
      %v2351 = vadd.f32 %v2319, %v2235
      %v2352 = vadd.f32 %v2320, %v2238
      %v2353 = vadd.f32 %v2321, %v2243
      %v2354 = vadd.f32 %v2322, %v2246
      %v2355 = vadd.f32 %v2323, %v2251
      %v2356 = vadd.f32 %v2324, %v2254
      %v2357 = vadd.f32 %v2325, %v2259
      %v2358 = vadd.f32 %v2326, %v2262
      %v2359 = vadd.f32 %v2327, %v2267
      %v2360 = vadd.f32 %v2328, %v2270
      %v2361 = vadd.f32 %v2329, %v2275
      %v2362 = vadd.f32 %v2330, %v2278
      %v2363 = vadd.f32 %v2331, %v2283
      %v2364 = vadd.f32 %v2332, %v2286
      %v2365 = vadd.f32 %v2333, %v2291
      %v2366 = vadd.f32 %v2334, %v2294
      %v2367 = vadd.f32 %v2335, %v2299
      %v2368 = vadd.f32 %v2336, %v2302
      %2369 = vst.msk [vmem:[#allocation4] sm:$0xff] %vm411, %v2337
      %2370 = vst.msk [vmem:[#allocation4 + $0x8] sm:$0xff] %vm411, %v2338
      %2371 = vst.msk [vmem:[#allocation4 + $0x10] sm:$0xff] %vm411, %v2339
      %2372 = vst.msk [vmem:[#allocation4 + $0x18] sm:$0xff] %vm411, %v2340
      %2373 = vst.msk [vmem:[#allocation4 + $0x20] sm:$0xff] %vm411, %v2341
      %2374 = vst.msk [vmem:[#allocation4 + $0x28] sm:$0xff] %vm411, %v2342
      %2375 = vst.msk [vmem:[#allocation4 + $0x30] sm:$0xff] %vm411, %v2343
      %2376 = vst.msk [vmem:[#allocation4 + $0x38] sm:$0xff] %vm411, %v2344
      %2377 = vst.msk [vmem:[#allocation4 + $0x40] sm:$0xff] %vm411, %v2345
      %2378 = vst.msk [vmem:[#allocation4 + $0x48] sm:$0xff] %vm411, %v2346
      %2379 = vst.msk [vmem:[#allocation4 + $0x50] sm:$0xff] %vm411, %v2347
      %2380 = vst.msk [vmem:[#allocation4 + $0x58] sm:$0xff] %vm411, %v2348
      %2381 = vst.msk [vmem:[#allocation4 + $0x60] sm:$0xff] %vm411, %v2349
      %2382 = vst.msk [vmem:[#allocation4 + $0x68] sm:$0xff] %vm411, %v2350
      %2383 = vst.msk [vmem:[#allocation4 + $0x70] sm:$0xff] %vm411, %v2351
      %2384 = vst.msk [vmem:[#allocation4 + $0x78] sm:$0xff] %vm411, %v2352
      %2385 = vst.msk [vmem:[#allocation4 + $0x80] sm:$0xff] %vm411, %v2353
      %2386 = vst.msk [vmem:[#allocation4 + $0x88] sm:$0xff] %vm411, %v2354
      %2387 = vst.msk [vmem:[#allocation4 + $0x90] sm:$0xff] %vm411, %v2355
      %2388 = vst.msk [vmem:[#allocation4 + $0x98] sm:$0xff] %vm411, %v2356
      %2389 = vst.msk [vmem:[#allocation4 + $0xa0] sm:$0xff] %vm411, %v2357
      %2390 = vst.msk [vmem:[#allocation4 + $0xa8] sm:$0xff] %vm411, %v2358
      %2391 = vst.msk [vmem:[#allocation4 + $0xb0] sm:$0xff] %vm411, %v2359
      %2392 = vst.msk [vmem:[#allocation4 + $0xb8] sm:$0xff] %vm411, %v2360
      %2393 = vst.msk [vmem:[#allocation4 + $0xc0] sm:$0xff] %vm411, %v2361
      %2394 = vst.msk [vmem:[#allocation4 + $0xc8] sm:$0xff] %vm411, %v2362
      %2395 = vst.msk [vmem:[#allocation4 + $0xd0] sm:$0xff] %vm411, %v2363
      %2396 = vst.msk [vmem:[#allocation4 + $0xd8] sm:$0xff] %vm411, %v2364
      %2397 = vst.msk [vmem:[#allocation4 + $0xe0] sm:$0xff] %vm411, %v2365
      %2398 = vst.msk [vmem:[#allocation4 + $0xe8] sm:$0xff] %vm411, %v2366
      %2399 = vst.msk [vmem:[#allocation4 + $0xf0] sm:$0xff] %vm411, %v2367
      %2400 = vst.msk [vmem:[#allocation4 + $0xf8] sm:$0xff] %vm411, %v2368
      %v2401 = vld [vmem:[#allocation4] sm:$0xff]
      %v2402 = vld [vmem:[#allocation4 + $0x8] sm:$0xff]
      %v2403 = vld [vmem:[#allocation4 + $0x10] sm:$0xff]
      %v2404 = vld [vmem:[#allocation4 + $0x18] sm:$0xff]
      %v2405 = vld [vmem:[#allocation4 + $0x20] sm:$0xff]
      %v2406 = vld [vmem:[#allocation4 + $0x28] sm:$0xff]
      %v2407 = vld [vmem:[#allocation4 + $0x30] sm:$0xff]
      %v2408 = vld [vmem:[#allocation4 + $0x38] sm:$0xff]
      %v2409 = vld [vmem:[#allocation4 + $0x40] sm:$0xff]
      %v2410 = vld [vmem:[#allocation4 + $0x48] sm:$0xff]
      %v2411 = vld [vmem:[#allocation4 + $0x50] sm:$0xff]
      %v2412 = vld [vmem:[#allocation4 + $0x58] sm:$0xff]
      %v2413 = vld [vmem:[#allocation4 + $0x60] sm:$0xff]
      %v2414 = vld [vmem:[#allocation4 + $0x68] sm:$0xff]
      %v2415 = vld [vmem:[#allocation4 + $0x70] sm:$0xff]
      %v2416 = vld [vmem:[#allocation4 + $0x78] sm:$0xff]
      %v2417 = vld [vmem:[#allocation4 + $0x80] sm:$0xff]
      %v2418 = vld [vmem:[#allocation4 + $0x88] sm:$0xff]
      %v2419 = vld [vmem:[#allocation4 + $0x90] sm:$0xff]
      %v2420 = vld [vmem:[#allocation4 + $0x98] sm:$0xff]
      %v2421 = vld [vmem:[#allocation4 + $0xa0] sm:$0xff]
      %v2422 = vld [vmem:[#allocation4 + $0xa8] sm:$0xff]
      %v2423 = vld [vmem:[#allocation4 + $0xb0] sm:$0xff]
      %v2424 = vld [vmem:[#allocation4 + $0xb8] sm:$0xff]
      %v2425 = vld [vmem:[#allocation4 + $0xc0] sm:$0xff]
      %v2426 = vld [vmem:[#allocation4 + $0xc8] sm:$0xff]
      %v2427 = vld [vmem:[#allocation4 + $0xd0] sm:$0xff]
      %v2428 = vld [vmem:[#allocation4 + $0xd8] sm:$0xff]
      %v2429 = vld [vmem:[#allocation4 + $0xe0] sm:$0xff]
      %v2430 = vld [vmem:[#allocation4 + $0xe8] sm:$0xff]
      %v2431 = vld [vmem:[#allocation4 + $0xf0] sm:$0xff]
      %v2432 = vld [vmem:[#allocation4 + $0xf8] sm:$0xff]
      %v2433 = vpack.c.bf16 %v2402, %v2401
      %v2434 = vpack.c.bf16 %v2404, %v2403
      %v2435 = vpack.c.bf16 %v2406, %v2405
      %v2436 = vpack.c.bf16 %v2408, %v2407
      %v2437 = vpack.c.bf16 %v2410, %v2409
      %v2438 = vpack.c.bf16 %v2412, %v2411
      %v2439 = vpack.c.bf16 %v2414, %v2413
      %v2440 = vpack.c.bf16 %v2416, %v2415
      %v2441 = vpack.c.bf16 %v2418, %v2417
      %v2442 = vpack.c.bf16 %v2420, %v2419
      %v2443 = vpack.c.bf16 %v2422, %v2421
      %v2444 = vpack.c.bf16 %v2424, %v2423
      %v2445 = vpack.c.bf16 %v2426, %v2425
      %v2446 = vpack.c.bf16 %v2428, %v2427
      %v2447 = vpack.c.bf16 %v2430, %v2429
      %v2448 = vpack.c.bf16 %v2432, %v2431
      %v2465 = vunpack.c.l.b16 %v2433
      %v2466 = vunpack.c.h.b16 %v2433
      %v2467 = vunpack.c.l.b16 %v2434
      %v2468 = vunpack.c.h.b16 %v2434
      %v2469 = vunpack.c.l.b16 %v2435
      %v2470 = vunpack.c.h.b16 %v2435
      %v2471 = vunpack.c.l.b16 %v2436
      %v2472 = vunpack.c.h.b16 %v2436
      %v2473 = vunpack.c.l.b16 %v2437
      %v2474 = vunpack.c.h.b16 %v2437
      %v2475 = vunpack.c.l.b16 %v2438
      %v2476 = vunpack.c.h.b16 %v2438
      %v2477 = vunpack.c.l.b16 %v2439
      %v2478 = vunpack.c.h.b16 %v2439
      %v2479 = vunpack.c.l.b16 %v2440
      %v2480 = vunpack.c.h.b16 %v2440
      %v2481 = vunpack.c.l.b16 %v2441
      %v2482 = vunpack.c.h.b16 %v2441
      %v2483 = vunpack.c.l.b16 %v2442
      %v2484 = vunpack.c.h.b16 %v2442
      %v2485 = vunpack.c.l.b16 %v2443
      %v2486 = vunpack.c.h.b16 %v2443
      %v2487 = vunpack.c.l.b16 %v2444
      %v2488 = vunpack.c.h.b16 %v2444
      %v2489 = vunpack.c.l.b16 %v2445
      %v2490 = vunpack.c.h.b16 %v2445
      %v2491 = vunpack.c.l.b16 %v2446
      %v2492 = vunpack.c.h.b16 %v2446
      %v2493 = vunpack.c.l.b16 %v2447
      %v2494 = vunpack.c.h.b16 %v2447
      %v2495 = vunpack.c.l.b16 %v2448
      %v2496 = vunpack.c.h.b16 %v2448
      %v2497 = vpack.c.b16 %v2465, %v2465
      %v2498 = vpack.c.b16 %v2466, %v2466
      %v2499 = vpack.c.b16 %v2467, %v2467
      %v2500 = vpack.c.b16 %v2468, %v2468
      %v2501 = vpack.c.b16 %v2469, %v2469
      %v2502 = vpack.c.b16 %v2470, %v2470
      %v2503 = vpack.c.b16 %v2471, %v2471
      %v2504 = vpack.c.b16 %v2472, %v2472
      %v2505 = vpack.c.b16 %v2473, %v2473
      %v2506 = vpack.c.b16 %v2474, %v2474
      %v2507 = vpack.c.b16 %v2475, %v2475
      %v2508 = vpack.c.b16 %v2476, %v2476
      %v2509 = vpack.c.b16 %v2477, %v2477
      %v2510 = vpack.c.b16 %v2478, %v2478
      %v2511 = vpack.c.b16 %v2479, %v2479
      %v2512 = vpack.c.b16 %v2480, %v2480
      %v2513 = vpack.c.b16 %v2481, %v2481
      %v2514 = vpack.c.b16 %v2482, %v2482
      %v2515 = vpack.c.b16 %v2483, %v2483
      %v2516 = vpack.c.b16 %v2484, %v2484
      %v2517 = vpack.c.b16 %v2485, %v2485
      %v2518 = vpack.c.b16 %v2486, %v2486
      %v2519 = vpack.c.b16 %v2487, %v2487
      %v2520 = vpack.c.b16 %v2488, %v2488
      %v2521 = vpack.c.b16 %v2489, %v2489
      %v2522 = vpack.c.b16 %v2490, %v2490
      %v2523 = vpack.c.b16 %v2491, %v2491
      %v2524 = vpack.c.b16 %v2492, %v2492
      %v2525 = vpack.c.b16 %v2493, %v2493
      %v2526 = vpack.c.b16 %v2494, %v2494
      %v2527 = vpack.c.b16 %v2495, %v2495
      %v2528 = vpack.c.b16 %v2496, %v2496
      %vm2561 = vcmask 60416
      %2562 = vst.msk [vmem:[%s231] sm:$0xf] %vm2561, %v2497
      %2563 = vst.msk [vmem:[%s231 + $0x4] sm:$0xf] %vm2561, %v2498
      %2564 = vst.msk [vmem:[%s231 + $0x8] sm:$0xf] %vm2561, %v2499
      %2565 = vst.msk [vmem:[%s231 + $0xc] sm:$0xf] %vm2561, %v2500
      %2566 = vst.msk [vmem:[%s231 + $0x10] sm:$0xf] %vm2561, %v2501
      %2567 = vst.msk [vmem:[%s231 + $0x14] sm:$0xf] %vm2561, %v2502
      %2568 = vst.msk [vmem:[%s231 + $0x18] sm:$0xf] %vm2561, %v2503
      %2569 = vst.msk [vmem:[%s231 + $0x1c] sm:$0xf] %vm2561, %v2504
      %2570 = vst.msk [vmem:[%s231 + $0x20] sm:$0xf] %vm2561, %v2505
      %2571 = vst.msk [vmem:[%s231 + $0x24] sm:$0xf] %vm2561, %v2506
      %2572 = vst.msk [vmem:[%s231 + $0x28] sm:$0xf] %vm2561, %v2507
      %2573 = vst.msk [vmem:[%s231 + $0x2c] sm:$0xf] %vm2561, %v2508
      %2574 = vst.msk [vmem:[%s231 + $0x30] sm:$0xf] %vm2561, %v2509
      %2575 = vst.msk [vmem:[%s231 + $0x34] sm:$0xf] %vm2561, %v2510
      %2576 = vst.msk [vmem:[%s231 + $0x38] sm:$0xf] %vm2561, %v2511
      %2577 = vst.msk [vmem:[%s231 + $0x3c] sm:$0xf] %vm2561, %v2512
      %2578 = vst.msk [vmem:[%s231 + $0x40] sm:$0xf] %vm2561, %v2513
      %2579 = vst.msk [vmem:[%s231 + $0x44] sm:$0xf] %vm2561, %v2514
      %2580 = vst.msk [vmem:[%s231 + $0x48] sm:$0xf] %vm2561, %v2515
      %2581 = vst.msk [vmem:[%s231 + $0x4c] sm:$0xf] %vm2561, %v2516
      %2582 = vst.msk [vmem:[%s231 + $0x50] sm:$0xf] %vm2561, %v2517
      %2583 = vst.msk [vmem:[%s231 + $0x54] sm:$0xf] %vm2561, %v2518
      %2584 = vst.msk [vmem:[%s231 + $0x58] sm:$0xf] %vm2561, %v2519
      %2585 = vst.msk [vmem:[%s231 + $0x5c] sm:$0xf] %vm2561, %v2520
      %2586 = vst.msk [vmem:[%s231 + $0x60] sm:$0xf] %vm2561, %v2521
      %2587 = vst.msk [vmem:[%s231 + $0x64] sm:$0xf] %vm2561, %v2522
      %2588 = vst.msk [vmem:[%s231 + $0x68] sm:$0xf] %vm2561, %v2523
      %2589 = vst.msk [vmem:[%s231 + $0x6c] sm:$0xf] %vm2561, %v2524
      %2590 = vst.msk [vmem:[%s231 + $0x70] sm:$0xf] %vm2561, %v2525
      %2591 = vst.msk [vmem:[%s231 + $0x74] sm:$0xf] %vm2561, %v2526
      %2592 = vst.msk [vmem:[%s231 + $0x78] sm:$0xf] %vm2561, %v2527
      %2593 = vst.msk [vmem:[%s231 + $0x7c] sm:$0xf] %vm2561, %v2528
      %v2594 = vsel %vm411, %v2401, 0.0
      %v2595 = vsel %vm411, %v2402, 0.0
      %v2596 = vadd.f32 %v2594, %v2595
      %v2597 = vsel %vm411, %v2403, 0.0
      %v2598 = vadd.f32 %v2596, %v2597
      %v2599 = vsel %vm411, %v2404, 0.0
      %v2600 = vadd.f32 %v2598, %v2599
      %v2601 = vsel %vm411, %v2405, 0.0
      %v2602 = vadd.f32 %v2600, %v2601
      %v2603 = vsel %vm411, %v2406, 0.0
      %v2604 = vadd.f32 %v2602, %v2603
      %v2605 = vsel %vm411, %v2407, 0.0
      %v2606 = vadd.f32 %v2604, %v2605
      %v2607 = vsel %vm411, %v2408, 0.0
      %v2608 = vadd.f32 %v2606, %v2607
      %v2609 = vsel %vm411, %v2409, 0.0
      %v2610 = vadd.f32 %v2608, %v2609
      %v2611 = vsel %vm411, %v2410, 0.0
      %v2612 = vadd.f32 %v2610, %v2611
      %v2613 = vsel %vm411, %v2411, 0.0
      %v2614 = vadd.f32 %v2612, %v2613
      %v2615 = vsel %vm411, %v2412, 0.0
      %v2616 = vadd.f32 %v2614, %v2615
      %v2617 = vsel %vm411, %v2413, 0.0
      %v2618 = vadd.f32 %v2616, %v2617
      %v2619 = vsel %vm411, %v2414, 0.0
      %v2620 = vadd.f32 %v2618, %v2619
      %v2621 = vsel %vm411, %v2415, 0.0
      %v2622 = vadd.f32 %v2620, %v2621
      %v2623 = vsel %vm411, %v2416, 0.0
      %v2624 = vadd.f32 %v2622, %v2623
      %v2625 = vsel %vm411, %v2417, 0.0
      %v2626 = vadd.f32 %v2624, %v2625
      %v2627 = vsel %vm411, %v2418, 0.0
      %v2628 = vadd.f32 %v2626, %v2627
      %v2629 = vsel %vm411, %v2419, 0.0
      %v2630 = vadd.f32 %v2628, %v2629
      %v2631 = vsel %vm411, %v2420, 0.0
      %v2632 = vadd.f32 %v2630, %v2631
      %v2633 = vsel %vm411, %v2421, 0.0
      %v2634 = vadd.f32 %v2632, %v2633
      %v2635 = vsel %vm411, %v2422, 0.0
      %v2636 = vadd.f32 %v2634, %v2635
      %v2637 = vsel %vm411, %v2423, 0.0
      %v2638 = vadd.f32 %v2636, %v2637
      %v2639 = vsel %vm411, %v2424, 0.0
      %v2640 = vadd.f32 %v2638, %v2639
      %v2641 = vsel %vm411, %v2425, 0.0
      %v2642 = vadd.f32 %v2640, %v2641
      %v2643 = vsel %vm411, %v2426, 0.0
      %v2644 = vadd.f32 %v2642, %v2643
      %v2645 = vsel %vm411, %v2427, 0.0
      %v2646 = vadd.f32 %v2644, %v2645
      %v2647 = vsel %vm411, %v2428, 0.0
      %v2648 = vadd.f32 %v2646, %v2647
      %v2649 = vsel %vm411, %v2429, 0.0
      %v2650 = vadd.f32 %v2648, %v2649
      %v2651 = vsel %vm411, %v2430, 0.0
      %v2652 = vadd.f32 %v2650, %v2651
      %v2653 = vsel %vm411, %v2431, 0.0
      %v2654 = vadd.f32 %v2652, %v2653
      %v2655 = vsel %vm411, %v2432, 0.0
      %v2656 = vadd.f32 %v2654, %v2655
      %v2657 = vrot.slane %v2656, 4
      %v2658 = vadd.f32 %v2656, %v2657
      %v2659 = vrot.slane %v2658, 2
      %v2660 = vadd.f32 %v2658, %v2659
      %v2661 = vrot.slane %v2660, 1
      %v2662 = vadd.f32 %v2660, %v2661
      %2663 = vst.msk [vmem:[%s235] sm:$0x1] %vm420, %v2662
      %v2664 = vmul.f32 %v2401, %v2401
      %v2665 = vmul.f32 %v2402, %v2402
      %v2666 = vmul.f32 %v2403, %v2403
      %v2667 = vmul.f32 %v2404, %v2404
      %v2668 = vmul.f32 %v2405, %v2405
      %v2669 = vmul.f32 %v2406, %v2406
      %v2670 = vmul.f32 %v2407, %v2407
      %v2671 = vmul.f32 %v2408, %v2408
      %v2672 = vmul.f32 %v2409, %v2409
      %v2673 = vmul.f32 %v2410, %v2410
      %v2674 = vmul.f32 %v2411, %v2411
      %v2675 = vmul.f32 %v2412, %v2412
      %v2676 = vmul.f32 %v2413, %v2413
      %v2677 = vmul.f32 %v2414, %v2414
      %v2678 = vmul.f32 %v2415, %v2415
      %v2679 = vmul.f32 %v2416, %v2416
      %v2680 = vmul.f32 %v2417, %v2417
      %v2681 = vmul.f32 %v2418, %v2418
      %v2682 = vmul.f32 %v2419, %v2419
      %v2683 = vmul.f32 %v2420, %v2420
      %v2684 = vmul.f32 %v2421, %v2421
      %v2685 = vmul.f32 %v2422, %v2422
      %v2686 = vmul.f32 %v2423, %v2423
      %v2687 = vmul.f32 %v2424, %v2424
      %v2688 = vmul.f32 %v2425, %v2425
      %v2689 = vmul.f32 %v2426, %v2426
      %v2690 = vmul.f32 %v2427, %v2427
      %v2691 = vmul.f32 %v2428, %v2428
      %v2692 = vmul.f32 %v2429, %v2429
      %v2693 = vmul.f32 %v2430, %v2430
      %v2694 = vmul.f32 %v2431, %v2431
      %v2695 = vmul.f32 %v2432, %v2432
      %v2696 = vsel %vm411, %v2664, 0.0
      %v2697 = vsel %vm411, %v2665, 0.0
      %v2698 = vadd.f32 %v2696, %v2697
      %v2699 = vsel %vm411, %v2666, 0.0
      %v2700 = vadd.f32 %v2698, %v2699
      %v2701 = vsel %vm411, %v2667, 0.0
      %v2702 = vadd.f32 %v2700, %v2701
      %v2703 = vsel %vm411, %v2668, 0.0
      %v2704 = vadd.f32 %v2702, %v2703
      %v2705 = vsel %vm411, %v2669, 0.0
      %v2706 = vadd.f32 %v2704, %v2705
      %v2707 = vsel %vm411, %v2670, 0.0
      %v2708 = vadd.f32 %v2706, %v2707
      %v2709 = vsel %vm411, %v2671, 0.0
      %v2710 = vadd.f32 %v2708, %v2709
      %v2711 = vsel %vm411, %v2672, 0.0
      %v2712 = vadd.f32 %v2710, %v2711
      %v2713 = vsel %vm411, %v2673, 0.0
      %v2714 = vadd.f32 %v2712, %v2713
      %v2715 = vsel %vm411, %v2674, 0.0
      %v2716 = vadd.f32 %v2714, %v2715
      %v2717 = vsel %vm411, %v2675, 0.0
      %v2718 = vadd.f32 %v2716, %v2717
      %v2719 = vsel %vm411, %v2676, 0.0
      %v2720 = vadd.f32 %v2718, %v2719
      %v2721 = vsel %vm411, %v2677, 0.0
      %v2722 = vadd.f32 %v2720, %v2721
      %v2723 = vsel %vm411, %v2678, 0.0
      %v2724 = vadd.f32 %v2722, %v2723
      %v2725 = vsel %vm411, %v2679, 0.0
      %v2726 = vadd.f32 %v2724, %v2725
      %v2727 = vsel %vm411, %v2680, 0.0
      %v2728 = vadd.f32 %v2726, %v2727
      %v2729 = vsel %vm411, %v2681, 0.0
      %v2730 = vadd.f32 %v2728, %v2729
      %v2731 = vsel %vm411, %v2682, 0.0
      %v2732 = vadd.f32 %v2730, %v2731
      %v2733 = vsel %vm411, %v2683, 0.0
      %v2734 = vadd.f32 %v2732, %v2733
      %v2735 = vsel %vm411, %v2684, 0.0
      %v2736 = vadd.f32 %v2734, %v2735
      %v2737 = vsel %vm411, %v2685, 0.0
      %v2738 = vadd.f32 %v2736, %v2737
      %v2739 = vsel %vm411, %v2686, 0.0
      %v2740 = vadd.f32 %v2738, %v2739
      %v2741 = vsel %vm411, %v2687, 0.0
      %v2742 = vadd.f32 %v2740, %v2741
      %v2743 = vsel %vm411, %v2688, 0.0
      %v2744 = vadd.f32 %v2742, %v2743
      %v2745 = vsel %vm411, %v2689, 0.0
      %v2746 = vadd.f32 %v2744, %v2745
      %v2747 = vsel %vm411, %v2690, 0.0
      %v2748 = vadd.f32 %v2746, %v2747
      %v2749 = vsel %vm411, %v2691, 0.0
      %v2750 = vadd.f32 %v2748, %v2749
      %v2751 = vsel %vm411, %v2692, 0.0
      %v2752 = vadd.f32 %v2750, %v2751
      %v2753 = vsel %vm411, %v2693, 0.0
      %v2754 = vadd.f32 %v2752, %v2753
      %v2755 = vsel %vm411, %v2694, 0.0
      %v2756 = vadd.f32 %v2754, %v2755
      %v2757 = vsel %vm411, %v2695, 0.0
      %v2758 = vadd.f32 %v2756, %v2757
      %v2759 = vrot.slane %v2758, 4
      %v2760 = vadd.f32 %v2758, %v2759
      %v2761 = vrot.slane %v2760, 2
      %v2762 = vadd.f32 %v2760, %v2761
      %v2763 = vrot.slane %v2762, 1
      %v2764 = vadd.f32 %v2762, %v2763
      %2765 = vst.msk [vmem:[%s235 + $0x1] sm:$0x1] %vm420, %v2764
      %p2766 = scmp.lt.s32.totalorder %s17, 1
      %s2767 = scalar_select %p2766, %s17, 1
      %s2768 = smul.addr %s2767, 32
      %s2769 = smul.addr %s2768, 4
      %s2770 = scalar_lea.vmem %s4, %s2769
      %p2771 = scmp.lt.s32.totalorder %s17, 1
      %s2772 = scalar_select %p2771, %s17, 1
      %s2773 = smul.addr %s2772, 2
      %s2774 = scalar_lea.vmem %s5, %s2773
      // Predicated region
      $region37: #{conv_block_forward.4} parent=35 // pred_check
        %p2775 = pneg %p124
      $region38: #{conv_block_forward.4} parent=35 // pred_check_branch
        %2777 = sbr.rel (%p2775) target = $region40
      $region39: #{conv_block_forward.4} parent=35 // pred_region
        _
      $region40: #{conv_block_forward.4} parent=35 // pred_fallthru
        _
      // Predicated region
      $region41: #{conv_block_forward.4} parent=35 // pred_check
        %p2778 = pneg %p150
      $region42: #{conv_block_forward.4} parent=35 // pred_check_branch
        %2780 = sbr.rel (%p2778) target = $region44
      $region43: #{conv_block_forward.4} parent=35 // pred_region
        _
      $region44: #{conv_block_forward.4} parent=35 // pred_fallthru
        _
    $region36: #{conv_block_forward.4} parent=5 // pred_fallthru
      _
    %p2781 = scmp.le.s32.totalorder 2, %s12
    // Predicated region
    $region45: #{conv_block_forward.4} parent=5 // pred_check
      %p2782 = pneg %p2781
    $region46: #{conv_block_forward.4} parent=5 // pred_check_branch
      %2784 = sbr.rel (%p2782) target = $region48
    $region47: #{conv_block_forward.4} parent=5 // pred_region
      %s2785 = ssub.s32 %s12, 2
      // Predicated region
      $region49: #{conv_block_forward.4} parent=47 // pred_check
        %p2786 = pneg %p130
      $region50: #{conv_block_forward.4} parent=47 // pred_check_branch
        %2788 = sbr.rel (%p2786) target = $region52
      $region51: #{conv_block_forward.4} parent=47 // pred_region
        %p2789 = scmp.lt.s32.totalorder %s18, 1
        %s2790 = scalar_select %p2789, %s18, 1
        %s2791 = smul.addr %s2790, 32
        %s2792 = smul.addr %s2791, 4
        %s2793 = scalar_lea.vmem %s4, %s2792
      $region52: #{conv_block_forward.4} parent=47 // pred_fallthru
        _
      // Predicated region
      $region53: #{conv_block_forward.4} parent=47 // pred_check
        %p2794 = pneg %p156
      $region54: #{conv_block_forward.4} parent=47 // pred_check_branch
        %2796 = sbr.rel (%p2794) target = $region56
      $region55: #{conv_block_forward.4} parent=47 // pred_region
        %p2797 = scmp.lt.s32.totalorder %s18, 1
        %s2798 = scalar_select %p2797, %s18, 1
        %s2799 = smul.addr %s2798, 2
        %s2800 = scalar_lea.vmem %s5, %s2799
      $region56: #{conv_block_forward.4} parent=47 // pred_fallthru
        _
    $region48: #{conv_block_forward.4} parent=5 // pred_fallthru
      _
  $region6: #{conv_block_forward.4} parent=0 // loop_footer
    %s16 = sadd.s32 1, %s12
  $region7: #{conv_block_forward.4} parent=0 // loop_footer_branch
    %11 = sbr.rel target = $region3
  $region8: #{conv_block_forward.4} parent=0 // loop_exit
    _

</llo_original>
